<compile_context>
chip_gen: v5e
topology: v5e:2x2
jax: 0.10.0
libtpu: 0.0.40
codegen_flags: <defaults>
</compile_context>

<pallas_src>
import functools
import math

import jax
import jax.numpy as jnp
from jax import lax
from jax.experimental import pallas as pl
from jax.experimental.pallas import tpu as pltpu


# ----------------------------------------------------------------------------
# Kernel bodies
# ----------------------------------------------------------------------------

def _attention_core(qkv_ref, wo_ref, bo_ref, out_ref, attn_ref, *, num_heads, d_k):
    """qkv_ref: (S, 3*D) bf16 VMEM scratch (1/sqrt(d_k) already folded into the q slice).

    Per head (h small & static -> unrolled Python loop):
      s    = q_h @ k_h^T              (dot_general contracting d_k of both operands)
      p    = softmax(s)               (exact 1/l; returned attn map tracks torch softmax)
      out += (p @ v_h) @ Wo[h*d_k:(h+1)*d_k, :]   (per-head fused output projection;
                                                   lane-dense (S,128) accumulation,
                                                   no masked 32-lane stores, no scratch)
    """
    bf16 = jnp.bfloat16
    f32 = jnp.float32
    d_model = num_heads * d_k
    for hd in range(num_heads):                     # static -> unrolled
        lo = hd * d_k
        # TODO(synk): the 32-lane head slices (offsets 0/32/64/96) each cost an XLU
        # relayout; a head-batched dot_general would trim this, but it is hidden under
        # HBM at these shapes (review item 4: minor).
        qh = qkv_ref[:, lo:lo + d_k]                                  # (S, d_k) bf16
        kh = qkv_ref[:, d_model + lo:d_model + lo + d_k]
        vh = qkv_ref[:, 2 * d_model + lo:2 * d_model + lo + d_k]
        # A @ B^T form: contract d_k of both operands directly -> MXU, no K transpose.
        s = lax.dot_general(qh, kh, (((1,), (1,)), ((), ())),
                            preferred_element_type=f32)               # (S, S) f32
        m = jnp.max(s, axis=-1, keepdims=True)
        e = jnp.exp(s - m)
        l = jnp.sum(e, axis=-1, keepdims=True)
        p = (e * (1.0 / l)).astype(bf16)                              # (S, S) bf16
        attn_ref[hd] = p.astype(attn_ref.dtype)       # bf16 store: halves attn HBM bytes
        oh = jnp.dot(p, vh, preferred_element_type=f32)               # (S, d_k) f32
        contrib = jnp.dot(oh.astype(bf16), wo_ref[lo:lo + d_k, :],
                          preferred_element_type=f32)                 # (S, D) lane-dense
        if hd == 0:
            out_ref[...] = contrib + bo_ref[...]
        else:
            out_ref[...] += contrib


def _mha_self_kernel(x_ref, wqkv_ref, bqkv_ref, wo_ref, bo_ref,
                     out_ref, attn_ref, qkv_ref, *, num_heads, d_k):
    """Self-attention fast path: one fused (D, 3D) QKV projection, staged in VMEM."""
    bf16 = jnp.bfloat16
    f32 = jnp.float32
    qkv_ref[...] = (jnp.dot(x_ref[...].astype(bf16), wqkv_ref[...],
                            preferred_element_type=f32) + bqkv_ref[...]).astype(bf16)
    _attention_core(qkv_ref, wo_ref, bo_ref, out_ref, attn_ref,
                    num_heads=num_heads, d_k=d_k)


def _mha_kernel(q_ref, k_ref, v_ref,
                wq_ref, bq_ref, wk_ref, bk_ref, wv_ref, bv_ref, wo_ref, bo_ref,
                out_ref, attn_ref, qkv_ref, *, num_heads, d_k):
    """General path (distinct query / key / value tensors) — still one launch per batch."""
    bf16 = jnp.bfloat16
    f32 = jnp.float32
    D = num_heads * d_k
    # 128-aligned lane-dense stores into the qkv staging scratch.
    qkv_ref[:, 0:D] = (jnp.dot(q_ref[...].astype(bf16), wq_ref[...],
                               preferred_element_type=f32) + bq_ref[...]).astype(bf16)
    qkv_ref[:, D:2 * D] = (jnp.dot(k_ref[...].astype(bf16), wk_ref[...],
                                   preferred_element_type=f32) + bk_ref[...]).astype(bf16)
    qkv_ref[:, 2 * D:3 * D] = (jnp.dot(v_ref[...].astype(bf16), wv_ref[...],
                                       preferred_element_type=f32) + bv_ref[...]).astype(bf16)
    _attention_core(qkv_ref, wo_ref, bo_ref, out_ref, attn_ref,
                    num_heads=num_heads, d_k=d_k)


# ----------------------------------------------------------------------------
# Public wrapper (matches torch MultiHeadedAttention.forward with mask=None)
# ----------------------------------------------------------------------------

def multi_head_attention(query, key, value, params, *, num_heads=4,
                         attn_dtype=jnp.bfloat16):
    """query/key/value: (B, S, D) f32.

    Returns (out (B,S,D) f32, attn_map (B,h,S,S) attn_dtype).  attn_dtype defaults to
    bfloat16 (the attention-map writeback dominates HBM traffic in this mem-bound
    kernel); pass attn_dtype=jnp.float32 for a full-precision map.
    """
    B, S, D = query.shape
    assert D % num_heads == 0
    d_k = D // num_heads
    scale = 1.0 / math.sqrt(d_k)
    bf16 = jnp.bfloat16
    f32 = jnp.float32

    # Parameters are stored as (in, out) so the kernel does x @ W + b
    # (torch's nn.Linear stores (out, in) and computes x @ W.T + b).
    # Fold the 1/sqrt(d_k) scale into Wq / bq; cast weights to bf16 (halves weight DMA).
    wq = (params["wq"] * scale).astype(bf16)
    bq = (params["bq"] * scale).astype(f32).reshape(1, D)
    wk = params["wk"].astype(bf16)
    bk = params["bk"].astype(f32).reshape(1, D)
    wv = params["wv"].astype(bf16)
    bv = params["bv"].astype(f32).reshape(1, D)
    wo = params["wo"].astype(bf16)
    bo = params["bo"].astype(f32).reshape(1, D)

    out_shapes = (jax.ShapeDtypeStruct((B, S, D), f32),
                  jax.ShapeDtypeStruct((B, num_heads, S, S), attn_dtype))
    x_spec = pl.BlockSpec((pl.Squeezed(), S, D), lambda b: (b, 0, 0))
    out_specs = [pl.BlockSpec((pl.Squeezed(), S, D), lambda b: (b, 0, 0)),
                 pl.BlockSpec((pl.Squeezed(), num_heads, S, S),
                              lambda b: (b, 0, 0, 0))]
    # qkv staging scratch (bf16): keeps the projected q/k/v out of vregs across the
    # unrolled head loop (each head's (S,S) f32 score tile already needs 64 vregs).
    scratch = [pltpu.VMEM((S, 3 * D), bf16)]
    cparams = pltpu.CompilerParams(dimension_semantics=("parallel",))

    def rep(shape):                                          # grid-invariant operand
        nd = len(shape)
        return pl.BlockSpec(shape, lambda b: (0,) * nd)

    # NOTE: the fast path is dispatched on Python object identity (resolved at trace
    # time); numerically-identical but distinct arrays fall back to the general path.
    if (query is key) and (key is value):
        # Self-attention (the module's actual use in tbsrn): fused QKV projection.
        wqkv = jnp.concatenate([wq, wk, wv], axis=1)         # (D, 3D) bf16
        bqkv = jnp.concatenate([bq, bk, bv], axis=1)         # (1, 3D) f32
        kernel = functools.partial(_mha_self_kernel, num_heads=num_heads, d_k=d_k)
        out, attn = pl.pallas_call(
            kernel,
            out_shape=out_shapes,
            grid_spec=pltpu.PrefetchScalarGridSpec(
                num_scalar_prefetch=0, grid=(B,),
                in_specs=[x_spec,
                          rep((D, 3 * D)), rep((1, 3 * D)),
                          rep((D, D)), rep((1, D))],
                out_specs=out_specs,
                scratch_shapes=scratch),
            compiler_params=cparams,
        )(query, wqkv, bqkv, wo, bo)
    else:
        kernel = functools.partial(_mha_kernel, num_heads=num_heads, d_k=d_k)
        out, attn = pl.pallas_call(
            kernel,
            out_shape=out_shapes,
            grid_spec=pltpu.PrefetchScalarGridSpec(
                num_scalar_prefetch=0, grid=(B,),
                in_specs=[x_spec, x_spec, x_spec,
                          rep((D, D)), rep((1, D)),
                          rep((D, D)), rep((1, D)),
                          rep((D, D)), rep((1, D)),
                          rep((D, D)), rep((1, D))],
                out_specs=out_specs,
                scratch_shapes=scratch),
            compiler_params=cparams,
        )(query, key, value, wq, bq, wk, bk, wv, bv, wo, bo)
    # TODO(synk): add a query-tile grid axis for long sequences.  The double-buffered
    # attn block is H*S^2*bytes*2: with bf16 that is ~8 MiB at S=1024, which is fine on
    # v5e/v6e (128 MiB VMEM) but hits v7x's 32 MiB scoped default around S~2048, i.e.
    # the threshold triggers ~2x earlier on v7x (64 MiB physical) than on v5e/v6e.
    # At the module's S=H*W=256 the whole per-batch block comfortably fits everywhere.
    return out, attn


# ----------------------------------------------------------------------------
# Pure-JAX reference (f32) for a loose numerical sanity check
# ----------------------------------------------------------------------------

def _mha_reference(query, key, value, params, num_heads):
    B, S, D = query.shape
    d_k = D // num_heads

    def proj(x, w, b):
        y = x @ w + b
        return y.reshape(B, S, num_heads, d_k).transpose(0, 2, 1, 3)

    q = proj(query, params["wq"], params["bq"])
    k = proj(key, params["wk"], params["bk"])
    v = proj(value, params["wv"], params["bv"])
    s = jnp.einsum("bhqd,bhkd->bhqk", q, k) / math.sqrt(d_k)
    p = jax.nn.softmax(s, axis=-1)
    o = jnp.einsum("bhqk,bhkd->bhqd", p, v)
    o = o.transpose(0, 2, 1, 3).reshape(B, S, D)
    return o @ params["wo"] + params["bo"], p


# ----------------------------------------------------------------------------
# Main
# ----------------------------------------------------------------------------

if __name__ == "__main__":
    B, S, D, H = 2, 256, 128, 4        # d_model=128, h=4 (as wired in the tbsrn model)

    key = jax.random.PRNGKey(0)
    kx, *kw = jax.random.split(key, 10)

    def w(k, *shape, s=0.05):
        return s * jax.random.normal(k, shape, jnp.float32)

    params = dict(
        wq=w(kw[0], D, D), bq=w(kw[1], D, s=0.01),
        wk=w(kw[2], D, D), bk=w(kw[3], D, s=0.01),
        wv=w(kw[4], D, D), bv=w(kw[5], D, s=0.01),
        wo=w(kw[6], D, D), bo=w(kw[7], D, s=0.01),
    )
    x = jax.random.normal(kx, (B, S, D), jnp.float32)

    # Self-attention call (query = key = value), matching how the module is used.
    fwd = jax.jit(lambda xx, pp: multi_head_attention(xx, xx, xx, pp, num_heads=H))
    out, attn = fwd(x, params)
    jax.block_until_ready((out, attn))

    assert out.shape == (B, S, D) and out.dtype == jnp.float32
    assert attn.shape == (B, H, S, S) and attn.dtype == jnp.bfloat16

    # Loose tolerances: kernel uses bf16 MXU operands and a bf16 attention map.
    ref_out, ref_attn = _mha_reference(x, x, x, params, H)
    assert float(jnp.max(jnp.abs(out - ref_out))) < 5e-2
    assert float(jnp.max(jnp.abs(attn.astype(jnp.float32) - ref_attn))) < 2e-2

    print("KERNEL_OK")
</pallas_src>

<mosaic_0001>
module attributes {stable_mosaic.version = 11 : i64} {
  func.func @_mha_self_kernel(%arg0: i32, %arg1: memref<1x256x128xf32, #tpu.memory_space<vmem>>, %arg2: memref<128x384xbf16, #tpu.memory_space<vmem>>, %arg3: memref<1x384xf32, #tpu.memory_space<vmem>>, %arg4: memref<128x128xbf16, #tpu.memory_space<vmem>>, %arg5: memref<1x128xf32, #tpu.memory_space<vmem>>, %arg6: memref<1x256x128xf32, #tpu.memory_space<vmem>>, %arg7: memref<1x4x256x256xbf16, #tpu.memory_space<vmem>>, %arg8: memref<256x384xbf16, #tpu.memory_space<vmem>>) attributes {dimension_semantics = [#tpu.dimension_semantics<parallel>], iteration_bounds = array<i64: 2>, scalar_prefetch = 0 : i64, scratch_operands = 1 : i64, tpu.core_type = #tpu.core_type<tc>, window_params = [{transform_indices = @transform_0, window_bounds = array<i64: 1, 256, 128>}, {pipeline_mode = #tpu.pipeline_mode<synchronous>, transform_indices = @transform_1, window_bounds = array<i64: 128, 384>}, {pipeline_mode = #tpu.pipeline_mode<synchronous>, transform_indices = @transform_2, window_bounds = array<i64: 1, 384>}, {pipeline_mode = #tpu.pipeline_mode<synchronous>, transform_indices = @transform_3, window_bounds = array<i64: 128, 128>}, {pipeline_mode = #tpu.pipeline_mode<synchronous>, transform_indices = @transform_4, window_bounds = array<i64: 1, 128>}, {transform_indices = @transform_5, window_bounds = array<i64: 1, 256, 128>}, {transform_indices = @transform_6, window_bounds = array<i64: 1, 4, 256, 256>}]} {
    %c0 = arith.constant 0 : index
    %c0_0 = arith.constant 0 : index
    %c0_1 = arith.constant 0 : index
    %0 = vector.load %arg1[%c0, %c0_0, %c0_1] : memref<1x256x128xf32, #tpu.memory_space<vmem>>, vector<1x256x128xf32>
    %1 = vector.shape_cast %0 : vector<1x256x128xf32> to vector<256x128xf32>
    %2 = arith.truncf %1 : vector<256x128xf32> to vector<256x128xbf16>
    %c0_2 = arith.constant 0 : index
    %c0_3 = arith.constant 0 : index
    %3 = vector.load %arg2[%c0_2, %c0_3] : memref<128x384xbf16, #tpu.memory_space<vmem>>, vector<128x384xbf16>
    %cst = arith.constant dense<0.000000e+00> : vector<256x384xf32>
    %4 = tpu.matmul %2, %3, %cst {dimension_numbers = #tpu.dot_dimension_numbers<[1], [0], [0], [1], [0, 0, 1, 1], [], []>} : vector<256x128xbf16>, vector<128x384xbf16>, vector<256x384xf32> -> vector<256x384xf32>
    %c0_4 = arith.constant 0 : index
    %c0_5 = arith.constant 0 : index
    %5 = vector.load %arg3[%c0_4, %c0_5] : memref<1x384xf32, #tpu.memory_space<vmem>>, vector<1x384xf32>
    %6 = vector.broadcast %5 : vector<1x384xf32> to vector<256x384xf32>
    %7 = arith.addf %4, %6 : vector<256x384xf32>
    %8 = arith.truncf %7 : vector<256x384xf32> to vector<256x384xbf16>
    %c0_6 = arith.constant 0 : index
    %c0_7 = arith.constant 0 : index
    %9 = vector.load %arg8[%c0_6, %c0_7] : memref<256x384xbf16, #tpu.memory_space<vmem>>, vector<256x384xbf16>
    tpu.vector_store %arg8[%c0_6, %c0_7], %8 {strides = array<i32>} : memref<256x384xbf16, #tpu.memory_space<vmem>>, vector<256x384xbf16>,
    %c0_8 = arith.constant 0 : index
    %c0_9 = arith.constant 0 : index
    %10 = vector.load %arg8[%c0_8, %c0_9] : memref<256x384xbf16, #tpu.memory_space<vmem>>, vector<256x32xbf16>
    %c0_10 = arith.constant 0 : index
    %c128 = arith.constant 128 : index
    %11 = vector.load %arg8[%c0_10, %c128] : memref<256x384xbf16, #tpu.memory_space<vmem>>, vector<256x32xbf16>
    %c0_11 = arith.constant 0 : index
    %c256 = arith.constant 256 : index
    %12 = vector.load %arg8[%c0_11, %c256] : memref<256x384xbf16, #tpu.memory_space<vmem>>, vector<256x32xbf16>
    %cst_12 = arith.constant dense<0.000000e+00> : vector<256x256xf32>
    %13 = tpu.matmul %10, %11, %cst_12 {dimension_numbers = #tpu.dot_dimension_numbers<[1], [1], [0], [0], [0, 0, 1, 0], [], []>} : vector<256x32xbf16>, vector<256x32xbf16>, vector<256x256xf32> -> vector<256x256xf32>
    %cst_13 = arith.constant dense<0xFF800000> : vector<256xf32>
    %14 = vector.multi_reduction <maximumf>, %13, %cst_13 [1] : vector<256x256xf32> to vector<256xf32>
    %15 = vector.shape_cast %14 : vector<256xf32> to vector<256x1xf32>
    %16 = vector.broadcast %15 : vector<256x1xf32> to vector<256x256xf32>
    %17 = arith.subf %13, %16 : vector<256x256xf32>
    %18 = math.exp %17 : vector<256x256xf32>
    %cst_14 = arith.constant dense<0.000000e+00> : vector<256xf32>
    %19 = vector.multi_reduction <add>, %18, %cst_14 [1] : vector<256x256xf32> to vector<256xf32>
    %20 = vector.shape_cast %19 : vector<256xf32> to vector<256x1xf32>
    %cst_15 = arith.constant 1.000000e+00 : f32
    %21 = vector.broadcast %cst_15 : f32 to vector<256x1xf32>
    %22 = arith.divf %21, %20 : vector<256x1xf32>
    %23 = vector.broadcast %22 : vector<256x1xf32> to vector<256x256xf32>
    %24 = arith.mulf %18, %23 : vector<256x256xf32>
    %25 = arith.truncf %24 : vector<256x256xf32> to vector<256x256xbf16>
    %c0_16 = arith.constant 0 : index
    %c0_17 = arith.constant 0 : index
    %c0_18 = arith.constant 0 : index
    %c0_19 = arith.constant 0 : index
    %26 = vector.load %arg7[%c0_16, %c0_17, %c0_18, %c0_19] : memref<1x4x256x256xbf16, #tpu.memory_space<vmem>>, vector<1x1x256x256xbf16>
    %27 = vector.shape_cast %26 : vector<1x1x256x256xbf16> to vector<256x256xbf16>
    %28 = vector.shape_cast %25 : vector<256x256xbf16> to vector<1x1x256x256xbf16>
    tpu.vector_store %arg7[%c0_16, %c0_17, %c0_18, %c0_19], %28 {strides = array<i32>} : memref<1x4x256x256xbf16, #tpu.memory_space<vmem>>, vector<1x1x256x256xbf16>,
    %cst_20 = arith.constant dense<0.000000e+00> : vector<256x32xf32>
    %29 = tpu.matmul %25, %12, %cst_20 {dimension_numbers = #tpu.dot_dimension_numbers<[1], [0], [0], [1], [0, 0, 1, 1], [], []>} : vector<256x256xbf16>, vector<256x32xbf16>, vector<256x32xf32> -> vector<256x32xf32>
    %30 = arith.truncf %29 : vector<256x32xf32> to vector<256x32xbf16>
    %c0_21 = arith.constant 0 : index
    %c0_22 = arith.constant 0 : index
    %31 = vector.load %arg4[%c0_21, %c0_22] : memref<128x128xbf16, #tpu.memory_space<vmem>>, vector<32x128xbf16>
    %cst_23 = arith.constant dense<0.000000e+00> : vector<256x128xf32>
    %32 = tpu.matmul %30, %31, %cst_23 {dimension_numbers = #tpu.dot_dimension_numbers<[1], [0], [0], [1], [0, 0, 1, 1], [], []>} : vector<256x32xbf16>, vector<32x128xbf16>, vector<256x128xf32> -> vector<256x128xf32>
    %c0_24 = arith.constant 0 : index
    %c0_25 = arith.constant 0 : index
    %33 = vector.load %arg5[%c0_24, %c0_25] : memref<1x128xf32, #tpu.memory_space<vmem>>, vector<1x128xf32>
    %34 = vector.broadcast %33 : vector<1x128xf32> to vector<256x128xf32>
    %35 = arith.addf %32, %34 : vector<256x128xf32>
    %c0_26 = arith.constant 0 : index
    %c0_27 = arith.constant 0 : index
    %c0_28 = arith.constant 0 : index
    %36 = vector.load %arg6[%c0_26, %c0_27, %c0_28] : memref<1x256x128xf32, #tpu.memory_space<vmem>>, vector<1x256x128xf32>
    %37 = vector.shape_cast %36 : vector<1x256x128xf32> to vector<256x128xf32>
    %38 = vector.shape_cast %35 : vector<256x128xf32> to vector<1x256x128xf32>
    tpu.vector_store %arg6[%c0_26, %c0_27, %c0_28], %38 {strides = array<i32>} : memref<1x256x128xf32, #tpu.memory_space<vmem>>, vector<1x256x128xf32>,
    %c0_29 = arith.constant 0 : index
    %c32 = arith.constant 32 : index
    %39 = vector.load %arg8[%c0_29, %c32] : memref<256x384xbf16, #tpu.memory_space<vmem>>, vector<256x32xbf16>
    %c0_30 = arith.constant 0 : index
    %c160 = arith.constant 160 : index
    %40 = vector.load %arg8[%c0_30, %c160] : memref<256x384xbf16, #tpu.memory_space<vmem>>, vector<256x32xbf16>
    %c0_31 = arith.constant 0 : index
    %c288 = arith.constant 288 : index
    %41 = vector.load %arg8[%c0_31, %c288] : memref<256x384xbf16, #tpu.memory_space<vmem>>, vector<256x32xbf16>
    %cst_32 = arith.constant dense<0.000000e+00> : vector<256x256xf32>
    %42 = tpu.matmul %39, %40, %cst_32 {dimension_numbers = #tpu.dot_dimension_numbers<[1], [1], [0], [0], [0, 0, 1, 0], [], []>} : vector<256x32xbf16>, vector<256x32xbf16>, vector<256x256xf32> -> vector<256x256xf32>
    %cst_33 = arith.constant dense<0xFF800000> : vector<256xf32>
    %43 = vector.multi_reduction <maximumf>, %42, %cst_33 [1] : vector<256x256xf32> to vector<256xf32>
    %44 = vector.shape_cast %43 : vector<256xf32> to vector<256x1xf32>
    %45 = vector.broadcast %44 : vector<256x1xf32> to vector<256x256xf32>
    %46 = arith.subf %42, %45 : vector<256x256xf32>
    %47 = math.exp %46 : vector<256x256xf32>
    %cst_34 = arith.constant dense<0.000000e+00> : vector<256xf32>
    %48 = vector.multi_reduction <add>, %47, %cst_34 [1] : vector<256x256xf32> to vector<256xf32>
    %49 = vector.shape_cast %48 : vector<256xf32> to vector<256x1xf32>
    %cst_35 = arith.constant 1.000000e+00 : f32
    %50 = vector.broadcast %cst_35 : f32 to vector<256x1xf32>
    %51 = arith.divf %50, %49 : vector<256x1xf32>
    %52 = vector.broadcast %51 : vector<256x1xf32> to vector<256x256xf32>
    %53 = arith.mulf %47, %52 : vector<256x256xf32>
    %54 = arith.truncf %53 : vector<256x256xf32> to vector<256x256xbf16>
    %c0_36 = arith.constant 0 : index
    %c1 = arith.constant 1 : index
    %c0_37 = arith.constant 0 : index
    %c0_38 = arith.constant 0 : index
    %55 = vector.load %arg7[%c0_36, %c1, %c0_37, %c0_38] : memref<1x4x256x256xbf16, #tpu.memory_space<vmem>>, vector<1x1x256x256xbf16>
    %56 = vector.shape_cast %55 : vector<1x1x256x256xbf16> to vector<256x256xbf16>
    %57 = vector.shape_cast %54 : vector<256x256xbf16> to vector<1x1x256x256xbf16>
    tpu.vector_store %arg7[%c0_36, %c1, %c0_37, %c0_38], %57 {strides = array<i32>} : memref<1x4x256x256xbf16, #tpu.memory_space<vmem>>, vector<1x1x256x256xbf16>,
    %cst_39 = arith.constant dense<0.000000e+00> : vector<256x32xf32>
    %58 = tpu.matmul %54, %41, %cst_39 {dimension_numbers = #tpu.dot_dimension_numbers<[1], [0], [0], [1], [0, 0, 1, 1], [], []>} : vector<256x256xbf16>, vector<256x32xbf16>, vector<256x32xf32> -> vector<256x32xf32>
    %59 = arith.truncf %58 : vector<256x32xf32> to vector<256x32xbf16>
    %c32_40 = arith.constant 32 : index
    %c0_41 = arith.constant 0 : index
    %60 = vector.load %arg4[%c32_40, %c0_41] : memref<128x128xbf16, #tpu.memory_space<vmem>>, vector<32x128xbf16>
    %cst_42 = arith.constant dense<0.000000e+00> : vector<256x128xf32>
    %61 = tpu.matmul %59, %60, %cst_42 {dimension_numbers = #tpu.dot_dimension_numbers<[1], [0], [0], [1], [0, 0, 1, 1], [], []>} : vector<256x32xbf16>, vector<32x128xbf16>, vector<256x128xf32> -> vector<256x128xf32>
    %c0_43 = arith.constant 0 : index
    %c0_44 = arith.constant 0 : index
    %c0_45 = arith.constant 0 : index
    %62 = vector.load %arg6[%c0_43, %c0_44, %c0_45] : memref<1x256x128xf32, #tpu.memory_space<vmem>>, vector<1x256x128xf32>
    %63 = vector.shape_cast %62 : vector<1x256x128xf32> to vector<256x128xf32>
    %64 = arith.addf %63, %61 : vector<256x128xf32>
    %c0_46 = arith.constant 0 : index
    %c0_47 = arith.constant 0 : index
    %c0_48 = arith.constant 0 : index
    %65 = vector.load %arg6[%c0_46, %c0_47, %c0_48] : memref<1x256x128xf32, #tpu.memory_space<vmem>>, vector<1x256x128xf32>
    %66 = vector.shape_cast %65 : vector<1x256x128xf32> to vector<256x128xf32>
    %67 = vector.shape_cast %64 : vector<256x128xf32> to vector<1x256x128xf32>
    tpu.vector_store %arg6[%c0_46, %c0_47, %c0_48], %67 {strides = array<i32>} : memref<1x256x128xf32, #tpu.memory_space<vmem>>, vector<1x256x128xf32>,
    %c0_49 = arith.constant 0 : index
    %c64 = arith.constant 64 : index
    %68 = vector.load %arg8[%c0_49, %c64] : memref<256x384xbf16, #tpu.memory_space<vmem>>, vector<256x32xbf16>
    %c0_50 = arith.constant 0 : index
    %c192 = arith.constant 192 : index
    %69 = vector.load %arg8[%c0_50, %c192] : memref<256x384xbf16, #tpu.memory_space<vmem>>, vector<256x32xbf16>
    %c0_51 = arith.constant 0 : index
    %c320 = arith.constant 320 : index
    %70 = vector.load %arg8[%c0_51, %c320] : memref<256x384xbf16, #tpu.memory_space<vmem>>, vector<256x32xbf16>
    %cst_52 = arith.constant dense<0.000000e+00> : vector<256x256xf32>
    %71 = tpu.matmul %68, %69, %cst_52 {dimension_numbers = #tpu.dot_dimension_numbers<[1], [1], [0], [0], [0, 0, 1, 0], [], []>} : vector<256x32xbf16>, vector<256x32xbf16>, vector<256x256xf32> -> vector<256x256xf32>
    %cst_53 = arith.constant dense<0xFF800000> : vector<256xf32>
    %72 = vector.multi_reduction <maximumf>, %71, %cst_53 [1] : vector<256x256xf32> to vector<256xf32>
    %73 = vector.shape_cast %72 : vector<256xf32> to vector<256x1xf32>
    %74 = vector.broadcast %73 : vector<256x1xf32> to vector<256x256xf32>
    %75 = arith.subf %71, %74 : vector<256x256xf32>
    %76 = math.exp %75 : vector<256x256xf32>
    %cst_54 = arith.constant dense<0.000000e+00> : vector<256xf32>
    %77 = vector.multi_reduction <add>, %76, %cst_54 [1] : vector<256x256xf32> to vector<256xf32>
    %78 = vector.shape_cast %77 : vector<256xf32> to vector<256x1xf32>
    %cst_55 = arith.constant 1.000000e+00 : f32
    %79 = vector.broadcast %cst_55 : f32 to vector<256x1xf32>
    %80 = arith.divf %79, %78 : vector<256x1xf32>
    %81 = vector.broadcast %80 : vector<256x1xf32> to vector<256x256xf32>
    %82 = arith.mulf %76, %81 : vector<256x256xf32>
    %83 = arith.truncf %82 : vector<256x256xf32> to vector<256x256xbf16>
    %c0_56 = arith.constant 0 : index
    %c2 = arith.constant 2 : index
    %c0_57 = arith.constant 0 : index
    %c0_58 = arith.constant 0 : index
    %84 = vector.load %arg7[%c0_56, %c2, %c0_57, %c0_58] : memref<1x4x256x256xbf16, #tpu.memory_space<vmem>>, vector<1x1x256x256xbf16>
    %85 = vector.shape_cast %84 : vector<1x1x256x256xbf16> to vector<256x256xbf16>
    %86 = vector.shape_cast %83 : vector<256x256xbf16> to vector<1x1x256x256xbf16>
    tpu.vector_store %arg7[%c0_56, %c2, %c0_57, %c0_58], %86 {strides = array<i32>} : memref<1x4x256x256xbf16, #tpu.memory_space<vmem>>, vector<1x1x256x256xbf16>,
    %cst_59 = arith.constant dense<0.000000e+00> : vector<256x32xf32>
    %87 = tpu.matmul %83, %70, %cst_59 {dimension_numbers = #tpu.dot_dimension_numbers<[1], [0], [0], [1], [0, 0, 1, 1], [], []>} : vector<256x256xbf16>, vector<256x32xbf16>, vector<256x32xf32> -> vector<256x32xf32>
    %88 = arith.truncf %87 : vector<256x32xf32> to vector<256x32xbf16>
    %c64_60 = arith.constant 64 : index
    %c0_61 = arith.constant 0 : index
    %89 = vector.load %arg4[%c64_60, %c0_61] : memref<128x128xbf16, #tpu.memory_space<vmem>>, vector<32x128xbf16>
    %cst_62 = arith.constant dense<0.000000e+00> : vector<256x128xf32>
    %90 = tpu.matmul %88, %89, %cst_62 {dimension_numbers = #tpu.dot_dimension_numbers<[1], [0], [0], [1], [0, 0, 1, 1], [], []>} : vector<256x32xbf16>, vector<32x128xbf16>, vector<256x128xf32> -> vector<256x128xf32>
    %c0_63 = arith.constant 0 : index
    %c0_64 = arith.constant 0 : index
    %c0_65 = arith.constant 0 : index
    %91 = vector.load %arg6[%c0_63, %c0_64, %c0_65] : memref<1x256x128xf32, #tpu.memory_space<vmem>>, vector<1x256x128xf32>
    %92 = vector.shape_cast %91 : vector<1x256x128xf32> to vector<256x128xf32>
    %93 = arith.addf %92, %90 : vector<256x128xf32>
    %c0_66 = arith.constant 0 : index
    %c0_67 = arith.constant 0 : index
    %c0_68 = arith.constant 0 : index
    %94 = vector.load %arg6[%c0_66, %c0_67, %c0_68] : memref<1x256x128xf32, #tpu.memory_space<vmem>>, vector<1x256x128xf32>
    %95 = vector.shape_cast %94 : vector<1x256x128xf32> to vector<256x128xf32>
    %96 = vector.shape_cast %93 : vector<256x128xf32> to vector<1x256x128xf32>
    tpu.vector_store %arg6[%c0_66, %c0_67, %c0_68], %96 {strides = array<i32>} : memref<1x256x128xf32, #tpu.memory_space<vmem>>, vector<1x256x128xf32>,
    %c0_69 = arith.constant 0 : index
    %c96 = arith.constant 96 : index
    %97 = vector.load %arg8[%c0_69, %c96] : memref<256x384xbf16, #tpu.memory_space<vmem>>, vector<256x32xbf16>
    %c0_70 = arith.constant 0 : index
    %c224 = arith.constant 224 : index
    %98 = vector.load %arg8[%c0_70, %c224] : memref<256x384xbf16, #tpu.memory_space<vmem>>, vector<256x32xbf16>
    %c0_71 = arith.constant 0 : index
    %c352 = arith.constant 352 : index
    %99 = vector.load %arg8[%c0_71, %c352] : memref<256x384xbf16, #tpu.memory_space<vmem>>, vector<256x32xbf16>
    %cst_72 = arith.constant dense<0.000000e+00> : vector<256x256xf32>
    %100 = tpu.matmul %97, %98, %cst_72 {dimension_numbers = #tpu.dot_dimension_numbers<[1], [1], [0], [0], [0, 0, 1, 0], [], []>} : vector<256x32xbf16>, vector<256x32xbf16>, vector<256x256xf32> -> vector<256x256xf32>
    %cst_73 = arith.constant dense<0xFF800000> : vector<256xf32>
    %101 = vector.multi_reduction <maximumf>, %100, %cst_73 [1] : vector<256x256xf32> to vector<256xf32>
    %102 = vector.shape_cast %101 : vector<256xf32> to vector<256x1xf32>
    %103 = vector.broadcast %102 : vector<256x1xf32> to vector<256x256xf32>
    %104 = arith.subf %100, %103 : vector<256x256xf32>
    %105 = math.exp %104 : vector<256x256xf32>
    %cst_74 = arith.constant dense<0.000000e+00> : vector<256xf32>
    %106 = vector.multi_reduction <add>, %105, %cst_74 [1] : vector<256x256xf32> to vector<256xf32>
    %107 = vector.shape_cast %106 : vector<256xf32> to vector<256x1xf32>
    %cst_75 = arith.constant 1.000000e+00 : f32
    %108 = vector.broadcast %cst_75 : f32 to vector<256x1xf32>
    %109 = arith.divf %108, %107 : vector<256x1xf32>
    %110 = vector.broadcast %109 : vector<256x1xf32> to vector<256x256xf32>
    %111 = arith.mulf %105, %110 : vector<256x256xf32>
    %112 = arith.truncf %111 : vector<256x256xf32> to vector<256x256xbf16>
    %c0_76 = arith.constant 0 : index
    %c3 = arith.constant 3 : index
    %c0_77 = arith.constant 0 : index
    %c0_78 = arith.constant 0 : index
    %113 = vector.load %arg7[%c0_76, %c3, %c0_77, %c0_78] : memref<1x4x256x256xbf16, #tpu.memory_space<vmem>>, vector<1x1x256x256xbf16>
    %114 = vector.shape_cast %113 : vector<1x1x256x256xbf16> to vector<256x256xbf16>
    %115 = vector.shape_cast %112 : vector<256x256xbf16> to vector<1x1x256x256xbf16>
    tpu.vector_store %arg7[%c0_76, %c3, %c0_77, %c0_78], %115 {strides = array<i32>} : memref<1x4x256x256xbf16, #tpu.memory_space<vmem>>, vector<1x1x256x256xbf16>,
    %cst_79 = arith.constant dense<0.000000e+00> : vector<256x32xf32>
    %116 = tpu.matmul %112, %99, %cst_79 {dimension_numbers = #tpu.dot_dimension_numbers<[1], [0], [0], [1], [0, 0, 1, 1], [], []>} : vector<256x256xbf16>, vector<256x32xbf16>, vector<256x32xf32> -> vector<256x32xf32>
    %117 = arith.truncf %116 : vector<256x32xf32> to vector<256x32xbf16>
    %c96_80 = arith.constant 96 : index
    %c0_81 = arith.constant 0 : index
    %118 = vector.load %arg4[%c96_80, %c0_81] : memref<128x128xbf16, #tpu.memory_space<vmem>>, vector<32x128xbf16>
    %cst_82 = arith.constant dense<0.000000e+00> : vector<256x128xf32>
    %119 = tpu.matmul %117, %118, %cst_82 {dimension_numbers = #tpu.dot_dimension_numbers<[1], [0], [0], [1], [0, 0, 1, 1], [], []>} : vector<256x32xbf16>, vector<32x128xbf16>, vector<256x128xf32> -> vector<256x128xf32>
    %c0_83 = arith.constant 0 : index
    %c0_84 = arith.constant 0 : index
    %c0_85 = arith.constant 0 : index
    %120 = vector.load %arg6[%c0_83, %c0_84, %c0_85] : memref<1x256x128xf32, #tpu.memory_space<vmem>>, vector<1x256x128xf32>
    %121 = vector.shape_cast %120 : vector<1x256x128xf32> to vector<256x128xf32>
    %122 = arith.addf %121, %119 : vector<256x128xf32>
    %c0_86 = arith.constant 0 : index
    %c0_87 = arith.constant 0 : index
    %c0_88 = arith.constant 0 : index
    %123 = vector.load %arg6[%c0_86, %c0_87, %c0_88] : memref<1x256x128xf32, #tpu.memory_space<vmem>>, vector<1x256x128xf32>
    %124 = vector.shape_cast %123 : vector<1x256x128xf32> to vector<256x128xf32>
    %125 = vector.shape_cast %122 : vector<256x128xf32> to vector<1x256x128xf32>
    tpu.vector_store %arg6[%c0_86, %c0_87, %c0_88], %125 {strides = array<i32>} : memref<1x256x128xf32, #tpu.memory_space<vmem>>, vector<1x256x128xf32>,
    return
  }
  func.func @transform_0(%arg0: i32) -> (i32, i32, i32) {
    %c0_i32 = arith.constant 0 : i32
    %c0_i32_0 = arith.constant 0 : i32
    %c0_i32_1 = arith.constant 0 : i32
    return %arg0, %c0_i32, %c0_i32_0 : i32, i32, i32
  }
  func.func @transform_1(%arg0: i32) -> (i32, i32) {
    %c0_i32 = arith.constant 0 : i32
    %c0_i32_0 = arith.constant 0 : i32
    %c0_i32_1 = arith.constant 0 : i32
    return %c0_i32, %c0_i32_0 : i32, i32
  }
  func.func @transform_2(%arg0: i32) -> (i32, i32) {
    %c0_i32 = arith.constant 0 : i32
    %c0_i32_0 = arith.constant 0 : i32
    %c0_i32_1 = arith.constant 0 : i32
    return %c0_i32, %c0_i32_0 : i32, i32
  }
  func.func @transform_3(%arg0: i32) -> (i32, i32) {
    %c0_i32 = arith.constant 0 : i32
    %c0_i32_0 = arith.constant 0 : i32
    %c0_i32_1 = arith.constant 0 : i32
    return %c0_i32, %c0_i32_0 : i32, i32
  }
  func.func @transform_4(%arg0: i32) -> (i32, i32) {
    %c0_i32 = arith.constant 0 : i32
    %c0_i32_0 = arith.constant 0 : i32
    %c0_i32_1 = arith.constant 0 : i32
    return %c0_i32, %c0_i32_0 : i32, i32
  }
  func.func @transform_5(%arg0: i32) -> (i32, i32, i32) {
    %c0_i32 = arith.constant 0 : i32
    %c0_i32_0 = arith.constant 0 : i32
    %c0_i32_1 = arith.constant 0 : i32
    return %arg0, %c0_i32, %c0_i32_0 : i32, i32, i32
  }
  func.func @transform_6(%arg0: i32) -> (i32, i32, i32, i32) {
    %c0_i32 = arith.constant 0 : i32
    %c0_i32_0 = arith.constant 0 : i32
    %c0_i32_1 = arith.constant 0 : i32
    %c0_i32_2 = arith.constant 0 : i32
    return %arg0, %c0_i32, %c0_i32_0, %c0_i32_1 : i32, i32, i32, i32
  }
}

</mosaic_0001>

<llo_original>
// kernel: _lambda_.1
$region0: #{_lambda_.1}
  #allocation0 [shape = 'u32[]', space=smem, size = 0x4, offset = 0x4, fixed_abs, tag = 'smem constant byte address 0x4 - core index']
  #allocation1 [shape = 'u32[72,128]{1,0:T(1,128)}', space=vmem, size = 0x9000, scoped, tag = 'internal scratch']
  #allocation2 [shape = 'bf16[256,384]{1,0:T(8,128)(2,1)}', space=vmem, size = 0x30000, scoped, tag = 'scratch operand']
  %s0 = inlined_call_operand.vmem [shape: f32[2,256,128], index: 0, kind: input, shape index: {}]
  %s1 = inlined_call_operand.vmem [shape: bf16[128,384], index: 1, kind: input, shape index: {}]
  %s2 = inlined_call_operand.vmem [shape: f32[1,384], index: 2, kind: input, shape index: {}]
  %s3 = inlined_call_operand.vmem [shape: bf16[128,128], index: 3, kind: input, shape index: {}]
  %s4 = inlined_call_operand.vmem [shape: f32[1,128], index: 4, kind: input, shape index: {}]
  %s5 = inlined_call_operand.hbm [shape: f32[2,256,128], index: 5, kind: output, shape index: {0}]
  %s6 = inlined_call_operand.hbm [shape: bf16[2,4,256,256], index: 6, kind: output, shape index: {1}]
  %7 = xla_tuple %s5, %s6
  %s8 = sld [smem:[#allocation0]]
  $region61: #{_lambda_.1} parent=0
    _
  %s10 = ssub.s32 1, %s8
  %s11 = scalar_select 0, %s10, %s8
  $region1: #{_lambda_.1} parent=0
    #allocation3 [shape = 'u8[262144]{0}', space=vmem, size = 0x40000, scoped, tag = 'output window, operand 0']
    #allocation4 [shape = 's32[2]{0}', space=sflag, size = 0x8, scoped, tag = 'scoped memory for _lambda_.1']
    #allocation5 [shape = 'u8[1048576]{0}', space=vmem, size = 0x100000, scoped, tag = 'output window, operand 1']
    #allocation6 [shape = 's32[2]{0}', space=sflag, size = 0x8, scoped, tag = 'scoped memory for _lambda_.1']
    %12 = vsyncpa [#allocation4], 0
    %s13 = scalar_lea.sflag [#allocation4], 1
    %14 = vsyncpa %s13, 0
    %15 = vsyncpa [#allocation6], 0
    %s16 = scalar_lea.sflag [#allocation6], 1
    %17 = vsyncpa %s16, 0
    loop: start=0, step=1, limit=4
    $region2: #{_lambda_.1} parent=1 // loop_pre_header
      _
    $region3: #{_lambda_.1} parent=1 // loop_header
      %s19 = sphi 0, %s23
      %p20 = scmp.ge.s32.totalorder %s19, 4
      %s29 = sphi 0, %s31
      %s32 = sphi 0, %s29
      %s33 = sphi 0, %s32
      %s49 = sphi 0, %s33
      %s53 = sphi 0, %s53
      %s55 = sphi 0, %s53
      %s56 = sphi 0, %s55
      %s70 = sphi 0, %s56
      %s74 = sphi 0, %s74
      %s76 = sphi 0, %s74
      %s77 = sphi 0, %s76
      %s91 = sphi 0, %s77
      %s95 = sphi 0, %s95
      %s97 = sphi 0, %s95
      %s98 = sphi 0, %s97
      %s112 = sphi 0, %s98
      %s116 = sphi 0, %s116
      %s118 = sphi 0, %s116
      %s119 = sphi 0, %s118
      %s133 = sphi 0, %s119
      %s139 = sphi 0, %s141
      %s142 = sphi 0, %s139
      %s143 = sphi 0, %s142
      %s159 = sphi 0, %s143
      %s165 = sphi 0, %s167
      %s168 = sphi 0, %s165
      %s169 = sphi 0, %s168
      %s185 = sphi 0, %s169
    $region4: #{_lambda_.1} parent=1 // loop_header_branch
      %22 = sbr.rel (%p20) target = $region8
    $region5: #{_lambda_.1} parent=1 // loop_body
      %s24 = ssub.s32 %s19, 1
      %s25 = ssub.s32 %s19, 2
      %s26 = sadd.s32 %s19, 1
      %s27 = ssub.s32 %s19, %s26
      %p28 = scmp.eq.s32.totalorder %s27, 0
      %s30 = sadd.s32 %s29, 1
      %s31 = scalar_select %p28, %s29, %s30
      %p34 = pneg %p28
      %p35 = scmp.eq.s32.totalorder %s19, 1
      %p36 = por %p34, %p35
      %p37 = scmp.ne.s32.totalorder %s29, %s32
      %p38 = scmp.eq.s32.totalorder %s19, 0
      %p39 = por %p37, %p38
      %p40 = scmp.ne.s32.totalorder %s29, %s32
      %p41 = scmp.eq.s32.totalorder %s24, 1
      %p42 = por %p40, %p41
      %p43 = scmp.ne.s32.totalorder %s32, %s33
      %p44 = scmp.eq.s32.totalorder %s24, 0
      %p45 = por %p43, %p44
      %p46 = scmp.ne.s32.totalorder %s32, %s33
      %p47 = scmp.eq.s32.totalorder %s25, 1
      %p48 = por %p46, %p47
      %p50 = scmp.ne.s32.totalorder %s33, %s49
      %p51 = scmp.eq.s32.totalorder %s25, 0
      %p52 = por %p50, %p51
      %s54 = sadd.s32 %s53, 1
      %p57 = scmp.eq.s32.totalorder %s19, 1
      %p58 = scmp.ne.s32.totalorder %s53, %s55
      %p59 = scmp.eq.s32.totalorder %s19, 0
      %p60 = por %p58, %p59
      %p61 = scmp.ne.s32.totalorder %s53, %s55
      %p62 = scmp.eq.s32.totalorder %s24, 1
      %p63 = por %p61, %p62
      %p64 = scmp.ne.s32.totalorder %s55, %s56
      %p65 = scmp.eq.s32.totalorder %s24, 0
      %p66 = por %p64, %p65
      %p67 = scmp.ne.s32.totalorder %s55, %s56
      %p68 = scmp.eq.s32.totalorder %s25, 1
      %p69 = por %p67, %p68
      %p71 = scmp.ne.s32.totalorder %s56, %s70
      %p72 = scmp.eq.s32.totalorder %s25, 0
      %p73 = por %p71, %p72
      %s75 = sadd.s32 %s74, 1
      %p78 = scmp.eq.s32.totalorder %s19, 1
      %p79 = scmp.ne.s32.totalorder %s74, %s76
      %p80 = scmp.eq.s32.totalorder %s19, 0
      %p81 = por %p79, %p80
      %p82 = scmp.ne.s32.totalorder %s74, %s76
      %p83 = scmp.eq.s32.totalorder %s24, 1
      %p84 = por %p82, %p83
      %p85 = scmp.ne.s32.totalorder %s76, %s77
      %p86 = scmp.eq.s32.totalorder %s24, 0
      %p87 = por %p85, %p86
      %p88 = scmp.ne.s32.totalorder %s76, %s77
      %p89 = scmp.eq.s32.totalorder %s25, 1
      %p90 = por %p88, %p89
      %p92 = scmp.ne.s32.totalorder %s77, %s91
      %p93 = scmp.eq.s32.totalorder %s25, 0
      %p94 = por %p92, %p93
      %s96 = sadd.s32 %s95, 1
      %p99 = scmp.eq.s32.totalorder %s19, 1
      %p100 = scmp.ne.s32.totalorder %s95, %s97
      %p101 = scmp.eq.s32.totalorder %s19, 0
      %p102 = por %p100, %p101
      %p103 = scmp.ne.s32.totalorder %s95, %s97
      %p104 = scmp.eq.s32.totalorder %s24, 1
      %p105 = por %p103, %p104
      %p106 = scmp.ne.s32.totalorder %s97, %s98
      %p107 = scmp.eq.s32.totalorder %s24, 0
      %p108 = por %p106, %p107
      %p109 = scmp.ne.s32.totalorder %s97, %s98
      %p110 = scmp.eq.s32.totalorder %s25, 1
      %p111 = por %p109, %p110
      %p113 = scmp.ne.s32.totalorder %s98, %s112
      %p114 = scmp.eq.s32.totalorder %s25, 0
      %p115 = por %p113, %p114
      %s117 = sadd.s32 %s116, 1
      %p120 = scmp.eq.s32.totalorder %s19, 1
      %p121 = scmp.ne.s32.totalorder %s116, %s118
      %p122 = scmp.eq.s32.totalorder %s19, 0
      %p123 = por %p121, %p122
      %p124 = scmp.ne.s32.totalorder %s116, %s118
      %p125 = scmp.eq.s32.totalorder %s24, 1
      %p126 = por %p124, %p125
      %p127 = scmp.ne.s32.totalorder %s118, %s119
      %p128 = scmp.eq.s32.totalorder %s24, 0
      %p129 = por %p127, %p128
      %p130 = scmp.ne.s32.totalorder %s118, %s119
      %p131 = scmp.eq.s32.totalorder %s25, 1
      %p132 = por %p130, %p131
      %p134 = scmp.ne.s32.totalorder %s119, %s133
      %p135 = scmp.eq.s32.totalorder %s25, 0
      %p136 = por %p134, %p135
      %s137 = ssub.s32 %s19, %s26
      %p138 = scmp.eq.s32.totalorder %s137, 0
      %s140 = sadd.s32 %s139, 1
      %s141 = scalar_select %p138, %s139, %s140
      %p144 = pneg %p138
      %p145 = scmp.eq.s32.totalorder %s19, 1
      %p146 = por %p144, %p145
      %p147 = scmp.ne.s32.totalorder %s139, %s142
      %p148 = scmp.eq.s32.totalorder %s19, 0
      %p149 = por %p147, %p148
      %p150 = scmp.ne.s32.totalorder %s139, %s142
      %p151 = scmp.eq.s32.totalorder %s24, 1
      %p152 = por %p150, %p151
      %p153 = scmp.ne.s32.totalorder %s142, %s143
      %p154 = scmp.eq.s32.totalorder %s24, 0
      %p155 = por %p153, %p154
      %p156 = scmp.ne.s32.totalorder %s142, %s143
      %p157 = scmp.eq.s32.totalorder %s25, 1
      %p158 = por %p156, %p157
      %p160 = scmp.ne.s32.totalorder %s143, %s159
      %p161 = scmp.eq.s32.totalorder %s25, 0
      %p162 = por %p160, %p161
      %s163 = ssub.s32 %s19, %s26
      %p164 = scmp.eq.s32.totalorder %s163, 0
      %s166 = sadd.s32 %s165, 1
      %s167 = scalar_select %p164, %s165, %s166
      %p170 = pneg %p164
      %p171 = scmp.eq.s32.totalorder %s19, 1
      %p172 = por %p170, %p171
      %p173 = scmp.ne.s32.totalorder %s165, %s168
      %p174 = scmp.eq.s32.totalorder %s19, 0
      %p175 = por %p173, %p174
      %p176 = scmp.ne.s32.totalorder %s165, %s168
      %p177 = scmp.eq.s32.totalorder %s24, 1
      %p178 = por %p176, %p177
      %p179 = scmp.ne.s32.totalorder %s168, %s169
      %p180 = scmp.eq.s32.totalorder %s24, 0
      %p181 = por %p179, %p180
      %p182 = scmp.ne.s32.totalorder %s168, %s169
      %p183 = scmp.eq.s32.totalorder %s25, 1
      %p184 = por %p182, %p183
      %p186 = scmp.ne.s32.totalorder %s169, %s185
      %p187 = scmp.eq.s32.totalorder %s25, 0
      %p188 = por %p186, %p187
      %p189 = scmp.le.s32.totalorder 1, %s19
      %p190 = scmp.lt.s32.totalorder %s19, 3
      %p191 = pnand %p189, %p190
      %p192 = pneg %p191
      // Predicated region
      $region9: #{_lambda_.1} parent=5 // pred_check
        _
      $region10: #{_lambda_.1} parent=5 // pred_check_branch
        %194 = sbr.rel (%p191) target = $region12
      $region11: #{_lambda_.1} parent=5 // pred_region
        %s195 = ssub.s32 %s19, 1
        // Predicated region
        $region13: #{_lambda_.1} parent=11 // pred_check
          %p196 = pneg %p66
        $region14: #{_lambda_.1} parent=11 // pred_check_branch
          %198 = sbr.rel (%p196) target = $region16
        $region15: #{_lambda_.1} parent=11 // pred_region
          _
        $region16: #{_lambda_.1} parent=11 // pred_fallthru
          _
        // Predicated region
        $region17: #{_lambda_.1} parent=11 // pred_check
          %p199 = pneg %p87
        $region18: #{_lambda_.1} parent=11 // pred_check_branch
          %201 = sbr.rel (%p199) target = $region20
        $region19: #{_lambda_.1} parent=11 // pred_region
          _
        $region20: #{_lambda_.1} parent=11 // pred_fallthru
          _
        // Predicated region
        $region21: #{_lambda_.1} parent=11 // pred_check
          %p202 = pneg %p108
        $region22: #{_lambda_.1} parent=11 // pred_check_branch
          %204 = sbr.rel (%p202) target = $region24
        $region23: #{_lambda_.1} parent=11 // pred_region
          _
        $region24: #{_lambda_.1} parent=11 // pred_fallthru
          _
        // Predicated region
        $region25: #{_lambda_.1} parent=11 // pred_check
          %p205 = pneg %p129
        $region26: #{_lambda_.1} parent=11 // pred_check_branch
          %207 = sbr.rel (%p205) target = $region28
        $region27: #{_lambda_.1} parent=11 // pred_region
          _
        $region28: #{_lambda_.1} parent=11 // pred_fallthru
          _
      $region12: #{_lambda_.1} parent=5 // pred_fallthru
        _
      %p208 = scmp.lt.s32.totalorder %s19, 2
      // Predicated region
      $region29: #{_lambda_.1} parent=5 // pred_check
        %p209 = pneg %p208
      $region30: #{_lambda_.1} parent=5 // pred_check_branch
        %211 = sbr.rel (%p209) target = $region32
      $region31: #{_lambda_.1} parent=5 // pred_region
        // Predicated region
        $region33: #{_lambda_.1} parent=31 // pred_check
          %p212 = pneg %p39
        $region34: #{_lambda_.1} parent=31 // pred_check_branch
          %214 = sbr.rel (%p212) target = $region36
        $region35: #{_lambda_.1} parent=31 // pred_region
          %p215 = scmp.lt.s32.totalorder %s19, 1
          %s216 = scalar_select %p215, %s19, 1
          %s217 = smul.addr %s216, 32
          %s218 = smul.addr %s217, 8
          %s219 = scalar_lea.vmem %s0, %s218
        $region36: #{_lambda_.1} parent=31 // pred_fallthru
          _
      $region32: #{_lambda_.1} parent=5 // pred_fallthru
        _
      %p220 = scmp.le.s32.totalorder 1, %s19
      %p221 = scmp.lt.s32.totalorder %s19, 3
      %p222 = pnand %p220, %p221
      %p223 = pneg %p222
      // Predicated region
      $region37: #{_lambda_.1} parent=5 // pred_check
        _
      $region38: #{_lambda_.1} parent=5 // pred_check_branch
        %225 = sbr.rel (%p222) target = $region40
      $region39: #{_lambda_.1} parent=5 // pred_region
        %s226 = ssub.s32 %s19, 1
        %p227 = scmp.lt.s32.totalorder %s24, 1
        %s228 = scalar_select %p227, %s24, 1
        %s229 = smul.addr %s228, 32
        %s230 = smul.addr %s229, 8
        %s231 = scalar_lea.vmem %s0, %s230
        %p232 = pneg %p45
        %p233 = pneg %p42
        %p234 = pneg %p66
        %p235 = pneg %p63
        %p236 = pneg %p87
        %p237 = pneg %p84
        %p238 = pneg %p108
        %p239 = pneg %p105
        %p240 = pneg %p129
        %p241 = pneg %p126
        %p242 = pneg %p155
        %p243 = pneg %p152
        %s244 = sand.u32 %s142, 1
        %s245 = scalar_lea.sflag [#allocation4], %s244
        %s246 = sand.u32 %s142, 1
        %s247 = smul.addr %s246, 256
        %s248 = scalar_lea.vmem [#allocation3], %s247
        %p249 = pneg %p181
        %p250 = pneg %p178
        %s251 = sand.u32 %s168, 1
        %s252 = scalar_lea.sflag [#allocation6], %s251
        %s253 = sand.u32 %s168, 1
        %s254 = smul.addr %s253, 1024
        %s255 = scalar_lea.vmem [#allocation5], %s254
        %p256 = scmp.lt.s32.totalorder %s24, 1
        %s257 = scalar_select %p256, %s24, 1
        %s258 = smul.addr %s257, 32
        %s259 = smul.addr %s258, 8
        %s260 = scalar_lea.vmem %s0, %s259
        %v262 = vld [vmem:[%s260] sm:$0xff]
        %v263 = vld [vmem:[%s260 + $0x8] sm:$0xff]
        %v264 = vld [vmem:[%s260 + $0x10] sm:$0xff]
        %v265 = vld [vmem:[%s260 + $0x18] sm:$0xff]
        %v266 = vld [vmem:[%s260 + $0x20] sm:$0xff]
        %v267 = vld [vmem:[%s260 + $0x28] sm:$0xff]
        %v268 = vld [vmem:[%s260 + $0x30] sm:$0xff]
        %v269 = vld [vmem:[%s260 + $0x38] sm:$0xff]
        %v270 = vld [vmem:[%s260 + $0x40] sm:$0xff]
        %v271 = vld [vmem:[%s260 + $0x48] sm:$0xff]
        %v272 = vld [vmem:[%s260 + $0x50] sm:$0xff]
        %v273 = vld [vmem:[%s260 + $0x58] sm:$0xff]
        %v274 = vld [vmem:[%s260 + $0x60] sm:$0xff]
        %v275 = vld [vmem:[%s260 + $0x68] sm:$0xff]
        %v276 = vld [vmem:[%s260 + $0x70] sm:$0xff]
        %v277 = vld [vmem:[%s260 + $0x78] sm:$0xff]
        %v278 = vld [vmem:[%s260 + $0x80] sm:$0xff]
        %v279 = vld [vmem:[%s260 + $0x88] sm:$0xff]
        %v280 = vld [vmem:[%s260 + $0x90] sm:$0xff]
        %v281 = vld [vmem:[%s260 + $0x98] sm:$0xff]
        %v282 = vld [vmem:[%s260 + $0xa0] sm:$0xff]
        %v283 = vld [vmem:[%s260 + $0xa8] sm:$0xff]
        %v284 = vld [vmem:[%s260 + $0xb0] sm:$0xff]
        %v285 = vld [vmem:[%s260 + $0xb8] sm:$0xff]
        %v286 = vld [vmem:[%s260 + $0xc0] sm:$0xff]
        %v287 = vld [vmem:[%s260 + $0xc8] sm:$0xff]
        %v288 = vld [vmem:[%s260 + $0xd0] sm:$0xff]
        %v289 = vld [vmem:[%s260 + $0xd8] sm:$0xff]
        %v290 = vld [vmem:[%s260 + $0xe0] sm:$0xff]
        %v291 = vld [vmem:[%s260 + $0xe8] sm:$0xff]
        %v292 = vld [vmem:[%s260 + $0xf0] sm:$0xff]
        %v293 = vld [vmem:[%s260 + $0xf8] sm:$0xff]
        %v294 = vpack.c.bf16 %v263, %v262
        %v295 = vpack.c.bf16 %v265, %v264
        %v296 = vpack.c.bf16 %v267, %v266
        %v297 = vpack.c.bf16 %v269, %v268
        %v298 = vpack.c.bf16 %v271, %v270
        %v299 = vpack.c.bf16 %v273, %v272
        %v300 = vpack.c.bf16 %v275, %v274
        %v301 = vpack.c.bf16 %v277, %v276
        %v302 = vpack.c.bf16 %v279, %v278
        %v303 = vpack.c.bf16 %v281, %v280
        %v304 = vpack.c.bf16 %v283, %v282
        %v305 = vpack.c.bf16 %v285, %v284
        %v306 = vpack.c.bf16 %v287, %v286
        %v307 = vpack.c.bf16 %v289, %v288
        %v308 = vpack.c.bf16 %v291, %v290
        %v309 = vpack.c.bf16 %v293, %v292
        %v310 = vld [vmem:[%s1] sm:$0xff]
        %v311 = vld [vmem:[%s1 + $0x8] sm:$0xf]
        %v312 = vld [vmem:[%s1 + $0xc] sm:$0xff]
        %v313 = vld [vmem:[%s1 + $0x14] sm:$0xf]
        %v314 = vld [vmem:[%s1 + $0x18] sm:$0xff]
        %v315 = vld [vmem:[%s1 + $0x20] sm:$0xf]
        %v316 = vld [vmem:[%s1 + $0x24] sm:$0xff]
        %v317 = vld [vmem:[%s1 + $0x2c] sm:$0xf]
        %v318 = vld [vmem:[%s1 + $0x30] sm:$0xff]
        %v319 = vld [vmem:[%s1 + $0x38] sm:$0xf]
        %v320 = vld [vmem:[%s1 + $0x3c] sm:$0xff]
        %v321 = vld [vmem:[%s1 + $0x44] sm:$0xf]
        %v322 = vld [vmem:[%s1 + $0x48] sm:$0xff]
        %v323 = vld [vmem:[%s1 + $0x50] sm:$0xf]
        %v324 = vld [vmem:[%s1 + $0x54] sm:$0xff]
        %v325 = vld [vmem:[%s1 + $0x5c] sm:$0xf]
        %v326 = vld [vmem:[%s1 + $0x60] sm:$0xff]
        %v327 = vld [vmem:[%s1 + $0x68] sm:$0xf]
        %v328 = vld [vmem:[%s1 + $0x6c] sm:$0xff]
        %v329 = vld [vmem:[%s1 + $0x74] sm:$0xf]
        %v330 = vld [vmem:[%s1 + $0x78] sm:$0xff]
        %v331 = vld [vmem:[%s1 + $0x80] sm:$0xf]
        %v332 = vld [vmem:[%s1 + $0x84] sm:$0xff]
        %v333 = vld [vmem:[%s1 + $0x8c] sm:$0xf]
        %v334 = vld [vmem:[%s1 + $0x90] sm:$0xff]
        %v335 = vld [vmem:[%s1 + $0x98] sm:$0xf]
        %v336 = vld [vmem:[%s1 + $0x9c] sm:$0xff]
        %v337 = vld [vmem:[%s1 + $0xa4] sm:$0xf]
        %v338 = vld [vmem:[%s1 + $0xa8] sm:$0xff]
        %v339 = vld [vmem:[%s1 + $0xb0] sm:$0xf]
        %v340 = vld [vmem:[%s1 + $0xb4] sm:$0xff]
        %v341 = vld [vmem:[%s1 + $0xbc] sm:$0xf]
        %v342 = vld [vmem:[%s2] sm:$0x7]
        %v344 = vperm.slane %v342, 0
        %v345 = vperm.slane %v342, 1
        %v346 = vperm.slane %v342, 2
        %v382 = vunpack.c.l.b16 %v310
        %v383 = vunpack.c.h.b16 %v310
        %v384 = vunpack.c.l.b16 %v311
        %v385 = vunpack.c.l.b16 %v312
        %v386 = vunpack.c.h.b16 %v312
        %v387 = vunpack.c.l.b16 %v313
        %v388 = vunpack.c.l.b16 %v314
        %v389 = vunpack.c.h.b16 %v314
        %v390 = vunpack.c.l.b16 %v315
        %v391 = vunpack.c.l.b16 %v316
        %v392 = vunpack.c.h.b16 %v316
        %v393 = vunpack.c.l.b16 %v317
        %v394 = vunpack.c.l.b16 %v318
        %v395 = vunpack.c.h.b16 %v318
        %v396 = vunpack.c.l.b16 %v319
        %v397 = vunpack.c.l.b16 %v320
        %v398 = vunpack.c.h.b16 %v320
        %v399 = vunpack.c.l.b16 %v321
        %v400 = vunpack.c.l.b16 %v322
        %v401 = vunpack.c.h.b16 %v322
        %v402 = vunpack.c.l.b16 %v323
        %v403 = vunpack.c.l.b16 %v324
        %v404 = vunpack.c.h.b16 %v324
        %v405 = vunpack.c.l.b16 %v325
        %v406 = vunpack.c.l.b16 %v326
        %v407 = vunpack.c.h.b16 %v326
        %v408 = vunpack.c.l.b16 %v327
        %v409 = vunpack.c.l.b16 %v328
        %v410 = vunpack.c.h.b16 %v328
        %v411 = vunpack.c.l.b16 %v329
        %v412 = vunpack.c.l.b16 %v330
        %v413 = vunpack.c.h.b16 %v330
        %v414 = vunpack.c.l.b16 %v331
        %v415 = vunpack.c.l.b16 %v332
        %v416 = vunpack.c.h.b16 %v332
        %v417 = vunpack.c.l.b16 %v333
        %v418 = vunpack.c.l.b16 %v334
        %v419 = vunpack.c.h.b16 %v334
        %v420 = vunpack.c.l.b16 %v335
        %v421 = vunpack.c.l.b16 %v336
        %v422 = vunpack.c.h.b16 %v336
        %v423 = vunpack.c.l.b16 %v337
        %v424 = vunpack.c.l.b16 %v338
        %v425 = vunpack.c.h.b16 %v338
        %v426 = vunpack.c.l.b16 %v339
        %v427 = vunpack.c.l.b16 %v340
        %v428 = vunpack.c.h.b16 %v340
        %v429 = vunpack.c.l.b16 %v341
        %v430 = vpack.c.b16 %v385, %v382
        %v431 = vpack.c.b16 %v386, %v383
        %v432 = vpack.c.b16 %v387, %v384
        %v433 = vpack.c.b16 %v391, %v388
        %v434 = vpack.c.b16 %v392, %v389
        %v435 = vpack.c.b16 %v393, %v390
        %v436 = vpack.c.b16 %v397, %v394
        %v437 = vpack.c.b16 %v398, %v395
        %v438 = vpack.c.b16 %v399, %v396
        %v439 = vpack.c.b16 %v403, %v400
        %v440 = vpack.c.b16 %v404, %v401
        %v441 = vpack.c.b16 %v405, %v402
        %v442 = vpack.c.b16 %v409, %v406
        %v443 = vpack.c.b16 %v410, %v407
        %v444 = vpack.c.b16 %v411, %v408
        %v445 = vpack.c.b16 %v415, %v412
        %v446 = vpack.c.b16 %v416, %v413
        %v447 = vpack.c.b16 %v417, %v414
        %v448 = vpack.c.b16 %v421, %v418
        %v449 = vpack.c.b16 %v422, %v419
        %v450 = vpack.c.b16 %v423, %v420
        %v451 = vpack.c.b16 %v427, %v424
        %v452 = vpack.c.b16 %v428, %v425
        %v453 = vpack.c.b16 %v429, %v426
        %478 = vmatpush.bf16.msra.mxu0 %v451
        %479 = vmatpush.bf16.msra.mxu0 %v448
        %480 = vmatpush.bf16.msra.mxu0 %v445
        %481 = vmatpush.bf16.msra.mxu0 %v442
        %482 = vmatpush.bf16.msra.mxu0 %v439
        %483 = vmatpush.bf16.msra.mxu0 %v436
        %484 = vmatpush.bf16.msra.mxu0 %v433
        %485 = vmatpush.bf16.msra.mxu0 %v430
        %486 = vmatmul.bf16.gmra.mxu0 %v294
        %v487 = vpop.f32.mrf.mxu0
        %v488 = vadd.f32 %v344, %v487
        %v489 = vpop.f32.mrf.mxu0
        %v490 = vadd.f32 %v344, %v489
        %491 = vmatmul.bf16.gmra.mxu0 %v295
        %v492 = vpop.f32.mrf.mxu0
        %v493 = vadd.f32 %v344, %v492
        %v494 = vpop.f32.mrf.mxu0
        %v495 = vadd.f32 %v344, %v494
        %496 = vmatmul.bf16.gmra.mxu0 %v296
        %v497 = vpop.f32.mrf.mxu0
        %v498 = vadd.f32 %v344, %v497
        %v499 = vpop.f32.mrf.mxu0
        %v500 = vadd.f32 %v344, %v499
        %501 = vmatmul.bf16.gmra.mxu0 %v297
        %v502 = vpop.f32.mrf.mxu0
        %v503 = vadd.f32 %v344, %v502
        %v504 = vpop.f32.mrf.mxu0
        %v505 = vadd.f32 %v344, %v504
        %506 = vmatmul.bf16.gmra.mxu0 %v298
        %v507 = vpop.f32.mrf.mxu0
        %v508 = vadd.f32 %v344, %v507
        %v509 = vpop.f32.mrf.mxu0
        %v510 = vadd.f32 %v344, %v509
        %511 = vmatmul.bf16.gmra.mxu0 %v299
        %v512 = vpop.f32.mrf.mxu0
        %v513 = vadd.f32 %v344, %v512
        %v514 = vpop.f32.mrf.mxu0
        %v515 = vadd.f32 %v344, %v514
        %516 = vmatmul.bf16.gmra.mxu0 %v300
        %v517 = vpop.f32.mrf.mxu0
        %v518 = vadd.f32 %v344, %v517
        %v519 = vpop.f32.mrf.mxu0
        %v520 = vadd.f32 %v344, %v519
        %521 = vmatmul.bf16.gmra.mxu0 %v301
        %v522 = vpop.f32.mrf.mxu0
        %v523 = vadd.f32 %v344, %v522
        %v524 = vpop.f32.mrf.mxu0
        %v525 = vadd.f32 %v344, %v524
        %526 = vmatmul.bf16.gmra.mxu0 %v302
        %v527 = vpop.f32.mrf.mxu0
        %v528 = vadd.f32 %v344, %v527
        %v529 = vpop.f32.mrf.mxu0
        %v530 = vadd.f32 %v344, %v529
        %531 = vmatmul.bf16.gmra.mxu0 %v303
        %v532 = vpop.f32.mrf.mxu0
        %v533 = vadd.f32 %v344, %v532
        %v534 = vpop.f32.mrf.mxu0
        %v535 = vadd.f32 %v344, %v534
        %536 = vmatmul.bf16.gmra.mxu0 %v304
        %v537 = vpop.f32.mrf.mxu0
        %v538 = vadd.f32 %v344, %v537
        %v539 = vpop.f32.mrf.mxu0
        %v540 = vadd.f32 %v344, %v539
        %541 = vmatmul.bf16.gmra.mxu0 %v305
        %v542 = vpop.f32.mrf.mxu0
        %v543 = vadd.f32 %v344, %v542
        %v544 = vpop.f32.mrf.mxu0
        %v545 = vadd.f32 %v344, %v544
        %546 = vmatmul.bf16.gmra.mxu0 %v306
        %v547 = vpop.f32.mrf.mxu0
        %v548 = vadd.f32 %v344, %v547
        %v549 = vpop.f32.mrf.mxu0
        %v550 = vadd.f32 %v344, %v549
        %551 = vmatmul.bf16.gmra.mxu0 %v307
        %v552 = vpop.f32.mrf.mxu0
        %v553 = vadd.f32 %v344, %v552
        %v554 = vpop.f32.mrf.mxu0
        %v555 = vadd.f32 %v344, %v554
        %556 = vmatmul.bf16.gmra.mxu0 %v308
        %v557 = vpop.f32.mrf.mxu0
        %v558 = vadd.f32 %v344, %v557
        %v559 = vpop.f32.mrf.mxu0
        %v560 = vadd.f32 %v344, %v559
        %561 = vmatmul.bf16.gmra.mxu0 %v309
        %v562 = vpop.f32.mrf.mxu0
        %v563 = vadd.f32 %v344, %v562
        %v564 = vpop.f32.mrf.mxu0
        %v565 = vadd.f32 %v344, %v564
        %566 = vdwg.mxu0
        %567 = vmatpush.bf16.msra.mxu0 %v452
        %568 = vmatpush.bf16.msra.mxu0 %v449
        %569 = vmatpush.bf16.msra.mxu0 %v446
        %570 = vmatpush.bf16.msra.mxu0 %v443
        %571 = vmatpush.bf16.msra.mxu0 %v440
        %572 = vmatpush.bf16.msra.mxu0 %v437
        %573 = vmatpush.bf16.msra.mxu0 %v434
        %574 = vmatpush.bf16.msra.mxu0 %v431
        %575 = vmatmul.bf16.gmra.mxu0 %v294
        %v576 = vpop.f32.mrf.mxu0
        %v577 = vadd.f32 %v345, %v576
        %v578 = vpop.f32.mrf.mxu0
        %v579 = vadd.f32 %v345, %v578
        %580 = vmatmul.bf16.gmra.mxu0 %v295
        %v581 = vpop.f32.mrf.mxu0
        %v582 = vadd.f32 %v345, %v581
        %v583 = vpop.f32.mrf.mxu0
        %v584 = vadd.f32 %v345, %v583
        %585 = vmatmul.bf16.gmra.mxu0 %v296
        %v586 = vpop.f32.mrf.mxu0
        %v587 = vadd.f32 %v345, %v586
        %v588 = vpop.f32.mrf.mxu0
        %v589 = vadd.f32 %v345, %v588
        %590 = vmatmul.bf16.gmra.mxu0 %v297
        %v591 = vpop.f32.mrf.mxu0
        %v592 = vadd.f32 %v345, %v591
        %v593 = vpop.f32.mrf.mxu0
        %v594 = vadd.f32 %v345, %v593
        %595 = vmatmul.bf16.gmra.mxu0 %v298
        %v596 = vpop.f32.mrf.mxu0
        %v597 = vadd.f32 %v345, %v596
        %v598 = vpop.f32.mrf.mxu0
        %v599 = vadd.f32 %v345, %v598
        %600 = vmatmul.bf16.gmra.mxu0 %v299
        %v601 = vpop.f32.mrf.mxu0
        %v602 = vadd.f32 %v345, %v601
        %v603 = vpop.f32.mrf.mxu0
        %v604 = vadd.f32 %v345, %v603
        %605 = vmatmul.bf16.gmra.mxu0 %v300
        %v606 = vpop.f32.mrf.mxu0
        %v607 = vadd.f32 %v345, %v606
        %v608 = vpop.f32.mrf.mxu0
        %v609 = vadd.f32 %v345, %v608
        %610 = vmatmul.bf16.gmra.mxu0 %v301
        %v611 = vpop.f32.mrf.mxu0
        %v612 = vadd.f32 %v345, %v611
        %v613 = vpop.f32.mrf.mxu0
        %v614 = vadd.f32 %v345, %v613
        %615 = vmatmul.bf16.gmra.mxu0 %v302
        %v616 = vpop.f32.mrf.mxu0
        %v617 = vadd.f32 %v345, %v616
        %v618 = vpop.f32.mrf.mxu0
        %v619 = vadd.f32 %v345, %v618
        %620 = vmatmul.bf16.gmra.mxu0 %v303
        %v621 = vpop.f32.mrf.mxu0
        %v622 = vadd.f32 %v345, %v621
        %v623 = vpop.f32.mrf.mxu0
        %v624 = vadd.f32 %v345, %v623
        %625 = vmatmul.bf16.gmra.mxu0 %v304
        %v626 = vpop.f32.mrf.mxu0
        %v627 = vadd.f32 %v345, %v626
        %v628 = vpop.f32.mrf.mxu0
        %v629 = vadd.f32 %v345, %v628
        %630 = vmatmul.bf16.gmra.mxu0 %v305
        %v631 = vpop.f32.mrf.mxu0
        %v632 = vadd.f32 %v345, %v631
        %v633 = vpop.f32.mrf.mxu0
        %v634 = vadd.f32 %v345, %v633
        %635 = vmatmul.bf16.gmra.mxu0 %v306
        %v636 = vpop.f32.mrf.mxu0
        %v637 = vadd.f32 %v345, %v636
        %v638 = vpop.f32.mrf.mxu0
        %v639 = vadd.f32 %v345, %v638
        %640 = vmatmul.bf16.gmra.mxu0 %v307
        %v641 = vpop.f32.mrf.mxu0
        %v642 = vadd.f32 %v345, %v641
        %v643 = vpop.f32.mrf.mxu0
        %v644 = vadd.f32 %v345, %v643
        %645 = vmatmul.bf16.gmra.mxu0 %v308
        %v646 = vpop.f32.mrf.mxu0
        %v647 = vadd.f32 %v345, %v646
        %v648 = vpop.f32.mrf.mxu0
        %v649 = vadd.f32 %v345, %v648
        %650 = vmatmul.bf16.gmra.mxu0 %v309
        %v651 = vpop.f32.mrf.mxu0
        %v652 = vadd.f32 %v345, %v651
        %v653 = vpop.f32.mrf.mxu0
        %v654 = vadd.f32 %v345, %v653
        %655 = vdwg.mxu0
        %656 = vmatpush.bf16.msra.mxu0 %v453
        %657 = vmatpush.bf16.msra.mxu0 %v450
        %658 = vmatpush.bf16.msra.mxu0 %v447
        %659 = vmatpush.bf16.msra.mxu0 %v444
        %660 = vmatpush.bf16.msra.mxu0 %v441
        %661 = vmatpush.bf16.msra.mxu0 %v438
        %662 = vmatpush.bf16.msra.mxu0 %v435
        %663 = vmatpush.bf16.msra.mxu0 %v432
        %664 = vmatmul.bf16.gmra.mxu0 %v294
        %v665 = vpop.f32.mrf.mxu0
        %v666 = vadd.f32 %v346, %v665
        %v667 = vpop.f32.mrf.mxu0
        %v668 = vadd.f32 %v346, %v667
        %669 = vmatmul.bf16.gmra.mxu0 %v295
        %v670 = vpop.f32.mrf.mxu0
        %v671 = vadd.f32 %v346, %v670
        %v672 = vpop.f32.mrf.mxu0
        %v673 = vadd.f32 %v346, %v672
        %674 = vmatmul.bf16.gmra.mxu0 %v296
        %v675 = vpop.f32.mrf.mxu0
        %v676 = vadd.f32 %v346, %v675
        %v677 = vpop.f32.mrf.mxu0
        %v678 = vadd.f32 %v346, %v677
        %679 = vmatmul.bf16.gmra.mxu0 %v297
        %v680 = vpop.f32.mrf.mxu0
        %v681 = vadd.f32 %v346, %v680
        %v682 = vpop.f32.mrf.mxu0
        %v683 = vadd.f32 %v346, %v682
        %684 = vmatmul.bf16.gmra.mxu0 %v298
        %v685 = vpop.f32.mrf.mxu0
        %v686 = vadd.f32 %v346, %v685
        %v687 = vpop.f32.mrf.mxu0
        %v688 = vadd.f32 %v346, %v687
        %689 = vmatmul.bf16.gmra.mxu0 %v299
        %v690 = vpop.f32.mrf.mxu0
        %v691 = vadd.f32 %v346, %v690
        %v692 = vpop.f32.mrf.mxu0
        %v693 = vadd.f32 %v346, %v692
        %694 = vmatmul.bf16.gmra.mxu0 %v300
        %v695 = vpop.f32.mrf.mxu0
        %v696 = vadd.f32 %v346, %v695
        %v697 = vpop.f32.mrf.mxu0
        %v698 = vadd.f32 %v346, %v697
        %699 = vmatmul.bf16.gmra.mxu0 %v301
        %v700 = vpop.f32.mrf.mxu0
        %v701 = vadd.f32 %v346, %v700
        %v702 = vpop.f32.mrf.mxu0
        %v703 = vadd.f32 %v346, %v702
        %704 = vmatmul.bf16.gmra.mxu0 %v302
        %v705 = vpop.f32.mrf.mxu0
        %v706 = vadd.f32 %v346, %v705
        %v707 = vpop.f32.mrf.mxu0
        %v708 = vadd.f32 %v346, %v707
        %709 = vmatmul.bf16.gmra.mxu0 %v303
        %v710 = vpop.f32.mrf.mxu0
        %v711 = vadd.f32 %v346, %v710
        %v712 = vpop.f32.mrf.mxu0
        %v713 = vadd.f32 %v346, %v712
        %714 = vmatmul.bf16.gmra.mxu0 %v304
        %v715 = vpop.f32.mrf.mxu0
        %v716 = vadd.f32 %v346, %v715
        %v717 = vpop.f32.mrf.mxu0
        %v718 = vadd.f32 %v346, %v717
        %719 = vmatmul.bf16.gmra.mxu0 %v305
        %v720 = vpop.f32.mrf.mxu0
        %v721 = vadd.f32 %v346, %v720
        %v722 = vpop.f32.mrf.mxu0
        %v723 = vadd.f32 %v346, %v722
        %724 = vmatmul.bf16.gmra.mxu0 %v306
        %v725 = vpop.f32.mrf.mxu0
        %v726 = vadd.f32 %v346, %v725
        %v727 = vpop.f32.mrf.mxu0
        %v728 = vadd.f32 %v346, %v727
        %729 = vmatmul.bf16.gmra.mxu0 %v307
        %v730 = vpop.f32.mrf.mxu0
        %v731 = vadd.f32 %v346, %v730
        %v732 = vpop.f32.mrf.mxu0
        %v733 = vadd.f32 %v346, %v732
        %734 = vmatmul.bf16.gmra.mxu0 %v308
        %v735 = vpop.f32.mrf.mxu0
        %v736 = vadd.f32 %v346, %v735
        %v737 = vpop.f32.mrf.mxu0
        %v738 = vadd.f32 %v346, %v737
        %739 = vmatmul.bf16.gmra.mxu0 %v309
        %v740 = vpop.f32.mrf.mxu0
        %v741 = vadd.f32 %v346, %v740
        %v742 = vpop.f32.mrf.mxu0
        %v743 = vadd.f32 %v346, %v742
        %744 = vdwg.mxu0
        %v745 = vpack.c.bf16 %v577, %v488
        %v746 = vpack.c.bf16 %v666, %v666
        %v747 = vpack.c.bf16 %v579, %v490
        %v748 = vpack.c.bf16 %v668, %v668
        %v749 = vpack.c.bf16 %v582, %v493
        %v750 = vpack.c.bf16 %v671, %v671
        %v751 = vpack.c.bf16 %v584, %v495
        %v752 = vpack.c.bf16 %v673, %v673
        %v753 = vpack.c.bf16 %v587, %v498
        %v754 = vpack.c.bf16 %v676, %v676
        %v755 = vpack.c.bf16 %v589, %v500
        %v756 = vpack.c.bf16 %v678, %v678
        %v757 = vpack.c.bf16 %v592, %v503
        %v758 = vpack.c.bf16 %v681, %v681
        %v759 = vpack.c.bf16 %v594, %v505
        %v760 = vpack.c.bf16 %v683, %v683
        %v761 = vpack.c.bf16 %v597, %v508
        %v762 = vpack.c.bf16 %v686, %v686
        %v763 = vpack.c.bf16 %v599, %v510
        %v764 = vpack.c.bf16 %v688, %v688
        %v765 = vpack.c.bf16 %v602, %v513
        %v766 = vpack.c.bf16 %v691, %v691
        %v767 = vpack.c.bf16 %v604, %v515
        %v768 = vpack.c.bf16 %v693, %v693
        %v769 = vpack.c.bf16 %v607, %v518
        %v770 = vpack.c.bf16 %v696, %v696
        %v771 = vpack.c.bf16 %v609, %v520
        %v772 = vpack.c.bf16 %v698, %v698
        %v773 = vpack.c.bf16 %v612, %v523
        %v774 = vpack.c.bf16 %v701, %v701
        %v775 = vpack.c.bf16 %v614, %v525
        %v776 = vpack.c.bf16 %v703, %v703
        %v777 = vpack.c.bf16 %v617, %v528
        %v778 = vpack.c.bf16 %v706, %v706
        %v779 = vpack.c.bf16 %v619, %v530
        %v780 = vpack.c.bf16 %v708, %v708
        %v781 = vpack.c.bf16 %v622, %v533
        %v782 = vpack.c.bf16 %v711, %v711
        %v783 = vpack.c.bf16 %v624, %v535
        %v784 = vpack.c.bf16 %v713, %v713
        %v785 = vpack.c.bf16 %v627, %v538
        %v786 = vpack.c.bf16 %v716, %v716
        %v787 = vpack.c.bf16 %v629, %v540
        %v788 = vpack.c.bf16 %v718, %v718
        %v789 = vpack.c.bf16 %v632, %v543
        %v790 = vpack.c.bf16 %v721, %v721
        %v791 = vpack.c.bf16 %v634, %v545
        %v792 = vpack.c.bf16 %v723, %v723
        %v793 = vpack.c.bf16 %v637, %v548
        %v794 = vpack.c.bf16 %v726, %v726
        %v795 = vpack.c.bf16 %v639, %v550
        %v796 = vpack.c.bf16 %v728, %v728
        %v797 = vpack.c.bf16 %v642, %v553
        %v798 = vpack.c.bf16 %v731, %v731
        %v799 = vpack.c.bf16 %v644, %v555
        %v800 = vpack.c.bf16 %v733, %v733
        %v801 = vpack.c.bf16 %v647, %v558
        %v802 = vpack.c.bf16 %v736, %v736
        %v803 = vpack.c.bf16 %v649, %v560
        %v804 = vpack.c.bf16 %v738, %v738
        %v805 = vpack.c.bf16 %v652, %v563
        %v806 = vpack.c.bf16 %v741, %v741
        %v807 = vpack.c.bf16 %v654, %v565
        %v808 = vpack.c.bf16 %v743, %v743
        %809 = vst [vmem:[#allocation2] sm:$0xff] %v745
        %810 = vst [vmem:[#allocation2 + $0x8] sm:$0xf] %v746
        %811 = vst [vmem:[#allocation2 + $0xc] sm:$0xff] %v747
        %812 = vst [vmem:[#allocation2 + $0x14] sm:$0xf] %v748
        %813 = vst [vmem:[#allocation2 + $0x18] sm:$0xff] %v749
        %814 = vst [vmem:[#allocation2 + $0x20] sm:$0xf] %v750
        %815 = vst [vmem:[#allocation2 + $0x24] sm:$0xff] %v751
        %816 = vst [vmem:[#allocation2 + $0x2c] sm:$0xf] %v752
        %817 = vst [vmem:[#allocation2 + $0x30] sm:$0xff] %v753
        %818 = vst [vmem:[#allocation2 + $0x38] sm:$0xf] %v754
        %819 = vst [vmem:[#allocation2 + $0x3c] sm:$0xff] %v755
        %820 = vst [vmem:[#allocation2 + $0x44] sm:$0xf] %v756
        %821 = vst [vmem:[#allocation2 + $0x48] sm:$0xff] %v757
        %822 = vst [vmem:[#allocation2 + $0x50] sm:$0xf] %v758
        %823 = vst [vmem:[#allocation2 + $0x54] sm:$0xff] %v759
        %824 = vst [vmem:[#allocation2 + $0x5c] sm:$0xf] %v760
        %825 = vst [vmem:[#allocation2 + $0x60] sm:$0xff] %v761
        %826 = vst [vmem:[#allocation2 + $0x68] sm:$0xf] %v762
        %827 = vst [vmem:[#allocation2 + $0x6c] sm:$0xff] %v763
        %828 = vst [vmem:[#allocation2 + $0x74] sm:$0xf] %v764
        %829 = vst [vmem:[#allocation2 + $0x78] sm:$0xff] %v765
        %830 = vst [vmem:[#allocation2 + $0x80] sm:$0xf] %v766
        %831 = vst [vmem:[#allocation2 + $0x84] sm:$0xff] %v767
        %832 = vst [vmem:[#allocation2 + $0x8c] sm:$0xf] %v768
        %833 = vst [vmem:[#allocation2 + $0x90] sm:$0xff] %v769
        %834 = vst [vmem:[#allocation2 + $0x98] sm:$0xf] %v770
        %835 = vst [vmem:[#allocation2 + $0x9c] sm:$0xff] %v771
        %836 = vst [vmem:[#allocation2 + $0xa4] sm:$0xf] %v772
        %837 = vst [vmem:[#allocation2 + $0xa8] sm:$0xff] %v773
        %838 = vst [vmem:[#allocation2 + $0xb0] sm:$0xf] %v774
        %839 = vst [vmem:[#allocation2 + $0xb4] sm:$0xff] %v775
        %840 = vst [vmem:[#allocation2 + $0xbc] sm:$0xf] %v776
        %841 = vst [vmem:[#allocation2 + $0xc0] sm:$0xff] %v777
        %842 = vst [vmem:[#allocation2 + $0xc8] sm:$0xf] %v778
        %843 = vst [vmem:[#allocation2 + $0xcc] sm:$0xff] %v779
        %844 = vst [vmem:[#allocation2 + $0xd4] sm:$0xf] %v780
        %845 = vst [vmem:[#allocation2 + $0xd8] sm:$0xff] %v781
        %846 = vst [vmem:[#allocation2 + $0xe0] sm:$0xf] %v782
        %847 = vst [vmem:[#allocation2 + $0xe4] sm:$0xff] %v783
        %848 = vst [vmem:[#allocation2 + $0xec] sm:$0xf] %v784
        %849 = vst [vmem:[#allocation2 + $0xf0] sm:$0xff] %v785
        %850 = vst [vmem:[#allocation2 + $0xf8] sm:$0xf] %v786
        %851 = vst [vmem:[#allocation2 + $0xfc] sm:$0xff] %v787
        %852 = vst [vmem:[#allocation2 + $0x104] sm:$0xf] %v788
        %853 = vst [vmem:[#allocation2 + $0x108] sm:$0xff] %v789
        %854 = vst [vmem:[#allocation2 + $0x110] sm:$0xf] %v790
        %855 = vst [vmem:[#allocation2 + $0x114] sm:$0xff] %v791
        %856 = vst [vmem:[#allocation2 + $0x11c] sm:$0xf] %v792
        %857 = vst [vmem:[#allocation2 + $0x120] sm:$0xff] %v793
        %858 = vst [vmem:[#allocation2 + $0x128] sm:$0xf] %v794
        %859 = vst [vmem:[#allocation2 + $0x12c] sm:$0xff] %v795
        %860 = vst [vmem:[#allocation2 + $0x134] sm:$0xf] %v796
        %861 = vst [vmem:[#allocation2 + $0x138] sm:$0xff] %v797
        %862 = vst [vmem:[#allocation2 + $0x140] sm:$0xf] %v798
        %863 = vst [vmem:[#allocation2 + $0x144] sm:$0xff] %v799
        %864 = vst [vmem:[#allocation2 + $0x14c] sm:$0xf] %v800
        %865 = vst [vmem:[#allocation2 + $0x150] sm:$0xff] %v801
        %866 = vst [vmem:[#allocation2 + $0x158] sm:$0xf] %v802
        %867 = vst [vmem:[#allocation2 + $0x15c] sm:$0xff] %v803
        %868 = vst [vmem:[#allocation2 + $0x164] sm:$0xf] %v804
        %869 = vst [vmem:[#allocation2 + $0x168] sm:$0xff] %v805
        %870 = vst [vmem:[#allocation2 + $0x170] sm:$0xf] %v806
        %871 = vst [vmem:[#allocation2 + $0x174] sm:$0xff] %v807
        %872 = vst [vmem:[#allocation2 + $0x17c] sm:$0xf] %v808
        %v873 = vld [vmem:[#allocation2] sm:$0xf]
        %v874 = vld [vmem:[#allocation2 + $0xc] sm:$0xf]
        %v875 = vld [vmem:[#allocation2 + $0x18] sm:$0xf]
        %v876 = vld [vmem:[#allocation2 + $0x24] sm:$0xf]
        %v877 = vld [vmem:[#allocation2 + $0x30] sm:$0xf]
        %v878 = vld [vmem:[#allocation2 + $0x3c] sm:$0xf]
        %v879 = vld [vmem:[#allocation2 + $0x48] sm:$0xf]
        %v880 = vld [vmem:[#allocation2 + $0x54] sm:$0xf]
        %v881 = vld [vmem:[#allocation2 + $0x60] sm:$0xf]
        %v882 = vld [vmem:[#allocation2 + $0x6c] sm:$0xf]
        %v883 = vld [vmem:[#allocation2 + $0x78] sm:$0xf]
        %v884 = vld [vmem:[#allocation2 + $0x84] sm:$0xf]
        %v885 = vld [vmem:[#allocation2 + $0x90] sm:$0xf]
        %v886 = vld [vmem:[#allocation2 + $0x9c] sm:$0xf]
        %v887 = vld [vmem:[#allocation2 + $0xa8] sm:$0xf]
        %v888 = vld [vmem:[#allocation2 + $0xb4] sm:$0xf]
        %v889 = vld [vmem:[#allocation2 + $0xc0] sm:$0xf]
        %v890 = vld [vmem:[#allocation2 + $0xcc] sm:$0xf]
        %v891 = vld [vmem:[#allocation2 + $0xd8] sm:$0xf]
        %v892 = vld [vmem:[#allocation2 + $0xe4] sm:$0xf]
        %v893 = vld [vmem:[#allocation2 + $0xf0] sm:$0xf]
        %v894 = vld [vmem:[#allocation2 + $0xfc] sm:$0xf]
        %v895 = vld [vmem:[#allocation2 + $0x108] sm:$0xf]
        %v896 = vld [vmem:[#allocation2 + $0x114] sm:$0xf]
        %v897 = vld [vmem:[#allocation2 + $0x120] sm:$0xf]
        %v898 = vld [vmem:[#allocation2 + $0x12c] sm:$0xf]
        %v899 = vld [vmem:[#allocation2 + $0x138] sm:$0xf]
        %v900 = vld [vmem:[#allocation2 + $0x144] sm:$0xf]
        %v901 = vld [vmem:[#allocation2 + $0x150] sm:$0xf]
        %v902 = vld [vmem:[#allocation2 + $0x15c] sm:$0xf]
        %v903 = vld [vmem:[#allocation2 + $0x168] sm:$0xf]
        %v904 = vld [vmem:[#allocation2 + $0x174] sm:$0xf]
        %v905 = vld [vmem:[#allocation2 + $0x4] sm:$0xf]
        %v906 = vld [vmem:[#allocation2 + $0x10] sm:$0xf]
        %v907 = vld [vmem:[#allocation2 + $0x1c] sm:$0xf]
        %v908 = vld [vmem:[#allocation2 + $0x28] sm:$0xf]
        %v909 = vld [vmem:[#allocation2 + $0x34] sm:$0xf]
        %v910 = vld [vmem:[#allocation2 + $0x40] sm:$0xf]
        %v911 = vld [vmem:[#allocation2 + $0x4c] sm:$0xf]
        %v912 = vld [vmem:[#allocation2 + $0x58] sm:$0xf]
        %v913 = vld [vmem:[#allocation2 + $0x64] sm:$0xf]
        %v914 = vld [vmem:[#allocation2 + $0x70] sm:$0xf]
        %v915 = vld [vmem:[#allocation2 + $0x7c] sm:$0xf]
        %v916 = vld [vmem:[#allocation2 + $0x88] sm:$0xf]
        %v917 = vld [vmem:[#allocation2 + $0x94] sm:$0xf]
        %v918 = vld [vmem:[#allocation2 + $0xa0] sm:$0xf]
        %v919 = vld [vmem:[#allocation2 + $0xac] sm:$0xf]
        %v920 = vld [vmem:[#allocation2 + $0xb8] sm:$0xf]
        %v921 = vld [vmem:[#allocation2 + $0xc4] sm:$0xf]
        %v922 = vld [vmem:[#allocation2 + $0xd0] sm:$0xf]
        %v923 = vld [vmem:[#allocation2 + $0xdc] sm:$0xf]
        %v924 = vld [vmem:[#allocation2 + $0xe8] sm:$0xf]
        %v925 = vld [vmem:[#allocation2 + $0xf4] sm:$0xf]
        %v926 = vld [vmem:[#allocation2 + $0x100] sm:$0xf]
        %v927 = vld [vmem:[#allocation2 + $0x10c] sm:$0xf]
        %v928 = vld [vmem:[#allocation2 + $0x118] sm:$0xf]
        %v929 = vld [vmem:[#allocation2 + $0x124] sm:$0xf]
        %v930 = vld [vmem:[#allocation2 + $0x130] sm:$0xf]
        %v931 = vld [vmem:[#allocation2 + $0x13c] sm:$0xf]
        %v932 = vld [vmem:[#allocation2 + $0x148] sm:$0xf]
        %v933 = vld [vmem:[#allocation2 + $0x154] sm:$0xf]
        %v934 = vld [vmem:[#allocation2 + $0x160] sm:$0xf]
        %v935 = vld [vmem:[#allocation2 + $0x16c] sm:$0xf]
        %v936 = vld [vmem:[#allocation2 + $0x178] sm:$0xf]
        %v937 = vld [vmem:[#allocation2 + $0x8] sm:$0xf]
        %v938 = vld [vmem:[#allocation2 + $0x14] sm:$0xf]
        %v939 = vld [vmem:[#allocation2 + $0x20] sm:$0xf]
        %v940 = vld [vmem:[#allocation2 + $0x2c] sm:$0xf]
        %v941 = vld [vmem:[#allocation2 + $0x38] sm:$0xf]
        %v942 = vld [vmem:[#allocation2 + $0x44] sm:$0xf]
        %v943 = vld [vmem:[#allocation2 + $0x50] sm:$0xf]
        %v944 = vld [vmem:[#allocation2 + $0x5c] sm:$0xf]
        %v945 = vld [vmem:[#allocation2 + $0x68] sm:$0xf]
        %v946 = vld [vmem:[#allocation2 + $0x74] sm:$0xf]
        %v947 = vld [vmem:[#allocation2 + $0x80] sm:$0xf]
        %v948 = vld [vmem:[#allocation2 + $0x8c] sm:$0xf]
        %v949 = vld [vmem:[#allocation2 + $0x98] sm:$0xf]
        %v950 = vld [vmem:[#allocation2 + $0xa4] sm:$0xf]
        %v951 = vld [vmem:[#allocation2 + $0xb0] sm:$0xf]
        %v952 = vld [vmem:[#allocation2 + $0xbc] sm:$0xf]
        %v953 = vld [vmem:[#allocation2 + $0xc8] sm:$0xf]
        %v954 = vld [vmem:[#allocation2 + $0xd4] sm:$0xf]
        %v955 = vld [vmem:[#allocation2 + $0xe0] sm:$0xf]
        %v956 = vld [vmem:[#allocation2 + $0xec] sm:$0xf]
        %v957 = vld [vmem:[#allocation2 + $0xf8] sm:$0xf]
        %v958 = vld [vmem:[#allocation2 + $0x104] sm:$0xf]
        %v959 = vld [vmem:[#allocation2 + $0x110] sm:$0xf]
        %v960 = vld [vmem:[#allocation2 + $0x11c] sm:$0xf]
        %v961 = vld [vmem:[#allocation2 + $0x128] sm:$0xf]
        %v962 = vld [vmem:[#allocation2 + $0x134] sm:$0xf]
        %v963 = vld [vmem:[#allocation2 + $0x140] sm:$0xf]
        %v964 = vld [vmem:[#allocation2 + $0x14c] sm:$0xf]
        %v965 = vld [vmem:[#allocation2 + $0x158] sm:$0xf]
        %v966 = vld [vmem:[#allocation2 + $0x164] sm:$0xf]
        %v967 = vld [vmem:[#allocation2 + $0x170] sm:$0xf]
        %v968 = vld [vmem:[#allocation2 + $0x17c] sm:$0xf]
        %v1001 = vunpack.c.l.b16 %v873
        %v1002 = vunpack.c.l.b16 %v874
        %v1003 = vunpack.c.l.b16 %v875
        %v1004 = vunpack.c.l.b16 %v876
        %v1005 = vunpack.c.l.b16 %v877
        %v1006 = vunpack.c.l.b16 %v878
        %v1007 = vunpack.c.l.b16 %v879
        %v1008 = vunpack.c.l.b16 %v880
        %v1009 = vunpack.c.l.b16 %v881
        %v1010 = vunpack.c.l.b16 %v882
        %v1011 = vunpack.c.l.b16 %v883
        %v1012 = vunpack.c.l.b16 %v884
        %v1013 = vunpack.c.l.b16 %v885
        %v1014 = vunpack.c.l.b16 %v886
        %v1015 = vunpack.c.l.b16 %v887
        %v1016 = vunpack.c.l.b16 %v888
        %v1017 = vunpack.c.l.b16 %v889
        %v1018 = vunpack.c.l.b16 %v890
        %v1019 = vunpack.c.l.b16 %v891
        %v1020 = vunpack.c.l.b16 %v892
        %v1021 = vunpack.c.l.b16 %v893
        %v1022 = vunpack.c.l.b16 %v894
        %v1023 = vunpack.c.l.b16 %v895
        %v1024 = vunpack.c.l.b16 %v896
        %v1025 = vunpack.c.l.b16 %v897
        %v1026 = vunpack.c.l.b16 %v898
        %v1027 = vunpack.c.l.b16 %v899
        %v1028 = vunpack.c.l.b16 %v900
        %v1029 = vunpack.c.l.b16 %v901
        %v1030 = vunpack.c.l.b16 %v902
        %v1031 = vunpack.c.l.b16 %v903
        %v1032 = vunpack.c.l.b16 %v904
        %v1033 = vpack.c.b16 %v1002, %v1001
        %v1034 = vpack.c.b16 %v1004, %v1003
        %v1035 = vpack.c.b16 %v1006, %v1005
        %v1036 = vpack.c.b16 %v1008, %v1007
        %v1037 = vpack.c.b16 %v1010, %v1009
        %v1038 = vpack.c.b16 %v1012, %v1011
        %v1039 = vpack.c.b16 %v1014, %v1013
        %v1040 = vpack.c.b16 %v1016, %v1015
        %v1041 = vpack.c.b16 %v1018, %v1017
        %v1042 = vpack.c.b16 %v1020, %v1019
        %v1043 = vpack.c.b16 %v1022, %v1021
        %v1044 = vpack.c.b16 %v1024, %v1023
        %v1045 = vpack.c.b16 %v1026, %v1025
        %v1046 = vpack.c.b16 %v1028, %v1027
        %v1047 = vpack.c.b16 %v1030, %v1029
        %v1048 = vpack.c.b16 %v1032, %v1031
        %v1081 = vunpack.c.l.b16 %v905
        %v1082 = vunpack.c.l.b16 %v906
        %v1083 = vunpack.c.l.b16 %v907
        %v1084 = vunpack.c.l.b16 %v908
        %v1085 = vunpack.c.l.b16 %v909
        %v1086 = vunpack.c.l.b16 %v910
        %v1087 = vunpack.c.l.b16 %v911
        %v1088 = vunpack.c.l.b16 %v912
        %v1089 = vunpack.c.l.b16 %v913
        %v1090 = vunpack.c.l.b16 %v914
        %v1091 = vunpack.c.l.b16 %v915
        %v1092 = vunpack.c.l.b16 %v916
        %v1093 = vunpack.c.l.b16 %v917
        %v1094 = vunpack.c.l.b16 %v918
        %v1095 = vunpack.c.l.b16 %v919
        %v1096 = vunpack.c.l.b16 %v920
        %v1097 = vunpack.c.l.b16 %v921
        %v1098 = vunpack.c.l.b16 %v922
        %v1099 = vunpack.c.l.b16 %v923
        %v1100 = vunpack.c.l.b16 %v924
        %v1101 = vunpack.c.l.b16 %v925
        %v1102 = vunpack.c.l.b16 %v926
        %v1103 = vunpack.c.l.b16 %v927
        %v1104 = vunpack.c.l.b16 %v928
        %v1105 = vunpack.c.l.b16 %v929
        %v1106 = vunpack.c.l.b16 %v930
        %v1107 = vunpack.c.l.b16 %v931
        %v1108 = vunpack.c.l.b16 %v932
        %v1109 = vunpack.c.l.b16 %v933
        %v1110 = vunpack.c.l.b16 %v934
        %v1111 = vunpack.c.l.b16 %v935
        %v1112 = vunpack.c.l.b16 %v936
        %v1113 = vpack.c.b16 %v1082, %v1081
        %v1114 = vpack.c.b16 %v1084, %v1083
        %v1115 = vpack.c.b16 %v1086, %v1085
        %v1116 = vpack.c.b16 %v1088, %v1087
        %v1117 = vpack.c.b16 %v1090, %v1089
        %v1118 = vpack.c.b16 %v1092, %v1091
        %v1119 = vpack.c.b16 %v1094, %v1093
        %v1120 = vpack.c.b16 %v1096, %v1095
        %v1121 = vpack.c.b16 %v1098, %v1097
        %v1122 = vpack.c.b16 %v1100, %v1099
        %v1123 = vpack.c.b16 %v1102, %v1101
        %v1124 = vpack.c.b16 %v1104, %v1103
        %v1125 = vpack.c.b16 %v1106, %v1105
        %v1126 = vpack.c.b16 %v1108, %v1107
        %v1127 = vpack.c.b16 %v1110, %v1109
        %v1128 = vpack.c.b16 %v1112, %v1111
        %vm1129 = vcmask 261120
        %v1131 = vsel %vm1129, %v1033, 0
        %v1134 = vsel %vm1129, %v1034, 0
        %v1137 = vsel %vm1129, %v1035, 0
        %v1140 = vsel %vm1129, %v1036, 0
        %v1143 = vsel %vm1129, %v1037, 0
        %v1146 = vsel %vm1129, %v1038, 0
        %v1149 = vsel %vm1129, %v1039, 0
        %v1152 = vsel %vm1129, %v1040, 0
        %v1155 = vsel %vm1129, %v1041, 0
        %v1158 = vsel %vm1129, %v1042, 0
        %v1161 = vsel %vm1129, %v1043, 0
        %v1164 = vsel %vm1129, %v1044, 0
        %v1167 = vsel %vm1129, %v1045, 0
        %v1170 = vsel %vm1129, %v1046, 0
        %v1173 = vsel %vm1129, %v1047, 0
        %v1176 = vsel %vm1129, %v1048, 0
        %v1179 = vsel %vm1129, %v1113, 0
        %v1182 = vsel %vm1129, %v1114, 0
        %v1185 = vsel %vm1129, %v1115, 0
        %v1188 = vsel %vm1129, %v1116, 0
        %v1191 = vsel %vm1129, %v1117, 0
        %v1194 = vsel %vm1129, %v1118, 0
        %v1197 = vsel %vm1129, %v1119, 0
        %v1200 = vsel %vm1129, %v1120, 0
        %v1203 = vsel %vm1129, %v1121, 0
        %v1206 = vsel %vm1129, %v1122, 0
        %v1209 = vsel %vm1129, %v1123, 0
        %v1212 = vsel %vm1129, %v1124, 0
        %v1215 = vsel %vm1129, %v1125, 0
        %v1218 = vsel %vm1129, %v1126, 0
        %v1221 = vsel %vm1129, %v1127, 0
        %v1224 = vsel %vm1129, %v1128, 0
        %1226 = vmatpush.bf16.xpose.msra.mxu0 %v1200
        %1227 = vmatpush.bf16.xpose.msra.mxu0 %v1197
        %1228 = vmatpush.bf16.xpose.msra.mxu0 %v1194
        %1229 = vmatpush.bf16.xpose.msra.mxu0 %v1191
        %1230 = vmatpush.bf16.xpose.msra.mxu0 %v1188
        %1231 = vmatpush.bf16.xpose.msra.mxu0 %v1185
        %1232 = vmatpush.bf16.xpose.msra.mxu0 %v1182
        %1233 = vmatpush.bf16.xpose.msra.mxu0 %v1179
        %1234 = vmatmul.bf16.gmra.mxu0 %v1131
        %v1235 = vpop.f32.mrf.mxu0
        %v1236 = vadd.f32 0.0, %v1235
        %v1237 = vpop.f32.mrf.mxu0
        %v1238 = vadd.f32 0.0, %v1237
        %1239 = vmatmul.bf16.gmra.mxu0 %v1134
        %v1240 = vpop.f32.mrf.mxu0
        %v1241 = vadd.f32 0.0, %v1240
        %v1242 = vpop.f32.mrf.mxu0
        %v1243 = vadd.f32 0.0, %v1242
        %1244 = vmatmul.bf16.gmra.mxu0 %v1137
        %v1245 = vpop.f32.mrf.mxu0
        %v1246 = vadd.f32 0.0, %v1245
        %v1247 = vpop.f32.mrf.mxu0
        %v1248 = vadd.f32 0.0, %v1247
        %1249 = vmatmul.bf16.gmra.mxu0 %v1140
        %v1250 = vpop.f32.mrf.mxu0
        %v1251 = vadd.f32 0.0, %v1250
        %v1252 = vpop.f32.mrf.mxu0
        %v1253 = vadd.f32 0.0, %v1252
        %1254 = vmatmul.bf16.gmra.mxu0 %v1143
        %v1255 = vpop.f32.mrf.mxu0
        %v1256 = vadd.f32 0.0, %v1255
        %v1257 = vpop.f32.mrf.mxu0
        %v1258 = vadd.f32 0.0, %v1257
        %1259 = vmatmul.bf16.gmra.mxu0 %v1146
        %v1260 = vpop.f32.mrf.mxu0
        %v1261 = vadd.f32 0.0, %v1260
        %v1262 = vpop.f32.mrf.mxu0
        %v1263 = vadd.f32 0.0, %v1262
        %1264 = vmatmul.bf16.gmra.mxu0 %v1149
        %v1265 = vpop.f32.mrf.mxu0
        %v1266 = vadd.f32 0.0, %v1265
        %v1267 = vpop.f32.mrf.mxu0
        %v1268 = vadd.f32 0.0, %v1267
        %1269 = vmatmul.bf16.gmra.mxu0 %v1152
        %v1270 = vpop.f32.mrf.mxu0
        %v1271 = vadd.f32 0.0, %v1270
        %v1272 = vpop.f32.mrf.mxu0
        %v1273 = vadd.f32 0.0, %v1272
        %1274 = vmatmul.bf16.gmra.mxu0 %v1155
        %v1275 = vpop.f32.mrf.mxu0
        %v1276 = vadd.f32 0.0, %v1275
        %v1277 = vpop.f32.mrf.mxu0
        %v1278 = vadd.f32 0.0, %v1277
        %1279 = vmatmul.bf16.gmra.mxu0 %v1158
        %v1280 = vpop.f32.mrf.mxu0
        %v1281 = vadd.f32 0.0, %v1280
        %v1282 = vpop.f32.mrf.mxu0
        %v1283 = vadd.f32 0.0, %v1282
        %1284 = vmatmul.bf16.gmra.mxu0 %v1161
        %v1285 = vpop.f32.mrf.mxu0
        %v1286 = vadd.f32 0.0, %v1285
        %v1287 = vpop.f32.mrf.mxu0
        %v1288 = vadd.f32 0.0, %v1287
        %1289 = vmatmul.bf16.gmra.mxu0 %v1164
        %v1290 = vpop.f32.mrf.mxu0
        %v1291 = vadd.f32 0.0, %v1290
        %v1292 = vpop.f32.mrf.mxu0
        %v1293 = vadd.f32 0.0, %v1292
        %1294 = vmatmul.bf16.gmra.mxu0 %v1167
        %v1295 = vpop.f32.mrf.mxu0
        %v1296 = vadd.f32 0.0, %v1295
        %v1297 = vpop.f32.mrf.mxu0
        %v1298 = vadd.f32 0.0, %v1297
        %1299 = vmatmul.bf16.gmra.mxu0 %v1170
        %v1300 = vpop.f32.mrf.mxu0
        %v1301 = vadd.f32 0.0, %v1300
        %v1302 = vpop.f32.mrf.mxu0
        %v1303 = vadd.f32 0.0, %v1302
        %1304 = vmatmul.bf16.gmra.mxu0 %v1173
        %v1305 = vpop.f32.mrf.mxu0
        %v1306 = vadd.f32 0.0, %v1305
        %v1307 = vpop.f32.mrf.mxu0
        %v1308 = vadd.f32 0.0, %v1307
        %1309 = vmatmul.bf16.gmra.mxu0 %v1176
        %v1310 = vpop.f32.mrf.mxu0
        %v1311 = vadd.f32 0.0, %v1310
        %v1312 = vpop.f32.mrf.mxu0
        %v1313 = vadd.f32 0.0, %v1312
        %1314 = vdwg.mxu0
        %1315 = vmatpush.bf16.xpose.msra.mxu0 %v1224
        %1316 = vmatpush.bf16.xpose.msra.mxu0 %v1221
        %1317 = vmatpush.bf16.xpose.msra.mxu0 %v1218
        %1318 = vmatpush.bf16.xpose.msra.mxu0 %v1215
        %1319 = vmatpush.bf16.xpose.msra.mxu0 %v1212
        %1320 = vmatpush.bf16.xpose.msra.mxu0 %v1209
        %1321 = vmatpush.bf16.xpose.msra.mxu0 %v1206
        %1322 = vmatpush.bf16.xpose.msra.mxu0 %v1203
        %1323 = vmatmul.bf16.gmra.mxu0 %v1131
        %v1324 = vpop.f32.mrf.mxu0
        %v1325 = vadd.f32 0.0, %v1324
        %v1326 = vpop.f32.mrf.mxu0
        %v1327 = vadd.f32 0.0, %v1326
        %1328 = vmatmul.bf16.gmra.mxu0 %v1134
        %v1329 = vpop.f32.mrf.mxu0
        %v1330 = vadd.f32 0.0, %v1329
        %v1331 = vpop.f32.mrf.mxu0
        %v1332 = vadd.f32 0.0, %v1331
        %1333 = vmatmul.bf16.gmra.mxu0 %v1137
        %v1334 = vpop.f32.mrf.mxu0
        %v1335 = vadd.f32 0.0, %v1334
        %v1336 = vpop.f32.mrf.mxu0
        %v1337 = vadd.f32 0.0, %v1336
        %1338 = vmatmul.bf16.gmra.mxu0 %v1140
        %v1339 = vpop.f32.mrf.mxu0
        %v1340 = vadd.f32 0.0, %v1339
        %v1341 = vpop.f32.mrf.mxu0
        %v1342 = vadd.f32 0.0, %v1341
        %1343 = vmatmul.bf16.gmra.mxu0 %v1143
        %v1344 = vpop.f32.mrf.mxu0
        %v1345 = vadd.f32 0.0, %v1344
        %v1346 = vpop.f32.mrf.mxu0
        %v1347 = vadd.f32 0.0, %v1346
        %1348 = vmatmul.bf16.gmra.mxu0 %v1146
        %v1349 = vpop.f32.mrf.mxu0
        %v1350 = vadd.f32 0.0, %v1349
        %v1351 = vpop.f32.mrf.mxu0
        %v1352 = vadd.f32 0.0, %v1351
        %1353 = vmatmul.bf16.gmra.mxu0 %v1149
        %v1354 = vpop.f32.mrf.mxu0
        %v1355 = vadd.f32 0.0, %v1354
        %v1356 = vpop.f32.mrf.mxu0
        %v1357 = vadd.f32 0.0, %v1356
        %1358 = vmatmul.bf16.gmra.mxu0 %v1152
        %v1359 = vpop.f32.mrf.mxu0
        %v1360 = vadd.f32 0.0, %v1359
        %v1361 = vpop.f32.mrf.mxu0
        %v1362 = vadd.f32 0.0, %v1361
        %1363 = vmatmul.bf16.gmra.mxu0 %v1155
        %v1364 = vpop.f32.mrf.mxu0
        %v1365 = vadd.f32 0.0, %v1364
        %v1366 = vpop.f32.mrf.mxu0
        %v1367 = vadd.f32 0.0, %v1366
        %1368 = vmatmul.bf16.gmra.mxu0 %v1158
        %v1369 = vpop.f32.mrf.mxu0
        %v1370 = vadd.f32 0.0, %v1369
        %v1371 = vpop.f32.mrf.mxu0
        %v1372 = vadd.f32 0.0, %v1371
        %1373 = vmatmul.bf16.gmra.mxu0 %v1161
        %v1374 = vpop.f32.mrf.mxu0
        %v1375 = vadd.f32 0.0, %v1374
        %v1376 = vpop.f32.mrf.mxu0
        %v1377 = vadd.f32 0.0, %v1376
        %1378 = vmatmul.bf16.gmra.mxu0 %v1164
        %v1379 = vpop.f32.mrf.mxu0
        %v1380 = vadd.f32 0.0, %v1379
        %v1381 = vpop.f32.mrf.mxu0
        %v1382 = vadd.f32 0.0, %v1381
        %1383 = vmatmul.bf16.gmra.mxu0 %v1167
        %v1384 = vpop.f32.mrf.mxu0
        %v1385 = vadd.f32 0.0, %v1384
        %v1386 = vpop.f32.mrf.mxu0
        %v1387 = vadd.f32 0.0, %v1386
        %1388 = vmatmul.bf16.gmra.mxu0 %v1170
        %v1389 = vpop.f32.mrf.mxu0
        %v1390 = vadd.f32 0.0, %v1389
        %v1391 = vpop.f32.mrf.mxu0
        %v1392 = vadd.f32 0.0, %v1391
        %1393 = vmatmul.bf16.gmra.mxu0 %v1173
        %v1394 = vpop.f32.mrf.mxu0
        %v1395 = vadd.f32 0.0, %v1394
        %v1396 = vpop.f32.mrf.mxu0
        %v1397 = vadd.f32 0.0, %v1396
        %1398 = vmatmul.bf16.gmra.mxu0 %v1176
        %v1399 = vpop.f32.mrf.mxu0
        %v1400 = vadd.f32 0.0, %v1399
        %v1401 = vpop.f32.mrf.mxu0
        %v1402 = vadd.f32 0.0, %v1401
        %1403 = vdwg.mxu0
        %v1404 = vmax.f32 %v1236, %v1325
        %1405 = vmax.xlane.f32.xlu0 %v1404
        %v1406 = vpop.xlane.xlu0 %1405
        %v1407 = vmax.f32 %v1238, %v1327
        %1408 = vmax.xlane.f32.xlu0 %v1407
        %v1409 = vpop.xlane.xlu0 %1408
        %v1410 = vmax.f32 %v1241, %v1330
        %1411 = vmax.xlane.f32.xlu0 %v1410
        %v1412 = vpop.xlane.xlu0 %1411
        %v1413 = vmax.f32 %v1243, %v1332
        %1414 = vmax.xlane.f32.xlu0 %v1413
        %v1415 = vpop.xlane.xlu0 %1414
        %v1416 = vmax.f32 %v1246, %v1335
        %1417 = vmax.xlane.f32.xlu0 %v1416
        %v1418 = vpop.xlane.xlu0 %1417
        %v1419 = vmax.f32 %v1248, %v1337
        %1420 = vmax.xlane.f32.xlu0 %v1419
        %v1421 = vpop.xlane.xlu0 %1420
        %v1422 = vmax.f32 %v1251, %v1340
        %1423 = vmax.xlane.f32.xlu0 %v1422
        %v1424 = vpop.xlane.xlu0 %1423
        %v1425 = vmax.f32 %v1253, %v1342
        %1426 = vmax.xlane.f32.xlu0 %v1425
        %v1427 = vpop.xlane.xlu0 %1426
        %v1428 = vmax.f32 %v1256, %v1345
        %1429 = vmax.xlane.f32.xlu0 %v1428
        %v1430 = vpop.xlane.xlu0 %1429
        %v1431 = vmax.f32 %v1258, %v1347
        %1432 = vmax.xlane.f32.xlu0 %v1431
        %v1433 = vpop.xlane.xlu0 %1432
        %v1434 = vmax.f32 %v1261, %v1350
        %1435 = vmax.xlane.f32.xlu0 %v1434
        %v1436 = vpop.xlane.xlu0 %1435
        %v1437 = vmax.f32 %v1263, %v1352
        %1438 = vmax.xlane.f32.xlu0 %v1437
        %v1439 = vpop.xlane.xlu0 %1438
        %v1440 = vmax.f32 %v1266, %v1355
        %1441 = vmax.xlane.f32.xlu0 %v1440
        %v1442 = vpop.xlane.xlu0 %1441
        %v1443 = vmax.f32 %v1268, %v1357
        %1444 = vmax.xlane.f32.xlu0 %v1443
        %v1445 = vpop.xlane.xlu0 %1444
        %v1446 = vmax.f32 %v1271, %v1360
        %1447 = vmax.xlane.f32.xlu0 %v1446
        %v1448 = vpop.xlane.xlu0 %1447
        %v1449 = vmax.f32 %v1273, %v1362
        %1450 = vmax.xlane.f32.xlu0 %v1449
        %v1451 = vpop.xlane.xlu0 %1450
        %v1452 = vmax.f32 %v1276, %v1365
        %1453 = vmax.xlane.f32.xlu0 %v1452
        %v1454 = vpop.xlane.xlu0 %1453
        %v1455 = vmax.f32 %v1278, %v1367
        %1456 = vmax.xlane.f32.xlu0 %v1455
        %v1457 = vpop.xlane.xlu0 %1456
        %v1458 = vmax.f32 %v1281, %v1370
        %1459 = vmax.xlane.f32.xlu0 %v1458
        %v1460 = vpop.xlane.xlu0 %1459
        %v1461 = vmax.f32 %v1283, %v1372
        %1462 = vmax.xlane.f32.xlu0 %v1461
        %v1463 = vpop.xlane.xlu0 %1462
        %v1464 = vmax.f32 %v1286, %v1375
        %1465 = vmax.xlane.f32.xlu0 %v1464
        %v1466 = vpop.xlane.xlu0 %1465
        %v1467 = vmax.f32 %v1288, %v1377
        %1468 = vmax.xlane.f32.xlu0 %v1467
        %v1469 = vpop.xlane.xlu0 %1468
        %v1470 = vmax.f32 %v1291, %v1380
        %1471 = vmax.xlane.f32.xlu0 %v1470
        %v1472 = vpop.xlane.xlu0 %1471
        %v1473 = vmax.f32 %v1293, %v1382
        %1474 = vmax.xlane.f32.xlu0 %v1473
        %v1475 = vpop.xlane.xlu0 %1474
        %v1476 = vmax.f32 %v1296, %v1385
        %1477 = vmax.xlane.f32.xlu0 %v1476
        %v1478 = vpop.xlane.xlu0 %1477
        %v1479 = vmax.f32 %v1298, %v1387
        %1480 = vmax.xlane.f32.xlu0 %v1479
        %v1481 = vpop.xlane.xlu0 %1480
        %v1482 = vmax.f32 %v1301, %v1390
        %1483 = vmax.xlane.f32.xlu0 %v1482
        %v1484 = vpop.xlane.xlu0 %1483
        %v1485 = vmax.f32 %v1303, %v1392
        %1486 = vmax.xlane.f32.xlu0 %v1485
        %v1487 = vpop.xlane.xlu0 %1486
        %v1488 = vmax.f32 %v1306, %v1395
        %1489 = vmax.xlane.f32.xlu0 %v1488
        %v1490 = vpop.xlane.xlu0 %1489
        %v1491 = vmax.f32 %v1308, %v1397
        %1492 = vmax.xlane.f32.xlu0 %v1491
        %v1493 = vpop.xlane.xlu0 %1492
        %v1494 = vmax.f32 %v1311, %v1400
        %1495 = vmax.xlane.f32.xlu0 %v1494
        %v1496 = vpop.xlane.xlu0 %1495
        %v1497 = vmax.f32 %v1313, %v1402
        %1498 = vmax.xlane.f32.xlu0 %v1497
        %v1499 = vpop.xlane.xlu0 %1498
        %v1500 = vsub.f32 %v1236, %v1406
        %v1501 = vsub.f32 %v1325, %v1406
        %v1502 = vsub.f32 %v1238, %v1409
        %v1503 = vsub.f32 %v1327, %v1409
        %v1504 = vsub.f32 %v1241, %v1412
        %v1505 = vsub.f32 %v1330, %v1412
        %v1506 = vsub.f32 %v1243, %v1415
        %v1507 = vsub.f32 %v1332, %v1415
        %v1508 = vsub.f32 %v1246, %v1418
        %v1509 = vsub.f32 %v1335, %v1418
        %v1510 = vsub.f32 %v1248, %v1421
        %v1511 = vsub.f32 %v1337, %v1421
        %v1512 = vsub.f32 %v1251, %v1424
        %v1513 = vsub.f32 %v1340, %v1424
        %v1514 = vsub.f32 %v1253, %v1427
        %v1515 = vsub.f32 %v1342, %v1427
        %v1516 = vsub.f32 %v1256, %v1430
        %v1517 = vsub.f32 %v1345, %v1430
        %v1518 = vsub.f32 %v1258, %v1433
        %v1519 = vsub.f32 %v1347, %v1433
        %v1520 = vsub.f32 %v1261, %v1436
        %v1521 = vsub.f32 %v1350, %v1436
        %v1522 = vsub.f32 %v1263, %v1439
        %v1523 = vsub.f32 %v1352, %v1439
        %v1524 = vsub.f32 %v1266, %v1442
        %v1525 = vsub.f32 %v1355, %v1442
        %v1526 = vsub.f32 %v1268, %v1445
        %v1527 = vsub.f32 %v1357, %v1445
        %v1528 = vsub.f32 %v1271, %v1448
        %v1529 = vsub.f32 %v1360, %v1448
        %v1530 = vsub.f32 %v1273, %v1451
        %v1531 = vsub.f32 %v1362, %v1451
        %v1532 = vsub.f32 %v1276, %v1454
        %v1533 = vsub.f32 %v1365, %v1454
        %v1534 = vsub.f32 %v1278, %v1457
        %v1535 = vsub.f32 %v1367, %v1457
        %v1536 = vsub.f32 %v1281, %v1460
        %v1537 = vsub.f32 %v1370, %v1460
        %v1538 = vsub.f32 %v1283, %v1463
        %v1539 = vsub.f32 %v1372, %v1463
        %v1540 = vsub.f32 %v1286, %v1466
        %v1541 = vsub.f32 %v1375, %v1466
        %v1542 = vsub.f32 %v1288, %v1469
        %v1543 = vsub.f32 %v1377, %v1469
        %v1544 = vsub.f32 %v1291, %v1472
        %v1545 = vsub.f32 %v1380, %v1472
        %v1546 = vsub.f32 %v1293, %v1475
        %v1547 = vsub.f32 %v1382, %v1475
        %v1548 = vsub.f32 %v1296, %v1478
        %v1549 = vsub.f32 %v1385, %v1478
        %v1550 = vsub.f32 %v1298, %v1481
        %v1551 = vsub.f32 %v1387, %v1481
        %v1552 = vsub.f32 %v1301, %v1484
        %v1553 = vsub.f32 %v1390, %v1484
        %v1554 = vsub.f32 %v1303, %v1487
        %v1555 = vsub.f32 %v1392, %v1487
        %v1556 = vsub.f32 %v1306, %v1490
        %v1557 = vsub.f32 %v1395, %v1490
        %v1558 = vsub.f32 %v1308, %v1493
        %v1559 = vsub.f32 %v1397, %v1493
        %v1560 = vsub.f32 %v1311, %v1496
        %v1561 = vsub.f32 %v1400, %v1496
        %v1562 = vsub.f32 %v1313, %v1499
        %v1563 = vsub.f32 %v1402, %v1499
        %v1564 = vmul.f32 %v1500, 1.442695
        %v1565 = vpow.pop %v1564
        %v1566 = vmul.f32 %v1501, 1.442695
        %v1567 = vpow.pop %v1566
        %v1568 = vmul.f32 %v1502, 1.442695
        %v1569 = vpow.pop %v1568
        %v1570 = vmul.f32 %v1503, 1.442695
        %v1571 = vpow.pop %v1570
        %v1572 = vmul.f32 %v1504, 1.442695
        %v1573 = vpow.pop %v1572
        %v1574 = vmul.f32 %v1505, 1.442695
        %v1575 = vpow.pop %v1574
        %v1576 = vmul.f32 %v1506, 1.442695
        %v1577 = vpow.pop %v1576
        %v1578 = vmul.f32 %v1507, 1.442695
        %v1579 = vpow.pop %v1578
        %v1580 = vmul.f32 %v1508, 1.442695
        %v1581 = vpow.pop %v1580
        %v1582 = vmul.f32 %v1509, 1.442695
        %v1583 = vpow.pop %v1582
        %v1584 = vmul.f32 %v1510, 1.442695
        %v1585 = vpow.pop %v1584
        %v1586 = vmul.f32 %v1511, 1.442695
        %v1587 = vpow.pop %v1586
        %v1588 = vmul.f32 %v1512, 1.442695
        %v1589 = vpow.pop %v1588
        %v1590 = vmul.f32 %v1513, 1.442695
        %v1591 = vpow.pop %v1590
        %v1592 = vmul.f32 %v1514, 1.442695
        %v1593 = vpow.pop %v1592
        %v1594 = vmul.f32 %v1515, 1.442695
        %v1595 = vpow.pop %v1594
        %v1596 = vmul.f32 %v1516, 1.442695
        %v1597 = vpow.pop %v1596
        %v1598 = vmul.f32 %v1517, 1.442695
        %v1599 = vpow.pop %v1598
        %v1600 = vmul.f32 %v1518, 1.442695
        %v1601 = vpow.pop %v1600
        %v1602 = vmul.f32 %v1519, 1.442695
        %v1603 = vpow.pop %v1602
        %v1604 = vmul.f32 %v1520, 1.442695
        %v1605 = vpow.pop %v1604
        %v1606 = vmul.f32 %v1521, 1.442695
        %v1607 = vpow.pop %v1606
        %v1608 = vmul.f32 %v1522, 1.442695
        %v1609 = vpow.pop %v1608
        %v1610 = vmul.f32 %v1523, 1.442695
        %v1611 = vpow.pop %v1610
        %v1612 = vmul.f32 %v1524, 1.442695
        %v1613 = vpow.pop %v1612
        %v1614 = vmul.f32 %v1525, 1.442695
        %v1615 = vpow.pop %v1614
        %v1616 = vmul.f32 %v1526, 1.442695
        %v1617 = vpow.pop %v1616
        %v1618 = vmul.f32 %v1527, 1.442695
        %v1619 = vpow.pop %v1618
        %v1620 = vmul.f32 %v1528, 1.442695
        %v1621 = vpow.pop %v1620
        %v1622 = vmul.f32 %v1529, 1.442695
        %v1623 = vpow.pop %v1622
        %v1624 = vmul.f32 %v1530, 1.442695
        %v1625 = vpow.pop %v1624
        %v1626 = vmul.f32 %v1531, 1.442695
        %v1627 = vpow.pop %v1626
        %v1628 = vmul.f32 %v1532, 1.442695
        %v1629 = vpow.pop %v1628
        %v1630 = vmul.f32 %v1533, 1.442695
        %v1631 = vpow.pop %v1630
        %v1632 = vmul.f32 %v1534, 1.442695
        %v1633 = vpow.pop %v1632
        %v1634 = vmul.f32 %v1535, 1.442695
        %v1635 = vpow.pop %v1634
        %v1636 = vmul.f32 %v1536, 1.442695
        %v1637 = vpow.pop %v1636
        %v1638 = vmul.f32 %v1537, 1.442695
        %v1639 = vpow.pop %v1638
        %v1640 = vmul.f32 %v1538, 1.442695
        %v1641 = vpow.pop %v1640
        %v1642 = vmul.f32 %v1539, 1.442695
        %v1643 = vpow.pop %v1642
        %v1644 = vmul.f32 %v1540, 1.442695
        %v1645 = vpow.pop %v1644
        %v1646 = vmul.f32 %v1541, 1.442695
        %v1647 = vpow.pop %v1646
        %v1648 = vmul.f32 %v1542, 1.442695
        %v1649 = vpow.pop %v1648
        %v1650 = vmul.f32 %v1543, 1.442695
        %v1651 = vpow.pop %v1650
        %v1652 = vmul.f32 %v1544, 1.442695
        %v1653 = vpow.pop %v1652
        %v1654 = vmul.f32 %v1545, 1.442695
        %v1655 = vpow.pop %v1654
        %v1656 = vmul.f32 %v1546, 1.442695
        %v1657 = vpow.pop %v1656
        %v1658 = vmul.f32 %v1547, 1.442695
        %v1659 = vpow.pop %v1658
        %v1660 = vmul.f32 %v1548, 1.442695
        %v1661 = vpow.pop %v1660
        %v1662 = vmul.f32 %v1549, 1.442695
        %v1663 = vpow.pop %v1662
        %v1664 = vmul.f32 %v1550, 1.442695
        %v1665 = vpow.pop %v1664
        %v1666 = vmul.f32 %v1551, 1.442695
        %v1667 = vpow.pop %v1666
        %v1668 = vmul.f32 %v1552, 1.442695
        %v1669 = vpow.pop %v1668
        %v1670 = vmul.f32 %v1553, 1.442695
        %v1671 = vpow.pop %v1670
        %v1672 = vmul.f32 %v1554, 1.442695
        %v1673 = vpow.pop %v1672
        %v1674 = vmul.f32 %v1555, 1.442695
        %v1675 = vpow.pop %v1674
        %v1676 = vmul.f32 %v1556, 1.442695
        %v1677 = vpow.pop %v1676
        %v1678 = vmul.f32 %v1557, 1.442695
        %v1679 = vpow.pop %v1678
        %v1680 = vmul.f32 %v1558, 1.442695
        %v1681 = vpow.pop %v1680
        %v1682 = vmul.f32 %v1559, 1.442695
        %v1683 = vpow.pop %v1682
        %v1684 = vmul.f32 %v1560, 1.442695
        %v1685 = vpow.pop %v1684
        %v1686 = vmul.f32 %v1561, 1.442695
        %v1687 = vpow.pop %v1686
        %v1688 = vmul.f32 %v1562, 1.442695
        %v1689 = vpow.pop %v1688
        %v1690 = vmul.f32 %v1563, 1.442695
        %v1691 = vpow.pop %v1690
        %v1692 = vadd.f32 %v1565, %v1567
        %1693 = vadd.xlane.f32.xlu0 %v1692
        %v1694 = vpop.xlane.xlu0 %1693
        %v1695 = vadd.f32 %v1569, %v1571
        %1696 = vadd.xlane.f32.xlu0 %v1695
        %v1697 = vpop.xlane.xlu0 %1696
        %v1698 = vadd.f32 %v1573, %v1575
        %1699 = vadd.xlane.f32.xlu0 %v1698
        %v1700 = vpop.xlane.xlu0 %1699
        %v1701 = vadd.f32 %v1577, %v1579
        %1702 = vadd.xlane.f32.xlu0 %v1701
        %v1703 = vpop.xlane.xlu0 %1702
        %v1704 = vadd.f32 %v1581, %v1583
        %1705 = vadd.xlane.f32.xlu0 %v1704
        %v1706 = vpop.xlane.xlu0 %1705
        %v1707 = vadd.f32 %v1585, %v1587
        %1708 = vadd.xlane.f32.xlu0 %v1707
        %v1709 = vpop.xlane.xlu0 %1708
        %v1710 = vadd.f32 %v1589, %v1591
        %1711 = vadd.xlane.f32.xlu0 %v1710
        %v1712 = vpop.xlane.xlu0 %1711
        %v1713 = vadd.f32 %v1593, %v1595
        %1714 = vadd.xlane.f32.xlu0 %v1713
        %v1715 = vpop.xlane.xlu0 %1714
        %v1716 = vadd.f32 %v1597, %v1599
        %1717 = vadd.xlane.f32.xlu0 %v1716
        %v1718 = vpop.xlane.xlu0 %1717
        %v1719 = vadd.f32 %v1601, %v1603
        %1720 = vadd.xlane.f32.xlu0 %v1719
        %v1721 = vpop.xlane.xlu0 %1720
        %v1722 = vadd.f32 %v1605, %v1607
        %1723 = vadd.xlane.f32.xlu0 %v1722
        %v1724 = vpop.xlane.xlu0 %1723
        %v1725 = vadd.f32 %v1609, %v1611
        %1726 = vadd.xlane.f32.xlu0 %v1725
        %v1727 = vpop.xlane.xlu0 %1726
        %v1728 = vadd.f32 %v1613, %v1615
        %1729 = vadd.xlane.f32.xlu0 %v1728
        %v1730 = vpop.xlane.xlu0 %1729
        %v1731 = vadd.f32 %v1617, %v1619
        %1732 = vadd.xlane.f32.xlu0 %v1731
        %v1733 = vpop.xlane.xlu0 %1732
        %v1734 = vadd.f32 %v1621, %v1623
        %1735 = vadd.xlane.f32.xlu0 %v1734
        %v1736 = vpop.xlane.xlu0 %1735
        %v1737 = vadd.f32 %v1625, %v1627
        %1738 = vadd.xlane.f32.xlu0 %v1737
        %v1739 = vpop.xlane.xlu0 %1738
        %v1740 = vadd.f32 %v1629, %v1631
        %1741 = vadd.xlane.f32.xlu0 %v1740
        %v1742 = vpop.xlane.xlu0 %1741
        %v1743 = vadd.f32 %v1633, %v1635
        %1744 = vadd.xlane.f32.xlu0 %v1743
        %v1745 = vpop.xlane.xlu0 %1744
        %v1746 = vadd.f32 %v1637, %v1639
        %1747 = vadd.xlane.f32.xlu0 %v1746
        %v1748 = vpop.xlane.xlu0 %1747
        %v1749 = vadd.f32 %v1641, %v1643
        %1750 = vadd.xlane.f32.xlu0 %v1749
        %v1751 = vpop.xlane.xlu0 %1750
        %v1752 = vadd.f32 %v1645, %v1647
        %1753 = vadd.xlane.f32.xlu0 %v1752
        %v1754 = vpop.xlane.xlu0 %1753
        %v1755 = vadd.f32 %v1649, %v1651
        %1756 = vadd.xlane.f32.xlu0 %v1755
        %v1757 = vpop.xlane.xlu0 %1756
        %v1758 = vadd.f32 %v1653, %v1655
        %1759 = vadd.xlane.f32.xlu0 %v1758
        %v1760 = vpop.xlane.xlu0 %1759
        %v1761 = vadd.f32 %v1657, %v1659
        %1762 = vadd.xlane.f32.xlu0 %v1761
        %v1763 = vpop.xlane.xlu0 %1762
        %v1764 = vadd.f32 %v1661, %v1663
        %1765 = vadd.xlane.f32.xlu0 %v1764
        %v1766 = vpop.xlane.xlu0 %1765
        %v1767 = vadd.f32 %v1665, %v1667
        %1768 = vadd.xlane.f32.xlu0 %v1767
        %v1769 = vpop.xlane.xlu0 %1768
        %v1770 = vadd.f32 %v1669, %v1671
        %1771 = vadd.xlane.f32.xlu0 %v1770
        %v1772 = vpop.xlane.xlu0 %1771
        %v1773 = vadd.f32 %v1673, %v1675
        %1774 = vadd.xlane.f32.xlu0 %v1773
        %v1775 = vpop.xlane.xlu0 %1774
        %v1776 = vadd.f32 %v1677, %v1679
        %1777 = vadd.xlane.f32.xlu0 %v1776
        %v1778 = vpop.xlane.xlu0 %1777
        %v1779 = vadd.f32 %v1681, %v1683
        %1780 = vadd.xlane.f32.xlu0 %v1779
        %v1781 = vpop.xlane.xlu0 %1780
        %v1782 = vadd.f32 %v1685, %v1687
        %1783 = vadd.xlane.f32.xlu0 %v1782
        %v1784 = vpop.xlane.xlu0 %1783
        %v1785 = vadd.f32 %v1689, %v1691
        %1786 = vadd.xlane.f32.xlu0 %v1785
        %v1787 = vpop.xlane.xlu0 %1786
        %v1788 = vrcp.pop %v1694
        %v1789 = vmul.f32 %v1694, %v1788
        %v1790 = vsub.f32 1.0, %v1789
        %v1791 = vmul.f32 %v1788, %v1790
        %v1792 = vadd.f32 %v1788, %v1791
        %vm1793 = vweird.f32 %v1694
        %vm1794 = vweird.f32 %v1788
        %vm1795 = vmor %vm1793, %vm1794
        %v1796 = vsel %vm1795, %v1788, %v1792
        %v1797 = vand.u32 2147483647, %v1694
        %vm1798 = vcmp.eq.f32.partialorder %v1797, 8.507059e+37
        %v1799 = vand.u32 %v1694, 2147483648
        %v1800 = vor.u32 1.1754944e-38, %v1799
        %v1801 = vsel %vm1798, %v1800, %v1796
        %v1802 = vmul.f32 1.0, %v1801
        %v1803 = vrcp.pop %v1697
        %v1804 = vmul.f32 %v1697, %v1803
        %v1805 = vsub.f32 1.0, %v1804
        %v1806 = vmul.f32 %v1803, %v1805
        %v1807 = vadd.f32 %v1803, %v1806
        %vm1808 = vweird.f32 %v1697
        %vm1809 = vweird.f32 %v1803
        %vm1810 = vmor %vm1808, %vm1809
        %v1811 = vsel %vm1810, %v1803, %v1807
        %v1812 = vand.u32 2147483647, %v1697
        %vm1813 = vcmp.eq.f32.partialorder %v1812, 8.507059e+37
        %v1814 = vand.u32 %v1697, 2147483648
        %v1815 = vor.u32 1.1754944e-38, %v1814
        %v1816 = vsel %vm1813, %v1815, %v1811
        %v1817 = vmul.f32 1.0, %v1816
        %v1818 = vrcp.pop %v1700
        %v1819 = vmul.f32 %v1700, %v1818
        %v1820 = vsub.f32 1.0, %v1819
        %v1821 = vmul.f32 %v1818, %v1820
        %v1822 = vadd.f32 %v1818, %v1821
        %vm1823 = vweird.f32 %v1700
        %vm1824 = vweird.f32 %v1818
        %vm1825 = vmor %vm1823, %vm1824
        %v1826 = vsel %vm1825, %v1818, %v1822
        %v1827 = vand.u32 2147483647, %v1700
        %vm1828 = vcmp.eq.f32.partialorder %v1827, 8.507059e+37
        %v1829 = vand.u32 %v1700, 2147483648
        %v1830 = vor.u32 1.1754944e-38, %v1829
        %v1831 = vsel %vm1828, %v1830, %v1826
        %v1832 = vmul.f32 1.0, %v1831
        %v1833 = vrcp.pop %v1703
        %v1834 = vmul.f32 %v1703, %v1833
        %v1835 = vsub.f32 1.0, %v1834
        %v1836 = vmul.f32 %v1833, %v1835
        %v1837 = vadd.f32 %v1833, %v1836
        %vm1838 = vweird.f32 %v1703
        %vm1839 = vweird.f32 %v1833
        %vm1840 = vmor %vm1838, %vm1839
        %v1841 = vsel %vm1840, %v1833, %v1837
        %v1842 = vand.u32 2147483647, %v1703
        %vm1843 = vcmp.eq.f32.partialorder %v1842, 8.507059e+37
        %v1844 = vand.u32 %v1703, 2147483648
        %v1845 = vor.u32 1.1754944e-38, %v1844
        %v1846 = vsel %vm1843, %v1845, %v1841
        %v1847 = vmul.f32 1.0, %v1846
        %v1848 = vrcp.pop %v1706
        %v1849 = vmul.f32 %v1706, %v1848
        %v1850 = vsub.f32 1.0, %v1849
        %v1851 = vmul.f32 %v1848, %v1850
        %v1852 = vadd.f32 %v1848, %v1851
        %vm1853 = vweird.f32 %v1706
        %vm1854 = vweird.f32 %v1848
        %vm1855 = vmor %vm1853, %vm1854
        %v1856 = vsel %vm1855, %v1848, %v1852
        %v1857 = vand.u32 2147483647, %v1706
        %vm1858 = vcmp.eq.f32.partialorder %v1857, 8.507059e+37
        %v1859 = vand.u32 %v1706, 2147483648
        %v1860 = vor.u32 1.1754944e-38, %v1859
        %v1861 = vsel %vm1858, %v1860, %v1856
        %v1862 = vmul.f32 1.0, %v1861
        %v1863 = vrcp.pop %v1709
        %v1864 = vmul.f32 %v1709, %v1863
        %v1865 = vsub.f32 1.0, %v1864
        %v1866 = vmul.f32 %v1863, %v1865
        %v1867 = vadd.f32 %v1863, %v1866
        %vm1868 = vweird.f32 %v1709
        %vm1869 = vweird.f32 %v1863
        %vm1870 = vmor %vm1868, %vm1869
        %v1871 = vsel %vm1870, %v1863, %v1867
        %v1872 = vand.u32 2147483647, %v1709
        %vm1873 = vcmp.eq.f32.partialorder %v1872, 8.507059e+37
        %v1874 = vand.u32 %v1709, 2147483648
        %v1875 = vor.u32 1.1754944e-38, %v1874
        %v1876 = vsel %vm1873, %v1875, %v1871
        %v1877 = vmul.f32 1.0, %v1876
        %v1878 = vrcp.pop %v1712
        %v1879 = vmul.f32 %v1712, %v1878
        %v1880 = vsub.f32 1.0, %v1879
        %v1881 = vmul.f32 %v1878, %v1880
        %v1882 = vadd.f32 %v1878, %v1881
        %vm1883 = vweird.f32 %v1712
        %vm1884 = vweird.f32 %v1878
        %vm1885 = vmor %vm1883, %vm1884
        %v1886 = vsel %vm1885, %v1878, %v1882
        %v1887 = vand.u32 2147483647, %v1712
        %vm1888 = vcmp.eq.f32.partialorder %v1887, 8.507059e+37
        %v1889 = vand.u32 %v1712, 2147483648
        %v1890 = vor.u32 1.1754944e-38, %v1889
        %v1891 = vsel %vm1888, %v1890, %v1886
        %v1892 = vmul.f32 1.0, %v1891
        %v1893 = vrcp.pop %v1715
        %v1894 = vmul.f32 %v1715, %v1893
        %v1895 = vsub.f32 1.0, %v1894
        %v1896 = vmul.f32 %v1893, %v1895
        %v1897 = vadd.f32 %v1893, %v1896
        %vm1898 = vweird.f32 %v1715
        %vm1899 = vweird.f32 %v1893
        %vm1900 = vmor %vm1898, %vm1899
        %v1901 = vsel %vm1900, %v1893, %v1897
        %v1902 = vand.u32 2147483647, %v1715
        %vm1903 = vcmp.eq.f32.partialorder %v1902, 8.507059e+37
        %v1904 = vand.u32 %v1715, 2147483648
        %v1905 = vor.u32 1.1754944e-38, %v1904
        %v1906 = vsel %vm1903, %v1905, %v1901
        %v1907 = vmul.f32 1.0, %v1906
        %v1908 = vrcp.pop %v1718
        %v1909 = vmul.f32 %v1718, %v1908
        %v1910 = vsub.f32 1.0, %v1909
        %v1911 = vmul.f32 %v1908, %v1910
        %v1912 = vadd.f32 %v1908, %v1911
        %vm1913 = vweird.f32 %v1718
        %vm1914 = vweird.f32 %v1908
        %vm1915 = vmor %vm1913, %vm1914
        %v1916 = vsel %vm1915, %v1908, %v1912
        %v1917 = vand.u32 2147483647, %v1718
        %vm1918 = vcmp.eq.f32.partialorder %v1917, 8.507059e+37
        %v1919 = vand.u32 %v1718, 2147483648
        %v1920 = vor.u32 1.1754944e-38, %v1919
        %v1921 = vsel %vm1918, %v1920, %v1916
        %v1922 = vmul.f32 1.0, %v1921
        %v1923 = vrcp.pop %v1721
        %v1924 = vmul.f32 %v1721, %v1923
        %v1925 = vsub.f32 1.0, %v1924
        %v1926 = vmul.f32 %v1923, %v1925
        %v1927 = vadd.f32 %v1923, %v1926
        %vm1928 = vweird.f32 %v1721
        %vm1929 = vweird.f32 %v1923
        %vm1930 = vmor %vm1928, %vm1929
        %v1931 = vsel %vm1930, %v1923, %v1927
        %v1932 = vand.u32 2147483647, %v1721
        %vm1933 = vcmp.eq.f32.partialorder %v1932, 8.507059e+37
        %v1934 = vand.u32 %v1721, 2147483648
        %v1935 = vor.u32 1.1754944e-38, %v1934
        %v1936 = vsel %vm1933, %v1935, %v1931
        %v1937 = vmul.f32 1.0, %v1936
        %v1938 = vrcp.pop %v1724
        %v1939 = vmul.f32 %v1724, %v1938
        %v1940 = vsub.f32 1.0, %v1939
        %v1941 = vmul.f32 %v1938, %v1940
        %v1942 = vadd.f32 %v1938, %v1941
        %vm1943 = vweird.f32 %v1724
        %vm1944 = vweird.f32 %v1938
        %vm1945 = vmor %vm1943, %vm1944
        %v1946 = vsel %vm1945, %v1938, %v1942
        %v1947 = vand.u32 2147483647, %v1724
        %vm1948 = vcmp.eq.f32.partialorder %v1947, 8.507059e+37
        %v1949 = vand.u32 %v1724, 2147483648
        %v1950 = vor.u32 1.1754944e-38, %v1949
        %v1951 = vsel %vm1948, %v1950, %v1946
        %v1952 = vmul.f32 1.0, %v1951
        %v1953 = vrcp.pop %v1727
        %v1954 = vmul.f32 %v1727, %v1953
        %v1955 = vsub.f32 1.0, %v1954
        %v1956 = vmul.f32 %v1953, %v1955
        %v1957 = vadd.f32 %v1953, %v1956
        %vm1958 = vweird.f32 %v1727
        %vm1959 = vweird.f32 %v1953
        %vm1960 = vmor %vm1958, %vm1959
        %v1961 = vsel %vm1960, %v1953, %v1957
        %v1962 = vand.u32 2147483647, %v1727
        %vm1963 = vcmp.eq.f32.partialorder %v1962, 8.507059e+37
        %v1964 = vand.u32 %v1727, 2147483648
        %v1965 = vor.u32 1.1754944e-38, %v1964
        %v1966 = vsel %vm1963, %v1965, %v1961
        %v1967 = vmul.f32 1.0, %v1966
        %v1968 = vrcp.pop %v1730
        %v1969 = vmul.f32 %v1730, %v1968
        %v1970 = vsub.f32 1.0, %v1969
        %v1971 = vmul.f32 %v1968, %v1970
        %v1972 = vadd.f32 %v1968, %v1971
        %vm1973 = vweird.f32 %v1730
        %vm1974 = vweird.f32 %v1968
        %vm1975 = vmor %vm1973, %vm1974
        %v1976 = vsel %vm1975, %v1968, %v1972
        %v1977 = vand.u32 2147483647, %v1730
        %vm1978 = vcmp.eq.f32.partialorder %v1977, 8.507059e+37
        %v1979 = vand.u32 %v1730, 2147483648
        %v1980 = vor.u32 1.1754944e-38, %v1979
        %v1981 = vsel %vm1978, %v1980, %v1976
        %v1982 = vmul.f32 1.0, %v1981
        %v1983 = vrcp.pop %v1733
        %v1984 = vmul.f32 %v1733, %v1983
        %v1985 = vsub.f32 1.0, %v1984
        %v1986 = vmul.f32 %v1983, %v1985
        %v1987 = vadd.f32 %v1983, %v1986
        %vm1988 = vweird.f32 %v1733
        %vm1989 = vweird.f32 %v1983
        %vm1990 = vmor %vm1988, %vm1989
        %v1991 = vsel %vm1990, %v1983, %v1987
        %v1992 = vand.u32 2147483647, %v1733
        %vm1993 = vcmp.eq.f32.partialorder %v1992, 8.507059e+37
        %v1994 = vand.u32 %v1733, 2147483648
        %v1995 = vor.u32 1.1754944e-38, %v1994
        %v1996 = vsel %vm1993, %v1995, %v1991
        %v1997 = vmul.f32 1.0, %v1996
        %v1998 = vrcp.pop %v1736
        %v1999 = vmul.f32 %v1736, %v1998
        %v2000 = vsub.f32 1.0, %v1999
        %v2001 = vmul.f32 %v1998, %v2000
        %v2002 = vadd.f32 %v1998, %v2001
        %vm2003 = vweird.f32 %v1736
        %vm2004 = vweird.f32 %v1998
        %vm2005 = vmor %vm2003, %vm2004
        %v2006 = vsel %vm2005, %v1998, %v2002
        %v2007 = vand.u32 2147483647, %v1736
        %vm2008 = vcmp.eq.f32.partialorder %v2007, 8.507059e+37
        %v2009 = vand.u32 %v1736, 2147483648
        %v2010 = vor.u32 1.1754944e-38, %v2009
        %v2011 = vsel %vm2008, %v2010, %v2006
        %v2012 = vmul.f32 1.0, %v2011
        %v2013 = vrcp.pop %v1739
        %v2014 = vmul.f32 %v1739, %v2013
        %v2015 = vsub.f32 1.0, %v2014
        %v2016 = vmul.f32 %v2013, %v2015
        %v2017 = vadd.f32 %v2013, %v2016
        %vm2018 = vweird.f32 %v1739
        %vm2019 = vweird.f32 %v2013
        %vm2020 = vmor %vm2018, %vm2019
        %v2021 = vsel %vm2020, %v2013, %v2017
        %v2022 = vand.u32 2147483647, %v1739
        %vm2023 = vcmp.eq.f32.partialorder %v2022, 8.507059e+37
        %v2024 = vand.u32 %v1739, 2147483648
        %v2025 = vor.u32 1.1754944e-38, %v2024
        %v2026 = vsel %vm2023, %v2025, %v2021
        %v2027 = vmul.f32 1.0, %v2026
        %v2028 = vrcp.pop %v1742
        %v2029 = vmul.f32 %v1742, %v2028
        %v2030 = vsub.f32 1.0, %v2029
        %v2031 = vmul.f32 %v2028, %v2030
        %v2032 = vadd.f32 %v2028, %v2031
        %vm2033 = vweird.f32 %v1742
        %vm2034 = vweird.f32 %v2028
        %vm2035 = vmor %vm2033, %vm2034
        %v2036 = vsel %vm2035, %v2028, %v2032
        %v2037 = vand.u32 2147483647, %v1742
        %vm2038 = vcmp.eq.f32.partialorder %v2037, 8.507059e+37
        %v2039 = vand.u32 %v1742, 2147483648
        %v2040 = vor.u32 1.1754944e-38, %v2039
        %v2041 = vsel %vm2038, %v2040, %v2036
        %v2042 = vmul.f32 1.0, %v2041
        %v2043 = vrcp.pop %v1745
        %v2044 = vmul.f32 %v1745, %v2043
        %v2045 = vsub.f32 1.0, %v2044
        %v2046 = vmul.f32 %v2043, %v2045
        %v2047 = vadd.f32 %v2043, %v2046
        %vm2048 = vweird.f32 %v1745
        %vm2049 = vweird.f32 %v2043
        %vm2050 = vmor %vm2048, %vm2049
        %v2051 = vsel %vm2050, %v2043, %v2047
        %v2052 = vand.u32 2147483647, %v1745
        %vm2053 = vcmp.eq.f32.partialorder %v2052, 8.507059e+37
        %v2054 = vand.u32 %v1745, 2147483648
        %v2055 = vor.u32 1.1754944e-38, %v2054
        %v2056 = vsel %vm2053, %v2055, %v2051
        %v2057 = vmul.f32 1.0, %v2056
        %v2058 = vrcp.pop %v1748
        %v2059 = vmul.f32 %v1748, %v2058
        %v2060 = vsub.f32 1.0, %v2059
        %v2061 = vmul.f32 %v2058, %v2060
        %v2062 = vadd.f32 %v2058, %v2061
        %vm2063 = vweird.f32 %v1748
        %vm2064 = vweird.f32 %v2058
        %vm2065 = vmor %vm2063, %vm2064
        %v2066 = vsel %vm2065, %v2058, %v2062
        %v2067 = vand.u32 2147483647, %v1748
        %vm2068 = vcmp.eq.f32.partialorder %v2067, 8.507059e+37
        %v2069 = vand.u32 %v1748, 2147483648
        %v2070 = vor.u32 1.1754944e-38, %v2069
        %v2071 = vsel %vm2068, %v2070, %v2066
        %v2072 = vmul.f32 1.0, %v2071
        %v2073 = vrcp.pop %v1751
        %v2074 = vmul.f32 %v1751, %v2073
        %v2075 = vsub.f32 1.0, %v2074
        %v2076 = vmul.f32 %v2073, %v2075
        %v2077 = vadd.f32 %v2073, %v2076
        %vm2078 = vweird.f32 %v1751
        %vm2079 = vweird.f32 %v2073
        %vm2080 = vmor %vm2078, %vm2079
        %v2081 = vsel %vm2080, %v2073, %v2077
        %v2082 = vand.u32 2147483647, %v1751
        %vm2083 = vcmp.eq.f32.partialorder %v2082, 8.507059e+37
        %v2084 = vand.u32 %v1751, 2147483648
        %v2085 = vor.u32 1.1754944e-38, %v2084
        %v2086 = vsel %vm2083, %v2085, %v2081
        %v2087 = vmul.f32 1.0, %v2086
        %v2088 = vrcp.pop %v1754
        %v2089 = vmul.f32 %v1754, %v2088
        %v2090 = vsub.f32 1.0, %v2089
        %v2091 = vmul.f32 %v2088, %v2090
        %v2092 = vadd.f32 %v2088, %v2091
        %vm2093 = vweird.f32 %v1754
        %vm2094 = vweird.f32 %v2088
        %vm2095 = vmor %vm2093, %vm2094
        %v2096 = vsel %vm2095, %v2088, %v2092
        %v2097 = vand.u32 2147483647, %v1754
        %vm2098 = vcmp.eq.f32.partialorder %v2097, 8.507059e+37
        %v2099 = vand.u32 %v1754, 2147483648
        %v2100 = vor.u32 1.1754944e-38, %v2099
        %v2101 = vsel %vm2098, %v2100, %v2096
        %v2102 = vmul.f32 1.0, %v2101
        %v2103 = vrcp.pop %v1757
        %v2104 = vmul.f32 %v1757, %v2103
        %v2105 = vsub.f32 1.0, %v2104
        %v2106 = vmul.f32 %v2103, %v2105
        %v2107 = vadd.f32 %v2103, %v2106
        %vm2108 = vweird.f32 %v1757
        %vm2109 = vweird.f32 %v2103
        %vm2110 = vmor %vm2108, %vm2109
        %v2111 = vsel %vm2110, %v2103, %v2107
        %v2112 = vand.u32 2147483647, %v1757
        %vm2113 = vcmp.eq.f32.partialorder %v2112, 8.507059e+37
        %v2114 = vand.u32 %v1757, 2147483648
        %v2115 = vor.u32 1.1754944e-38, %v2114
        %v2116 = vsel %vm2113, %v2115, %v2111
        %v2117 = vmul.f32 1.0, %v2116
        %v2118 = vrcp.pop %v1760
        %v2119 = vmul.f32 %v1760, %v2118
        %v2120 = vsub.f32 1.0, %v2119
        %v2121 = vmul.f32 %v2118, %v2120
        %v2122 = vadd.f32 %v2118, %v2121
        %vm2123 = vweird.f32 %v1760
        %vm2124 = vweird.f32 %v2118
        %vm2125 = vmor %vm2123, %vm2124
        %v2126 = vsel %vm2125, %v2118, %v2122
        %v2127 = vand.u32 2147483647, %v1760
        %vm2128 = vcmp.eq.f32.partialorder %v2127, 8.507059e+37
        %v2129 = vand.u32 %v1760, 2147483648
        %v2130 = vor.u32 1.1754944e-38, %v2129
        %v2131 = vsel %vm2128, %v2130, %v2126
        %v2132 = vmul.f32 1.0, %v2131
        %v2133 = vrcp.pop %v1763
        %v2134 = vmul.f32 %v1763, %v2133
        %v2135 = vsub.f32 1.0, %v2134
        %v2136 = vmul.f32 %v2133, %v2135
        %v2137 = vadd.f32 %v2133, %v2136
        %vm2138 = vweird.f32 %v1763
        %vm2139 = vweird.f32 %v2133
        %vm2140 = vmor %vm2138, %vm2139
        %v2141 = vsel %vm2140, %v2133, %v2137
        %v2142 = vand.u32 2147483647, %v1763
        %vm2143 = vcmp.eq.f32.partialorder %v2142, 8.507059e+37
        %v2144 = vand.u32 %v1763, 2147483648
        %v2145 = vor.u32 1.1754944e-38, %v2144
        %v2146 = vsel %vm2143, %v2145, %v2141
        %v2147 = vmul.f32 1.0, %v2146
        %v2148 = vrcp.pop %v1766
        %v2149 = vmul.f32 %v1766, %v2148
        %v2150 = vsub.f32 1.0, %v2149
        %v2151 = vmul.f32 %v2148, %v2150
        %v2152 = vadd.f32 %v2148, %v2151
        %vm2153 = vweird.f32 %v1766
        %vm2154 = vweird.f32 %v2148
        %vm2155 = vmor %vm2153, %vm2154
        %v2156 = vsel %vm2155, %v2148, %v2152
        %v2157 = vand.u32 2147483647, %v1766
        %vm2158 = vcmp.eq.f32.partialorder %v2157, 8.507059e+37
        %v2159 = vand.u32 %v1766, 2147483648
        %v2160 = vor.u32 1.1754944e-38, %v2159
        %v2161 = vsel %vm2158, %v2160, %v2156
        %v2162 = vmul.f32 1.0, %v2161
        %v2163 = vrcp.pop %v1769
        %v2164 = vmul.f32 %v1769, %v2163
        %v2165 = vsub.f32 1.0, %v2164
        %v2166 = vmul.f32 %v2163, %v2165
        %v2167 = vadd.f32 %v2163, %v2166
        %vm2168 = vweird.f32 %v1769
        %vm2169 = vweird.f32 %v2163
        %vm2170 = vmor %vm2168, %vm2169
        %v2171 = vsel %vm2170, %v2163, %v2167
        %v2172 = vand.u32 2147483647, %v1769
        %vm2173 = vcmp.eq.f32.partialorder %v2172, 8.507059e+37
        %v2174 = vand.u32 %v1769, 2147483648
        %v2175 = vor.u32 1.1754944e-38, %v2174
        %v2176 = vsel %vm2173, %v2175, %v2171
        %v2177 = vmul.f32 1.0, %v2176
        %v2178 = vrcp.pop %v1772
        %v2179 = vmul.f32 %v1772, %v2178
        %v2180 = vsub.f32 1.0, %v2179
        %v2181 = vmul.f32 %v2178, %v2180
        %v2182 = vadd.f32 %v2178, %v2181
        %vm2183 = vweird.f32 %v1772
        %vm2184 = vweird.f32 %v2178
        %vm2185 = vmor %vm2183, %vm2184
        %v2186 = vsel %vm2185, %v2178, %v2182
        %v2187 = vand.u32 2147483647, %v1772
        %vm2188 = vcmp.eq.f32.partialorder %v2187, 8.507059e+37
        %v2189 = vand.u32 %v1772, 2147483648
        %v2190 = vor.u32 1.1754944e-38, %v2189
        %v2191 = vsel %vm2188, %v2190, %v2186
        %v2192 = vmul.f32 1.0, %v2191
        %v2193 = vrcp.pop %v1775
        %v2194 = vmul.f32 %v1775, %v2193
        %v2195 = vsub.f32 1.0, %v2194
        %v2196 = vmul.f32 %v2193, %v2195
        %v2197 = vadd.f32 %v2193, %v2196
        %vm2198 = vweird.f32 %v1775
        %vm2199 = vweird.f32 %v2193
        %vm2200 = vmor %vm2198, %vm2199
        %v2201 = vsel %vm2200, %v2193, %v2197
        %v2202 = vand.u32 2147483647, %v1775
        %vm2203 = vcmp.eq.f32.partialorder %v2202, 8.507059e+37
        %v2204 = vand.u32 %v1775, 2147483648
        %v2205 = vor.u32 1.1754944e-38, %v2204
        %v2206 = vsel %vm2203, %v2205, %v2201
        %v2207 = vmul.f32 1.0, %v2206
        %v2208 = vrcp.pop %v1778
        %v2209 = vmul.f32 %v1778, %v2208
        %v2210 = vsub.f32 1.0, %v2209
        %v2211 = vmul.f32 %v2208, %v2210
        %v2212 = vadd.f32 %v2208, %v2211
        %vm2213 = vweird.f32 %v1778
        %vm2214 = vweird.f32 %v2208
        %vm2215 = vmor %vm2213, %vm2214
        %v2216 = vsel %vm2215, %v2208, %v2212
        %v2217 = vand.u32 2147483647, %v1778
        %vm2218 = vcmp.eq.f32.partialorder %v2217, 8.507059e+37
        %v2219 = vand.u32 %v1778, 2147483648
        %v2220 = vor.u32 1.1754944e-38, %v2219
        %v2221 = vsel %vm2218, %v2220, %v2216
        %v2222 = vmul.f32 1.0, %v2221
        %v2223 = vrcp.pop %v1781
        %v2224 = vmul.f32 %v1781, %v2223
        %v2225 = vsub.f32 1.0, %v2224
        %v2226 = vmul.f32 %v2223, %v2225
        %v2227 = vadd.f32 %v2223, %v2226
        %vm2228 = vweird.f32 %v1781
        %vm2229 = vweird.f32 %v2223
        %vm2230 = vmor %vm2228, %vm2229
        %v2231 = vsel %vm2230, %v2223, %v2227
        %v2232 = vand.u32 2147483647, %v1781
        %vm2233 = vcmp.eq.f32.partialorder %v2232, 8.507059e+37
        %v2234 = vand.u32 %v1781, 2147483648
        %v2235 = vor.u32 1.1754944e-38, %v2234
        %v2236 = vsel %vm2233, %v2235, %v2231
        %v2237 = vmul.f32 1.0, %v2236
        %v2238 = vrcp.pop %v1784
        %v2239 = vmul.f32 %v1784, %v2238
        %v2240 = vsub.f32 1.0, %v2239
        %v2241 = vmul.f32 %v2238, %v2240
        %v2242 = vadd.f32 %v2238, %v2241
        %vm2243 = vweird.f32 %v1784
        %vm2244 = vweird.f32 %v2238
        %vm2245 = vmor %vm2243, %vm2244
        %v2246 = vsel %vm2245, %v2238, %v2242
        %v2247 = vand.u32 2147483647, %v1784
        %vm2248 = vcmp.eq.f32.partialorder %v2247, 8.507059e+37
        %v2249 = vand.u32 %v1784, 2147483648
        %v2250 = vor.u32 1.1754944e-38, %v2249
        %v2251 = vsel %vm2248, %v2250, %v2246
        %v2252 = vmul.f32 1.0, %v2251
        %v2253 = vrcp.pop %v1787
        %v2254 = vmul.f32 %v1787, %v2253
        %v2255 = vsub.f32 1.0, %v2254
        %v2256 = vmul.f32 %v2253, %v2255
        %v2257 = vadd.f32 %v2253, %v2256
        %vm2258 = vweird.f32 %v1787
        %vm2259 = vweird.f32 %v2253
        %vm2260 = vmor %vm2258, %vm2259
        %v2261 = vsel %vm2260, %v2253, %v2257
        %v2262 = vand.u32 2147483647, %v1787
        %vm2263 = vcmp.eq.f32.partialorder %v2262, 8.507059e+37
        %v2264 = vand.u32 %v1787, 2147483648
        %v2265 = vor.u32 1.1754944e-38, %v2264
        %v2266 = vsel %vm2263, %v2265, %v2261
        %v2267 = vmul.f32 1.0, %v2266
        %v2268 = vmul.f32 %v1565, %v1802
        %v2269 = vmul.f32 %v1567, %v1802
        %v2270 = vmul.f32 %v1569, %v1817
        %v2271 = vmul.f32 %v1571, %v1817
        %v2272 = vmul.f32 %v1573, %v1832
        %v2273 = vmul.f32 %v1575, %v1832
        %v2274 = vmul.f32 %v1577, %v1847
        %v2275 = vmul.f32 %v1579, %v1847
        %v2276 = vmul.f32 %v1581, %v1862
        %v2277 = vmul.f32 %v1583, %v1862
        %v2278 = vmul.f32 %v1585, %v1877
        %v2279 = vmul.f32 %v1587, %v1877
        %v2280 = vmul.f32 %v1589, %v1892
        %v2281 = vmul.f32 %v1591, %v1892
        %v2282 = vmul.f32 %v1593, %v1907
        %v2283 = vmul.f32 %v1595, %v1907
        %v2284 = vmul.f32 %v1597, %v1922
        %v2285 = vmul.f32 %v1599, %v1922
        %v2286 = vmul.f32 %v1601, %v1937
        %v2287 = vmul.f32 %v1603, %v1937
        %v2288 = vmul.f32 %v1605, %v1952
        %v2289 = vmul.f32 %v1607, %v1952
        %v2290 = vmul.f32 %v1609, %v1967
        %v2291 = vmul.f32 %v1611, %v1967
        %v2292 = vmul.f32 %v1613, %v1982
        %v2293 = vmul.f32 %v1615, %v1982
        %v2294 = vmul.f32 %v1617, %v1997
        %v2295 = vmul.f32 %v1619, %v1997
        %v2296 = vmul.f32 %v1621, %v2012
        %v2297 = vmul.f32 %v1623, %v2012
        %v2298 = vmul.f32 %v1625, %v2027
        %v2299 = vmul.f32 %v1627, %v2027
        %v2300 = vmul.f32 %v1629, %v2042
        %v2301 = vmul.f32 %v1631, %v2042
        %v2302 = vmul.f32 %v1633, %v2057
        %v2303 = vmul.f32 %v1635, %v2057
        %v2304 = vmul.f32 %v1637, %v2072
        %v2305 = vmul.f32 %v1639, %v2072
        %v2306 = vmul.f32 %v1641, %v2087
        %v2307 = vmul.f32 %v1643, %v2087
        %v2308 = vmul.f32 %v1645, %v2102
        %v2309 = vmul.f32 %v1647, %v2102
        %v2310 = vmul.f32 %v1649, %v2117
        %v2311 = vmul.f32 %v1651, %v2117
        %v2312 = vmul.f32 %v1653, %v2132
        %v2313 = vmul.f32 %v1655, %v2132
        %v2314 = vmul.f32 %v1657, %v2147
        %v2315 = vmul.f32 %v1659, %v2147
        %v2316 = vmul.f32 %v1661, %v2162
        %v2317 = vmul.f32 %v1663, %v2162
        %v2318 = vmul.f32 %v1665, %v2177
        %v2319 = vmul.f32 %v1667, %v2177
        %v2320 = vmul.f32 %v1669, %v2192
        %v2321 = vmul.f32 %v1671, %v2192
        %v2322 = vmul.f32 %v1673, %v2207
        %v2323 = vmul.f32 %v1675, %v2207
        %v2324 = vmul.f32 %v1677, %v2222
        %v2325 = vmul.f32 %v1679, %v2222
        %v2326 = vmul.f32 %v1681, %v2237
        %v2327 = vmul.f32 %v1683, %v2237
        %v2328 = vmul.f32 %v1685, %v2252
        %v2329 = vmul.f32 %v1687, %v2252
        %v2330 = vmul.f32 %v1689, %v2267
        %v2331 = vmul.f32 %v1691, %v2267
        %v2332 = vpack.c.bf16 %v2269, %v2268
        %v2333 = vpack.c.bf16 %v2271, %v2270
        %v2334 = vpack.c.bf16 %v2273, %v2272
        %v2335 = vpack.c.bf16 %v2275, %v2274
        %v2336 = vpack.c.bf16 %v2277, %v2276
        %v2337 = vpack.c.bf16 %v2279, %v2278
        %v2338 = vpack.c.bf16 %v2281, %v2280
        %v2339 = vpack.c.bf16 %v2283, %v2282
        %v2340 = vpack.c.bf16 %v2285, %v2284
        %v2341 = vpack.c.bf16 %v2287, %v2286
        %v2342 = vpack.c.bf16 %v2289, %v2288
        %v2343 = vpack.c.bf16 %v2291, %v2290
        %v2344 = vpack.c.bf16 %v2293, %v2292
        %v2345 = vpack.c.bf16 %v2295, %v2294
        %v2346 = vpack.c.bf16 %v2297, %v2296
        %v2347 = vpack.c.bf16 %v2299, %v2298
        %v2348 = vpack.c.bf16 %v2301, %v2300
        %v2349 = vpack.c.bf16 %v2303, %v2302
        %v2350 = vpack.c.bf16 %v2305, %v2304
        %v2351 = vpack.c.bf16 %v2307, %v2306
        %v2352 = vpack.c.bf16 %v2309, %v2308
        %v2353 = vpack.c.bf16 %v2311, %v2310
        %v2354 = vpack.c.bf16 %v2313, %v2312
        %v2355 = vpack.c.bf16 %v2315, %v2314
        %v2356 = vpack.c.bf16 %v2317, %v2316
        %v2357 = vpack.c.bf16 %v2319, %v2318
        %v2358 = vpack.c.bf16 %v2321, %v2320
        %v2359 = vpack.c.bf16 %v2323, %v2322
        %v2360 = vpack.c.bf16 %v2325, %v2324
        %v2361 = vpack.c.bf16 %v2327, %v2326
        %v2362 = vpack.c.bf16 %v2329, %v2328
        %v2363 = vpack.c.bf16 %v2331, %v2330
        %2364 = vst [vmem:[%s255] sm:$0xff] %v2332
        %2365 = vst [vmem:[%s255 + $0x8] sm:$0xff] %v2333
        %2366 = vst [vmem:[%s255 + $0x10] sm:$0xff] %v2334
        %2367 = vst [vmem:[%s255 + $0x18] sm:$0xff] %v2335
        %2368 = vst [vmem:[%s255 + $0x20] sm:$0xff] %v2336
        %2369 = vst [vmem:[%s255 + $0x28] sm:$0xff] %v2337
        %2370 = vst [vmem:[%s255 + $0x30] sm:$0xff] %v2338
        %2371 = vst [vmem:[%s255 + $0x38] sm:$0xff] %v2339
        %2372 = vst [vmem:[%s255 + $0x40] sm:$0xff] %v2340
        %2373 = vst [vmem:[%s255 + $0x48] sm:$0xff] %v2341
        %2374 = vst [vmem:[%s255 + $0x50] sm:$0xff] %v2342
        %2375 = vst [vmem:[%s255 + $0x58] sm:$0xff] %v2343
        %2376 = vst [vmem:[%s255 + $0x60] sm:$0xff] %v2344
        %2377 = vst [vmem:[%s255 + $0x68] sm:$0xff] %v2345
        %2378 = vst [vmem:[%s255 + $0x70] sm:$0xff] %v2346
        %2379 = vst [vmem:[%s255 + $0x78] sm:$0xff] %v2347
        %2380 = vst [vmem:[%s255 + $0x80] sm:$0xff] %v2348
        %2381 = vst [vmem:[%s255 + $0x88] sm:$0xff] %v2349
        %2382 = vst [vmem:[%s255 + $0x90] sm:$0xff] %v2350
        %2383 = vst [vmem:[%s255 + $0x98] sm:$0xff] %v2351
        %2384 = vst [vmem:[%s255 + $0xa0] sm:$0xff] %v2352
        %2385 = vst [vmem:[%s255 + $0xa8] sm:$0xff] %v2353
        %2386 = vst [vmem:[%s255 + $0xb0] sm:$0xff] %v2354
        %2387 = vst [vmem:[%s255 + $0xb8] sm:$0xff] %v2355
        %2388 = vst [vmem:[%s255 + $0xc0] sm:$0xff] %v2356
        %2389 = vst [vmem:[%s255 + $0xc8] sm:$0xff] %v2357
        %2390 = vst [vmem:[%s255 + $0xd0] sm:$0xff] %v2358
        %2391 = vst [vmem:[%s255 + $0xd8] sm:$0xff] %v2359
        %2392 = vst [vmem:[%s255 + $0xe0] sm:$0xff] %v2360
        %2393 = vst [vmem:[%s255 + $0xe8] sm:$0xff] %v2361
        %2394 = vst [vmem:[%s255 + $0xf0] sm:$0xff] %v2362
        %2395 = vst [vmem:[%s255 + $0xf8] sm:$0xff] %v2363
        %v2428 = vunpack.c.l.b16 %v2332
        %v2429 = vunpack.c.h.b16 %v2332
        %v2430 = vunpack.c.l.b16 %v2333
        %v2431 = vunpack.c.h.b16 %v2333
        %v2432 = vunpack.c.l.b16 %v2334
        %v2433 = vunpack.c.h.b16 %v2334
        %v2434 = vunpack.c.l.b16 %v2335
        %v2435 = vunpack.c.h.b16 %v2335
        %v2436 = vunpack.c.l.b16 %v2336
        %v2437 = vunpack.c.h.b16 %v2336
        %v2438 = vunpack.c.l.b16 %v2337
        %v2439 = vunpack.c.h.b16 %v2337
        %v2440 = vunpack.c.l.b16 %v2338
        %v2441 = vunpack.c.h.b16 %v2338
        %v2442 = vunpack.c.l.b16 %v2339
        %v2443 = vunpack.c.h.b16 %v2339
        %v2444 = vunpack.c.l.b16 %v2340
        %v2445 = vunpack.c.h.b16 %v2340
        %v2446 = vunpack.c.l.b16 %v2341
        %v2447 = vunpack.c.h.b16 %v2341
        %v2448 = vunpack.c.l.b16 %v2342
        %v2449 = vunpack.c.h.b16 %v2342
        %v2450 = vunpack.c.l.b16 %v2343
        %v2451 = vunpack.c.h.b16 %v2343
        %v2452 = vunpack.c.l.b16 %v2344
        %v2453 = vunpack.c.h.b16 %v2344
        %v2454 = vunpack.c.l.b16 %v2345
        %v2455 = vunpack.c.h.b16 %v2345
        %v2456 = vunpack.c.l.b16 %v2346
        %v2457 = vunpack.c.h.b16 %v2346
        %v2458 = vunpack.c.l.b16 %v2347
        %v2459 = vunpack.c.h.b16 %v2347
        %v2460 = vunpack.c.l.b16 %v2348
        %v2461 = vunpack.c.h.b16 %v2348
        %v2462 = vunpack.c.l.b16 %v2349
        %v2463 = vunpack.c.h.b16 %v2349
        %v2464 = vunpack.c.l.b16 %v2350
        %v2465 = vunpack.c.h.b16 %v2350
        %v2466 = vunpack.c.l.b16 %v2351
        %v2467 = vunpack.c.h.b16 %v2351
        %v2468 = vunpack.c.l.b16 %v2352
        %v2469 = vunpack.c.h.b16 %v2352
        %v2470 = vunpack.c.l.b16 %v2353
        %v2471 = vunpack.c.h.b16 %v2353
        %v2472 = vunpack.c.l.b16 %v2354
        %v2473 = vunpack.c.h.b16 %v2354
        %v2474 = vunpack.c.l.b16 %v2355
        %v2475 = vunpack.c.h.b16 %v2355
        %v2476 = vunpack.c.l.b16 %v2356
        %v2477 = vunpack.c.h.b16 %v2356
        %v2478 = vunpack.c.l.b16 %v2357
        %v2479 = vunpack.c.h.b16 %v2357
        %v2480 = vunpack.c.l.b16 %v2358
        %v2481 = vunpack.c.h.b16 %v2358
        %v2482 = vunpack.c.l.b16 %v2359
        %v2483 = vunpack.c.h.b16 %v2359
        %v2484 = vunpack.c.l.b16 %v2360
        %v2485 = vunpack.c.h.b16 %v2360
        %v2486 = vunpack.c.l.b16 %v2361
        %v2487 = vunpack.c.h.b16 %v2361
        %v2488 = vunpack.c.l.b16 %v2362
        %v2489 = vunpack.c.h.b16 %v2362
        %v2490 = vunpack.c.l.b16 %v2363
        %v2491 = vunpack.c.h.b16 %v2363
        %v2492 = vpack.c.b16 %v2430, %v2428
        %v2493 = vpack.c.b16 %v2431, %v2429
        %v2494 = vpack.c.b16 %v2434, %v2432
        %v2495 = vpack.c.b16 %v2435, %v2433
        %v2496 = vpack.c.b16 %v2438, %v2436
        %v2497 = vpack.c.b16 %v2439, %v2437
        %v2498 = vpack.c.b16 %v2442, %v2440
        %v2499 = vpack.c.b16 %v2443, %v2441
        %v2500 = vpack.c.b16 %v2446, %v2444
        %v2501 = vpack.c.b16 %v2447, %v2445
        %v2502 = vpack.c.b16 %v2450, %v2448
        %v2503 = vpack.c.b16 %v2451, %v2449
        %v2504 = vpack.c.b16 %v2454, %v2452
        %v2505 = vpack.c.b16 %v2455, %v2453
        %v2506 = vpack.c.b16 %v2458, %v2456
        %v2507 = vpack.c.b16 %v2459, %v2457
        %v2508 = vpack.c.b16 %v2462, %v2460
        %v2509 = vpack.c.b16 %v2463, %v2461
        %v2510 = vpack.c.b16 %v2466, %v2464
        %v2511 = vpack.c.b16 %v2467, %v2465
        %v2512 = vpack.c.b16 %v2470, %v2468
        %v2513 = vpack.c.b16 %v2471, %v2469
        %v2514 = vpack.c.b16 %v2474, %v2472
        %v2515 = vpack.c.b16 %v2475, %v2473
        %v2516 = vpack.c.b16 %v2478, %v2476
        %v2517 = vpack.c.b16 %v2479, %v2477
        %v2518 = vpack.c.b16 %v2482, %v2480
        %v2519 = vpack.c.b16 %v2483, %v2481
        %v2520 = vpack.c.b16 %v2486, %v2484
        %v2521 = vpack.c.b16 %v2487, %v2485
        %v2522 = vpack.c.b16 %v2490, %v2488
        %v2523 = vpack.c.b16 %v2491, %v2489
        %v2588 = vunpack.c.l.b16 %v937
        %v2589 = vunpack.c.l.b16 %v938
        %v2590 = vunpack.c.l.b16 %v939
        %v2591 = vunpack.c.l.b16 %v940
        %v2592 = vunpack.c.l.b16 %v941
        %v2593 = vunpack.c.l.b16 %v942
        %v2594 = vunpack.c.l.b16 %v943
        %v2595 = vunpack.c.l.b16 %v944
        %v2596 = vunpack.c.l.b16 %v945
        %v2597 = vunpack.c.l.b16 %v946
        %v2598 = vunpack.c.l.b16 %v947
        %v2599 = vunpack.c.l.b16 %v948
        %v2600 = vunpack.c.l.b16 %v949
        %v2601 = vunpack.c.l.b16 %v950
        %v2602 = vunpack.c.l.b16 %v951
        %v2603 = vunpack.c.l.b16 %v952
        %v2604 = vunpack.c.l.b16 %v953
        %v2605 = vunpack.c.l.b16 %v954
        %v2606 = vunpack.c.l.b16 %v955
        %v2607 = vunpack.c.l.b16 %v956
        %v2608 = vunpack.c.l.b16 %v957
        %v2609 = vunpack.c.l.b16 %v958
        %v2610 = vunpack.c.l.b16 %v959
        %v2611 = vunpack.c.l.b16 %v960
        %v2612 = vunpack.c.l.b16 %v961
        %v2613 = vunpack.c.l.b16 %v962
        %v2614 = vunpack.c.l.b16 %v963
        %v2615 = vunpack.c.l.b16 %v964
        %v2616 = vunpack.c.l.b16 %v965
        %v2617 = vunpack.c.l.b16 %v966
        %v2618 = vunpack.c.l.b16 %v967
        %v2619 = vunpack.c.l.b16 %v968
        %v2620 = vpack.c.b16 %v2589, %v2588
        %v2621 = vpack.c.b16 %v2591, %v2590
        %v2622 = vpack.c.b16 %v2593, %v2592
        %v2623 = vpack.c.b16 %v2595, %v2594
        %v2624 = vpack.c.b16 %v2597, %v2596
        %v2625 = vpack.c.b16 %v2599, %v2598
        %v2626 = vpack.c.b16 %v2601, %v2600
        %v2627 = vpack.c.b16 %v2603, %v2602
        %v2628 = vpack.c.b16 %v2605, %v2604
        %v2629 = vpack.c.b16 %v2607, %v2606
        %v2630 = vpack.c.b16 %v2609, %v2608
        %v2631 = vpack.c.b16 %v2611, %v2610
        %v2632 = vpack.c.b16 %v2613, %v2612
        %v2633 = vpack.c.b16 %v2615, %v2614
        %v2634 = vpack.c.b16 %v2617, %v2616
        %v2635 = vpack.c.b16 %v2619, %v2618
        %2652 = vmatpush.bf16.msra.mxu0 %v2627
        %2653 = vmatpush.bf16.msra.mxu0 %v2626
        %2654 = vmatpush.bf16.msra.mxu0 %v2625
        %2655 = vmatpush.bf16.msra.mxu0 %v2624
        %2656 = vmatpush.bf16.msra.mxu0 %v2623
        %2657 = vmatpush.bf16.msra.mxu0 %v2622
        %2658 = vmatpush.bf16.msra.mxu0 %v2621
        %2659 = vmatpush.bf16.msra.mxu0 %v2620
        %2660 = vmatmul.bf16.gmra.mxu0 %v2492
        %v2661 = vpop.f32.mrf.mxu0
        %v2662 = vadd.f32 0.0, %v2661
        %v2663 = vpop.f32.mrf.mxu0
        %v2664 = vadd.f32 0.0, %v2663
        %2665 = vmatmul.bf16.gmra.mxu0 %v2494
        %v2666 = vpop.f32.mrf.mxu0
        %v2667 = vadd.f32 0.0, %v2666
        %v2668 = vpop.f32.mrf.mxu0
        %v2669 = vadd.f32 0.0, %v2668
        %2670 = vmatmul.bf16.gmra.mxu0 %v2496
        %v2671 = vpop.f32.mrf.mxu0
        %v2672 = vadd.f32 0.0, %v2671
        %v2673 = vpop.f32.mrf.mxu0
        %v2674 = vadd.f32 0.0, %v2673
        %2675 = vmatmul.bf16.gmra.mxu0 %v2498
        %v2676 = vpop.f32.mrf.mxu0
        %v2677 = vadd.f32 0.0, %v2676
        %v2678 = vpop.f32.mrf.mxu0
        %v2679 = vadd.f32 0.0, %v2678
        %2680 = vmatmul.bf16.gmra.mxu0 %v2500
        %v2681 = vpop.f32.mrf.mxu0
        %v2682 = vadd.f32 0.0, %v2681
        %v2683 = vpop.f32.mrf.mxu0
        %v2684 = vadd.f32 0.0, %v2683
        %2685 = vmatmul.bf16.gmra.mxu0 %v2502
        %v2686 = vpop.f32.mrf.mxu0
        %v2687 = vadd.f32 0.0, %v2686
        %v2688 = vpop.f32.mrf.mxu0
        %v2689 = vadd.f32 0.0, %v2688
        %2690 = vmatmul.bf16.gmra.mxu0 %v2504
        %v2691 = vpop.f32.mrf.mxu0
        %v2692 = vadd.f32 0.0, %v2691
        %v2693 = vpop.f32.mrf.mxu0
        %v2694 = vadd.f32 0.0, %v2693
        %2695 = vmatmul.bf16.gmra.mxu0 %v2506
        %v2696 = vpop.f32.mrf.mxu0
        %v2697 = vadd.f32 0.0, %v2696
        %v2698 = vpop.f32.mrf.mxu0
        %v2699 = vadd.f32 0.0, %v2698
        %2700 = vmatmul.bf16.gmra.mxu0 %v2508
        %v2701 = vpop.f32.mrf.mxu0
        %v2702 = vadd.f32 0.0, %v2701
        %v2703 = vpop.f32.mrf.mxu0
        %v2704 = vadd.f32 0.0, %v2703
        %2705 = vmatmul.bf16.gmra.mxu0 %v2510
        %v2706 = vpop.f32.mrf.mxu0
        %v2707 = vadd.f32 0.0, %v2706
        %v2708 = vpop.f32.mrf.mxu0
        %v2709 = vadd.f32 0.0, %v2708
        %2710 = vmatmul.bf16.gmra.mxu0 %v2512
        %v2711 = vpop.f32.mrf.mxu0
        %v2712 = vadd.f32 0.0, %v2711
        %v2713 = vpop.f32.mrf.mxu0
        %v2714 = vadd.f32 0.0, %v2713
        %2715 = vmatmul.bf16.gmra.mxu0 %v2514
        %v2716 = vpop.f32.mrf.mxu0
        %v2717 = vadd.f32 0.0, %v2716
        %v2718 = vpop.f32.mrf.mxu0
        %v2719 = vadd.f32 0.0, %v2718
        %2720 = vmatmul.bf16.gmra.mxu0 %v2516
        %v2721 = vpop.f32.mrf.mxu0
        %v2722 = vadd.f32 0.0, %v2721
        %v2723 = vpop.f32.mrf.mxu0
        %v2724 = vadd.f32 0.0, %v2723
        %2725 = vmatmul.bf16.gmra.mxu0 %v2518
        %v2726 = vpop.f32.mrf.mxu0
        %v2727 = vadd.f32 0.0, %v2726
        %v2728 = vpop.f32.mrf.mxu0
        %v2729 = vadd.f32 0.0, %v2728
        %2730 = vmatmul.bf16.gmra.mxu0 %v2520
        %v2731 = vpop.f32.mrf.mxu0
        %v2732 = vadd.f32 0.0, %v2731
        %v2733 = vpop.f32.mrf.mxu0
        %v2734 = vadd.f32 0.0, %v2733
        %2735 = vmatmul.bf16.gmra.mxu0 %v2522
        %v2736 = vpop.f32.mrf.mxu0
        %v2737 = vadd.f32 0.0, %v2736
        %v2738 = vpop.f32.mrf.mxu0
        %v2739 = vadd.f32 0.0, %v2738
        %2740 = vdwg.mxu0
        %2741 = vmatpush.bf16.msra.mxu0 %v2635
        %2742 = vmatpush.bf16.msra.mxu0 %v2634
        %2743 = vmatpush.bf16.msra.mxu0 %v2633
        %2744 = vmatpush.bf16.msra.mxu0 %v2632
        %2745 = vmatpush.bf16.msra.mxu0 %v2631
        %2746 = vmatpush.bf16.msra.mxu0 %v2630
        %2747 = vmatpush.bf16.msra.mxu0 %v2629
        %2748 = vmatpush.bf16.msra.mxu0 %v2628
        %2749 = vmatmul.bf16.gmra.mxu0 %v2493
        %v2750 = vpop.f32.mrf.mxu0
        %v2751 = vadd.f32 %v2662, %v2750
        %v2752 = vpop.f32.mrf.mxu0
        %v2753 = vadd.f32 %v2664, %v2752
        %2754 = vmatmul.bf16.gmra.mxu0 %v2495
        %v2755 = vpop.f32.mrf.mxu0
        %v2756 = vadd.f32 %v2667, %v2755
        %v2757 = vpop.f32.mrf.mxu0
        %v2758 = vadd.f32 %v2669, %v2757
        %2759 = vmatmul.bf16.gmra.mxu0 %v2497
        %v2760 = vpop.f32.mrf.mxu0
        %v2761 = vadd.f32 %v2672, %v2760
        %v2762 = vpop.f32.mrf.mxu0
        %v2763 = vadd.f32 %v2674, %v2762
        %2764 = vmatmul.bf16.gmra.mxu0 %v2499
        %v2765 = vpop.f32.mrf.mxu0
        %v2766 = vadd.f32 %v2677, %v2765
        %v2767 = vpop.f32.mrf.mxu0
        %v2768 = vadd.f32 %v2679, %v2767
        %2769 = vmatmul.bf16.gmra.mxu0 %v2501
        %v2770 = vpop.f32.mrf.mxu0
        %v2771 = vadd.f32 %v2682, %v2770
        %v2772 = vpop.f32.mrf.mxu0
        %v2773 = vadd.f32 %v2684, %v2772
        %2774 = vmatmul.bf16.gmra.mxu0 %v2503
        %v2775 = vpop.f32.mrf.mxu0
        %v2776 = vadd.f32 %v2687, %v2775
        %v2777 = vpop.f32.mrf.mxu0
        %v2778 = vadd.f32 %v2689, %v2777
        %2779 = vmatmul.bf16.gmra.mxu0 %v2505
        %v2780 = vpop.f32.mrf.mxu0
        %v2781 = vadd.f32 %v2692, %v2780
        %v2782 = vpop.f32.mrf.mxu0
        %v2783 = vadd.f32 %v2694, %v2782
        %2784 = vmatmul.bf16.gmra.mxu0 %v2507
        %v2785 = vpop.f32.mrf.mxu0
        %v2786 = vadd.f32 %v2697, %v2785
        %v2787 = vpop.f32.mrf.mxu0
        %v2788 = vadd.f32 %v2699, %v2787
        %2789 = vmatmul.bf16.gmra.mxu0 %v2509
        %v2790 = vpop.f32.mrf.mxu0
        %v2791 = vadd.f32 %v2702, %v2790
        %v2792 = vpop.f32.mrf.mxu0
        %v2793 = vadd.f32 %v2704, %v2792
        %2794 = vmatmul.bf16.gmra.mxu0 %v2511
        %v2795 = vpop.f32.mrf.mxu0
        %v2796 = vadd.f32 %v2707, %v2795
        %v2797 = vpop.f32.mrf.mxu0
        %v2798 = vadd.f32 %v2709, %v2797
        %2799 = vmatmul.bf16.gmra.mxu0 %v2513
        %v2800 = vpop.f32.mrf.mxu0
        %v2801 = vadd.f32 %v2712, %v2800
        %v2802 = vpop.f32.mrf.mxu0
        %v2803 = vadd.f32 %v2714, %v2802
        %2804 = vmatmul.bf16.gmra.mxu0 %v2515
        %v2805 = vpop.f32.mrf.mxu0
        %v2806 = vadd.f32 %v2717, %v2805
        %v2807 = vpop.f32.mrf.mxu0
        %v2808 = vadd.f32 %v2719, %v2807
        %2809 = vmatmul.bf16.gmra.mxu0 %v2517
        %v2810 = vpop.f32.mrf.mxu0
        %v2811 = vadd.f32 %v2722, %v2810
        %v2812 = vpop.f32.mrf.mxu0
        %v2813 = vadd.f32 %v2724, %v2812
        %2814 = vmatmul.bf16.gmra.mxu0 %v2519
        %v2815 = vpop.f32.mrf.mxu0
        %v2816 = vadd.f32 %v2727, %v2815
        %v2817 = vpop.f32.mrf.mxu0
        %v2818 = vadd.f32 %v2729, %v2817
        %2819 = vmatmul.bf16.gmra.mxu0 %v2521
        %v2820 = vpop.f32.mrf.mxu0
        %v2821 = vadd.f32 %v2732, %v2820
        %v2822 = vpop.f32.mrf.mxu0
        %v2823 = vadd.f32 %v2734, %v2822
        %2824 = vmatmul.bf16.gmra.mxu0 %v2523
        %v2825 = vpop.f32.mrf.mxu0
        %v2826 = vadd.f32 %v2737, %v2825
        %v2827 = vpop.f32.mrf.mxu0
        %v2828 = vadd.f32 %v2739, %v2827
        %2829 = vdwg.mxu0
        %v2830 = vpack.c.bf16 %v2753, %v2751
        %v2831 = vpack.c.bf16 %v2758, %v2756
        %v2832 = vpack.c.bf16 %v2763, %v2761
        %v2833 = vpack.c.bf16 %v2768, %v2766
        %v2834 = vpack.c.bf16 %v2773, %v2771
        %v2835 = vpack.c.bf16 %v2778, %v2776
        %v2836 = vpack.c.bf16 %v2783, %v2781
        %v2837 = vpack.c.bf16 %v2788, %v2786
        %v2838 = vpack.c.bf16 %v2793, %v2791
        %v2839 = vpack.c.bf16 %v2798, %v2796
        %v2840 = vpack.c.bf16 %v2803, %v2801
        %v2841 = vpack.c.bf16 %v2808, %v2806
        %v2842 = vpack.c.bf16 %v2813, %v2811
        %v2843 = vpack.c.bf16 %v2818, %v2816
        %v2844 = vpack.c.bf16 %v2823, %v2821
        %v2845 = vpack.c.bf16 %v2828, %v2826
        %v2846 = vld [vmem:[%s3] sm:$0xf]
        %v2847 = vld [vmem:[%s3 + $0x4] sm:$0xf]
        %v2848 = vld [vmem:[%s3 + $0x8] sm:$0xf]
        %v2849 = vld [vmem:[%s3 + $0xc] sm:$0xf]
        %v2850 = vld [vmem:[%s4] sm:$0x1]
        %v2852 = vperm.slane %v2850, 0
        %v2858 = vunpack.c.l.b16 %v2846
        %v2859 = vunpack.c.l.b16 %v2847
        %v2860 = vunpack.c.l.b16 %v2848
        %v2861 = vunpack.c.l.b16 %v2849
        %v2862 = vpack.c.b16 %v2859, %v2858
        %v2863 = vpack.c.b16 %v2861, %v2860
        %v2867 = vsel %vm1129, %v2830, 0
        %v2870 = vsel %vm1129, %v2831, 0
        %v2873 = vsel %vm1129, %v2832, 0
        %v2876 = vsel %vm1129, %v2833, 0
        %v2879 = vsel %vm1129, %v2834, 0
        %v2882 = vsel %vm1129, %v2835, 0
        %v2885 = vsel %vm1129, %v2836, 0
        %v2888 = vsel %vm1129, %v2837, 0
        %v2891 = vsel %vm1129, %v2838, 0
        %v2894 = vsel %vm1129, %v2839, 0
        %v2897 = vsel %vm1129, %v2840, 0
        %v2900 = vsel %vm1129, %v2841, 0
        %v2903 = vsel %vm1129, %v2842, 0
        %v2906 = vsel %vm1129, %v2843, 0
        %v2909 = vsel %vm1129, %v2844, 0
        %v2912 = vsel %vm1129, %v2845, 0
        %2914 = vmatpush.bf16.msra.mxu0 0
        %2915 = vmatpush.bf16.msra.mxu0 0
        %2916 = vmatpush.bf16.msra.mxu0 0
        %2917 = vmatpush.bf16.msra.mxu0 0
        %2918 = vmatpush.bf16.msra.mxu0 0
        %2919 = vmatpush.bf16.msra.mxu0 0
        %2920 = vmatpush.bf16.msra.mxu0 %v2863
        %2921 = vmatpush.bf16.msra.mxu0 %v2862
        %2922 = vmatmul.bf16.gmra.mxu0 %v2867
        %v2923 = vpop.f32.mrf.mxu0
        %v2924 = vadd.f32 %v2852, %v2923
        %v2925 = vpop.f32.mrf.mxu0
        %v2926 = vadd.f32 %v2852, %v2925
        %2927 = vmatmul.bf16.gmra.mxu0 %v2870
        %v2928 = vpop.f32.mrf.mxu0
        %v2929 = vadd.f32 %v2852, %v2928
        %v2930 = vpop.f32.mrf.mxu0
        %v2931 = vadd.f32 %v2852, %v2930
        %2932 = vmatmul.bf16.gmra.mxu0 %v2873
        %v2933 = vpop.f32.mrf.mxu0
        %v2934 = vadd.f32 %v2852, %v2933
        %v2935 = vpop.f32.mrf.mxu0
        %v2936 = vadd.f32 %v2852, %v2935
        %2937 = vmatmul.bf16.gmra.mxu0 %v2876
        %v2938 = vpop.f32.mrf.mxu0
        %v2939 = vadd.f32 %v2852, %v2938
        %v2940 = vpop.f32.mrf.mxu0
        %v2941 = vadd.f32 %v2852, %v2940
        %2942 = vmatmul.bf16.gmra.mxu0 %v2879
        %v2943 = vpop.f32.mrf.mxu0
        %v2944 = vadd.f32 %v2852, %v2943
        %v2945 = vpop.f32.mrf.mxu0
        %v2946 = vadd.f32 %v2852, %v2945
        %2947 = vmatmul.bf16.gmra.mxu0 %v2882
        %v2948 = vpop.f32.mrf.mxu0
        %v2949 = vadd.f32 %v2852, %v2948
        %v2950 = vpop.f32.mrf.mxu0
        %v2951 = vadd.f32 %v2852, %v2950
        %2952 = vmatmul.bf16.gmra.mxu0 %v2885
        %v2953 = vpop.f32.mrf.mxu0
        %v2954 = vadd.f32 %v2852, %v2953
        %v2955 = vpop.f32.mrf.mxu0
        %v2956 = vadd.f32 %v2852, %v2955
        %2957 = vmatmul.bf16.gmra.mxu0 %v2888
        %v2958 = vpop.f32.mrf.mxu0
        %v2959 = vadd.f32 %v2852, %v2958
        %v2960 = vpop.f32.mrf.mxu0
        %v2961 = vadd.f32 %v2852, %v2960
        %2962 = vmatmul.bf16.gmra.mxu0 %v2891
        %v2963 = vpop.f32.mrf.mxu0
        %v2964 = vadd.f32 %v2852, %v2963
        %v2965 = vpop.f32.mrf.mxu0
        %v2966 = vadd.f32 %v2852, %v2965
        %2967 = vmatmul.bf16.gmra.mxu0 %v2894
        %v2968 = vpop.f32.mrf.mxu0
        %v2969 = vadd.f32 %v2852, %v2968
        %v2970 = vpop.f32.mrf.mxu0
        %v2971 = vadd.f32 %v2852, %v2970
        %2972 = vmatmul.bf16.gmra.mxu0 %v2897
        %v2973 = vpop.f32.mrf.mxu0
        %v2974 = vadd.f32 %v2852, %v2973
        %v2975 = vpop.f32.mrf.mxu0
        %v2976 = vadd.f32 %v2852, %v2975
        %2977 = vmatmul.bf16.gmra.mxu0 %v2900
        %v2978 = vpop.f32.mrf.mxu0
        %v2979 = vadd.f32 %v2852, %v2978
        %v2980 = vpop.f32.mrf.mxu0
        %v2981 = vadd.f32 %v2852, %v2980
        %2982 = vmatmul.bf16.gmra.mxu0 %v2903
        %v2983 = vpop.f32.mrf.mxu0
        %v2984 = vadd.f32 %v2852, %v2983
        %v2985 = vpop.f32.mrf.mxu0
        %v2986 = vadd.f32 %v2852, %v2985
        %2987 = vmatmul.bf16.gmra.mxu0 %v2906
        %v2988 = vpop.f32.mrf.mxu0
        %v2989 = vadd.f32 %v2852, %v2988
        %v2990 = vpop.f32.mrf.mxu0
        %v2991 = vadd.f32 %v2852, %v2990
        %2992 = vmatmul.bf16.gmra.mxu0 %v2909
        %v2993 = vpop.f32.mrf.mxu0
        %v2994 = vadd.f32 %v2852, %v2993
        %v2995 = vpop.f32.mrf.mxu0
        %v2996 = vadd.f32 %v2852, %v2995
        %2997 = vmatmul.bf16.gmra.mxu0 %v2912
        %v2998 = vpop.f32.mrf.mxu0
        %v2999 = vadd.f32 %v2852, %v2998
        %v3000 = vpop.f32.mrf.mxu0
        %v3001 = vadd.f32 %v2852, %v3000
        %3002 = vdwg.mxu0
        %3003 = vst [vmem:[%s248] sm:$0xff] %v2924
        %3004 = vst [vmem:[%s248 + $0x8] sm:$0xff] %v2926
        %3005 = vst [vmem:[%s248 + $0x10] sm:$0xff] %v2929
        %3006 = vst [vmem:[%s248 + $0x18] sm:$0xff] %v2931
        %3007 = vst [vmem:[%s248 + $0x20] sm:$0xff] %v2934
        %3008 = vst [vmem:[%s248 + $0x28] sm:$0xff] %v2936
        %3009 = vst [vmem:[%s248 + $0x30] sm:$0xff] %v2939
        %3010 = vst [vmem:[%s248 + $0x38] sm:$0xff] %v2941
        %3011 = vst [vmem:[%s248 + $0x40] sm:$0xff] %v2944
        %3012 = vst [vmem:[%s248 + $0x48] sm:$0xff] %v2946
        %3013 = vst [vmem:[%s248 + $0x50] sm:$0xff] %v2949
        %3014 = vst [vmem:[%s248 + $0x58] sm:$0xff] %v2951
        %3015 = vst [vmem:[%s248 + $0x60] sm:$0xff] %v2954
        %3016 = vst [vmem:[%s248 + $0x68] sm:$0xff] %v2956
        %3017 = vst [vmem:[%s248 + $0x70] sm:$0xff] %v2959
        %3018 = vst [vmem:[%s248 + $0x78] sm:$0xff] %v2961
        %3019 = vst [vmem:[%s248 + $0x80] sm:$0xff] %v2964
        %3020 = vst [vmem:[%s248 + $0x88] sm:$0xff] %v2966
        %3021 = vst [vmem:[%s248 + $0x90] sm:$0xff] %v2969
        %3022 = vst [vmem:[%s248 + $0x98] sm:$0xff] %v2971
        %3023 = vst [vmem:[%s248 + $0xa0] sm:$0xff] %v2974
        %3024 = vst [vmem:[%s248 + $0xa8] sm:$0xff] %v2976
        %3025 = vst [vmem:[%s248 + $0xb0] sm:$0xff] %v2979
        %3026 = vst [vmem:[%s248 + $0xb8] sm:$0xff] %v2981
        %3027 = vst [vmem:[%s248 + $0xc0] sm:$0xff] %v2984
        %3028 = vst [vmem:[%s248 + $0xc8] sm:$0xff] %v2986
        %3029 = vst [vmem:[%s248 + $0xd0] sm:$0xff] %v2989
        %3030 = vst [vmem:[%s248 + $0xd8] sm:$0xff] %v2991
        %3031 = vst [vmem:[%s248 + $0xe0] sm:$0xff] %v2994
        %3032 = vst [vmem:[%s248 + $0xe8] sm:$0xff] %v2996
        %3033 = vst [vmem:[%s248 + $0xf0] sm:$0xff] %v2999
        %3034 = vst [vmem:[%s248 + $0xf8] sm:$0xff] %v3001
        %v3035 = vld [vmem:[#allocation2] sm:$0xf]
        %v3036 = vld [vmem:[#allocation2 + $0xc] sm:$0xf]
        %v3037 = vld [vmem:[#allocation2 + $0x18] sm:$0xf]
        %v3038 = vld [vmem:[#allocation2 + $0x24] sm:$0xf]
        %v3039 = vld [vmem:[#allocation2 + $0x30] sm:$0xf]
        %v3040 = vld [vmem:[#allocation2 + $0x3c] sm:$0xf]
        %v3041 = vld [vmem:[#allocation2 + $0x48] sm:$0xf]
        %v3042 = vld [vmem:[#allocation2 + $0x54] sm:$0xf]
        %v3043 = vld [vmem:[#allocation2 + $0x60] sm:$0xf]
        %v3044 = vld [vmem:[#allocation2 + $0x6c] sm:$0xf]
        %v3045 = vld [vmem:[#allocation2 + $0x78] sm:$0xf]
        %v3046 = vld [vmem:[#allocation2 + $0x84] sm:$0xf]
        %v3047 = vld [vmem:[#allocation2 + $0x90] sm:$0xf]
        %v3048 = vld [vmem:[#allocation2 + $0x9c] sm:$0xf]
        %v3049 = vld [vmem:[#allocation2 + $0xa8] sm:$0xf]
        %v3050 = vld [vmem:[#allocation2 + $0xb4] sm:$0xf]
        %v3051 = vld [vmem:[#allocation2 + $0xc0] sm:$0xf]
        %v3052 = vld [vmem:[#allocation2 + $0xcc] sm:$0xf]
        %v3053 = vld [vmem:[#allocation2 + $0xd8] sm:$0xf]
        %v3054 = vld [vmem:[#allocation2 + $0xe4] sm:$0xf]
        %v3055 = vld [vmem:[#allocation2 + $0xf0] sm:$0xf]
        %v3056 = vld [vmem:[#allocation2 + $0xfc] sm:$0xf]
        %v3057 = vld [vmem:[#allocation2 + $0x108] sm:$0xf]
        %v3058 = vld [vmem:[#allocation2 + $0x114] sm:$0xf]
        %v3059 = vld [vmem:[#allocation2 + $0x120] sm:$0xf]
        %v3060 = vld [vmem:[#allocation2 + $0x12c] sm:$0xf]
        %v3061 = vld [vmem:[#allocation2 + $0x138] sm:$0xf]
        %v3062 = vld [vmem:[#allocation2 + $0x144] sm:$0xf]
        %v3063 = vld [vmem:[#allocation2 + $0x150] sm:$0xf]
        %v3064 = vld [vmem:[#allocation2 + $0x15c] sm:$0xf]
        %v3065 = vld [vmem:[#allocation2 + $0x168] sm:$0xf]
        %v3066 = vld [vmem:[#allocation2 + $0x174] sm:$0xf]
        %v3067 = vld [vmem:[#allocation2 + $0x4] sm:$0xf]
        %v3068 = vld [vmem:[#allocation2 + $0x10] sm:$0xf]
        %v3069 = vld [vmem:[#allocation2 + $0x1c] sm:$0xf]
        %v3070 = vld [vmem:[#allocation2 + $0x28] sm:$0xf]
        %v3071 = vld [vmem:[#allocation2 + $0x34] sm:$0xf]
        %v3072 = vld [vmem:[#allocation2 + $0x40] sm:$0xf]
        %v3073 = vld [vmem:[#allocation2 + $0x4c] sm:$0xf]
        %v3074 = vld [vmem:[#allocation2 + $0x58] sm:$0xf]
        %v3075 = vld [vmem:[#allocation2 + $0x64] sm:$0xf]
        %v3076 = vld [vmem:[#allocation2 + $0x70] sm:$0xf]
        %v3077 = vld [vmem:[#allocation2 + $0x7c] sm:$0xf]
        %v3078 = vld [vmem:[#allocation2 + $0x88] sm:$0xf]
        %v3079 = vld [vmem:[#allocation2 + $0x94] sm:$0xf]
        %v3080 = vld [vmem:[#allocation2 + $0xa0] sm:$0xf]
        %v3081 = vld [vmem:[#allocation2 + $0xac] sm:$0xf]
        %v3082 = vld [vmem:[#allocation2 + $0xb8] sm:$0xf]
        %v3083 = vld [vmem:[#allocation2 + $0xc4] sm:$0xf]
        %v3084 = vld [vmem:[#allocation2 + $0xd0] sm:$0xf]
        %v3085 = vld [vmem:[#allocation2 + $0xdc] sm:$0xf]
        %v3086 = vld [vmem:[#allocation2 + $0xe8] sm:$0xf]
        %v3087 = vld [vmem:[#allocation2 + $0xf4] sm:$0xf]
        %v3088 = vld [vmem:[#allocation2 + $0x100] sm:$0xf]
        %v3089 = vld [vmem:[#allocation2 + $0x10c] sm:$0xf]
        %v3090 = vld [vmem:[#allocation2 + $0x118] sm:$0xf]
        %v3091 = vld [vmem:[#allocation2 + $0x124] sm:$0xf]
        %v3092 = vld [vmem:[#allocation2 + $0x130] sm:$0xf]
        %v3093 = vld [vmem:[#allocation2 + $0x13c] sm:$0xf]
        %v3094 = vld [vmem:[#allocation2 + $0x148] sm:$0xf]
        %v3095 = vld [vmem:[#allocation2 + $0x154] sm:$0xf]
        %v3096 = vld [vmem:[#allocation2 + $0x160] sm:$0xf]
        %v3097 = vld [vmem:[#allocation2 + $0x16c] sm:$0xf]
        %v3098 = vld [vmem:[#allocation2 + $0x178] sm:$0xf]
        %v3099 = vld [vmem:[#allocation2 + $0x8] sm:$0xf]
        %v3100 = vld [vmem:[#allocation2 + $0x14] sm:$0xf]
        %v3101 = vld [vmem:[#allocation2 + $0x20] sm:$0xf]
        %v3102 = vld [vmem:[#allocation2 + $0x2c] sm:$0xf]
        %v3103 = vld [vmem:[#allocation2 + $0x38] sm:$0xf]
        %v3104 = vld [vmem:[#allocation2 + $0x44] sm:$0xf]
        %v3105 = vld [vmem:[#allocation2 + $0x50] sm:$0xf]
        %v3106 = vld [vmem:[#allocation2 + $0x5c] sm:$0xf]
        %v3107 = vld [vmem:[#allocation2 + $0x68] sm:$0xf]
        %v3108 = vld [vmem:[#allocation2 + $0x74] sm:$0xf]
        %v3109 = vld [vmem:[#allocation2 + $0x80] sm:$0xf]
        %v3110 = vld [vmem:[#allocation2 + $0x8c] sm:$0xf]
        %v3111 = vld [vmem:[#allocation2 + $0x98] sm:$0xf]
        %v3112 = vld [vmem:[#allocation2 + $0xa4] sm:$0xf]
        %v3113 = vld [vmem:[#allocation2 + $0xb0] sm:$0xf]
        %v3114 = vld [vmem:[#allocation2 + $0xbc] sm:$0xf]
        %v3115 = vld [vmem:[#allocation2 + $0xc8] sm:$0xf]
        %v3116 = vld [vmem:[#allocation2 + $0xd4] sm:$0xf]
        %v3117 = vld [vmem:[#allocation2 + $0xe0] sm:$0xf]
        %v3118 = vld [vmem:[#allocation2 + $0xec] sm:$0xf]
        %v3119 = vld [vmem:[#allocation2 + $0xf8] sm:$0xf]
        %v3120 = vld [vmem:[#allocation2 + $0x104] sm:$0xf]
        %v3121 = vld [vmem:[#allocation2 + $0x110] sm:$0xf]
        %v3122 = vld [vmem:[#allocation2 + $0x11c] sm:$0xf]
        %v3123 = vld [vmem:[#allocation2 + $0x128] sm:$0xf]
        %v3124 = vld [vmem:[#allocation2 + $0x134] sm:$0xf]
        %v3125 = vld [vmem:[#allocation2 + $0x140] sm:$0xf]
        %v3126 = vld [vmem:[#allocation2 + $0x14c] sm:$0xf]
        %v3127 = vld [vmem:[#allocation2 + $0x158] sm:$0xf]
        %v3128 = vld [vmem:[#allocation2 + $0x164] sm:$0xf]
        %v3129 = vld [vmem:[#allocation2 + $0x170] sm:$0xf]
        %v3130 = vld [vmem:[#allocation2 + $0x17c] sm:$0xf]
        %v3163 = vunpack.c.l.b16 %v3035
        %v3164 = vunpack.c.l.b16 %v3036
        %v3165 = vunpack.c.l.b16 %v3037
        %v3166 = vunpack.c.l.b16 %v3038
        %v3167 = vunpack.c.l.b16 %v3039
        %v3168 = vunpack.c.l.b16 %v3040
        %v3169 = vunpack.c.l.b16 %v3041
        %v3170 = vunpack.c.l.b16 %v3042
        %v3171 = vunpack.c.l.b16 %v3043
        %v3172 = vunpack.c.l.b16 %v3044
        %v3173 = vunpack.c.l.b16 %v3045
        %v3174 = vunpack.c.l.b16 %v3046
        %v3175 = vunpack.c.l.b16 %v3047
        %v3176 = vunpack.c.l.b16 %v3048
        %v3177 = vunpack.c.l.b16 %v3049
        %v3178 = vunpack.c.l.b16 %v3050
        %v3179 = vunpack.c.l.b16 %v3051
        %v3180 = vunpack.c.l.b16 %v3052
        %v3181 = vunpack.c.l.b16 %v3053
        %v3182 = vunpack.c.l.b16 %v3054
        %v3183 = vunpack.c.l.b16 %v3055
        %v3184 = vunpack.c.l.b16 %v3056
        %v3185 = vunpack.c.l.b16 %v3057
        %v3186 = vunpack.c.l.b16 %v3058
        %v3187 = vunpack.c.l.b16 %v3059
        %v3188 = vunpack.c.l.b16 %v3060
        %v3189 = vunpack.c.l.b16 %v3061
        %v3190 = vunpack.c.l.b16 %v3062
        %v3191 = vunpack.c.l.b16 %v3063
        %v3192 = vunpack.c.l.b16 %v3064
        %v3193 = vunpack.c.l.b16 %v3065
        %v3194 = vunpack.c.l.b16 %v3066
        %v3195 = vpack.c.b16 %v3164, %v3163
        %v3196 = vpack.c.b16 %v3166, %v3165
        %v3197 = vpack.c.b16 %v3168, %v3167
        %v3198 = vpack.c.b16 %v3170, %v3169
        %v3199 = vpack.c.b16 %v3172, %v3171
        %v3200 = vpack.c.b16 %v3174, %v3173
        %v3201 = vpack.c.b16 %v3176, %v3175
        %v3202 = vpack.c.b16 %v3178, %v3177
        %v3203 = vpack.c.b16 %v3180, %v3179
        %v3204 = vpack.c.b16 %v3182, %v3181
        %v3205 = vpack.c.b16 %v3184, %v3183
        %v3206 = vpack.c.b16 %v3186, %v3185
        %v3207 = vpack.c.b16 %v3188, %v3187
        %v3208 = vpack.c.b16 %v3190, %v3189
        %v3209 = vpack.c.b16 %v3192, %v3191
        %v3210 = vpack.c.b16 %v3194, %v3193
        %3211 = vrot.lane.b32.xlu0 %v3195, 96
        %v3212 = vpop.permute.xlu0 %3211
        %3213 = vrot.lane.b32.xlu0 %v3196, 96
        %v3214 = vpop.permute.xlu0 %3213
        %3215 = vrot.lane.b32.xlu0 %v3197, 96
        %v3216 = vpop.permute.xlu0 %3215
        %3217 = vrot.lane.b32.xlu0 %v3198, 96
        %v3218 = vpop.permute.xlu0 %3217
        %3219 = vrot.lane.b32.xlu0 %v3199, 96
        %v3220 = vpop.permute.xlu0 %3219
        %3221 = vrot.lane.b32.xlu0 %v3200, 96
        %v3222 = vpop.permute.xlu0 %3221
        %3223 = vrot.lane.b32.xlu0 %v3201, 96
        %v3224 = vpop.permute.xlu0 %3223
        %3225 = vrot.lane.b32.xlu0 %v3202, 96
        %v3226 = vpop.permute.xlu0 %3225
        %3227 = vrot.lane.b32.xlu0 %v3203, 96
        %v3228 = vpop.permute.xlu0 %3227
        %3229 = vrot.lane.b32.xlu0 %v3204, 96
        %v3230 = vpop.permute.xlu0 %3229
        %3231 = vrot.lane.b32.xlu0 %v3205, 96
        %v3232 = vpop.permute.xlu0 %3231
        %3233 = vrot.lane.b32.xlu0 %v3206, 96
        %v3234 = vpop.permute.xlu0 %3233
        %3235 = vrot.lane.b32.xlu0 %v3207, 96
        %v3236 = vpop.permute.xlu0 %3235
        %3237 = vrot.lane.b32.xlu0 %v3208, 96
        %v3238 = vpop.permute.xlu0 %3237
        %3239 = vrot.lane.b32.xlu0 %v3209, 96
        %v3240 = vpop.permute.xlu0 %3239
        %3241 = vrot.lane.b32.xlu0 %v3210, 96
        %v3242 = vpop.permute.xlu0 %3241
        %v3275 = vunpack.c.l.b16 %v3067
        %v3276 = vunpack.c.l.b16 %v3068
        %v3277 = vunpack.c.l.b16 %v3069
        %v3278 = vunpack.c.l.b16 %v3070
        %v3279 = vunpack.c.l.b16 %v3071
        %v3280 = vunpack.c.l.b16 %v3072
        %v3281 = vunpack.c.l.b16 %v3073
        %v3282 = vunpack.c.l.b16 %v3074
        %v3283 = vunpack.c.l.b16 %v3075
        %v3284 = vunpack.c.l.b16 %v3076
        %v3285 = vunpack.c.l.b16 %v3077
        %v3286 = vunpack.c.l.b16 %v3078
        %v3287 = vunpack.c.l.b16 %v3079
        %v3288 = vunpack.c.l.b16 %v3080
        %v3289 = vunpack.c.l.b16 %v3081
        %v3290 = vunpack.c.l.b16 %v3082
        %v3291 = vunpack.c.l.b16 %v3083
        %v3292 = vunpack.c.l.b16 %v3084
        %v3293 = vunpack.c.l.b16 %v3085
        %v3294 = vunpack.c.l.b16 %v3086
        %v3295 = vunpack.c.l.b16 %v3087
        %v3296 = vunpack.c.l.b16 %v3088
        %v3297 = vunpack.c.l.b16 %v3089
        %v3298 = vunpack.c.l.b16 %v3090
        %v3299 = vunpack.c.l.b16 %v3091
        %v3300 = vunpack.c.l.b16 %v3092
        %v3301 = vunpack.c.l.b16 %v3093
        %v3302 = vunpack.c.l.b16 %v3094
        %v3303 = vunpack.c.l.b16 %v3095
        %v3304 = vunpack.c.l.b16 %v3096
        %v3305 = vunpack.c.l.b16 %v3097
        %v3306 = vunpack.c.l.b16 %v3098
        %v3307 = vpack.c.b16 %v3276, %v3275
        %v3308 = vpack.c.b16 %v3278, %v3277
        %v3309 = vpack.c.b16 %v3280, %v3279
        %v3310 = vpack.c.b16 %v3282, %v3281
        %v3311 = vpack.c.b16 %v3284, %v3283
        %v3312 = vpack.c.b16 %v3286, %v3285
        %v3313 = vpack.c.b16 %v3288, %v3287
        %v3314 = vpack.c.b16 %v3290, %v3289
        %v3315 = vpack.c.b16 %v3292, %v3291
        %v3316 = vpack.c.b16 %v3294, %v3293
        %v3317 = vpack.c.b16 %v3296, %v3295
        %v3318 = vpack.c.b16 %v3298, %v3297
        %v3319 = vpack.c.b16 %v3300, %v3299
        %v3320 = vpack.c.b16 %v3302, %v3301
        %v3321 = vpack.c.b16 %v3304, %v3303
        %v3322 = vpack.c.b16 %v3306, %v3305
        %3323 = vrot.lane.b32.xlu0 %v3307, 96
        %v3324 = vpop.permute.xlu0 %3323
        %3325 = vrot.lane.b32.xlu0 %v3308, 96
        %v3326 = vpop.permute.xlu0 %3325
        %3327 = vrot.lane.b32.xlu0 %v3309, 96
        %v3328 = vpop.permute.xlu0 %3327
        %3329 = vrot.lane.b32.xlu0 %v3310, 96
        %v3330 = vpop.permute.xlu0 %3329
        %3331 = vrot.lane.b32.xlu0 %v3311, 96
        %v3332 = vpop.permute.xlu0 %3331
        %3333 = vrot.lane.b32.xlu0 %v3312, 96
        %v3334 = vpop.permute.xlu0 %3333
        %3335 = vrot.lane.b32.xlu0 %v3313, 96
        %v3336 = vpop.permute.xlu0 %3335
        %3337 = vrot.lane.b32.xlu0 %v3314, 96
        %v3338 = vpop.permute.xlu0 %3337
        %3339 = vrot.lane.b32.xlu0 %v3315, 96
        %v3340 = vpop.permute.xlu0 %3339
        %3341 = vrot.lane.b32.xlu0 %v3316, 96
        %v3342 = vpop.permute.xlu0 %3341
        %3343 = vrot.lane.b32.xlu0 %v3317, 96
        %v3344 = vpop.permute.xlu0 %3343
        %3345 = vrot.lane.b32.xlu0 %v3318, 96
        %v3346 = vpop.permute.xlu0 %3345
        %3347 = vrot.lane.b32.xlu0 %v3319, 96
        %v3348 = vpop.permute.xlu0 %3347
        %3349 = vrot.lane.b32.xlu0 %v3320, 96
        %v3350 = vpop.permute.xlu0 %3349
        %3351 = vrot.lane.b32.xlu0 %v3321, 96
        %v3352 = vpop.permute.xlu0 %3351
        %3353 = vrot.lane.b32.xlu0 %v3322, 96
        %v3354 = vpop.permute.xlu0 %3353
        %v3356 = vsel %vm1129, %v3212, 0
        %v3359 = vsel %vm1129, %v3214, 0
        %v3362 = vsel %vm1129, %v3216, 0
        %v3365 = vsel %vm1129, %v3218, 0
        %v3368 = vsel %vm1129, %v3220, 0
        %v3371 = vsel %vm1129, %v3222, 0
        %v3374 = vsel %vm1129, %v3224, 0
        %v3377 = vsel %vm1129, %v3226, 0
        %v3380 = vsel %vm1129, %v3228, 0
        %v3383 = vsel %vm1129, %v3230, 0
        %v3386 = vsel %vm1129, %v3232, 0
        %v3389 = vsel %vm1129, %v3234, 0
        %v3392 = vsel %vm1129, %v3236, 0
        %v3395 = vsel %vm1129, %v3238, 0
        %v3398 = vsel %vm1129, %v3240, 0
        %v3401 = vsel %vm1129, %v3242, 0
        %v3404 = vsel %vm1129, %v3324, 0
        %v3407 = vsel %vm1129, %v3326, 0
        %v3410 = vsel %vm1129, %v3328, 0
        %v3413 = vsel %vm1129, %v3330, 0
        %v3416 = vsel %vm1129, %v3332, 0
        %v3419 = vsel %vm1129, %v3334, 0
        %v3422 = vsel %vm1129, %v3336, 0
        %v3425 = vsel %vm1129, %v3338, 0
        %v3428 = vsel %vm1129, %v3340, 0
        %v3431 = vsel %vm1129, %v3342, 0
        %v3434 = vsel %vm1129, %v3344, 0
        %v3437 = vsel %vm1129, %v3346, 0
        %v3440 = vsel %vm1129, %v3348, 0
        %v3443 = vsel %vm1129, %v3350, 0
        %v3446 = vsel %vm1129, %v3352, 0
        %v3449 = vsel %vm1129, %v3354, 0
        %3451 = vmatpush.bf16.xpose.msra.mxu0 %v3425
        %3452 = vmatpush.bf16.xpose.msra.mxu0 %v3422
        %3453 = vmatpush.bf16.xpose.msra.mxu0 %v3419
        %3454 = vmatpush.bf16.xpose.msra.mxu0 %v3416
        %3455 = vmatpush.bf16.xpose.msra.mxu0 %v3413
        %3456 = vmatpush.bf16.xpose.msra.mxu0 %v3410
        %3457 = vmatpush.bf16.xpose.msra.mxu0 %v3407
        %3458 = vmatpush.bf16.xpose.msra.mxu0 %v3404
        %3459 = vmatmul.bf16.gmra.mxu0 %v3356
        %v3460 = vpop.f32.mrf.mxu0
        %v3461 = vadd.f32 0.0, %v3460
        %v3462 = vpop.f32.mrf.mxu0
        %v3463 = vadd.f32 0.0, %v3462
        %3464 = vmatmul.bf16.gmra.mxu0 %v3359
        %v3465 = vpop.f32.mrf.mxu0
        %v3466 = vadd.f32 0.0, %v3465
        %v3467 = vpop.f32.mrf.mxu0
        %v3468 = vadd.f32 0.0, %v3467
        %3469 = vmatmul.bf16.gmra.mxu0 %v3362
        %v3470 = vpop.f32.mrf.mxu0
        %v3471 = vadd.f32 0.0, %v3470
        %v3472 = vpop.f32.mrf.mxu0
        %v3473 = vadd.f32 0.0, %v3472
        %3474 = vmatmul.bf16.gmra.mxu0 %v3365
        %v3475 = vpop.f32.mrf.mxu0
        %v3476 = vadd.f32 0.0, %v3475
        %v3477 = vpop.f32.mrf.mxu0
        %v3478 = vadd.f32 0.0, %v3477
        %3479 = vmatmul.bf16.gmra.mxu0 %v3368
        %v3480 = vpop.f32.mrf.mxu0
        %v3481 = vadd.f32 0.0, %v3480
        %v3482 = vpop.f32.mrf.mxu0
        %v3483 = vadd.f32 0.0, %v3482
        %3484 = vmatmul.bf16.gmra.mxu0 %v3371
        %v3485 = vpop.f32.mrf.mxu0
        %v3486 = vadd.f32 0.0, %v3485
        %v3487 = vpop.f32.mrf.mxu0
        %v3488 = vadd.f32 0.0, %v3487
        %3489 = vmatmul.bf16.gmra.mxu0 %v3374
        %v3490 = vpop.f32.mrf.mxu0
        %v3491 = vadd.f32 0.0, %v3490
        %v3492 = vpop.f32.mrf.mxu0
        %v3493 = vadd.f32 0.0, %v3492
        %3494 = vmatmul.bf16.gmra.mxu0 %v3377
        %v3495 = vpop.f32.mrf.mxu0
        %v3496 = vadd.f32 0.0, %v3495
        %v3497 = vpop.f32.mrf.mxu0
        %v3498 = vadd.f32 0.0, %v3497
        %3499 = vmatmul.bf16.gmra.mxu0 %v3380
        %v3500 = vpop.f32.mrf.mxu0
        %v3501 = vadd.f32 0.0, %v3500
        %v3502 = vpop.f32.mrf.mxu0
        %v3503 = vadd.f32 0.0, %v3502
        %3504 = vmatmul.bf16.gmra.mxu0 %v3383
        %v3505 = vpop.f32.mrf.mxu0
        %v3506 = vadd.f32 0.0, %v3505
        %v3507 = vpop.f32.mrf.mxu0
        %v3508 = vadd.f32 0.0, %v3507
        %3509 = vmatmul.bf16.gmra.mxu0 %v3386
        %v3510 = vpop.f32.mrf.mxu0
        %v3511 = vadd.f32 0.0, %v3510
        %v3512 = vpop.f32.mrf.mxu0
        %v3513 = vadd.f32 0.0, %v3512
        %3514 = vmatmul.bf16.gmra.mxu0 %v3389
        %v3515 = vpop.f32.mrf.mxu0
        %v3516 = vadd.f32 0.0, %v3515
        %v3517 = vpop.f32.mrf.mxu0
        %v3518 = vadd.f32 0.0, %v3517
        %3519 = vmatmul.bf16.gmra.mxu0 %v3392
        %v3520 = vpop.f32.mrf.mxu0
        %v3521 = vadd.f32 0.0, %v3520
        %v3522 = vpop.f32.mrf.mxu0
        %v3523 = vadd.f32 0.0, %v3522
        %3524 = vmatmul.bf16.gmra.mxu0 %v3395
        %v3525 = vpop.f32.mrf.mxu0
        %v3526 = vadd.f32 0.0, %v3525
        %v3527 = vpop.f32.mrf.mxu0
        %v3528 = vadd.f32 0.0, %v3527
        %3529 = vmatmul.bf16.gmra.mxu0 %v3398
        %v3530 = vpop.f32.mrf.mxu0
        %v3531 = vadd.f32 0.0, %v3530
        %v3532 = vpop.f32.mrf.mxu0
        %v3533 = vadd.f32 0.0, %v3532
        %3534 = vmatmul.bf16.gmra.mxu0 %v3401
        %v3535 = vpop.f32.mrf.mxu0
        %v3536 = vadd.f32 0.0, %v3535
        %v3537 = vpop.f32.mrf.mxu0
        %v3538 = vadd.f32 0.0, %v3537
        %3539 = vdwg.mxu0
        %3540 = vmatpush.bf16.xpose.msra.mxu0 %v3449
        %3541 = vmatpush.bf16.xpose.msra.mxu0 %v3446
        %3542 = vmatpush.bf16.xpose.msra.mxu0 %v3443
        %3543 = vmatpush.bf16.xpose.msra.mxu0 %v3440
        %3544 = vmatpush.bf16.xpose.msra.mxu0 %v3437
        %3545 = vmatpush.bf16.xpose.msra.mxu0 %v3434
        %3546 = vmatpush.bf16.xpose.msra.mxu0 %v3431
        %3547 = vmatpush.bf16.xpose.msra.mxu0 %v3428
        %3548 = vmatmul.bf16.gmra.mxu0 %v3356
        %v3549 = vpop.f32.mrf.mxu0
        %v3550 = vadd.f32 0.0, %v3549
        %v3551 = vpop.f32.mrf.mxu0
        %v3552 = vadd.f32 0.0, %v3551
        %3553 = vmatmul.bf16.gmra.mxu0 %v3359
        %v3554 = vpop.f32.mrf.mxu0
        %v3555 = vadd.f32 0.0, %v3554
        %v3556 = vpop.f32.mrf.mxu0
        %v3557 = vadd.f32 0.0, %v3556
        %3558 = vmatmul.bf16.gmra.mxu0 %v3362
        %v3559 = vpop.f32.mrf.mxu0
        %v3560 = vadd.f32 0.0, %v3559
        %v3561 = vpop.f32.mrf.mxu0
        %v3562 = vadd.f32 0.0, %v3561
        %3563 = vmatmul.bf16.gmra.mxu0 %v3365
        %v3564 = vpop.f32.mrf.mxu0
        %v3565 = vadd.f32 0.0, %v3564
        %v3566 = vpop.f32.mrf.mxu0
        %v3567 = vadd.f32 0.0, %v3566
        %3568 = vmatmul.bf16.gmra.mxu0 %v3368
        %v3569 = vpop.f32.mrf.mxu0
        %v3570 = vadd.f32 0.0, %v3569
        %v3571 = vpop.f32.mrf.mxu0
        %v3572 = vadd.f32 0.0, %v3571
        %3573 = vmatmul.bf16.gmra.mxu0 %v3371
        %v3574 = vpop.f32.mrf.mxu0
        %v3575 = vadd.f32 0.0, %v3574
        %v3576 = vpop.f32.mrf.mxu0
        %v3577 = vadd.f32 0.0, %v3576
        %3578 = vmatmul.bf16.gmra.mxu0 %v3374
        %v3579 = vpop.f32.mrf.mxu0
        %v3580 = vadd.f32 0.0, %v3579
        %v3581 = vpop.f32.mrf.mxu0
        %v3582 = vadd.f32 0.0, %v3581
        %3583 = vmatmul.bf16.gmra.mxu0 %v3377
        %v3584 = vpop.f32.mrf.mxu0
        %v3585 = vadd.f32 0.0, %v3584
        %v3586 = vpop.f32.mrf.mxu0
        %v3587 = vadd.f32 0.0, %v3586
        %3588 = vmatmul.bf16.gmra.mxu0 %v3380
        %v3589 = vpop.f32.mrf.mxu0
        %v3590 = vadd.f32 0.0, %v3589
        %v3591 = vpop.f32.mrf.mxu0
        %v3592 = vadd.f32 0.0, %v3591
        %3593 = vmatmul.bf16.gmra.mxu0 %v3383
        %v3594 = vpop.f32.mrf.mxu0
        %v3595 = vadd.f32 0.0, %v3594
        %v3596 = vpop.f32.mrf.mxu0
        %v3597 = vadd.f32 0.0, %v3596
        %3598 = vmatmul.bf16.gmra.mxu0 %v3386
        %v3599 = vpop.f32.mrf.mxu0
        %v3600 = vadd.f32 0.0, %v3599
        %v3601 = vpop.f32.mrf.mxu0
        %v3602 = vadd.f32 0.0, %v3601
        %3603 = vmatmul.bf16.gmra.mxu0 %v3389
        %v3604 = vpop.f32.mrf.mxu0
        %v3605 = vadd.f32 0.0, %v3604
        %v3606 = vpop.f32.mrf.mxu0
        %v3607 = vadd.f32 0.0, %v3606
        %3608 = vmatmul.bf16.gmra.mxu0 %v3392
        %v3609 = vpop.f32.mrf.mxu0
        %v3610 = vadd.f32 0.0, %v3609
        %v3611 = vpop.f32.mrf.mxu0
        %v3612 = vadd.f32 0.0, %v3611
        %3613 = vmatmul.bf16.gmra.mxu0 %v3395
        %v3614 = vpop.f32.mrf.mxu0
        %v3615 = vadd.f32 0.0, %v3614
        %v3616 = vpop.f32.mrf.mxu0
        %v3617 = vadd.f32 0.0, %v3616
        %3618 = vmatmul.bf16.gmra.mxu0 %v3398
        %v3619 = vpop.f32.mrf.mxu0
        %v3620 = vadd.f32 0.0, %v3619
        %v3621 = vpop.f32.mrf.mxu0
        %v3622 = vadd.f32 0.0, %v3621
        %3623 = vmatmul.bf16.gmra.mxu0 %v3401
        %v3624 = vpop.f32.mrf.mxu0
        %v3625 = vadd.f32 0.0, %v3624
        %v3626 = vpop.f32.mrf.mxu0
        %v3627 = vadd.f32 0.0, %v3626
        %3628 = vdwg.mxu0
        %v3629 = vmax.f32 %v3461, %v3550
        %3630 = vmax.xlane.f32.xlu0 %v3629
        %v3631 = vpop.xlane.xlu0 %3630
        %v3632 = vmax.f32 %v3463, %v3552
        %3633 = vmax.xlane.f32.xlu0 %v3632
        %v3634 = vpop.xlane.xlu0 %3633
        %v3635 = vmax.f32 %v3466, %v3555
        %3636 = vmax.xlane.f32.xlu0 %v3635
        %v3637 = vpop.xlane.xlu0 %3636
        %v3638 = vmax.f32 %v3468, %v3557
        %3639 = vmax.xlane.f32.xlu0 %v3638
        %v3640 = vpop.xlane.xlu0 %3639
        %v3641 = vmax.f32 %v3471, %v3560
        %3642 = vmax.xlane.f32.xlu0 %v3641
        %v3643 = vpop.xlane.xlu0 %3642
        %v3644 = vmax.f32 %v3473, %v3562
        %3645 = vmax.xlane.f32.xlu0 %v3644
        %v3646 = vpop.xlane.xlu0 %3645
        %v3647 = vmax.f32 %v3476, %v3565
        %3648 = vmax.xlane.f32.xlu0 %v3647
        %v3649 = vpop.xlane.xlu0 %3648
        %v3650 = vmax.f32 %v3478, %v3567
        %3651 = vmax.xlane.f32.xlu0 %v3650
        %v3652 = vpop.xlane.xlu0 %3651
        %v3653 = vmax.f32 %v3481, %v3570
        %3654 = vmax.xlane.f32.xlu0 %v3653
        %v3655 = vpop.xlane.xlu0 %3654
        %v3656 = vmax.f32 %v3483, %v3572
        %3657 = vmax.xlane.f32.xlu0 %v3656
        %v3658 = vpop.xlane.xlu0 %3657
        %v3659 = vmax.f32 %v3486, %v3575
        %3660 = vmax.xlane.f32.xlu0 %v3659
        %v3661 = vpop.xlane.xlu0 %3660
        %v3662 = vmax.f32 %v3488, %v3577
        %3663 = vmax.xlane.f32.xlu0 %v3662
        %v3664 = vpop.xlane.xlu0 %3663
        %v3665 = vmax.f32 %v3491, %v3580
        %3666 = vmax.xlane.f32.xlu0 %v3665
        %v3667 = vpop.xlane.xlu0 %3666
        %v3668 = vmax.f32 %v3493, %v3582
        %3669 = vmax.xlane.f32.xlu0 %v3668
        %v3670 = vpop.xlane.xlu0 %3669
        %v3671 = vmax.f32 %v3496, %v3585
        %3672 = vmax.xlane.f32.xlu0 %v3671
        %v3673 = vpop.xlane.xlu0 %3672
        %v3674 = vmax.f32 %v3498, %v3587
        %3675 = vmax.xlane.f32.xlu0 %v3674
        %v3676 = vpop.xlane.xlu0 %3675
        %v3677 = vmax.f32 %v3501, %v3590
        %3678 = vmax.xlane.f32.xlu0 %v3677
        %v3679 = vpop.xlane.xlu0 %3678
        %v3680 = vmax.f32 %v3503, %v3592
        %3681 = vmax.xlane.f32.xlu0 %v3680
        %v3682 = vpop.xlane.xlu0 %3681
        %v3683 = vmax.f32 %v3506, %v3595
        %3684 = vmax.xlane.f32.xlu0 %v3683
        %v3685 = vpop.xlane.xlu0 %3684
        %v3686 = vmax.f32 %v3508, %v3597
        %3687 = vmax.xlane.f32.xlu0 %v3686
        %v3688 = vpop.xlane.xlu0 %3687
        %v3689 = vmax.f32 %v3511, %v3600
        %3690 = vmax.xlane.f32.xlu0 %v3689
        %v3691 = vpop.xlane.xlu0 %3690
        %v3692 = vmax.f32 %v3513, %v3602
        %3693 = vmax.xlane.f32.xlu0 %v3692
        %v3694 = vpop.xlane.xlu0 %3693
        %v3695 = vmax.f32 %v3516, %v3605
        %3696 = vmax.xlane.f32.xlu0 %v3695
        %v3697 = vpop.xlane.xlu0 %3696
        %v3698 = vmax.f32 %v3518, %v3607
        %3699 = vmax.xlane.f32.xlu0 %v3698
        %v3700 = vpop.xlane.xlu0 %3699
        %v3701 = vmax.f32 %v3521, %v3610
        %3702 = vmax.xlane.f32.xlu0 %v3701
        %v3703 = vpop.xlane.xlu0 %3702
        %v3704 = vmax.f32 %v3523, %v3612
        %3705 = vmax.xlane.f32.xlu0 %v3704
        %v3706 = vpop.xlane.xlu0 %3705
        %v3707 = vmax.f32 %v3526, %v3615
        %3708 = vmax.xlane.f32.xlu0 %v3707
        %v3709 = vpop.xlane.xlu0 %3708
        %v3710 = vmax.f32 %v3528, %v3617
        %3711 = vmax.xlane.f32.xlu0 %v3710
        %v3712 = vpop.xlane.xlu0 %3711
        %v3713 = vmax.f32 %v3531, %v3620
        %3714 = vmax.xlane.f32.xlu0 %v3713
        %v3715 = vpop.xlane.xlu0 %3714
        %v3716 = vmax.f32 %v3533, %v3622
        %3717 = vmax.xlane.f32.xlu0 %v3716
        %v3718 = vpop.xlane.xlu0 %3717
        %v3719 = vmax.f32 %v3536, %v3625
        %3720 = vmax.xlane.f32.xlu0 %v3719
        %v3721 = vpop.xlane.xlu0 %3720
        %v3722 = vmax.f32 %v3538, %v3627
        %3723 = vmax.xlane.f32.xlu0 %v3722
        %v3724 = vpop.xlane.xlu0 %3723
        %v3725 = vsub.f32 %v3461, %v3631
        %v3726 = vsub.f32 %v3550, %v3631
        %v3727 = vsub.f32 %v3463, %v3634
        %v3728 = vsub.f32 %v3552, %v3634
        %v3729 = vsub.f32 %v3466, %v3637
        %v3730 = vsub.f32 %v3555, %v3637
        %v3731 = vsub.f32 %v3468, %v3640
        %v3732 = vsub.f32 %v3557, %v3640
        %v3733 = vsub.f32 %v3471, %v3643
        %v3734 = vsub.f32 %v3560, %v3643
        %v3735 = vsub.f32 %v3473, %v3646
        %v3736 = vsub.f32 %v3562, %v3646
        %v3737 = vsub.f32 %v3476, %v3649
        %v3738 = vsub.f32 %v3565, %v3649
        %v3739 = vsub.f32 %v3478, %v3652
        %v3740 = vsub.f32 %v3567, %v3652
        %v3741 = vsub.f32 %v3481, %v3655
        %v3742 = vsub.f32 %v3570, %v3655
        %v3743 = vsub.f32 %v3483, %v3658
        %v3744 = vsub.f32 %v3572, %v3658
        %v3745 = vsub.f32 %v3486, %v3661
        %v3746 = vsub.f32 %v3575, %v3661
        %v3747 = vsub.f32 %v3488, %v3664
        %v3748 = vsub.f32 %v3577, %v3664
        %v3749 = vsub.f32 %v3491, %v3667
        %v3750 = vsub.f32 %v3580, %v3667
        %v3751 = vsub.f32 %v3493, %v3670
        %v3752 = vsub.f32 %v3582, %v3670
        %v3753 = vsub.f32 %v3496, %v3673
        %v3754 = vsub.f32 %v3585, %v3673
        %v3755 = vsub.f32 %v3498, %v3676
        %v3756 = vsub.f32 %v3587, %v3676
        %v3757 = vsub.f32 %v3501, %v3679
        %v3758 = vsub.f32 %v3590, %v3679
        %v3759 = vsub.f32 %v3503, %v3682
        %v3760 = vsub.f32 %v3592, %v3682
        %v3761 = vsub.f32 %v3506, %v3685
        %v3762 = vsub.f32 %v3595, %v3685
        %v3763 = vsub.f32 %v3508, %v3688
        %v3764 = vsub.f32 %v3597, %v3688
        %v3765 = vsub.f32 %v3511, %v3691
        %v3766 = vsub.f32 %v3600, %v3691
        %v3767 = vsub.f32 %v3513, %v3694
        %v3768 = vsub.f32 %v3602, %v3694
        %v3769 = vsub.f32 %v3516, %v3697
        %v3770 = vsub.f32 %v3605, %v3697
        %v3771 = vsub.f32 %v3518, %v3700
        %v3772 = vsub.f32 %v3607, %v3700
        %v3773 = vsub.f32 %v3521, %v3703
        %v3774 = vsub.f32 %v3610, %v3703
        %v3775 = vsub.f32 %v3523, %v3706
        %v3776 = vsub.f32 %v3612, %v3706
        %v3777 = vsub.f32 %v3526, %v3709
        %v3778 = vsub.f32 %v3615, %v3709
        %v3779 = vsub.f32 %v3528, %v3712
        %v3780 = vsub.f32 %v3617, %v3712
        %v3781 = vsub.f32 %v3531, %v3715
        %v3782 = vsub.f32 %v3620, %v3715
        %v3783 = vsub.f32 %v3533, %v3718
        %v3784 = vsub.f32 %v3622, %v3718
        %v3785 = vsub.f32 %v3536, %v3721
        %v3786 = vsub.f32 %v3625, %v3721
        %v3787 = vsub.f32 %v3538, %v3724
        %v3788 = vsub.f32 %v3627, %v3724
        %v3789 = vmul.f32 %v3725, 1.442695
        %v3790 = vpow.pop %v3789
        %v3791 = vmul.f32 %v3726, 1.442695
        %v3792 = vpow.pop %v3791
        %v3793 = vmul.f32 %v3727, 1.442695
        %v3794 = vpow.pop %v3793
        %v3795 = vmul.f32 %v3728, 1.442695
        %v3796 = vpow.pop %v3795
        %v3797 = vmul.f32 %v3729, 1.442695
        %v3798 = vpow.pop %v3797
        %v3799 = vmul.f32 %v3730, 1.442695
        %v3800 = vpow.pop %v3799
        %v3801 = vmul.f32 %v3731, 1.442695
        %v3802 = vpow.pop %v3801
        %v3803 = vmul.f32 %v3732, 1.442695
        %v3804 = vpow.pop %v3803
        %v3805 = vmul.f32 %v3733, 1.442695
        %v3806 = vpow.pop %v3805
        %v3807 = vmul.f32 %v3734, 1.442695
        %v3808 = vpow.pop %v3807
        %v3809 = vmul.f32 %v3735, 1.442695
        %v3810 = vpow.pop %v3809
        %v3811 = vmul.f32 %v3736, 1.442695
        %v3812 = vpow.pop %v3811
        %v3813 = vmul.f32 %v3737, 1.442695
        %v3814 = vpow.pop %v3813
        %v3815 = vmul.f32 %v3738, 1.442695
        %v3816 = vpow.pop %v3815
        %v3817 = vmul.f32 %v3739, 1.442695
        %v3818 = vpow.pop %v3817
        %v3819 = vmul.f32 %v3740, 1.442695
        %v3820 = vpow.pop %v3819
        %v3821 = vmul.f32 %v3741, 1.442695
        %v3822 = vpow.pop %v3821
        %v3823 = vmul.f32 %v3742, 1.442695
        %v3824 = vpow.pop %v3823
        %v3825 = vmul.f32 %v3743, 1.442695
        %v3826 = vpow.pop %v3825
        %v3827 = vmul.f32 %v3744, 1.442695
        %v3828 = vpow.pop %v3827
        %v3829 = vmul.f32 %v3745, 1.442695
        %v3830 = vpow.pop %v3829
        %v3831 = vmul.f32 %v3746, 1.442695
        %v3832 = vpow.pop %v3831
        %v3833 = vmul.f32 %v3747, 1.442695
        %v3834 = vpow.pop %v3833
        %v3835 = vmul.f32 %v3748, 1.442695
        %v3836 = vpow.pop %v3835
        %v3837 = vmul.f32 %v3749, 1.442695
        %v3838 = vpow.pop %v3837
        %v3839 = vmul.f32 %v3750, 1.442695
        %v3840 = vpow.pop %v3839
        %v3841 = vmul.f32 %v3751, 1.442695
        %v3842 = vpow.pop %v3841
        %v3843 = vmul.f32 %v3752, 1.442695
        %v3844 = vpow.pop %v3843
        %v3845 = vmul.f32 %v3753, 1.442695
        %v3846 = vpow.pop %v3845
        %v3847 = vmul.f32 %v3754, 1.442695
        %v3848 = vpow.pop %v3847
        %v3849 = vmul.f32 %v3755, 1.442695
        %v3850 = vpow.pop %v3849
        %v3851 = vmul.f32 %v3756, 1.442695
        %v3852 = vpow.pop %v3851
        %v3853 = vmul.f32 %v3757, 1.442695
        %v3854 = vpow.pop %v3853
        %v3855 = vmul.f32 %v3758, 1.442695
        %v3856 = vpow.pop %v3855
        %v3857 = vmul.f32 %v3759, 1.442695
        %v3858 = vpow.pop %v3857
        %v3859 = vmul.f32 %v3760, 1.442695
        %v3860 = vpow.pop %v3859
        %v3861 = vmul.f32 %v3761, 1.442695
        %v3862 = vpow.pop %v3861
        %v3863 = vmul.f32 %v3762, 1.442695
        %v3864 = vpow.pop %v3863
        %v3865 = vmul.f32 %v3763, 1.442695
        %v3866 = vpow.pop %v3865
        %v3867 = vmul.f32 %v3764, 1.442695
        %v3868 = vpow.pop %v3867
        %v3869 = vmul.f32 %v3765, 1.442695
        %v3870 = vpow.pop %v3869
        %v3871 = vmul.f32 %v3766, 1.442695
        %v3872 = vpow.pop %v3871
        %v3873 = vmul.f32 %v3767, 1.442695
        %v3874 = vpow.pop %v3873
        %v3875 = vmul.f32 %v3768, 1.442695
        %v3876 = vpow.pop %v3875
        %v3877 = vmul.f32 %v3769, 1.442695
        %v3878 = vpow.pop %v3877
        %v3879 = vmul.f32 %v3770, 1.442695
        %v3880 = vpow.pop %v3879
        %v3881 = vmul.f32 %v3771, 1.442695
        %v3882 = vpow.pop %v3881
        %v3883 = vmul.f32 %v3772, 1.442695
        %v3884 = vpow.pop %v3883
        %v3885 = vmul.f32 %v3773, 1.442695
        %v3886 = vpow.pop %v3885
        %v3887 = vmul.f32 %v3774, 1.442695
        %v3888 = vpow.pop %v3887
        %v3889 = vmul.f32 %v3775, 1.442695
        %v3890 = vpow.pop %v3889
        %v3891 = vmul.f32 %v3776, 1.442695
        %v3892 = vpow.pop %v3891
        %v3893 = vmul.f32 %v3777, 1.442695
        %v3894 = vpow.pop %v3893
        %v3895 = vmul.f32 %v3778, 1.442695
        %v3896 = vpow.pop %v3895
        %v3897 = vmul.f32 %v3779, 1.442695
        %v3898 = vpow.pop %v3897
        %v3899 = vmul.f32 %v3780, 1.442695
        %v3900 = vpow.pop %v3899
        %v3901 = vmul.f32 %v3781, 1.442695
        %v3902 = vpow.pop %v3901
        %v3903 = vmul.f32 %v3782, 1.442695
        %v3904 = vpow.pop %v3903
        %v3905 = vmul.f32 %v3783, 1.442695
        %v3906 = vpow.pop %v3905
        %v3907 = vmul.f32 %v3784, 1.442695
        %v3908 = vpow.pop %v3907
        %v3909 = vmul.f32 %v3785, 1.442695
        %v3910 = vpow.pop %v3909
        %v3911 = vmul.f32 %v3786, 1.442695
        %v3912 = vpow.pop %v3911
        %v3913 = vmul.f32 %v3787, 1.442695
        %v3914 = vpow.pop %v3913
        %v3915 = vmul.f32 %v3788, 1.442695
        %v3916 = vpow.pop %v3915
        %v3917 = vadd.f32 %v3790, %v3792
        %3918 = vadd.xlane.f32.xlu0 %v3917
        %v3919 = vpop.xlane.xlu0 %3918
        %v3920 = vadd.f32 %v3794, %v3796
        %3921 = vadd.xlane.f32.xlu0 %v3920
        %v3922 = vpop.xlane.xlu0 %3921
        %v3923 = vadd.f32 %v3798, %v3800
        %3924 = vadd.xlane.f32.xlu0 %v3923
        %v3925 = vpop.xlane.xlu0 %3924
        %v3926 = vadd.f32 %v3802, %v3804
        %3927 = vadd.xlane.f32.xlu0 %v3926
        %v3928 = vpop.xlane.xlu0 %3927
        %v3929 = vadd.f32 %v3806, %v3808
        %3930 = vadd.xlane.f32.xlu0 %v3929
        %v3931 = vpop.xlane.xlu0 %3930
        %v3932 = vadd.f32 %v3810, %v3812
        %3933 = vadd.xlane.f32.xlu0 %v3932
        %v3934 = vpop.xlane.xlu0 %3933
        %v3935 = vadd.f32 %v3814, %v3816
        %3936 = vadd.xlane.f32.xlu0 %v3935
        %v3937 = vpop.xlane.xlu0 %3936
        %v3938 = vadd.f32 %v3818, %v3820
        %3939 = vadd.xlane.f32.xlu0 %v3938
        %v3940 = vpop.xlane.xlu0 %3939
        %v3941 = vadd.f32 %v3822, %v3824
        %3942 = vadd.xlane.f32.xlu0 %v3941
        %v3943 = vpop.xlane.xlu0 %3942
        %v3944 = vadd.f32 %v3826, %v3828
        %3945 = vadd.xlane.f32.xlu0 %v3944
        %v3946 = vpop.xlane.xlu0 %3945
        %v3947 = vadd.f32 %v3830, %v3832
        %3948 = vadd.xlane.f32.xlu0 %v3947
        %v3949 = vpop.xlane.xlu0 %3948
        %v3950 = vadd.f32 %v3834, %v3836
        %3951 = vadd.xlane.f32.xlu0 %v3950
        %v3952 = vpop.xlane.xlu0 %3951
        %v3953 = vadd.f32 %v3838, %v3840
        %3954 = vadd.xlane.f32.xlu0 %v3953
        %v3955 = vpop.xlane.xlu0 %3954
        %v3956 = vadd.f32 %v3842, %v3844
        %3957 = vadd.xlane.f32.xlu0 %v3956
        %v3958 = vpop.xlane.xlu0 %3957
        %v3959 = vadd.f32 %v3846, %v3848
        %3960 = vadd.xlane.f32.xlu0 %v3959
        %v3961 = vpop.xlane.xlu0 %3960
        %v3962 = vadd.f32 %v3850, %v3852
        %3963 = vadd.xlane.f32.xlu0 %v3962
        %v3964 = vpop.xlane.xlu0 %3963
        %v3965 = vadd.f32 %v3854, %v3856
        %3966 = vadd.xlane.f32.xlu0 %v3965
        %v3967 = vpop.xlane.xlu0 %3966
        %v3968 = vadd.f32 %v3858, %v3860
        %3969 = vadd.xlane.f32.xlu0 %v3968
        %v3970 = vpop.xlane.xlu0 %3969
        %v3971 = vadd.f32 %v3862, %v3864
        %3972 = vadd.xlane.f32.xlu0 %v3971
        %v3973 = vpop.xlane.xlu0 %3972
        %v3974 = vadd.f32 %v3866, %v3868
        %3975 = vadd.xlane.f32.xlu0 %v3974
        %v3976 = vpop.xlane.xlu0 %3975
        %v3977 = vadd.f32 %v3870, %v3872
        %3978 = vadd.xlane.f32.xlu0 %v3977
        %v3979 = vpop.xlane.xlu0 %3978
        %v3980 = vadd.f32 %v3874, %v3876
        %3981 = vadd.xlane.f32.xlu0 %v3980
        %v3982 = vpop.xlane.xlu0 %3981
        %v3983 = vadd.f32 %v3878, %v3880
        %3984 = vadd.xlane.f32.xlu0 %v3983
        %v3985 = vpop.xlane.xlu0 %3984
        %v3986 = vadd.f32 %v3882, %v3884
        %3987 = vadd.xlane.f32.xlu0 %v3986
        %v3988 = vpop.xlane.xlu0 %3987
        %v3989 = vadd.f32 %v3886, %v3888
        %3990 = vadd.xlane.f32.xlu0 %v3989
        %v3991 = vpop.xlane.xlu0 %3990
        %v3992 = vadd.f32 %v3890, %v3892
        %3993 = vadd.xlane.f32.xlu0 %v3992
        %v3994 = vpop.xlane.xlu0 %3993
        %v3995 = vadd.f32 %v3894, %v3896
        %3996 = vadd.xlane.f32.xlu0 %v3995
        %v3997 = vpop.xlane.xlu0 %3996
        %v3998 = vadd.f32 %v3898, %v3900
        %3999 = vadd.xlane.f32.xlu0 %v3998
        %v4000 = vpop.xlane.xlu0 %3999
        %v4001 = vadd.f32 %v3902, %v3904
        %4002 = vadd.xlane.f32.xlu0 %v4001
        %v4003 = vpop.xlane.xlu0 %4002
        %v4004 = vadd.f32 %v3906, %v3908
        %4005 = vadd.xlane.f32.xlu0 %v4004
        %v4006 = vpop.xlane.xlu0 %4005
        %v4007 = vadd.f32 %v3910, %v3912
        %4008 = vadd.xlane.f32.xlu0 %v4007
        %v4009 = vpop.xlane.xlu0 %4008
        %v4010 = vadd.f32 %v3914, %v3916
        %4011 = vadd.xlane.f32.xlu0 %v4010
        %v4012 = vpop.xlane.xlu0 %4011
        %v4013 = vrcp.pop %v3919
        %v4014 = vmul.f32 %v3919, %v4013
        %v4015 = vsub.f32 1.0, %v4014
        %v4016 = vmul.f32 %v4013, %v4015
        %v4017 = vadd.f32 %v4013, %v4016
        %vm4018 = vweird.f32 %v3919
        %vm4019 = vweird.f32 %v4013
        %vm4020 = vmor %vm4018, %vm4019
        %v4021 = vsel %vm4020, %v4013, %v4017
        %v4022 = vand.u32 2147483647, %v3919
        %vm4023 = vcmp.eq.f32.partialorder %v4022, 8.507059e+37
        %v4024 = vand.u32 %v3919, 2147483648
        %v4025 = vor.u32 1.1754944e-38, %v4024
        %v4026 = vsel %vm4023, %v4025, %v4021
        %v4027 = vmul.f32 1.0, %v4026
        %v4028 = vrcp.pop %v3922
        %v4029 = vmul.f32 %v3922, %v4028
        %v4030 = vsub.f32 1.0, %v4029
        %v4031 = vmul.f32 %v4028, %v4030
        %v4032 = vadd.f32 %v4028, %v4031
        %vm4033 = vweird.f32 %v3922
        %vm4034 = vweird.f32 %v4028
        %vm4035 = vmor %vm4033, %vm4034
        %v4036 = vsel %vm4035, %v4028, %v4032
        %v4037 = vand.u32 2147483647, %v3922
        %vm4038 = vcmp.eq.f32.partialorder %v4037, 8.507059e+37
        %v4039 = vand.u32 %v3922, 2147483648
        %v4040 = vor.u32 1.1754944e-38, %v4039
        %v4041 = vsel %vm4038, %v4040, %v4036
        %v4042 = vmul.f32 1.0, %v4041
        %v4043 = vrcp.pop %v3925
        %v4044 = vmul.f32 %v3925, %v4043
        %v4045 = vsub.f32 1.0, %v4044
        %v4046 = vmul.f32 %v4043, %v4045
        %v4047 = vadd.f32 %v4043, %v4046
        %vm4048 = vweird.f32 %v3925
        %vm4049 = vweird.f32 %v4043
        %vm4050 = vmor %vm4048, %vm4049
        %v4051 = vsel %vm4050, %v4043, %v4047
        %v4052 = vand.u32 2147483647, %v3925
        %vm4053 = vcmp.eq.f32.partialorder %v4052, 8.507059e+37
        %v4054 = vand.u32 %v3925, 2147483648
        %v4055 = vor.u32 1.1754944e-38, %v4054
        %v4056 = vsel %vm4053, %v4055, %v4051
        %v4057 = vmul.f32 1.0, %v4056
        %v4058 = vrcp.pop %v3928
        %v4059 = vmul.f32 %v3928, %v4058
        %v4060 = vsub.f32 1.0, %v4059
        %v4061 = vmul.f32 %v4058, %v4060
        %v4062 = vadd.f32 %v4058, %v4061
        %vm4063 = vweird.f32 %v3928
        %vm4064 = vweird.f32 %v4058
        %vm4065 = vmor %vm4063, %vm4064
        %v4066 = vsel %vm4065, %v4058, %v4062
        %v4067 = vand.u32 2147483647, %v3928
        %vm4068 = vcmp.eq.f32.partialorder %v4067, 8.507059e+37
        %v4069 = vand.u32 %v3928, 2147483648
        %v4070 = vor.u32 1.1754944e-38, %v4069
        %v4071 = vsel %vm4068, %v4070, %v4066
        %v4072 = vmul.f32 1.0, %v4071
        %v4073 = vrcp.pop %v3931
        %v4074 = vmul.f32 %v3931, %v4073
        %v4075 = vsub.f32 1.0, %v4074
        %v4076 = vmul.f32 %v4073, %v4075
        %v4077 = vadd.f32 %v4073, %v4076
        %vm4078 = vweird.f32 %v3931
        %vm4079 = vweird.f32 %v4073
        %vm4080 = vmor %vm4078, %vm4079
        %v4081 = vsel %vm4080, %v4073, %v4077
        %v4082 = vand.u32 2147483647, %v3931
        %vm4083 = vcmp.eq.f32.partialorder %v4082, 8.507059e+37
        %v4084 = vand.u32 %v3931, 2147483648
        %v4085 = vor.u32 1.1754944e-38, %v4084
        %v4086 = vsel %vm4083, %v4085, %v4081
        %v4087 = vmul.f32 1.0, %v4086
        %v4088 = vrcp.pop %v3934
        %v4089 = vmul.f32 %v3934, %v4088
        %v4090 = vsub.f32 1.0, %v4089
        %v4091 = vmul.f32 %v4088, %v4090
        %v4092 = vadd.f32 %v4088, %v4091
        %vm4093 = vweird.f32 %v3934
        %vm4094 = vweird.f32 %v4088
        %vm4095 = vmor %vm4093, %vm4094
        %v4096 = vsel %vm4095, %v4088, %v4092
        %v4097 = vand.u32 2147483647, %v3934
        %vm4098 = vcmp.eq.f32.partialorder %v4097, 8.507059e+37
        %v4099 = vand.u32 %v3934, 2147483648
        %v4100 = vor.u32 1.1754944e-38, %v4099
        %v4101 = vsel %vm4098, %v4100, %v4096
        %v4102 = vmul.f32 1.0, %v4101
        %v4103 = vrcp.pop %v3937
        %v4104 = vmul.f32 %v3937, %v4103
        %v4105 = vsub.f32 1.0, %v4104
        %v4106 = vmul.f32 %v4103, %v4105
        %v4107 = vadd.f32 %v4103, %v4106
        %vm4108 = vweird.f32 %v3937
        %vm4109 = vweird.f32 %v4103
        %vm4110 = vmor %vm4108, %vm4109
        %v4111 = vsel %vm4110, %v4103, %v4107
        %v4112 = vand.u32 2147483647, %v3937
        %vm4113 = vcmp.eq.f32.partialorder %v4112, 8.507059e+37
        %v4114 = vand.u32 %v3937, 2147483648
        %v4115 = vor.u32 1.1754944e-38, %v4114
        %v4116 = vsel %vm4113, %v4115, %v4111
        %v4117 = vmul.f32 1.0, %v4116
        %v4118 = vrcp.pop %v3940
        %v4119 = vmul.f32 %v3940, %v4118
        %v4120 = vsub.f32 1.0, %v4119
        %v4121 = vmul.f32 %v4118, %v4120
        %v4122 = vadd.f32 %v4118, %v4121
        %vm4123 = vweird.f32 %v3940
        %vm4124 = vweird.f32 %v4118
        %vm4125 = vmor %vm4123, %vm4124
        %v4126 = vsel %vm4125, %v4118, %v4122
        %v4127 = vand.u32 2147483647, %v3940
        %vm4128 = vcmp.eq.f32.partialorder %v4127, 8.507059e+37
        %v4129 = vand.u32 %v3940, 2147483648
        %v4130 = vor.u32 1.1754944e-38, %v4129
        %v4131 = vsel %vm4128, %v4130, %v4126
        %v4132 = vmul.f32 1.0, %v4131
        %v4133 = vrcp.pop %v3943
        %v4134 = vmul.f32 %v3943, %v4133
        %v4135 = vsub.f32 1.0, %v4134
        %v4136 = vmul.f32 %v4133, %v4135
        %v4137 = vadd.f32 %v4133, %v4136
        %vm4138 = vweird.f32 %v3943
        %vm4139 = vweird.f32 %v4133
        %vm4140 = vmor %vm4138, %vm4139
        %v4141 = vsel %vm4140, %v4133, %v4137
        %v4142 = vand.u32 2147483647, %v3943
        %vm4143 = vcmp.eq.f32.partialorder %v4142, 8.507059e+37
        %v4144 = vand.u32 %v3943, 2147483648
        %v4145 = vor.u32 1.1754944e-38, %v4144
        %v4146 = vsel %vm4143, %v4145, %v4141
        %v4147 = vmul.f32 1.0, %v4146
        %v4148 = vrcp.pop %v3946
        %v4149 = vmul.f32 %v3946, %v4148
        %v4150 = vsub.f32 1.0, %v4149
        %v4151 = vmul.f32 %v4148, %v4150
        %v4152 = vadd.f32 %v4148, %v4151
        %vm4153 = vweird.f32 %v3946
        %vm4154 = vweird.f32 %v4148
        %vm4155 = vmor %vm4153, %vm4154
        %v4156 = vsel %vm4155, %v4148, %v4152
        %v4157 = vand.u32 2147483647, %v3946
        %vm4158 = vcmp.eq.f32.partialorder %v4157, 8.507059e+37
        %v4159 = vand.u32 %v3946, 2147483648
        %v4160 = vor.u32 1.1754944e-38, %v4159
        %v4161 = vsel %vm4158, %v4160, %v4156
        %v4162 = vmul.f32 1.0, %v4161
        %v4163 = vrcp.pop %v3949
        %v4164 = vmul.f32 %v3949, %v4163
        %v4165 = vsub.f32 1.0, %v4164
        %v4166 = vmul.f32 %v4163, %v4165
        %v4167 = vadd.f32 %v4163, %v4166
        %vm4168 = vweird.f32 %v3949
        %vm4169 = vweird.f32 %v4163
        %vm4170 = vmor %vm4168, %vm4169
        %v4171 = vsel %vm4170, %v4163, %v4167
        %v4172 = vand.u32 2147483647, %v3949
        %vm4173 = vcmp.eq.f32.partialorder %v4172, 8.507059e+37
        %v4174 = vand.u32 %v3949, 2147483648
        %v4175 = vor.u32 1.1754944e-38, %v4174
        %v4176 = vsel %vm4173, %v4175, %v4171
        %v4177 = vmul.f32 1.0, %v4176
        %v4178 = vrcp.pop %v3952
        %v4179 = vmul.f32 %v3952, %v4178
        %v4180 = vsub.f32 1.0, %v4179
        %v4181 = vmul.f32 %v4178, %v4180
        %v4182 = vadd.f32 %v4178, %v4181
        %vm4183 = vweird.f32 %v3952
        %vm4184 = vweird.f32 %v4178
        %vm4185 = vmor %vm4183, %vm4184
        %v4186 = vsel %vm4185, %v4178, %v4182
        %v4187 = vand.u32 2147483647, %v3952
        %vm4188 = vcmp.eq.f32.partialorder %v4187, 8.507059e+37
        %v4189 = vand.u32 %v3952, 2147483648
        %v4190 = vor.u32 1.1754944e-38, %v4189
        %v4191 = vsel %vm4188, %v4190, %v4186
        %v4192 = vmul.f32 1.0, %v4191
        %v4193 = vrcp.pop %v3955
        %v4194 = vmul.f32 %v3955, %v4193
        %v4195 = vsub.f32 1.0, %v4194
        %v4196 = vmul.f32 %v4193, %v4195
        %v4197 = vadd.f32 %v4193, %v4196
        %vm4198 = vweird.f32 %v3955
        %vm4199 = vweird.f32 %v4193
        %vm4200 = vmor %vm4198, %vm4199
        %v4201 = vsel %vm4200, %v4193, %v4197
        %v4202 = vand.u32 2147483647, %v3955
        %vm4203 = vcmp.eq.f32.partialorder %v4202, 8.507059e+37
        %v4204 = vand.u32 %v3955, 2147483648
        %v4205 = vor.u32 1.1754944e-38, %v4204
        %v4206 = vsel %vm4203, %v4205, %v4201
        %v4207 = vmul.f32 1.0, %v4206
        %v4208 = vrcp.pop %v3958
        %v4209 = vmul.f32 %v3958, %v4208
        %v4210 = vsub.f32 1.0, %v4209
        %v4211 = vmul.f32 %v4208, %v4210
        %v4212 = vadd.f32 %v4208, %v4211
        %vm4213 = vweird.f32 %v3958
        %vm4214 = vweird.f32 %v4208
        %vm4215 = vmor %vm4213, %vm4214
        %v4216 = vsel %vm4215, %v4208, %v4212
        %v4217 = vand.u32 2147483647, %v3958
        %vm4218 = vcmp.eq.f32.partialorder %v4217, 8.507059e+37
        %v4219 = vand.u32 %v3958, 2147483648
        %v4220 = vor.u32 1.1754944e-38, %v4219
        %v4221 = vsel %vm4218, %v4220, %v4216
        %v4222 = vmul.f32 1.0, %v4221
        %v4223 = vrcp.pop %v3961
        %v4224 = vmul.f32 %v3961, %v4223
        %v4225 = vsub.f32 1.0, %v4224
        %v4226 = vmul.f32 %v4223, %v4225
        %v4227 = vadd.f32 %v4223, %v4226
        %vm4228 = vweird.f32 %v3961
        %vm4229 = vweird.f32 %v4223
        %vm4230 = vmor %vm4228, %vm4229
        %v4231 = vsel %vm4230, %v4223, %v4227
        %v4232 = vand.u32 2147483647, %v3961
        %vm4233 = vcmp.eq.f32.partialorder %v4232, 8.507059e+37
        %v4234 = vand.u32 %v3961, 2147483648
        %v4235 = vor.u32 1.1754944e-38, %v4234
        %v4236 = vsel %vm4233, %v4235, %v4231
        %v4237 = vmul.f32 1.0, %v4236
        %v4238 = vrcp.pop %v3964
        %v4239 = vmul.f32 %v3964, %v4238
        %v4240 = vsub.f32 1.0, %v4239
        %v4241 = vmul.f32 %v4238, %v4240
        %v4242 = vadd.f32 %v4238, %v4241
        %vm4243 = vweird.f32 %v3964
        %vm4244 = vweird.f32 %v4238
        %vm4245 = vmor %vm4243, %vm4244
        %v4246 = vsel %vm4245, %v4238, %v4242
        %v4247 = vand.u32 2147483647, %v3964
        %vm4248 = vcmp.eq.f32.partialorder %v4247, 8.507059e+37
        %v4249 = vand.u32 %v3964, 2147483648
        %v4250 = vor.u32 1.1754944e-38, %v4249
        %v4251 = vsel %vm4248, %v4250, %v4246
        %v4252 = vmul.f32 1.0, %v4251
        %v4253 = vrcp.pop %v3967
        %v4254 = vmul.f32 %v3967, %v4253
        %v4255 = vsub.f32 1.0, %v4254
        %v4256 = vmul.f32 %v4253, %v4255
        %v4257 = vadd.f32 %v4253, %v4256
        %vm4258 = vweird.f32 %v3967
        %vm4259 = vweird.f32 %v4253
        %vm4260 = vmor %vm4258, %vm4259
        %v4261 = vsel %vm4260, %v4253, %v4257
        %v4262 = vand.u32 2147483647, %v3967
        %vm4263 = vcmp.eq.f32.partialorder %v4262, 8.507059e+37
        %v4264 = vand.u32 %v3967, 2147483648
        %v4265 = vor.u32 1.1754944e-38, %v4264
        %v4266 = vsel %vm4263, %v4265, %v4261
        %v4267 = vmul.f32 1.0, %v4266
        %v4268 = vrcp.pop %v3970
        %v4269 = vmul.f32 %v3970, %v4268
        %v4270 = vsub.f32 1.0, %v4269
        %v4271 = vmul.f32 %v4268, %v4270
        %v4272 = vadd.f32 %v4268, %v4271
        %vm4273 = vweird.f32 %v3970
        %vm4274 = vweird.f32 %v4268
        %vm4275 = vmor %vm4273, %vm4274
        %v4276 = vsel %vm4275, %v4268, %v4272
        %v4277 = vand.u32 2147483647, %v3970
        %vm4278 = vcmp.eq.f32.partialorder %v4277, 8.507059e+37
        %v4279 = vand.u32 %v3970, 2147483648
        %v4280 = vor.u32 1.1754944e-38, %v4279
        %v4281 = vsel %vm4278, %v4280, %v4276
        %v4282 = vmul.f32 1.0, %v4281
        %v4283 = vrcp.pop %v3973
        %v4284 = vmul.f32 %v3973, %v4283
        %v4285 = vsub.f32 1.0, %v4284
        %v4286 = vmul.f32 %v4283, %v4285
        %v4287 = vadd.f32 %v4283, %v4286
        %vm4288 = vweird.f32 %v3973
        %vm4289 = vweird.f32 %v4283
        %vm4290 = vmor %vm4288, %vm4289
        %v4291 = vsel %vm4290, %v4283, %v4287
        %v4292 = vand.u32 2147483647, %v3973
        %vm4293 = vcmp.eq.f32.partialorder %v4292, 8.507059e+37
        %v4294 = vand.u32 %v3973, 2147483648
        %v4295 = vor.u32 1.1754944e-38, %v4294
        %v4296 = vsel %vm4293, %v4295, %v4291
        %v4297 = vmul.f32 1.0, %v4296
        %v4298 = vrcp.pop %v3976
        %v4299 = vmul.f32 %v3976, %v4298
        %v4300 = vsub.f32 1.0, %v4299
        %v4301 = vmul.f32 %v4298, %v4300
        %v4302 = vadd.f32 %v4298, %v4301
        %vm4303 = vweird.f32 %v3976
        %vm4304 = vweird.f32 %v4298
        %vm4305 = vmor %vm4303, %vm4304
        %v4306 = vsel %vm4305, %v4298, %v4302
        %v4307 = vand.u32 2147483647, %v3976
        %vm4308 = vcmp.eq.f32.partialorder %v4307, 8.507059e+37
        %v4309 = vand.u32 %v3976, 2147483648
        %v4310 = vor.u32 1.1754944e-38, %v4309
        %v4311 = vsel %vm4308, %v4310, %v4306
        %v4312 = vmul.f32 1.0, %v4311
        %v4313 = vrcp.pop %v3979
        %v4314 = vmul.f32 %v3979, %v4313
        %v4315 = vsub.f32 1.0, %v4314
        %v4316 = vmul.f32 %v4313, %v4315
        %v4317 = vadd.f32 %v4313, %v4316
        %vm4318 = vweird.f32 %v3979
        %vm4319 = vweird.f32 %v4313
        %vm4320 = vmor %vm4318, %vm4319
        %v4321 = vsel %vm4320, %v4313, %v4317
        %v4322 = vand.u32 2147483647, %v3979
        %vm4323 = vcmp.eq.f32.partialorder %v4322, 8.507059e+37
        %v4324 = vand.u32 %v3979, 2147483648
        %v4325 = vor.u32 1.1754944e-38, %v4324
        %v4326 = vsel %vm4323, %v4325, %v4321
        %v4327 = vmul.f32 1.0, %v4326
        %v4328 = vrcp.pop %v3982
        %v4329 = vmul.f32 %v3982, %v4328
        %v4330 = vsub.f32 1.0, %v4329
        %v4331 = vmul.f32 %v4328, %v4330
        %v4332 = vadd.f32 %v4328, %v4331
        %vm4333 = vweird.f32 %v3982
        %vm4334 = vweird.f32 %v4328
        %vm4335 = vmor %vm4333, %vm4334
        %v4336 = vsel %vm4335, %v4328, %v4332
        %v4337 = vand.u32 2147483647, %v3982
        %vm4338 = vcmp.eq.f32.partialorder %v4337, 8.507059e+37
        %v4339 = vand.u32 %v3982, 2147483648
        %v4340 = vor.u32 1.1754944e-38, %v4339
        %v4341 = vsel %vm4338, %v4340, %v4336
        %v4342 = vmul.f32 1.0, %v4341
        %v4343 = vrcp.pop %v3985
        %v4344 = vmul.f32 %v3985, %v4343
        %v4345 = vsub.f32 1.0, %v4344
        %v4346 = vmul.f32 %v4343, %v4345
        %v4347 = vadd.f32 %v4343, %v4346
        %vm4348 = vweird.f32 %v3985
        %vm4349 = vweird.f32 %v4343
        %vm4350 = vmor %vm4348, %vm4349
        %v4351 = vsel %vm4350, %v4343, %v4347
        %v4352 = vand.u32 2147483647, %v3985
        %vm4353 = vcmp.eq.f32.partialorder %v4352, 8.507059e+37
        %v4354 = vand.u32 %v3985, 2147483648
        %v4355 = vor.u32 1.1754944e-38, %v4354
        %v4356 = vsel %vm4353, %v4355, %v4351
        %v4357 = vmul.f32 1.0, %v4356
        %v4358 = vrcp.pop %v3988
        %v4359 = vmul.f32 %v3988, %v4358
        %v4360 = vsub.f32 1.0, %v4359
        %v4361 = vmul.f32 %v4358, %v4360
        %v4362 = vadd.f32 %v4358, %v4361
        %vm4363 = vweird.f32 %v3988
        %vm4364 = vweird.f32 %v4358
        %vm4365 = vmor %vm4363, %vm4364
        %v4366 = vsel %vm4365, %v4358, %v4362
        %v4367 = vand.u32 2147483647, %v3988
        %vm4368 = vcmp.eq.f32.partialorder %v4367, 8.507059e+37
        %v4369 = vand.u32 %v3988, 2147483648
        %v4370 = vor.u32 1.1754944e-38, %v4369
        %v4371 = vsel %vm4368, %v4370, %v4366
        %v4372 = vmul.f32 1.0, %v4371
        %v4373 = vrcp.pop %v3991
        %v4374 = vmul.f32 %v3991, %v4373
        %v4375 = vsub.f32 1.0, %v4374
        %v4376 = vmul.f32 %v4373, %v4375
        %v4377 = vadd.f32 %v4373, %v4376
        %vm4378 = vweird.f32 %v3991
        %vm4379 = vweird.f32 %v4373
        %vm4380 = vmor %vm4378, %vm4379
        %v4381 = vsel %vm4380, %v4373, %v4377
        %v4382 = vand.u32 2147483647, %v3991
        %vm4383 = vcmp.eq.f32.partialorder %v4382, 8.507059e+37
        %v4384 = vand.u32 %v3991, 2147483648
        %v4385 = vor.u32 1.1754944e-38, %v4384
        %v4386 = vsel %vm4383, %v4385, %v4381
        %v4387 = vmul.f32 1.0, %v4386
        %v4388 = vrcp.pop %v3994
        %v4389 = vmul.f32 %v3994, %v4388
        %v4390 = vsub.f32 1.0, %v4389
        %v4391 = vmul.f32 %v4388, %v4390
        %v4392 = vadd.f32 %v4388, %v4391
        %vm4393 = vweird.f32 %v3994
        %vm4394 = vweird.f32 %v4388
        %vm4395 = vmor %vm4393, %vm4394
        %v4396 = vsel %vm4395, %v4388, %v4392
        %v4397 = vand.u32 2147483647, %v3994
        %vm4398 = vcmp.eq.f32.partialorder %v4397, 8.507059e+37
        %v4399 = vand.u32 %v3994, 2147483648
        %v4400 = vor.u32 1.1754944e-38, %v4399
        %v4401 = vsel %vm4398, %v4400, %v4396
        %v4402 = vmul.f32 1.0, %v4401
        %v4403 = vrcp.pop %v3997
        %v4404 = vmul.f32 %v3997, %v4403
        %v4405 = vsub.f32 1.0, %v4404
        %v4406 = vmul.f32 %v4403, %v4405
        %v4407 = vadd.f32 %v4403, %v4406
        %vm4408 = vweird.f32 %v3997
        %vm4409 = vweird.f32 %v4403
        %vm4410 = vmor %vm4408, %vm4409
        %v4411 = vsel %vm4410, %v4403, %v4407
        %v4412 = vand.u32 2147483647, %v3997
        %vm4413 = vcmp.eq.f32.partialorder %v4412, 8.507059e+37
        %v4414 = vand.u32 %v3997, 2147483648
        %v4415 = vor.u32 1.1754944e-38, %v4414
        %v4416 = vsel %vm4413, %v4415, %v4411
        %v4417 = vmul.f32 1.0, %v4416
        %v4418 = vrcp.pop %v4000
        %v4419 = vmul.f32 %v4000, %v4418
        %v4420 = vsub.f32 1.0, %v4419
        %v4421 = vmul.f32 %v4418, %v4420
        %v4422 = vadd.f32 %v4418, %v4421
        %vm4423 = vweird.f32 %v4000
        %vm4424 = vweird.f32 %v4418
        %vm4425 = vmor %vm4423, %vm4424
        %v4426 = vsel %vm4425, %v4418, %v4422
        %v4427 = vand.u32 2147483647, %v4000
        %vm4428 = vcmp.eq.f32.partialorder %v4427, 8.507059e+37
        %v4429 = vand.u32 %v4000, 2147483648
        %v4430 = vor.u32 1.1754944e-38, %v4429
        %v4431 = vsel %vm4428, %v4430, %v4426
        %v4432 = vmul.f32 1.0, %v4431
        %v4433 = vrcp.pop %v4003
        %v4434 = vmul.f32 %v4003, %v4433
        %v4435 = vsub.f32 1.0, %v4434
        %v4436 = vmul.f32 %v4433, %v4435
        %v4437 = vadd.f32 %v4433, %v4436
        %vm4438 = vweird.f32 %v4003
        %vm4439 = vweird.f32 %v4433
        %vm4440 = vmor %vm4438, %vm4439
        %v4441 = vsel %vm4440, %v4433, %v4437
        %v4442 = vand.u32 2147483647, %v4003
        %vm4443 = vcmp.eq.f32.partialorder %v4442, 8.507059e+37
        %v4444 = vand.u32 %v4003, 2147483648
        %v4445 = vor.u32 1.1754944e-38, %v4444
        %v4446 = vsel %vm4443, %v4445, %v4441
        %v4447 = vmul.f32 1.0, %v4446
        %v4448 = vrcp.pop %v4006
        %v4449 = vmul.f32 %v4006, %v4448
        %v4450 = vsub.f32 1.0, %v4449
        %v4451 = vmul.f32 %v4448, %v4450
        %v4452 = vadd.f32 %v4448, %v4451
        %vm4453 = vweird.f32 %v4006
        %vm4454 = vweird.f32 %v4448
        %vm4455 = vmor %vm4453, %vm4454
        %v4456 = vsel %vm4455, %v4448, %v4452
        %v4457 = vand.u32 2147483647, %v4006
        %vm4458 = vcmp.eq.f32.partialorder %v4457, 8.507059e+37
        %v4459 = vand.u32 %v4006, 2147483648
        %v4460 = vor.u32 1.1754944e-38, %v4459
        %v4461 = vsel %vm4458, %v4460, %v4456
        %v4462 = vmul.f32 1.0, %v4461
        %v4463 = vrcp.pop %v4009
        %v4464 = vmul.f32 %v4009, %v4463
        %v4465 = vsub.f32 1.0, %v4464
        %v4466 = vmul.f32 %v4463, %v4465
        %v4467 = vadd.f32 %v4463, %v4466
        %vm4468 = vweird.f32 %v4009
        %vm4469 = vweird.f32 %v4463
        %vm4470 = vmor %vm4468, %vm4469
        %v4471 = vsel %vm4470, %v4463, %v4467
        %v4472 = vand.u32 2147483647, %v4009
        %vm4473 = vcmp.eq.f32.partialorder %v4472, 8.507059e+37
        %v4474 = vand.u32 %v4009, 2147483648
        %v4475 = vor.u32 1.1754944e-38, %v4474
        %v4476 = vsel %vm4473, %v4475, %v4471
        %v4477 = vmul.f32 1.0, %v4476
        %v4478 = vrcp.pop %v4012
        %v4479 = vmul.f32 %v4012, %v4478
        %v4480 = vsub.f32 1.0, %v4479
        %v4481 = vmul.f32 %v4478, %v4480
        %v4482 = vadd.f32 %v4478, %v4481
        %vm4483 = vweird.f32 %v4012
        %vm4484 = vweird.f32 %v4478
        %vm4485 = vmor %vm4483, %vm4484
        %v4486 = vsel %vm4485, %v4478, %v4482
        %v4487 = vand.u32 2147483647, %v4012
        %vm4488 = vcmp.eq.f32.partialorder %v4487, 8.507059e+37
        %v4489 = vand.u32 %v4012, 2147483648
        %v4490 = vor.u32 1.1754944e-38, %v4489
        %v4491 = vsel %vm4488, %v4490, %v4486
        %v4492 = vmul.f32 1.0, %v4491
        %v4493 = vmul.f32 %v3790, %v4027
        %v4494 = vmul.f32 %v3792, %v4027
        %v4495 = vmul.f32 %v3794, %v4042
        %v4496 = vmul.f32 %v3796, %v4042
        %v4497 = vmul.f32 %v3798, %v4057
        %v4498 = vmul.f32 %v3800, %v4057
        %v4499 = vmul.f32 %v3802, %v4072
        %v4500 = vmul.f32 %v3804, %v4072
        %v4501 = vmul.f32 %v3806, %v4087
        %v4502 = vmul.f32 %v3808, %v4087
        %v4503 = vmul.f32 %v3810, %v4102
        %v4504 = vmul.f32 %v3812, %v4102
        %v4505 = vmul.f32 %v3814, %v4117
        %v4506 = vmul.f32 %v3816, %v4117
        %v4507 = vmul.f32 %v3818, %v4132
        %v4508 = vmul.f32 %v3820, %v4132
        %v4509 = vmul.f32 %v3822, %v4147
        %v4510 = vmul.f32 %v3824, %v4147
        %v4511 = vmul.f32 %v3826, %v4162
        %v4512 = vmul.f32 %v3828, %v4162
        %v4513 = vmul.f32 %v3830, %v4177
        %v4514 = vmul.f32 %v3832, %v4177
        %v4515 = vmul.f32 %v3834, %v4192
        %v4516 = vmul.f32 %v3836, %v4192
        %v4517 = vmul.f32 %v3838, %v4207
        %v4518 = vmul.f32 %v3840, %v4207
        %v4519 = vmul.f32 %v3842, %v4222
        %v4520 = vmul.f32 %v3844, %v4222
        %v4521 = vmul.f32 %v3846, %v4237
        %v4522 = vmul.f32 %v3848, %v4237
        %v4523 = vmul.f32 %v3850, %v4252
        %v4524 = vmul.f32 %v3852, %v4252
        %v4525 = vmul.f32 %v3854, %v4267
        %v4526 = vmul.f32 %v3856, %v4267
        %v4527 = vmul.f32 %v3858, %v4282
        %v4528 = vmul.f32 %v3860, %v4282
        %v4529 = vmul.f32 %v3862, %v4297
        %v4530 = vmul.f32 %v3864, %v4297
        %v4531 = vmul.f32 %v3866, %v4312
        %v4532 = vmul.f32 %v3868, %v4312
        %v4533 = vmul.f32 %v3870, %v4327
        %v4534 = vmul.f32 %v3872, %v4327
        %v4535 = vmul.f32 %v3874, %v4342
        %v4536 = vmul.f32 %v3876, %v4342
        %v4537 = vmul.f32 %v3878, %v4357
        %v4538 = vmul.f32 %v3880, %v4357
        %v4539 = vmul.f32 %v3882, %v4372
        %v4540 = vmul.f32 %v3884, %v4372
        %v4541 = vmul.f32 %v3886, %v4387
        %v4542 = vmul.f32 %v3888, %v4387
        %v4543 = vmul.f32 %v3890, %v4402
        %v4544 = vmul.f32 %v3892, %v4402
        %v4545 = vmul.f32 %v3894, %v4417
        %v4546 = vmul.f32 %v3896, %v4417
        %v4547 = vmul.f32 %v3898, %v4432
        %v4548 = vmul.f32 %v3900, %v4432
        %v4549 = vmul.f32 %v3902, %v4447
        %v4550 = vmul.f32 %v3904, %v4447
        %v4551 = vmul.f32 %v3906, %v4462
        %v4552 = vmul.f32 %v3908, %v4462
        %v4553 = vmul.f32 %v3910, %v4477
        %v4554 = vmul.f32 %v3912, %v4477
        %v4555 = vmul.f32 %v3914, %v4492
        %v4556 = vmul.f32 %v3916, %v4492
        %v4557 = vpack.c.bf16 %v4494, %v4493
        %v4558 = vpack.c.bf16 %v4496, %v4495
        %v4559 = vpack.c.bf16 %v4498, %v4497
        %v4560 = vpack.c.bf16 %v4500, %v4499
        %v4561 = vpack.c.bf16 %v4502, %v4501
        %v4562 = vpack.c.bf16 %v4504, %v4503
        %v4563 = vpack.c.bf16 %v4506, %v4505
        %v4564 = vpack.c.bf16 %v4508, %v4507
        %v4565 = vpack.c.bf16 %v4510, %v4509
        %v4566 = vpack.c.bf16 %v4512, %v4511
        %v4567 = vpack.c.bf16 %v4514, %v4513
        %v4568 = vpack.c.bf16 %v4516, %v4515
        %v4569 = vpack.c.bf16 %v4518, %v4517
        %v4570 = vpack.c.bf16 %v4520, %v4519
        %v4571 = vpack.c.bf16 %v4522, %v4521
        %v4572 = vpack.c.bf16 %v4524, %v4523
        %v4573 = vpack.c.bf16 %v4526, %v4525
        %v4574 = vpack.c.bf16 %v4528, %v4527
        %v4575 = vpack.c.bf16 %v4530, %v4529
        %v4576 = vpack.c.bf16 %v4532, %v4531
        %v4577 = vpack.c.bf16 %v4534, %v4533
        %v4578 = vpack.c.bf16 %v4536, %v4535
        %v4579 = vpack.c.bf16 %v4538, %v4537
        %v4580 = vpack.c.bf16 %v4540, %v4539
        %v4581 = vpack.c.bf16 %v4542, %v4541
        %v4582 = vpack.c.bf16 %v4544, %v4543
        %v4583 = vpack.c.bf16 %v4546, %v4545
        %v4584 = vpack.c.bf16 %v4548, %v4547
        %v4585 = vpack.c.bf16 %v4550, %v4549
        %v4586 = vpack.c.bf16 %v4552, %v4551
        %v4587 = vpack.c.bf16 %v4554, %v4553
        %v4588 = vpack.c.bf16 %v4556, %v4555
        %s4589 = scalar_lea.vmem %s255, 256 [#allocation5]
        %4590 = vst [vmem:[%s4589] sm:$0xff] %v4557
        %4591 = vst [vmem:[%s4589 + $0x8] sm:$0xff] %v4558
        %4592 = vst [vmem:[%s4589 + $0x10] sm:$0xff] %v4559
        %4593 = vst [vmem:[%s4589 + $0x18] sm:$0xff] %v4560
        %4594 = vst [vmem:[%s4589 + $0x20] sm:$0xff] %v4561
        %4595 = vst [vmem:[%s4589 + $0x28] sm:$0xff] %v4562
        %4596 = vst [vmem:[%s4589 + $0x30] sm:$0xff] %v4563
        %4597 = vst [vmem:[%s4589 + $0x38] sm:$0xff] %v4564
        %4598 = vst [vmem:[%s4589 + $0x40] sm:$0xff] %v4565
        %4599 = vst [vmem:[%s4589 + $0x48] sm:$0xff] %v4566
        %4600 = vst [vmem:[%s4589 + $0x50] sm:$0xff] %v4567
        %4601 = vst [vmem:[%s4589 + $0x58] sm:$0xff] %v4568
        %4602 = vst [vmem:[%s4589 + $0x60] sm:$0xff] %v4569
        %4603 = vst [vmem:[%s4589 + $0x68] sm:$0xff] %v4570
        %4604 = vst [vmem:[%s4589 + $0x70] sm:$0xff] %v4571
        %4605 = vst [vmem:[%s4589 + $0x78] sm:$0xff] %v4572
        %4606 = vst [vmem:[%s4589 + $0x80] sm:$0xff] %v4573
        %4607 = vst [vmem:[%s4589 + $0x88] sm:$0xff] %v4574
        %4608 = vst [vmem:[%s4589 + $0x90] sm:$0xff] %v4575
        %4609 = vst [vmem:[%s4589 + $0x98] sm:$0xff] %v4576
        %4610 = vst [vmem:[%s4589 + $0xa0] sm:$0xff] %v4577
        %4611 = vst [vmem:[%s4589 + $0xa8] sm:$0xff] %v4578
        %4612 = vst [vmem:[%s4589 + $0xb0] sm:$0xff] %v4579
        %4613 = vst [vmem:[%s4589 + $0xb8] sm:$0xff] %v4580
        %4614 = vst [vmem:[%s4589 + $0xc0] sm:$0xff] %v4581
        %4615 = vst [vmem:[%s4589 + $0xc8] sm:$0xff] %v4582
        %4616 = vst [vmem:[%s4589 + $0xd0] sm:$0xff] %v4583
        %4617 = vst [vmem:[%s4589 + $0xd8] sm:$0xff] %v4584
        %4618 = vst [vmem:[%s4589 + $0xe0] sm:$0xff] %v4585
        %4619 = vst [vmem:[%s4589 + $0xe8] sm:$0xff] %v4586
        %4620 = vst [vmem:[%s4589 + $0xf0] sm:$0xff] %v4587
        %4621 = vst [vmem:[%s4589 + $0xf8] sm:$0xff] %v4588
        %v4654 = vunpack.c.l.b16 %v4557
        %v4655 = vunpack.c.h.b16 %v4557
        %v4656 = vunpack.c.l.b16 %v4558
        %v4657 = vunpack.c.h.b16 %v4558
        %v4658 = vunpack.c.l.b16 %v4559
        %v4659 = vunpack.c.h.b16 %v4559
        %v4660 = vunpack.c.l.b16 %v4560
        %v4661 = vunpack.c.h.b16 %v4560
        %v4662 = vunpack.c.l.b16 %v4561
        %v4663 = vunpack.c.h.b16 %v4561
        %v4664 = vunpack.c.l.b16 %v4562
        %v4665 = vunpack.c.h.b16 %v4562
        %v4666 = vunpack.c.l.b16 %v4563
        %v4667 = vunpack.c.h.b16 %v4563
        %v4668 = vunpack.c.l.b16 %v4564
        %v4669 = vunpack.c.h.b16 %v4564
        %v4670 = vunpack.c.l.b16 %v4565
        %v4671 = vunpack.c.h.b16 %v4565
        %v4672 = vunpack.c.l.b16 %v4566
        %v4673 = vunpack.c.h.b16 %v4566
        %v4674 = vunpack.c.l.b16 %v4567
        %v4675 = vunpack.c.h.b16 %v4567
        %v4676 = vunpack.c.l.b16 %v4568
        %v4677 = vunpack.c.h.b16 %v4568
        %v4678 = vunpack.c.l.b16 %v4569
        %v4679 = vunpack.c.h.b16 %v4569
        %v4680 = vunpack.c.l.b16 %v4570
        %v4681 = vunpack.c.h.b16 %v4570
        %v4682 = vunpack.c.l.b16 %v4571
        %v4683 = vunpack.c.h.b16 %v4571
        %v4684 = vunpack.c.l.b16 %v4572
        %v4685 = vunpack.c.h.b16 %v4572
        %v4686 = vunpack.c.l.b16 %v4573
        %v4687 = vunpack.c.h.b16 %v4573
        %v4688 = vunpack.c.l.b16 %v4574
        %v4689 = vunpack.c.h.b16 %v4574
        %v4690 = vunpack.c.l.b16 %v4575
        %v4691 = vunpack.c.h.b16 %v4575
        %v4692 = vunpack.c.l.b16 %v4576
        %v4693 = vunpack.c.h.b16 %v4576
        %v4694 = vunpack.c.l.b16 %v4577
        %v4695 = vunpack.c.h.b16 %v4577
        %v4696 = vunpack.c.l.b16 %v4578
        %v4697 = vunpack.c.h.b16 %v4578
        %v4698 = vunpack.c.l.b16 %v4579
        %v4699 = vunpack.c.h.b16 %v4579
        %v4700 = vunpack.c.l.b16 %v4580
        %v4701 = vunpack.c.h.b16 %v4580
        %v4702 = vunpack.c.l.b16 %v4581
        %v4703 = vunpack.c.h.b16 %v4581
        %v4704 = vunpack.c.l.b16 %v4582
        %v4705 = vunpack.c.h.b16 %v4582
        %v4706 = vunpack.c.l.b16 %v4583
        %v4707 = vunpack.c.h.b16 %v4583
        %v4708 = vunpack.c.l.b16 %v4584
        %v4709 = vunpack.c.h.b16 %v4584
        %v4710 = vunpack.c.l.b16 %v4585
        %v4711 = vunpack.c.h.b16 %v4585
        %v4712 = vunpack.c.l.b16 %v4586
        %v4713 = vunpack.c.h.b16 %v4586
        %v4714 = vunpack.c.l.b16 %v4587
        %v4715 = vunpack.c.h.b16 %v4587
        %v4716 = vunpack.c.l.b16 %v4588
        %v4717 = vunpack.c.h.b16 %v4588
        %v4718 = vpack.c.b16 %v4656, %v4654
        %v4719 = vpack.c.b16 %v4657, %v4655
        %v4720 = vpack.c.b16 %v4660, %v4658
        %v4721 = vpack.c.b16 %v4661, %v4659
        %v4722 = vpack.c.b16 %v4664, %v4662
        %v4723 = vpack.c.b16 %v4665, %v4663
        %v4724 = vpack.c.b16 %v4668, %v4666
        %v4725 = vpack.c.b16 %v4669, %v4667
        %v4726 = vpack.c.b16 %v4672, %v4670
        %v4727 = vpack.c.b16 %v4673, %v4671
        %v4728 = vpack.c.b16 %v4676, %v4674
        %v4729 = vpack.c.b16 %v4677, %v4675
        %v4730 = vpack.c.b16 %v4680, %v4678
        %v4731 = vpack.c.b16 %v4681, %v4679
        %v4732 = vpack.c.b16 %v4684, %v4682
        %v4733 = vpack.c.b16 %v4685, %v4683
        %v4734 = vpack.c.b16 %v4688, %v4686
        %v4735 = vpack.c.b16 %v4689, %v4687
        %v4736 = vpack.c.b16 %v4692, %v4690
        %v4737 = vpack.c.b16 %v4693, %v4691
        %v4738 = vpack.c.b16 %v4696, %v4694
        %v4739 = vpack.c.b16 %v4697, %v4695
        %v4740 = vpack.c.b16 %v4700, %v4698
        %v4741 = vpack.c.b16 %v4701, %v4699
        %v4742 = vpack.c.b16 %v4704, %v4702
        %v4743 = vpack.c.b16 %v4705, %v4703
        %v4744 = vpack.c.b16 %v4708, %v4706
        %v4745 = vpack.c.b16 %v4709, %v4707
        %v4746 = vpack.c.b16 %v4712, %v4710
        %v4747 = vpack.c.b16 %v4713, %v4711
        %v4748 = vpack.c.b16 %v4716, %v4714
        %v4749 = vpack.c.b16 %v4717, %v4715
        %v4814 = vunpack.c.l.b16 %v3099
        %v4815 = vunpack.c.l.b16 %v3100
        %v4816 = vunpack.c.l.b16 %v3101
        %v4817 = vunpack.c.l.b16 %v3102
        %v4818 = vunpack.c.l.b16 %v3103
        %v4819 = vunpack.c.l.b16 %v3104
        %v4820 = vunpack.c.l.b16 %v3105
        %v4821 = vunpack.c.l.b16 %v3106
        %v4822 = vunpack.c.l.b16 %v3107
        %v4823 = vunpack.c.l.b16 %v3108
        %v4824 = vunpack.c.l.b16 %v3109
        %v4825 = vunpack.c.l.b16 %v3110
        %v4826 = vunpack.c.l.b16 %v3111
        %v4827 = vunpack.c.l.b16 %v3112
        %v4828 = vunpack.c.l.b16 %v3113
        %v4829 = vunpack.c.l.b16 %v3114
        %v4830 = vunpack.c.l.b16 %v3115
        %v4831 = vunpack.c.l.b16 %v3116
        %v4832 = vunpack.c.l.b16 %v3117
        %v4833 = vunpack.c.l.b16 %v3118
        %v4834 = vunpack.c.l.b16 %v3119
        %v4835 = vunpack.c.l.b16 %v3120
        %v4836 = vunpack.c.l.b16 %v3121
        %v4837 = vunpack.c.l.b16 %v3122
        %v4838 = vunpack.c.l.b16 %v3123
        %v4839 = vunpack.c.l.b16 %v3124
        %v4840 = vunpack.c.l.b16 %v3125
        %v4841 = vunpack.c.l.b16 %v3126
        %v4842 = vunpack.c.l.b16 %v3127
        %v4843 = vunpack.c.l.b16 %v3128
        %v4844 = vunpack.c.l.b16 %v3129
        %v4845 = vunpack.c.l.b16 %v3130
        %v4846 = vpack.c.b16 %v4815, %v4814
        %v4847 = vpack.c.b16 %v4817, %v4816
        %v4848 = vpack.c.b16 %v4819, %v4818
        %v4849 = vpack.c.b16 %v4821, %v4820
        %v4850 = vpack.c.b16 %v4823, %v4822
        %v4851 = vpack.c.b16 %v4825, %v4824
        %v4852 = vpack.c.b16 %v4827, %v4826
        %v4853 = vpack.c.b16 %v4829, %v4828
        %v4854 = vpack.c.b16 %v4831, %v4830
        %v4855 = vpack.c.b16 %v4833, %v4832
        %v4856 = vpack.c.b16 %v4835, %v4834
        %v4857 = vpack.c.b16 %v4837, %v4836
        %v4858 = vpack.c.b16 %v4839, %v4838
        %v4859 = vpack.c.b16 %v4841, %v4840
        %v4860 = vpack.c.b16 %v4843, %v4842
        %v4861 = vpack.c.b16 %v4845, %v4844
        %4862 = vrot.lane.b32.xlu0 %v4846, 96
        %v4863 = vpop.permute.xlu0 %4862
        %4864 = vrot.lane.b32.xlu0 %v4847, 96
        %v4865 = vpop.permute.xlu0 %4864
        %4866 = vrot.lane.b32.xlu0 %v4848, 96
        %v4867 = vpop.permute.xlu0 %4866
        %4868 = vrot.lane.b32.xlu0 %v4849, 96
        %v4869 = vpop.permute.xlu0 %4868
        %4870 = vrot.lane.b32.xlu0 %v4850, 96
        %v4871 = vpop.permute.xlu0 %4870
        %4872 = vrot.lane.b32.xlu0 %v4851, 96
        %v4873 = vpop.permute.xlu0 %4872
        %4874 = vrot.lane.b32.xlu0 %v4852, 96
        %v4875 = vpop.permute.xlu0 %4874
        %4876 = vrot.lane.b32.xlu0 %v4853, 96
        %v4877 = vpop.permute.xlu0 %4876
        %4878 = vrot.lane.b32.xlu0 %v4854, 96
        %v4879 = vpop.permute.xlu0 %4878
        %4880 = vrot.lane.b32.xlu0 %v4855, 96
        %v4881 = vpop.permute.xlu0 %4880
        %4882 = vrot.lane.b32.xlu0 %v4856, 96
        %v4883 = vpop.permute.xlu0 %4882
        %4884 = vrot.lane.b32.xlu0 %v4857, 96
        %v4885 = vpop.permute.xlu0 %4884
        %4886 = vrot.lane.b32.xlu0 %v4858, 96
        %v4887 = vpop.permute.xlu0 %4886
        %4888 = vrot.lane.b32.xlu0 %v4859, 96
        %v4889 = vpop.permute.xlu0 %4888
        %4890 = vrot.lane.b32.xlu0 %v4860, 96
        %v4891 = vpop.permute.xlu0 %4890
        %4892 = vrot.lane.b32.xlu0 %v4861, 96
        %v4893 = vpop.permute.xlu0 %4892
        %4910 = vmatpush.bf16.msra.mxu0 %v4877
        %4911 = vmatpush.bf16.msra.mxu0 %v4875
        %4912 = vmatpush.bf16.msra.mxu0 %v4873
        %4913 = vmatpush.bf16.msra.mxu0 %v4871
        %4914 = vmatpush.bf16.msra.mxu0 %v4869
        %4915 = vmatpush.bf16.msra.mxu0 %v4867
        %4916 = vmatpush.bf16.msra.mxu0 %v4865
        %4917 = vmatpush.bf16.msra.mxu0 %v4863
        %4918 = vmatmul.bf16.gmra.mxu0 %v4718
        %v4919 = vpop.f32.mrf.mxu0
        %v4920 = vadd.f32 0.0, %v4919
        %v4921 = vpop.f32.mrf.mxu0
        %v4922 = vadd.f32 0.0, %v4921
        %4923 = vmatmul.bf16.gmra.mxu0 %v4720
        %v4924 = vpop.f32.mrf.mxu0
        %v4925 = vadd.f32 0.0, %v4924
        %v4926 = vpop.f32.mrf.mxu0
        %v4927 = vadd.f32 0.0, %v4926
        %4928 = vmatmul.bf16.gmra.mxu0 %v4722
        %v4929 = vpop.f32.mrf.mxu0
        %v4930 = vadd.f32 0.0, %v4929
        %v4931 = vpop.f32.mrf.mxu0
        %v4932 = vadd.f32 0.0, %v4931
        %4933 = vmatmul.bf16.gmra.mxu0 %v4724
        %v4934 = vpop.f32.mrf.mxu0
        %v4935 = vadd.f32 0.0, %v4934
        %v4936 = vpop.f32.mrf.mxu0
        %v4937 = vadd.f32 0.0, %v4936
        %4938 = vmatmul.bf16.gmra.mxu0 %v4726
        %v4939 = vpop.f32.mrf.mxu0
        %v4940 = vadd.f32 0.0, %v4939
        %v4941 = vpop.f32.mrf.mxu0
        %v4942 = vadd.f32 0.0, %v4941
        %4943 = vmatmul.bf16.gmra.mxu0 %v4728
        %v4944 = vpop.f32.mrf.mxu0
        %v4945 = vadd.f32 0.0, %v4944
        %v4946 = vpop.f32.mrf.mxu0
        %v4947 = vadd.f32 0.0, %v4946
        %4948 = vmatmul.bf16.gmra.mxu0 %v4730
        %v4949 = vpop.f32.mrf.mxu0
        %v4950 = vadd.f32 0.0, %v4949
        %v4951 = vpop.f32.mrf.mxu0
        %v4952 = vadd.f32 0.0, %v4951
        %4953 = vmatmul.bf16.gmra.mxu0 %v4732
        %v4954 = vpop.f32.mrf.mxu0
        %v4955 = vadd.f32 0.0, %v4954
        %v4956 = vpop.f32.mrf.mxu0
        %v4957 = vadd.f32 0.0, %v4956
        %4958 = vmatmul.bf16.gmra.mxu0 %v4734
        %v4959 = vpop.f32.mrf.mxu0
        %v4960 = vadd.f32 0.0, %v4959
        %v4961 = vpop.f32.mrf.mxu0
        %v4962 = vadd.f32 0.0, %v4961
        %4963 = vmatmul.bf16.gmra.mxu0 %v4736
        %v4964 = vpop.f32.mrf.mxu0
        %v4965 = vadd.f32 0.0, %v4964
        %v4966 = vpop.f32.mrf.mxu0
        %v4967 = vadd.f32 0.0, %v4966
        %4968 = vmatmul.bf16.gmra.mxu0 %v4738
        %v4969 = vpop.f32.mrf.mxu0
        %v4970 = vadd.f32 0.0, %v4969
        %v4971 = vpop.f32.mrf.mxu0
        %v4972 = vadd.f32 0.0, %v4971
        %4973 = vmatmul.bf16.gmra.mxu0 %v4740
        %v4974 = vpop.f32.mrf.mxu0
        %v4975 = vadd.f32 0.0, %v4974
        %v4976 = vpop.f32.mrf.mxu0
        %v4977 = vadd.f32 0.0, %v4976
        %4978 = vmatmul.bf16.gmra.mxu0 %v4742
        %v4979 = vpop.f32.mrf.mxu0
        %v4980 = vadd.f32 0.0, %v4979
        %v4981 = vpop.f32.mrf.mxu0
        %v4982 = vadd.f32 0.0, %v4981
        %4983 = vmatmul.bf16.gmra.mxu0 %v4744
        %v4984 = vpop.f32.mrf.mxu0
        %v4985 = vadd.f32 0.0, %v4984
        %v4986 = vpop.f32.mrf.mxu0
        %v4987 = vadd.f32 0.0, %v4986
        %4988 = vmatmul.bf16.gmra.mxu0 %v4746
        %v4989 = vpop.f32.mrf.mxu0
        %v4990 = vadd.f32 0.0, %v4989
        %v4991 = vpop.f32.mrf.mxu0
        %v4992 = vadd.f32 0.0, %v4991
        %4993 = vmatmul.bf16.gmra.mxu0 %v4748
        %v4994 = vpop.f32.mrf.mxu0
        %v4995 = vadd.f32 0.0, %v4994
        %v4996 = vpop.f32.mrf.mxu0
        %v4997 = vadd.f32 0.0, %v4996
        %4998 = vdwg.mxu0
        %4999 = vmatpush.bf16.msra.mxu0 %v4893
        %5000 = vmatpush.bf16.msra.mxu0 %v4891
        %5001 = vmatpush.bf16.msra.mxu0 %v4889
        %5002 = vmatpush.bf16.msra.mxu0 %v4887
        %5003 = vmatpush.bf16.msra.mxu0 %v4885
        %5004 = vmatpush.bf16.msra.mxu0 %v4883
        %5005 = vmatpush.bf16.msra.mxu0 %v4881
        %5006 = vmatpush.bf16.msra.mxu0 %v4879
        %5007 = vmatmul.bf16.gmra.mxu0 %v4719
        %v5008 = vpop.f32.mrf.mxu0
        %v5009 = vadd.f32 %v4920, %v5008
        %v5010 = vpop.f32.mrf.mxu0
        %v5011 = vadd.f32 %v4922, %v5010
        %5012 = vmatmul.bf16.gmra.mxu0 %v4721
        %v5013 = vpop.f32.mrf.mxu0
        %v5014 = vadd.f32 %v4925, %v5013
        %v5015 = vpop.f32.mrf.mxu0
        %v5016 = vadd.f32 %v4927, %v5015
        %5017 = vmatmul.bf16.gmra.mxu0 %v4723
        %v5018 = vpop.f32.mrf.mxu0
        %v5019 = vadd.f32 %v4930, %v5018
        %v5020 = vpop.f32.mrf.mxu0
        %v5021 = vadd.f32 %v4932, %v5020
        %5022 = vmatmul.bf16.gmra.mxu0 %v4725
        %v5023 = vpop.f32.mrf.mxu0
        %v5024 = vadd.f32 %v4935, %v5023
        %v5025 = vpop.f32.mrf.mxu0
        %v5026 = vadd.f32 %v4937, %v5025
        %5027 = vmatmul.bf16.gmra.mxu0 %v4727
        %v5028 = vpop.f32.mrf.mxu0
        %v5029 = vadd.f32 %v4940, %v5028
        %v5030 = vpop.f32.mrf.mxu0
        %v5031 = vadd.f32 %v4942, %v5030
        %5032 = vmatmul.bf16.gmra.mxu0 %v4729
        %v5033 = vpop.f32.mrf.mxu0
        %v5034 = vadd.f32 %v4945, %v5033
        %v5035 = vpop.f32.mrf.mxu0
        %v5036 = vadd.f32 %v4947, %v5035
        %5037 = vmatmul.bf16.gmra.mxu0 %v4731
        %v5038 = vpop.f32.mrf.mxu0
        %v5039 = vadd.f32 %v4950, %v5038
        %v5040 = vpop.f32.mrf.mxu0
        %v5041 = vadd.f32 %v4952, %v5040
        %5042 = vmatmul.bf16.gmra.mxu0 %v4733
        %v5043 = vpop.f32.mrf.mxu0
        %v5044 = vadd.f32 %v4955, %v5043
        %v5045 = vpop.f32.mrf.mxu0
        %v5046 = vadd.f32 %v4957, %v5045
        %5047 = vmatmul.bf16.gmra.mxu0 %v4735
        %v5048 = vpop.f32.mrf.mxu0
        %v5049 = vadd.f32 %v4960, %v5048
        %v5050 = vpop.f32.mrf.mxu0
        %v5051 = vadd.f32 %v4962, %v5050
        %5052 = vmatmul.bf16.gmra.mxu0 %v4737
        %v5053 = vpop.f32.mrf.mxu0
        %v5054 = vadd.f32 %v4965, %v5053
        %v5055 = vpop.f32.mrf.mxu0
        %v5056 = vadd.f32 %v4967, %v5055
        %5057 = vmatmul.bf16.gmra.mxu0 %v4739
        %v5058 = vpop.f32.mrf.mxu0
        %v5059 = vadd.f32 %v4970, %v5058
        %v5060 = vpop.f32.mrf.mxu0
        %v5061 = vadd.f32 %v4972, %v5060
        %5062 = vmatmul.bf16.gmra.mxu0 %v4741
        %v5063 = vpop.f32.mrf.mxu0
        %v5064 = vadd.f32 %v4975, %v5063
        %v5065 = vpop.f32.mrf.mxu0
        %v5066 = vadd.f32 %v4977, %v5065
        %5067 = vmatmul.bf16.gmra.mxu0 %v4743
        %v5068 = vpop.f32.mrf.mxu0
        %v5069 = vadd.f32 %v4980, %v5068
        %v5070 = vpop.f32.mrf.mxu0
        %v5071 = vadd.f32 %v4982, %v5070
        %5072 = vmatmul.bf16.gmra.mxu0 %v4745
        %v5073 = vpop.f32.mrf.mxu0
        %v5074 = vadd.f32 %v4985, %v5073
        %v5075 = vpop.f32.mrf.mxu0
        %v5076 = vadd.f32 %v4987, %v5075
        %5077 = vmatmul.bf16.gmra.mxu0 %v4747
        %v5078 = vpop.f32.mrf.mxu0
        %v5079 = vadd.f32 %v4990, %v5078
        %v5080 = vpop.f32.mrf.mxu0
        %v5081 = vadd.f32 %v4992, %v5080
        %5082 = vmatmul.bf16.gmra.mxu0 %v4749
        %v5083 = vpop.f32.mrf.mxu0
        %v5084 = vadd.f32 %v4995, %v5083
        %v5085 = vpop.f32.mrf.mxu0
        %v5086 = vadd.f32 %v4997, %v5085
        %5087 = vdwg.mxu0
        %v5088 = vpack.c.bf16 %v5011, %v5009
        %v5089 = vpack.c.bf16 %v5016, %v5014
        %v5090 = vpack.c.bf16 %v5021, %v5019
        %v5091 = vpack.c.bf16 %v5026, %v5024
        %v5092 = vpack.c.bf16 %v5031, %v5029
        %v5093 = vpack.c.bf16 %v5036, %v5034
        %v5094 = vpack.c.bf16 %v5041, %v5039
        %v5095 = vpack.c.bf16 %v5046, %v5044
        %v5096 = vpack.c.bf16 %v5051, %v5049
        %v5097 = vpack.c.bf16 %v5056, %v5054
        %v5098 = vpack.c.bf16 %v5061, %v5059
        %v5099 = vpack.c.bf16 %v5066, %v5064
        %v5100 = vpack.c.bf16 %v5071, %v5069
        %v5101 = vpack.c.bf16 %v5076, %v5074
        %v5102 = vpack.c.bf16 %v5081, %v5079
        %v5103 = vpack.c.bf16 %v5086, %v5084
        %v5104 = vld [vmem:[%s3 + $0x10] sm:$0xf]
        %v5105 = vld [vmem:[%s3 + $0x14] sm:$0xf]
        %v5106 = vld [vmem:[%s3 + $0x18] sm:$0xf]
        %v5107 = vld [vmem:[%s3 + $0x1c] sm:$0xf]
        %v5112 = vunpack.c.l.b16 %v5104
        %v5113 = vunpack.c.l.b16 %v5105
        %v5114 = vunpack.c.l.b16 %v5106
        %v5115 = vunpack.c.l.b16 %v5107
        %v5116 = vpack.c.b16 %v5113, %v5112
        %v5117 = vpack.c.b16 %v5115, %v5114
        %v5121 = vsel %vm1129, %v5088, 0
        %v5124 = vsel %vm1129, %v5089, 0
        %v5127 = vsel %vm1129, %v5090, 0
        %v5130 = vsel %vm1129, %v5091, 0
        %v5133 = vsel %vm1129, %v5092, 0
        %v5136 = vsel %vm1129, %v5093, 0
        %v5139 = vsel %vm1129, %v5094, 0
        %v5142 = vsel %vm1129, %v5095, 0
        %v5145 = vsel %vm1129, %v5096, 0
        %v5148 = vsel %vm1129, %v5097, 0
        %v5151 = vsel %vm1129, %v5098, 0
        %v5154 = vsel %vm1129, %v5099, 0
        %v5157 = vsel %vm1129, %v5100, 0
        %v5160 = vsel %vm1129, %v5101, 0
        %v5163 = vsel %vm1129, %v5102, 0
        %v5166 = vsel %vm1129, %v5103, 0
        %5168 = vmatpush.bf16.msra.mxu0 0
        %5169 = vmatpush.bf16.msra.mxu0 0
        %5170 = vmatpush.bf16.msra.mxu0 0
        %5171 = vmatpush.bf16.msra.mxu0 0
        %5172 = vmatpush.bf16.msra.mxu0 0
        %5173 = vmatpush.bf16.msra.mxu0 0
        %5174 = vmatpush.bf16.msra.mxu0 %v5117
        %5175 = vmatpush.bf16.msra.mxu0 %v5116
        %5176 = vmatmul.bf16.gmra.mxu0 %v5121
        %v5177 = vpop.f32.mrf.mxu0
        %v5178 = vadd.f32 0.0, %v5177
        %v5179 = vpop.f32.mrf.mxu0
        %v5180 = vadd.f32 0.0, %v5179
        %5181 = vmatmul.bf16.gmra.mxu0 %v5124
        %v5182 = vpop.f32.mrf.mxu0
        %v5183 = vadd.f32 0.0, %v5182
        %v5184 = vpop.f32.mrf.mxu0
        %v5185 = vadd.f32 0.0, %v5184
        %5186 = vmatmul.bf16.gmra.mxu0 %v5127
        %v5187 = vpop.f32.mrf.mxu0
        %v5188 = vadd.f32 0.0, %v5187
        %v5189 = vpop.f32.mrf.mxu0
        %v5190 = vadd.f32 0.0, %v5189
        %5191 = vmatmul.bf16.gmra.mxu0 %v5130
        %v5192 = vpop.f32.mrf.mxu0
        %v5193 = vadd.f32 0.0, %v5192
        %v5194 = vpop.f32.mrf.mxu0
        %v5195 = vadd.f32 0.0, %v5194
        %5196 = vmatmul.bf16.gmra.mxu0 %v5133
        %v5197 = vpop.f32.mrf.mxu0
        %v5198 = vadd.f32 0.0, %v5197
        %v5199 = vpop.f32.mrf.mxu0
        %v5200 = vadd.f32 0.0, %v5199
        %5201 = vmatmul.bf16.gmra.mxu0 %v5136
        %v5202 = vpop.f32.mrf.mxu0
        %v5203 = vadd.f32 0.0, %v5202
        %v5204 = vpop.f32.mrf.mxu0
        %v5205 = vadd.f32 0.0, %v5204
        %5206 = vmatmul.bf16.gmra.mxu0 %v5139
        %v5207 = vpop.f32.mrf.mxu0
        %v5208 = vadd.f32 0.0, %v5207
        %v5209 = vpop.f32.mrf.mxu0
        %v5210 = vadd.f32 0.0, %v5209
        %5211 = vmatmul.bf16.gmra.mxu0 %v5142
        %v5212 = vpop.f32.mrf.mxu0
        %v5213 = vadd.f32 0.0, %v5212
        %v5214 = vpop.f32.mrf.mxu0
        %v5215 = vadd.f32 0.0, %v5214
        %5216 = vmatmul.bf16.gmra.mxu0 %v5145
        %v5217 = vpop.f32.mrf.mxu0
        %v5218 = vadd.f32 0.0, %v5217
        %v5219 = vpop.f32.mrf.mxu0
        %v5220 = vadd.f32 0.0, %v5219
        %5221 = vmatmul.bf16.gmra.mxu0 %v5148
        %v5222 = vpop.f32.mrf.mxu0
        %v5223 = vadd.f32 0.0, %v5222
        %v5224 = vpop.f32.mrf.mxu0
        %v5225 = vadd.f32 0.0, %v5224
        %5226 = vmatmul.bf16.gmra.mxu0 %v5151
        %v5227 = vpop.f32.mrf.mxu0
        %v5228 = vadd.f32 0.0, %v5227
        %v5229 = vpop.f32.mrf.mxu0
        %v5230 = vadd.f32 0.0, %v5229
        %5231 = vmatmul.bf16.gmra.mxu0 %v5154
        %v5232 = vpop.f32.mrf.mxu0
        %v5233 = vadd.f32 0.0, %v5232
        %v5234 = vpop.f32.mrf.mxu0
        %v5235 = vadd.f32 0.0, %v5234
        %5236 = vmatmul.bf16.gmra.mxu0 %v5157
        %v5237 = vpop.f32.mrf.mxu0
        %v5238 = vadd.f32 0.0, %v5237
        %v5239 = vpop.f32.mrf.mxu0
        %v5240 = vadd.f32 0.0, %v5239
        %5241 = vmatmul.bf16.gmra.mxu0 %v5160
        %v5242 = vpop.f32.mrf.mxu0
        %v5243 = vadd.f32 0.0, %v5242
        %v5244 = vpop.f32.mrf.mxu0
        %v5245 = vadd.f32 0.0, %v5244
        %5246 = vmatmul.bf16.gmra.mxu0 %v5163
        %v5247 = vpop.f32.mrf.mxu0
        %v5248 = vadd.f32 0.0, %v5247
        %v5249 = vpop.f32.mrf.mxu0
        %v5250 = vadd.f32 0.0, %v5249
        %5251 = vmatmul.bf16.gmra.mxu0 %v5166
        %v5252 = vpop.f32.mrf.mxu0
        %v5253 = vadd.f32 0.0, %v5252
        %v5254 = vpop.f32.mrf.mxu0
        %v5255 = vadd.f32 0.0, %v5254
        %5256 = vdwg.mxu0
        %v5257 = vld [vmem:[%s248] sm:$0xff]
        %v5258 = vld [vmem:[%s248 + $0x8] sm:$0xff]
        %v5259 = vld [vmem:[%s248 + $0x10] sm:$0xff]
        %v5260 = vld [vmem:[%s248 + $0x18] sm:$0xff]
        %v5261 = vld [vmem:[%s248 + $0x20] sm:$0xff]
        %v5262 = vld [vmem:[%s248 + $0x28] sm:$0xff]
        %v5263 = vld [vmem:[%s248 + $0x30] sm:$0xff]
        %v5264 = vld [vmem:[%s248 + $0x38] sm:$0xff]
        %v5265 = vld [vmem:[%s248 + $0x40] sm:$0xff]
        %v5266 = vld [vmem:[%s248 + $0x48] sm:$0xff]
        %v5267 = vld [vmem:[%s248 + $0x50] sm:$0xff]
        %v5268 = vld [vmem:[%s248 + $0x58] sm:$0xff]
        %v5269 = vld [vmem:[%s248 + $0x60] sm:$0xff]
        %v5270 = vld [vmem:[%s248 + $0x68] sm:$0xff]
        %v5271 = vld [vmem:[%s248 + $0x70] sm:$0xff]
        %v5272 = vld [vmem:[%s248 + $0x78] sm:$0xff]
        %v5273 = vld [vmem:[%s248 + $0x80] sm:$0xff]
        %v5274 = vld [vmem:[%s248 + $0x88] sm:$0xff]
        %v5275 = vld [vmem:[%s248 + $0x90] sm:$0xff]
        %v5276 = vld [vmem:[%s248 + $0x98] sm:$0xff]
        %v5277 = vld [vmem:[%s248 + $0xa0] sm:$0xff]
        %v5278 = vld [vmem:[%s248 + $0xa8] sm:$0xff]
        %v5279 = vld [vmem:[%s248 + $0xb0] sm:$0xff]
        %v5280 = vld [vmem:[%s248 + $0xb8] sm:$0xff]
        %v5281 = vld [vmem:[%s248 + $0xc0] sm:$0xff]
        %v5282 = vld [vmem:[%s248 + $0xc8] sm:$0xff]
        %v5283 = vld [vmem:[%s248 + $0xd0] sm:$0xff]
        %v5284 = vld [vmem:[%s248 + $0xd8] sm:$0xff]
        %v5285 = vld [vmem:[%s248 + $0xe0] sm:$0xff]
        %v5286 = vld [vmem:[%s248 + $0xe8] sm:$0xff]
        %v5287 = vld [vmem:[%s248 + $0xf0] sm:$0xff]
        %v5288 = vld [vmem:[%s248 + $0xf8] sm:$0xff]
        %v5289 = vadd.f32 %v5257, %v5178
        %v5290 = vadd.f32 %v5258, %v5180
        %v5291 = vadd.f32 %v5259, %v5183
        %v5292 = vadd.f32 %v5260, %v5185
        %v5293 = vadd.f32 %v5261, %v5188
        %v5294 = vadd.f32 %v5262, %v5190
        %v5295 = vadd.f32 %v5263, %v5193
        %v5296 = vadd.f32 %v5264, %v5195
        %v5297 = vadd.f32 %v5265, %v5198
        %v5298 = vadd.f32 %v5266, %v5200
        %v5299 = vadd.f32 %v5267, %v5203
        %v5300 = vadd.f32 %v5268, %v5205
        %v5301 = vadd.f32 %v5269, %v5208
        %v5302 = vadd.f32 %v5270, %v5210
        %v5303 = vadd.f32 %v5271, %v5213
        %v5304 = vadd.f32 %v5272, %v5215
        %v5305 = vadd.f32 %v5273, %v5218
        %v5306 = vadd.f32 %v5274, %v5220
        %v5307 = vadd.f32 %v5275, %v5223
        %v5308 = vadd.f32 %v5276, %v5225
        %v5309 = vadd.f32 %v5277, %v5228
        %v5310 = vadd.f32 %v5278, %v5230
        %v5311 = vadd.f32 %v5279, %v5233
        %v5312 = vadd.f32 %v5280, %v5235
        %v5313 = vadd.f32 %v5281, %v5238
        %v5314 = vadd.f32 %v5282, %v5240
        %v5315 = vadd.f32 %v5283, %v5243
        %v5316 = vadd.f32 %v5284, %v5245
        %v5317 = vadd.f32 %v5285, %v5248
        %v5318 = vadd.f32 %v5286, %v5250
        %v5319 = vadd.f32 %v5287, %v5253
        %v5320 = vadd.f32 %v5288, %v5255
        %5321 = vst [vmem:[%s248] sm:$0xff] %v5289
        %5322 = vst [vmem:[%s248 + $0x8] sm:$0xff] %v5290
        %5323 = vst [vmem:[%s248 + $0x10] sm:$0xff] %v5291
        %5324 = vst [vmem:[%s248 + $0x18] sm:$0xff] %v5292
        %5325 = vst [vmem:[%s248 + $0x20] sm:$0xff] %v5293
        %5326 = vst [vmem:[%s248 + $0x28] sm:$0xff] %v5294
        %5327 = vst [vmem:[%s248 + $0x30] sm:$0xff] %v5295
        %5328 = vst [vmem:[%s248 + $0x38] sm:$0xff] %v5296
        %5329 = vst [vmem:[%s248 + $0x40] sm:$0xff] %v5297
        %5330 = vst [vmem:[%s248 + $0x48] sm:$0xff] %v5298
        %5331 = vst [vmem:[%s248 + $0x50] sm:$0xff] %v5299
        %5332 = vst [vmem:[%s248 + $0x58] sm:$0xff] %v5300
        %5333 = vst [vmem:[%s248 + $0x60] sm:$0xff] %v5301
        %5334 = vst [vmem:[%s248 + $0x68] sm:$0xff] %v5302
        %5335 = vst [vmem:[%s248 + $0x70] sm:$0xff] %v5303
        %5336 = vst [vmem:[%s248 + $0x78] sm:$0xff] %v5304
        %5337 = vst [vmem:[%s248 + $0x80] sm:$0xff] %v5305
        %5338 = vst [vmem:[%s248 + $0x88] sm:$0xff] %v5306
        %5339 = vst [vmem:[%s248 + $0x90] sm:$0xff] %v5307
        %5340 = vst [vmem:[%s248 + $0x98] sm:$0xff] %v5308
        %5341 = vst [vmem:[%s248 + $0xa0] sm:$0xff] %v5309
        %5342 = vst [vmem:[%s248 + $0xa8] sm:$0xff] %v5310
        %5343 = vst [vmem:[%s248 + $0xb0] sm:$0xff] %v5311
        %5344 = vst [vmem:[%s248 + $0xb8] sm:$0xff] %v5312
        %5345 = vst [vmem:[%s248 + $0xc0] sm:$0xff] %v5313
        %5346 = vst [vmem:[%s248 + $0xc8] sm:$0xff] %v5314
        %5347 = vst [vmem:[%s248 + $0xd0] sm:$0xff] %v5315
        %5348 = vst [vmem:[%s248 + $0xd8] sm:$0xff] %v5316
        %5349 = vst [vmem:[%s248 + $0xe0] sm:$0xff] %v5317
        %5350 = vst [vmem:[%s248 + $0xe8] sm:$0xff] %v5318
        %5351 = vst [vmem:[%s248 + $0xf0] sm:$0xff] %v5319
        %5352 = vst [vmem:[%s248 + $0xf8] sm:$0xff] %v5320
        %v5353 = vld [vmem:[#allocation2] sm:$0xf]
        %v5354 = vld [vmem:[#allocation2 + $0xc] sm:$0xf]
        %v5355 = vld [vmem:[#allocation2 + $0x18] sm:$0xf]
        %v5356 = vld [vmem:[#allocation2 + $0x24] sm:$0xf]
        %v5357 = vld [vmem:[#allocation2 + $0x30] sm:$0xf]
        %v5358 = vld [vmem:[#allocation2 + $0x3c] sm:$0xf]
        %v5359 = vld [vmem:[#allocation2 + $0x48] sm:$0xf]
        %v5360 = vld [vmem:[#allocation2 + $0x54] sm:$0xf]
        %v5361 = vld [vmem:[#allocation2 + $0x60] sm:$0xf]
        %v5362 = vld [vmem:[#allocation2 + $0x6c] sm:$0xf]
        %v5363 = vld [vmem:[#allocation2 + $0x78] sm:$0xf]
        %v5364 = vld [vmem:[#allocation2 + $0x84] sm:$0xf]
        %v5365 = vld [vmem:[#allocation2 + $0x90] sm:$0xf]
        %v5366 = vld [vmem:[#allocation2 + $0x9c] sm:$0xf]
        %v5367 = vld [vmem:[#allocation2 + $0xa8] sm:$0xf]
        %v5368 = vld [vmem:[#allocation2 + $0xb4] sm:$0xf]
        %v5369 = vld [vmem:[#allocation2 + $0xc0] sm:$0xf]
        %v5370 = vld [vmem:[#allocation2 + $0xcc] sm:$0xf]
        %v5371 = vld [vmem:[#allocation2 + $0xd8] sm:$0xf]
        %v5372 = vld [vmem:[#allocation2 + $0xe4] sm:$0xf]
        %v5373 = vld [vmem:[#allocation2 + $0xf0] sm:$0xf]
        %v5374 = vld [vmem:[#allocation2 + $0xfc] sm:$0xf]
        %v5375 = vld [vmem:[#allocation2 + $0x108] sm:$0xf]
        %v5376 = vld [vmem:[#allocation2 + $0x114] sm:$0xf]
        %v5377 = vld [vmem:[#allocation2 + $0x120] sm:$0xf]
        %v5378 = vld [vmem:[#allocation2 + $0x12c] sm:$0xf]
        %v5379 = vld [vmem:[#allocation2 + $0x138] sm:$0xf]
        %v5380 = vld [vmem:[#allocation2 + $0x144] sm:$0xf]
        %v5381 = vld [vmem:[#allocation2 + $0x150] sm:$0xf]
        %v5382 = vld [vmem:[#allocation2 + $0x15c] sm:$0xf]
        %v5383 = vld [vmem:[#allocation2 + $0x168] sm:$0xf]
        %v5384 = vld [vmem:[#allocation2 + $0x174] sm:$0xf]
        %v5385 = vld [vmem:[#allocation2 + $0x4] sm:$0xf]
        %v5386 = vld [vmem:[#allocation2 + $0x10] sm:$0xf]
        %v5387 = vld [vmem:[#allocation2 + $0x1c] sm:$0xf]
        %v5388 = vld [vmem:[#allocation2 + $0x28] sm:$0xf]
        %v5389 = vld [vmem:[#allocation2 + $0x34] sm:$0xf]
        %v5390 = vld [vmem:[#allocation2 + $0x40] sm:$0xf]
        %v5391 = vld [vmem:[#allocation2 + $0x4c] sm:$0xf]
        %v5392 = vld [vmem:[#allocation2 + $0x58] sm:$0xf]
        %v5393 = vld [vmem:[#allocation2 + $0x64] sm:$0xf]
        %v5394 = vld [vmem:[#allocation2 + $0x70] sm:$0xf]
        %v5395 = vld [vmem:[#allocation2 + $0x7c] sm:$0xf]
        %v5396 = vld [vmem:[#allocation2 + $0x88] sm:$0xf]
        %v5397 = vld [vmem:[#allocation2 + $0x94] sm:$0xf]
        %v5398 = vld [vmem:[#allocation2 + $0xa0] sm:$0xf]
        %v5399 = vld [vmem:[#allocation2 + $0xac] sm:$0xf]
        %v5400 = vld [vmem:[#allocation2 + $0xb8] sm:$0xf]
        %v5401 = vld [vmem:[#allocation2 + $0xc4] sm:$0xf]
        %v5402 = vld [vmem:[#allocation2 + $0xd0] sm:$0xf]
        %v5403 = vld [vmem:[#allocation2 + $0xdc] sm:$0xf]
        %v5404 = vld [vmem:[#allocation2 + $0xe8] sm:$0xf]
        %v5405 = vld [vmem:[#allocation2 + $0xf4] sm:$0xf]
        %v5406 = vld [vmem:[#allocation2 + $0x100] sm:$0xf]
        %v5407 = vld [vmem:[#allocation2 + $0x10c] sm:$0xf]
        %v5408 = vld [vmem:[#allocation2 + $0x118] sm:$0xf]
        %v5409 = vld [vmem:[#allocation2 + $0x124] sm:$0xf]
        %v5410 = vld [vmem:[#allocation2 + $0x130] sm:$0xf]
        %v5411 = vld [vmem:[#allocation2 + $0x13c] sm:$0xf]
        %v5412 = vld [vmem:[#allocation2 + $0x148] sm:$0xf]
        %v5413 = vld [vmem:[#allocation2 + $0x154] sm:$0xf]
        %v5414 = vld [vmem:[#allocation2 + $0x160] sm:$0xf]
        %v5415 = vld [vmem:[#allocation2 + $0x16c] sm:$0xf]
        %v5416 = vld [vmem:[#allocation2 + $0x178] sm:$0xf]
        %v5417 = vld [vmem:[#allocation2 + $0x8] sm:$0xf]
        %v5418 = vld [vmem:[#allocation2 + $0x14] sm:$0xf]
        %v5419 = vld [vmem:[#allocation2 + $0x20] sm:$0xf]
        %v5420 = vld [vmem:[#allocation2 + $0x2c] sm:$0xf]
        %v5421 = vld [vmem:[#allocation2 + $0x38] sm:$0xf]
        %v5422 = vld [vmem:[#allocation2 + $0x44] sm:$0xf]
        %v5423 = vld [vmem:[#allocation2 + $0x50] sm:$0xf]
        %v5424 = vld [vmem:[#allocation2 + $0x5c] sm:$0xf]
        %v5425 = vld [vmem:[#allocation2 + $0x68] sm:$0xf]
        %v5426 = vld [vmem:[#allocation2 + $0x74] sm:$0xf]
        %v5427 = vld [vmem:[#allocation2 + $0x80] sm:$0xf]
        %v5428 = vld [vmem:[#allocation2 + $0x8c] sm:$0xf]
        %v5429 = vld [vmem:[#allocation2 + $0x98] sm:$0xf]
        %v5430 = vld [vmem:[#allocation2 + $0xa4] sm:$0xf]
        %v5431 = vld [vmem:[#allocation2 + $0xb0] sm:$0xf]
        %v5432 = vld [vmem:[#allocation2 + $0xbc] sm:$0xf]
        %v5433 = vld [vmem:[#allocation2 + $0xc8] sm:$0xf]
        %v5434 = vld [vmem:[#allocation2 + $0xd4] sm:$0xf]
        %v5435 = vld [vmem:[#allocation2 + $0xe0] sm:$0xf]
        %v5436 = vld [vmem:[#allocation2 + $0xec] sm:$0xf]
        %v5437 = vld [vmem:[#allocation2 + $0xf8] sm:$0xf]
        %v5438 = vld [vmem:[#allocation2 + $0x104] sm:$0xf]
        %v5439 = vld [vmem:[#allocation2 + $0x110] sm:$0xf]
        %v5440 = vld [vmem:[#allocation2 + $0x11c] sm:$0xf]
        %v5441 = vld [vmem:[#allocation2 + $0x128] sm:$0xf]
        %v5442 = vld [vmem:[#allocation2 + $0x134] sm:$0xf]
        %v5443 = vld [vmem:[#allocation2 + $0x140] sm:$0xf]
        %v5444 = vld [vmem:[#allocation2 + $0x14c] sm:$0xf]
        %v5445 = vld [vmem:[#allocation2 + $0x158] sm:$0xf]
        %v5446 = vld [vmem:[#allocation2 + $0x164] sm:$0xf]
        %v5447 = vld [vmem:[#allocation2 + $0x170] sm:$0xf]
        %v5448 = vld [vmem:[#allocation2 + $0x17c] sm:$0xf]
        %v5481 = vunpack.c.l.b16 %v5353
        %v5482 = vunpack.c.l.b16 %v5354
        %v5483 = vunpack.c.l.b16 %v5355
        %v5484 = vunpack.c.l.b16 %v5356
        %v5485 = vunpack.c.l.b16 %v5357
        %v5486 = vunpack.c.l.b16 %v5358
        %v5487 = vunpack.c.l.b16 %v5359
        %v5488 = vunpack.c.l.b16 %v5360
        %v5489 = vunpack.c.l.b16 %v5361
        %v5490 = vunpack.c.l.b16 %v5362
        %v5491 = vunpack.c.l.b16 %v5363
        %v5492 = vunpack.c.l.b16 %v5364
        %v5493 = vunpack.c.l.b16 %v5365
        %v5494 = vunpack.c.l.b16 %v5366
        %v5495 = vunpack.c.l.b16 %v5367
        %v5496 = vunpack.c.l.b16 %v5368
        %v5497 = vunpack.c.l.b16 %v5369
        %v5498 = vunpack.c.l.b16 %v5370
        %v5499 = vunpack.c.l.b16 %v5371
        %v5500 = vunpack.c.l.b16 %v5372
        %v5501 = vunpack.c.l.b16 %v5373
        %v5502 = vunpack.c.l.b16 %v5374
        %v5503 = vunpack.c.l.b16 %v5375
        %v5504 = vunpack.c.l.b16 %v5376
        %v5505 = vunpack.c.l.b16 %v5377
        %v5506 = vunpack.c.l.b16 %v5378
        %v5507 = vunpack.c.l.b16 %v5379
        %v5508 = vunpack.c.l.b16 %v5380
        %v5509 = vunpack.c.l.b16 %v5381
        %v5510 = vunpack.c.l.b16 %v5382
        %v5511 = vunpack.c.l.b16 %v5383
        %v5512 = vunpack.c.l.b16 %v5384
        %v5513 = vpack.c.b16 %v5482, %v5481
        %v5514 = vpack.c.b16 %v5484, %v5483
        %v5515 = vpack.c.b16 %v5486, %v5485
        %v5516 = vpack.c.b16 %v5488, %v5487
        %v5517 = vpack.c.b16 %v5490, %v5489
        %v5518 = vpack.c.b16 %v5492, %v5491
        %v5519 = vpack.c.b16 %v5494, %v5493
        %v5520 = vpack.c.b16 %v5496, %v5495
        %v5521 = vpack.c.b16 %v5498, %v5497
        %v5522 = vpack.c.b16 %v5500, %v5499
        %v5523 = vpack.c.b16 %v5502, %v5501
        %v5524 = vpack.c.b16 %v5504, %v5503
        %v5525 = vpack.c.b16 %v5506, %v5505
        %v5526 = vpack.c.b16 %v5508, %v5507
        %v5527 = vpack.c.b16 %v5510, %v5509
        %v5528 = vpack.c.b16 %v5512, %v5511
        %5529 = vrot.lane.b32.xlu0 %v5513, 64
        %v5530 = vpop.permute.xlu0 %5529
        %5531 = vrot.lane.b32.xlu0 %v5514, 64
        %v5532 = vpop.permute.xlu0 %5531
        %5533 = vrot.lane.b32.xlu0 %v5515, 64
        %v5534 = vpop.permute.xlu0 %5533
        %5535 = vrot.lane.b32.xlu0 %v5516, 64
        %v5536 = vpop.permute.xlu0 %5535
        %5537 = vrot.lane.b32.xlu0 %v5517, 64
        %v5538 = vpop.permute.xlu0 %5537
        %5539 = vrot.lane.b32.xlu0 %v5518, 64
        %v5540 = vpop.permute.xlu0 %5539
        %5541 = vrot.lane.b32.xlu0 %v5519, 64
        %v5542 = vpop.permute.xlu0 %5541
        %5543 = vrot.lane.b32.xlu0 %v5520, 64
        %v5544 = vpop.permute.xlu0 %5543
        %5545 = vrot.lane.b32.xlu0 %v5521, 64
        %v5546 = vpop.permute.xlu0 %5545
        %5547 = vrot.lane.b32.xlu0 %v5522, 64
        %v5548 = vpop.permute.xlu0 %5547
        %5549 = vrot.lane.b32.xlu0 %v5523, 64
        %v5550 = vpop.permute.xlu0 %5549
        %5551 = vrot.lane.b32.xlu0 %v5524, 64
        %v5552 = vpop.permute.xlu0 %5551
        %5553 = vrot.lane.b32.xlu0 %v5525, 64
        %v5554 = vpop.permute.xlu0 %5553
        %5555 = vrot.lane.b32.xlu0 %v5526, 64
        %v5556 = vpop.permute.xlu0 %5555
        %5557 = vrot.lane.b32.xlu0 %v5527, 64
        %v5558 = vpop.permute.xlu0 %5557
        %5559 = vrot.lane.b32.xlu0 %v5528, 64
        %v5560 = vpop.permute.xlu0 %5559
        %v5593 = vunpack.c.l.b16 %v5385
        %v5594 = vunpack.c.l.b16 %v5386
        %v5595 = vunpack.c.l.b16 %v5387
        %v5596 = vunpack.c.l.b16 %v5388
        %v5597 = vunpack.c.l.b16 %v5389
        %v5598 = vunpack.c.l.b16 %v5390
        %v5599 = vunpack.c.l.b16 %v5391
        %v5600 = vunpack.c.l.b16 %v5392
        %v5601 = vunpack.c.l.b16 %v5393
        %v5602 = vunpack.c.l.b16 %v5394
        %v5603 = vunpack.c.l.b16 %v5395
        %v5604 = vunpack.c.l.b16 %v5396
        %v5605 = vunpack.c.l.b16 %v5397
        %v5606 = vunpack.c.l.b16 %v5398
        %v5607 = vunpack.c.l.b16 %v5399
        %v5608 = vunpack.c.l.b16 %v5400
        %v5609 = vunpack.c.l.b16 %v5401
        %v5610 = vunpack.c.l.b16 %v5402
        %v5611 = vunpack.c.l.b16 %v5403
        %v5612 = vunpack.c.l.b16 %v5404
        %v5613 = vunpack.c.l.b16 %v5405
        %v5614 = vunpack.c.l.b16 %v5406
        %v5615 = vunpack.c.l.b16 %v5407
        %v5616 = vunpack.c.l.b16 %v5408
        %v5617 = vunpack.c.l.b16 %v5409
        %v5618 = vunpack.c.l.b16 %v5410
        %v5619 = vunpack.c.l.b16 %v5411
        %v5620 = vunpack.c.l.b16 %v5412
        %v5621 = vunpack.c.l.b16 %v5413
        %v5622 = vunpack.c.l.b16 %v5414
        %v5623 = vunpack.c.l.b16 %v5415
        %v5624 = vunpack.c.l.b16 %v5416
        %v5625 = vpack.c.b16 %v5594, %v5593
        %v5626 = vpack.c.b16 %v5596, %v5595
        %v5627 = vpack.c.b16 %v5598, %v5597
        %v5628 = vpack.c.b16 %v5600, %v5599
        %v5629 = vpack.c.b16 %v5602, %v5601
        %v5630 = vpack.c.b16 %v5604, %v5603
        %v5631 = vpack.c.b16 %v5606, %v5605
        %v5632 = vpack.c.b16 %v5608, %v5607
        %v5633 = vpack.c.b16 %v5610, %v5609
        %v5634 = vpack.c.b16 %v5612, %v5611
        %v5635 = vpack.c.b16 %v5614, %v5613
        %v5636 = vpack.c.b16 %v5616, %v5615
        %v5637 = vpack.c.b16 %v5618, %v5617
        %v5638 = vpack.c.b16 %v5620, %v5619
        %v5639 = vpack.c.b16 %v5622, %v5621
        %v5640 = vpack.c.b16 %v5624, %v5623
        %5641 = vrot.lane.b32.xlu0 %v5625, 64
        %v5642 = vpop.permute.xlu0 %5641
        %5643 = vrot.lane.b32.xlu0 %v5626, 64
        %v5644 = vpop.permute.xlu0 %5643
        %5645 = vrot.lane.b32.xlu0 %v5627, 64
        %v5646 = vpop.permute.xlu0 %5645
        %5647 = vrot.lane.b32.xlu0 %v5628, 64
        %v5648 = vpop.permute.xlu0 %5647
        %5649 = vrot.lane.b32.xlu0 %v5629, 64
        %v5650 = vpop.permute.xlu0 %5649
        %5651 = vrot.lane.b32.xlu0 %v5630, 64
        %v5652 = vpop.permute.xlu0 %5651
        %5653 = vrot.lane.b32.xlu0 %v5631, 64
        %v5654 = vpop.permute.xlu0 %5653
        %5655 = vrot.lane.b32.xlu0 %v5632, 64
        %v5656 = vpop.permute.xlu0 %5655
        %5657 = vrot.lane.b32.xlu0 %v5633, 64
        %v5658 = vpop.permute.xlu0 %5657
        %5659 = vrot.lane.b32.xlu0 %v5634, 64
        %v5660 = vpop.permute.xlu0 %5659
        %5661 = vrot.lane.b32.xlu0 %v5635, 64
        %v5662 = vpop.permute.xlu0 %5661
        %5663 = vrot.lane.b32.xlu0 %v5636, 64
        %v5664 = vpop.permute.xlu0 %5663
        %5665 = vrot.lane.b32.xlu0 %v5637, 64
        %v5666 = vpop.permute.xlu0 %5665
        %5667 = vrot.lane.b32.xlu0 %v5638, 64
        %v5668 = vpop.permute.xlu0 %5667
        %5669 = vrot.lane.b32.xlu0 %v5639, 64
        %v5670 = vpop.permute.xlu0 %5669
        %5671 = vrot.lane.b32.xlu0 %v5640, 64
        %v5672 = vpop.permute.xlu0 %5671
        %v5674 = vsel %vm1129, %v5530, 0
        %v5677 = vsel %vm1129, %v5532, 0
        %v5680 = vsel %vm1129, %v5534, 0
        %v5683 = vsel %vm1129, %v5536, 0
        %v5686 = vsel %vm1129, %v5538, 0
        %v5689 = vsel %vm1129, %v5540, 0
        %v5692 = vsel %vm1129, %v5542, 0
        %v5695 = vsel %vm1129, %v5544, 0
        %v5698 = vsel %vm1129, %v5546, 0
        %v5701 = vsel %vm1129, %v5548, 0
        %v5704 = vsel %vm1129, %v5550, 0
        %v5707 = vsel %vm1129, %v5552, 0
        %v5710 = vsel %vm1129, %v5554, 0
        %v5713 = vsel %vm1129, %v5556, 0
        %v5716 = vsel %vm1129, %v5558, 0
        %v5719 = vsel %vm1129, %v5560, 0
        %v5722 = vsel %vm1129, %v5642, 0
        %v5725 = vsel %vm1129, %v5644, 0
        %v5728 = vsel %vm1129, %v5646, 0
        %v5731 = vsel %vm1129, %v5648, 0
        %v5734 = vsel %vm1129, %v5650, 0
        %v5737 = vsel %vm1129, %v5652, 0
        %v5740 = vsel %vm1129, %v5654, 0
        %v5743 = vsel %vm1129, %v5656, 0
        %v5746 = vsel %vm1129, %v5658, 0
        %v5749 = vsel %vm1129, %v5660, 0
        %v5752 = vsel %vm1129, %v5662, 0
        %v5755 = vsel %vm1129, %v5664, 0
        %v5758 = vsel %vm1129, %v5666, 0
        %v5761 = vsel %vm1129, %v5668, 0
        %v5764 = vsel %vm1129, %v5670, 0
        %v5767 = vsel %vm1129, %v5672, 0
        %5769 = vmatpush.bf16.xpose.msra.mxu0 %v5743
        %5770 = vmatpush.bf16.xpose.msra.mxu0 %v5740
        %5771 = vmatpush.bf16.xpose.msra.mxu0 %v5737
        %5772 = vmatpush.bf16.xpose.msra.mxu0 %v5734
        %5773 = vmatpush.bf16.xpose.msra.mxu0 %v5731
        %5774 = vmatpush.bf16.xpose.msra.mxu0 %v5728
        %5775 = vmatpush.bf16.xpose.msra.mxu0 %v5725
        %5776 = vmatpush.bf16.xpose.msra.mxu0 %v5722
        %5777 = vmatmul.bf16.gmra.mxu0 %v5674
        %v5778 = vpop.f32.mrf.mxu0
        %v5779 = vadd.f32 0.0, %v5778
        %v5780 = vpop.f32.mrf.mxu0
        %v5781 = vadd.f32 0.0, %v5780
        %5782 = vmatmul.bf16.gmra.mxu0 %v5677
        %v5783 = vpop.f32.mrf.mxu0
        %v5784 = vadd.f32 0.0, %v5783
        %v5785 = vpop.f32.mrf.mxu0
        %v5786 = vadd.f32 0.0, %v5785
        %5787 = vmatmul.bf16.gmra.mxu0 %v5680
        %v5788 = vpop.f32.mrf.mxu0
        %v5789 = vadd.f32 0.0, %v5788
        %v5790 = vpop.f32.mrf.mxu0
        %v5791 = vadd.f32 0.0, %v5790
        %5792 = vmatmul.bf16.gmra.mxu0 %v5683
        %v5793 = vpop.f32.mrf.mxu0
        %v5794 = vadd.f32 0.0, %v5793
        %v5795 = vpop.f32.mrf.mxu0
        %v5796 = vadd.f32 0.0, %v5795
        %5797 = vmatmul.bf16.gmra.mxu0 %v5686
        %v5798 = vpop.f32.mrf.mxu0
        %v5799 = vadd.f32 0.0, %v5798
        %v5800 = vpop.f32.mrf.mxu0
        %v5801 = vadd.f32 0.0, %v5800
        %5802 = vmatmul.bf16.gmra.mxu0 %v5689
        %v5803 = vpop.f32.mrf.mxu0
        %v5804 = vadd.f32 0.0, %v5803
        %v5805 = vpop.f32.mrf.mxu0
        %v5806 = vadd.f32 0.0, %v5805
        %5807 = vmatmul.bf16.gmra.mxu0 %v5692
        %v5808 = vpop.f32.mrf.mxu0
        %v5809 = vadd.f32 0.0, %v5808
        %v5810 = vpop.f32.mrf.mxu0
        %v5811 = vadd.f32 0.0, %v5810
        %5812 = vmatmul.bf16.gmra.mxu0 %v5695
        %v5813 = vpop.f32.mrf.mxu0
        %v5814 = vadd.f32 0.0, %v5813
        %v5815 = vpop.f32.mrf.mxu0
        %v5816 = vadd.f32 0.0, %v5815
        %5817 = vmatmul.bf16.gmra.mxu0 %v5698
        %v5818 = vpop.f32.mrf.mxu0
        %v5819 = vadd.f32 0.0, %v5818
        %v5820 = vpop.f32.mrf.mxu0
        %v5821 = vadd.f32 0.0, %v5820
        %5822 = vmatmul.bf16.gmra.mxu0 %v5701
        %v5823 = vpop.f32.mrf.mxu0
        %v5824 = vadd.f32 0.0, %v5823
        %v5825 = vpop.f32.mrf.mxu0
        %v5826 = vadd.f32 0.0, %v5825
        %5827 = vmatmul.bf16.gmra.mxu0 %v5704
        %v5828 = vpop.f32.mrf.mxu0
        %v5829 = vadd.f32 0.0, %v5828
        %v5830 = vpop.f32.mrf.mxu0
        %v5831 = vadd.f32 0.0, %v5830
        %5832 = vmatmul.bf16.gmra.mxu0 %v5707
        %v5833 = vpop.f32.mrf.mxu0
        %v5834 = vadd.f32 0.0, %v5833
        %v5835 = vpop.f32.mrf.mxu0
        %v5836 = vadd.f32 0.0, %v5835
        %5837 = vmatmul.bf16.gmra.mxu0 %v5710
        %v5838 = vpop.f32.mrf.mxu0
        %v5839 = vadd.f32 0.0, %v5838
        %v5840 = vpop.f32.mrf.mxu0
        %v5841 = vadd.f32 0.0, %v5840
        %5842 = vmatmul.bf16.gmra.mxu0 %v5713
        %v5843 = vpop.f32.mrf.mxu0
        %v5844 = vadd.f32 0.0, %v5843
        %v5845 = vpop.f32.mrf.mxu0
        %v5846 = vadd.f32 0.0, %v5845
        %5847 = vmatmul.bf16.gmra.mxu0 %v5716
        %v5848 = vpop.f32.mrf.mxu0
        %v5849 = vadd.f32 0.0, %v5848
        %v5850 = vpop.f32.mrf.mxu0
        %v5851 = vadd.f32 0.0, %v5850
        %5852 = vmatmul.bf16.gmra.mxu0 %v5719
        %v5853 = vpop.f32.mrf.mxu0
        %v5854 = vadd.f32 0.0, %v5853
        %v5855 = vpop.f32.mrf.mxu0
        %v5856 = vadd.f32 0.0, %v5855
        %5857 = vdwg.mxu0
        %5858 = vmatpush.bf16.xpose.msra.mxu0 %v5767
        %5859 = vmatpush.bf16.xpose.msra.mxu0 %v5764
        %5860 = vmatpush.bf16.xpose.msra.mxu0 %v5761
        %5861 = vmatpush.bf16.xpose.msra.mxu0 %v5758
        %5862 = vmatpush.bf16.xpose.msra.mxu0 %v5755
        %5863 = vmatpush.bf16.xpose.msra.mxu0 %v5752
        %5864 = vmatpush.bf16.xpose.msra.mxu0 %v5749
        %5865 = vmatpush.bf16.xpose.msra.mxu0 %v5746
        %5866 = vmatmul.bf16.gmra.mxu0 %v5674
        %v5867 = vpop.f32.mrf.mxu0
        %v5868 = vadd.f32 0.0, %v5867
        %v5869 = vpop.f32.mrf.mxu0
        %v5870 = vadd.f32 0.0, %v5869
        %5871 = vmatmul.bf16.gmra.mxu0 %v5677
        %v5872 = vpop.f32.mrf.mxu0
        %v5873 = vadd.f32 0.0, %v5872
        %v5874 = vpop.f32.mrf.mxu0
        %v5875 = vadd.f32 0.0, %v5874
        %5876 = vmatmul.bf16.gmra.mxu0 %v5680
        %v5877 = vpop.f32.mrf.mxu0
        %v5878 = vadd.f32 0.0, %v5877
        %v5879 = vpop.f32.mrf.mxu0
        %v5880 = vadd.f32 0.0, %v5879
        %5881 = vmatmul.bf16.gmra.mxu0 %v5683
        %v5882 = vpop.f32.mrf.mxu0
        %v5883 = vadd.f32 0.0, %v5882
        %v5884 = vpop.f32.mrf.mxu0
        %v5885 = vadd.f32 0.0, %v5884
        %5886 = vmatmul.bf16.gmra.mxu0 %v5686
        %v5887 = vpop.f32.mrf.mxu0
        %v5888 = vadd.f32 0.0, %v5887
        %v5889 = vpop.f32.mrf.mxu0
        %v5890 = vadd.f32 0.0, %v5889
        %5891 = vmatmul.bf16.gmra.mxu0 %v5689
        %v5892 = vpop.f32.mrf.mxu0
        %v5893 = vadd.f32 0.0, %v5892
        %v5894 = vpop.f32.mrf.mxu0
        %v5895 = vadd.f32 0.0, %v5894
        %5896 = vmatmul.bf16.gmra.mxu0 %v5692
        %v5897 = vpop.f32.mrf.mxu0
        %v5898 = vadd.f32 0.0, %v5897
        %v5899 = vpop.f32.mrf.mxu0
        %v5900 = vadd.f32 0.0, %v5899
        %5901 = vmatmul.bf16.gmra.mxu0 %v5695
        %v5902 = vpop.f32.mrf.mxu0
        %v5903 = vadd.f32 0.0, %v5902
        %v5904 = vpop.f32.mrf.mxu0
        %v5905 = vadd.f32 0.0, %v5904
        %5906 = vmatmul.bf16.gmra.mxu0 %v5698
        %v5907 = vpop.f32.mrf.mxu0
        %v5908 = vadd.f32 0.0, %v5907
        %v5909 = vpop.f32.mrf.mxu0
        %v5910 = vadd.f32 0.0, %v5909
        %5911 = vmatmul.bf16.gmra.mxu0 %v5701
        %v5912 = vpop.f32.mrf.mxu0
        %v5913 = vadd.f32 0.0, %v5912
        %v5914 = vpop.f32.mrf.mxu0
        %v5915 = vadd.f32 0.0, %v5914
        %5916 = vmatmul.bf16.gmra.mxu0 %v5704
        %v5917 = vpop.f32.mrf.mxu0
        %v5918 = vadd.f32 0.0, %v5917
        %v5919 = vpop.f32.mrf.mxu0
        %v5920 = vadd.f32 0.0, %v5919
        %5921 = vmatmul.bf16.gmra.mxu0 %v5707
        %v5922 = vpop.f32.mrf.mxu0
        %v5923 = vadd.f32 0.0, %v5922
        %v5924 = vpop.f32.mrf.mxu0
        %v5925 = vadd.f32 0.0, %v5924
        %5926 = vmatmul.bf16.gmra.mxu0 %v5710
        %v5927 = vpop.f32.mrf.mxu0
        %v5928 = vadd.f32 0.0, %v5927
        %v5929 = vpop.f32.mrf.mxu0
        %v5930 = vadd.f32 0.0, %v5929
        %5931 = vmatmul.bf16.gmra.mxu0 %v5713
        %v5932 = vpop.f32.mrf.mxu0
        %v5933 = vadd.f32 0.0, %v5932
        %v5934 = vpop.f32.mrf.mxu0
        %v5935 = vadd.f32 0.0, %v5934
        %5936 = vmatmul.bf16.gmra.mxu0 %v5716
        %v5937 = vpop.f32.mrf.mxu0
        %v5938 = vadd.f32 0.0, %v5937
        %v5939 = vpop.f32.mrf.mxu0
        %v5940 = vadd.f32 0.0, %v5939
        %5941 = vmatmul.bf16.gmra.mxu0 %v5719
        %v5942 = vpop.f32.mrf.mxu0
        %v5943 = vadd.f32 0.0, %v5942
        %v5944 = vpop.f32.mrf.mxu0
        %v5945 = vadd.f32 0.0, %v5944
        %5946 = vdwg.mxu0
        %v5947 = vmax.f32 %v5779, %v5868
        %5948 = vmax.xlane.f32.xlu0 %v5947
        %v5949 = vpop.xlane.xlu0 %5948
        %v5950 = vmax.f32 %v5781, %v5870
        %5951 = vmax.xlane.f32.xlu0 %v5950
        %v5952 = vpop.xlane.xlu0 %5951
        %v5953 = vmax.f32 %v5784, %v5873
        %5954 = vmax.xlane.f32.xlu0 %v5953
        %v5955 = vpop.xlane.xlu0 %5954
        %v5956 = vmax.f32 %v5786, %v5875
        %5957 = vmax.xlane.f32.xlu0 %v5956
        %v5958 = vpop.xlane.xlu0 %5957
        %v5959 = vmax.f32 %v5789, %v5878
        %5960 = vmax.xlane.f32.xlu0 %v5959
        %v5961 = vpop.xlane.xlu0 %5960
        %v5962 = vmax.f32 %v5791, %v5880
        %5963 = vmax.xlane.f32.xlu0 %v5962
        %v5964 = vpop.xlane.xlu0 %5963
        %v5965 = vmax.f32 %v5794, %v5883
        %5966 = vmax.xlane.f32.xlu0 %v5965
        %v5967 = vpop.xlane.xlu0 %5966
        %v5968 = vmax.f32 %v5796, %v5885
        %5969 = vmax.xlane.f32.xlu0 %v5968
        %v5970 = vpop.xlane.xlu0 %5969
        %v5971 = vmax.f32 %v5799, %v5888
        %5972 = vmax.xlane.f32.xlu0 %v5971
        %v5973 = vpop.xlane.xlu0 %5972
        %v5974 = vmax.f32 %v5801, %v5890
        %5975 = vmax.xlane.f32.xlu0 %v5974
        %v5976 = vpop.xlane.xlu0 %5975
        %v5977 = vmax.f32 %v5804, %v5893
        %5978 = vmax.xlane.f32.xlu0 %v5977
        %v5979 = vpop.xlane.xlu0 %5978
        %v5980 = vmax.f32 %v5806, %v5895
        %5981 = vmax.xlane.f32.xlu0 %v5980
        %v5982 = vpop.xlane.xlu0 %5981
        %v5983 = vmax.f32 %v5809, %v5898
        %5984 = vmax.xlane.f32.xlu0 %v5983
        %v5985 = vpop.xlane.xlu0 %5984
        %v5986 = vmax.f32 %v5811, %v5900
        %5987 = vmax.xlane.f32.xlu0 %v5986
        %v5988 = vpop.xlane.xlu0 %5987
        %v5989 = vmax.f32 %v5814, %v5903
        %5990 = vmax.xlane.f32.xlu0 %v5989
        %v5991 = vpop.xlane.xlu0 %5990
        %v5992 = vmax.f32 %v5816, %v5905
        %5993 = vmax.xlane.f32.xlu0 %v5992
        %v5994 = vpop.xlane.xlu0 %5993
        %v5995 = vmax.f32 %v5819, %v5908
        %5996 = vmax.xlane.f32.xlu0 %v5995
        %v5997 = vpop.xlane.xlu0 %5996
        %v5998 = vmax.f32 %v5821, %v5910
        %5999 = vmax.xlane.f32.xlu0 %v5998
        %v6000 = vpop.xlane.xlu0 %5999
        %v6001 = vmax.f32 %v5824, %v5913
        %6002 = vmax.xlane.f32.xlu0 %v6001
        %v6003 = vpop.xlane.xlu0 %6002
        %v6004 = vmax.f32 %v5826, %v5915
        %6005 = vmax.xlane.f32.xlu0 %v6004
        %v6006 = vpop.xlane.xlu0 %6005
        %v6007 = vmax.f32 %v5829, %v5918
        %6008 = vmax.xlane.f32.xlu0 %v6007
        %v6009 = vpop.xlane.xlu0 %6008
        %v6010 = vmax.f32 %v5831, %v5920
        %6011 = vmax.xlane.f32.xlu0 %v6010
        %v6012 = vpop.xlane.xlu0 %6011
        %v6013 = vmax.f32 %v5834, %v5923
        %6014 = vmax.xlane.f32.xlu0 %v6013
        %v6015 = vpop.xlane.xlu0 %6014
        %v6016 = vmax.f32 %v5836, %v5925
        %6017 = vmax.xlane.f32.xlu0 %v6016
        %v6018 = vpop.xlane.xlu0 %6017
        %v6019 = vmax.f32 %v5839, %v5928
        %6020 = vmax.xlane.f32.xlu0 %v6019
        %v6021 = vpop.xlane.xlu0 %6020
        %v6022 = vmax.f32 %v5841, %v5930
        %6023 = vmax.xlane.f32.xlu0 %v6022
        %v6024 = vpop.xlane.xlu0 %6023
        %v6025 = vmax.f32 %v5844, %v5933
        %6026 = vmax.xlane.f32.xlu0 %v6025
        %v6027 = vpop.xlane.xlu0 %6026
        %v6028 = vmax.f32 %v5846, %v5935
        %6029 = vmax.xlane.f32.xlu0 %v6028
        %v6030 = vpop.xlane.xlu0 %6029
        %v6031 = vmax.f32 %v5849, %v5938
        %6032 = vmax.xlane.f32.xlu0 %v6031
        %v6033 = vpop.xlane.xlu0 %6032
        %v6034 = vmax.f32 %v5851, %v5940
        %6035 = vmax.xlane.f32.xlu0 %v6034
        %v6036 = vpop.xlane.xlu0 %6035
        %v6037 = vmax.f32 %v5854, %v5943
        %6038 = vmax.xlane.f32.xlu0 %v6037
        %v6039 = vpop.xlane.xlu0 %6038
        %v6040 = vmax.f32 %v5856, %v5945
        %6041 = vmax.xlane.f32.xlu0 %v6040
        %v6042 = vpop.xlane.xlu0 %6041
        %v6043 = vsub.f32 %v5779, %v5949
        %v6044 = vsub.f32 %v5868, %v5949
        %v6045 = vsub.f32 %v5781, %v5952
        %v6046 = vsub.f32 %v5870, %v5952
        %v6047 = vsub.f32 %v5784, %v5955
        %v6048 = vsub.f32 %v5873, %v5955
        %v6049 = vsub.f32 %v5786, %v5958
        %v6050 = vsub.f32 %v5875, %v5958
        %v6051 = vsub.f32 %v5789, %v5961
        %v6052 = vsub.f32 %v5878, %v5961
        %v6053 = vsub.f32 %v5791, %v5964
        %v6054 = vsub.f32 %v5880, %v5964
        %v6055 = vsub.f32 %v5794, %v5967
        %v6056 = vsub.f32 %v5883, %v5967
        %v6057 = vsub.f32 %v5796, %v5970
        %v6058 = vsub.f32 %v5885, %v5970
        %v6059 = vsub.f32 %v5799, %v5973
        %v6060 = vsub.f32 %v5888, %v5973
        %v6061 = vsub.f32 %v5801, %v5976
        %v6062 = vsub.f32 %v5890, %v5976
        %v6063 = vsub.f32 %v5804, %v5979
        %v6064 = vsub.f32 %v5893, %v5979
        %v6065 = vsub.f32 %v5806, %v5982
        %v6066 = vsub.f32 %v5895, %v5982
        %v6067 = vsub.f32 %v5809, %v5985
        %v6068 = vsub.f32 %v5898, %v5985
        %v6069 = vsub.f32 %v5811, %v5988
        %v6070 = vsub.f32 %v5900, %v5988
        %v6071 = vsub.f32 %v5814, %v5991
        %v6072 = vsub.f32 %v5903, %v5991
        %v6073 = vsub.f32 %v5816, %v5994
        %v6074 = vsub.f32 %v5905, %v5994
        %v6075 = vsub.f32 %v5819, %v5997
        %v6076 = vsub.f32 %v5908, %v5997
        %v6077 = vsub.f32 %v5821, %v6000
        %v6078 = vsub.f32 %v5910, %v6000
        %v6079 = vsub.f32 %v5824, %v6003
        %v6080 = vsub.f32 %v5913, %v6003
        %v6081 = vsub.f32 %v5826, %v6006
        %v6082 = vsub.f32 %v5915, %v6006
        %v6083 = vsub.f32 %v5829, %v6009
        %v6084 = vsub.f32 %v5918, %v6009
        %v6085 = vsub.f32 %v5831, %v6012
        %v6086 = vsub.f32 %v5920, %v6012
        %v6087 = vsub.f32 %v5834, %v6015
        %v6088 = vsub.f32 %v5923, %v6015
        %v6089 = vsub.f32 %v5836, %v6018
        %v6090 = vsub.f32 %v5925, %v6018
        %v6091 = vsub.f32 %v5839, %v6021
        %v6092 = vsub.f32 %v5928, %v6021
        %v6093 = vsub.f32 %v5841, %v6024
        %v6094 = vsub.f32 %v5930, %v6024
        %v6095 = vsub.f32 %v5844, %v6027
        %v6096 = vsub.f32 %v5933, %v6027
        %v6097 = vsub.f32 %v5846, %v6030
        %v6098 = vsub.f32 %v5935, %v6030
        %v6099 = vsub.f32 %v5849, %v6033
        %v6100 = vsub.f32 %v5938, %v6033
        %v6101 = vsub.f32 %v5851, %v6036
        %v6102 = vsub.f32 %v5940, %v6036
        %v6103 = vsub.f32 %v5854, %v6039
        %v6104 = vsub.f32 %v5943, %v6039
        %v6105 = vsub.f32 %v5856, %v6042
        %v6106 = vsub.f32 %v5945, %v6042
        %v6107 = vmul.f32 %v6043, 1.442695
        %v6108 = vpow.pop %v6107
        %v6109 = vmul.f32 %v6044, 1.442695
        %v6110 = vpow.pop %v6109
        %v6111 = vmul.f32 %v6045, 1.442695
        %v6112 = vpow.pop %v6111
        %v6113 = vmul.f32 %v6046, 1.442695
        %v6114 = vpow.pop %v6113
        %v6115 = vmul.f32 %v6047, 1.442695
        %v6116 = vpow.pop %v6115
        %v6117 = vmul.f32 %v6048, 1.442695
        %v6118 = vpow.pop %v6117
        %v6119 = vmul.f32 %v6049, 1.442695
        %v6120 = vpow.pop %v6119
        %v6121 = vmul.f32 %v6050, 1.442695
        %v6122 = vpow.pop %v6121
        %v6123 = vmul.f32 %v6051, 1.442695
        %v6124 = vpow.pop %v6123
        %v6125 = vmul.f32 %v6052, 1.442695
        %v6126 = vpow.pop %v6125
        %v6127 = vmul.f32 %v6053, 1.442695
        %v6128 = vpow.pop %v6127
        %v6129 = vmul.f32 %v6054, 1.442695
        %v6130 = vpow.pop %v6129
        %v6131 = vmul.f32 %v6055, 1.442695
        %v6132 = vpow.pop %v6131
        %v6133 = vmul.f32 %v6056, 1.442695
        %v6134 = vpow.pop %v6133
        %v6135 = vmul.f32 %v6057, 1.442695
        %v6136 = vpow.pop %v6135
        %v6137 = vmul.f32 %v6058, 1.442695
        %v6138 = vpow.pop %v6137
        %v6139 = vmul.f32 %v6059, 1.442695
        %v6140 = vpow.pop %v6139
        %v6141 = vmul.f32 %v6060, 1.442695
        %v6142 = vpow.pop %v6141
        %v6143 = vmul.f32 %v6061, 1.442695
        %v6144 = vpow.pop %v6143
        %v6145 = vmul.f32 %v6062, 1.442695
        %v6146 = vpow.pop %v6145
        %v6147 = vmul.f32 %v6063, 1.442695
        %v6148 = vpow.pop %v6147
        %v6149 = vmul.f32 %v6064, 1.442695
        %v6150 = vpow.pop %v6149
        %v6151 = vmul.f32 %v6065, 1.442695
        %v6152 = vpow.pop %v6151
        %v6153 = vmul.f32 %v6066, 1.442695
        %v6154 = vpow.pop %v6153
        %v6155 = vmul.f32 %v6067, 1.442695
        %v6156 = vpow.pop %v6155
        %v6157 = vmul.f32 %v6068, 1.442695
        %v6158 = vpow.pop %v6157
        %v6159 = vmul.f32 %v6069, 1.442695
        %v6160 = vpow.pop %v6159
        %v6161 = vmul.f32 %v6070, 1.442695
        %v6162 = vpow.pop %v6161
        %v6163 = vmul.f32 %v6071, 1.442695
        %v6164 = vpow.pop %v6163
        %v6165 = vmul.f32 %v6072, 1.442695
        %v6166 = vpow.pop %v6165
        %v6167 = vmul.f32 %v6073, 1.442695
        %v6168 = vpow.pop %v6167
        %v6169 = vmul.f32 %v6074, 1.442695
        %v6170 = vpow.pop %v6169
        %v6171 = vmul.f32 %v6075, 1.442695
        %v6172 = vpow.pop %v6171
        %v6173 = vmul.f32 %v6076, 1.442695
        %v6174 = vpow.pop %v6173
        %v6175 = vmul.f32 %v6077, 1.442695
        %v6176 = vpow.pop %v6175
        %v6177 = vmul.f32 %v6078, 1.442695
        %v6178 = vpow.pop %v6177
        %v6179 = vmul.f32 %v6079, 1.442695
        %v6180 = vpow.pop %v6179
        %v6181 = vmul.f32 %v6080, 1.442695
        %v6182 = vpow.pop %v6181
        %v6183 = vmul.f32 %v6081, 1.442695
        %v6184 = vpow.pop %v6183
        %v6185 = vmul.f32 %v6082, 1.442695
        %v6186 = vpow.pop %v6185
        %v6187 = vmul.f32 %v6083, 1.442695
        %v6188 = vpow.pop %v6187
        %v6189 = vmul.f32 %v6084, 1.442695
        %v6190 = vpow.pop %v6189
        %v6191 = vmul.f32 %v6085, 1.442695
        %v6192 = vpow.pop %v6191
        %v6193 = vmul.f32 %v6086, 1.442695
        %v6194 = vpow.pop %v6193
        %v6195 = vmul.f32 %v6087, 1.442695
        %v6196 = vpow.pop %v6195
        %v6197 = vmul.f32 %v6088, 1.442695
        %v6198 = vpow.pop %v6197
        %v6199 = vmul.f32 %v6089, 1.442695
        %v6200 = vpow.pop %v6199
        %v6201 = vmul.f32 %v6090, 1.442695
        %v6202 = vpow.pop %v6201
        %v6203 = vmul.f32 %v6091, 1.442695
        %v6204 = vpow.pop %v6203
        %v6205 = vmul.f32 %v6092, 1.442695
        %v6206 = vpow.pop %v6205
        %v6207 = vmul.f32 %v6093, 1.442695
        %v6208 = vpow.pop %v6207
        %v6209 = vmul.f32 %v6094, 1.442695
        %v6210 = vpow.pop %v6209
        %v6211 = vmul.f32 %v6095, 1.442695
        %v6212 = vpow.pop %v6211
        %v6213 = vmul.f32 %v6096, 1.442695
        %v6214 = vpow.pop %v6213
        %v6215 = vmul.f32 %v6097, 1.442695
        %v6216 = vpow.pop %v6215
        %v6217 = vmul.f32 %v6098, 1.442695
        %v6218 = vpow.pop %v6217
        %v6219 = vmul.f32 %v6099, 1.442695
        %v6220 = vpow.pop %v6219
        %v6221 = vmul.f32 %v6100, 1.442695
        %v6222 = vpow.pop %v6221
        %v6223 = vmul.f32 %v6101, 1.442695
        %v6224 = vpow.pop %v6223
        %v6225 = vmul.f32 %v6102, 1.442695
        %v6226 = vpow.pop %v6225
        %v6227 = vmul.f32 %v6103, 1.442695
        %v6228 = vpow.pop %v6227
        %v6229 = vmul.f32 %v6104, 1.442695
        %v6230 = vpow.pop %v6229
        %v6231 = vmul.f32 %v6105, 1.442695
        %v6232 = vpow.pop %v6231
        %v6233 = vmul.f32 %v6106, 1.442695
        %v6234 = vpow.pop %v6233
        %v6235 = vadd.f32 %v6108, %v6110
        %6236 = vadd.xlane.f32.xlu0 %v6235
        %v6237 = vpop.xlane.xlu0 %6236
        %v6238 = vadd.f32 %v6112, %v6114
        %6239 = vadd.xlane.f32.xlu0 %v6238
        %v6240 = vpop.xlane.xlu0 %6239
        %v6241 = vadd.f32 %v6116, %v6118
        %6242 = vadd.xlane.f32.xlu0 %v6241
        %v6243 = vpop.xlane.xlu0 %6242
        %v6244 = vadd.f32 %v6120, %v6122
        %6245 = vadd.xlane.f32.xlu0 %v6244
        %v6246 = vpop.xlane.xlu0 %6245
        %v6247 = vadd.f32 %v6124, %v6126
        %6248 = vadd.xlane.f32.xlu0 %v6247
        %v6249 = vpop.xlane.xlu0 %6248
        %v6250 = vadd.f32 %v6128, %v6130
        %6251 = vadd.xlane.f32.xlu0 %v6250
        %v6252 = vpop.xlane.xlu0 %6251
        %v6253 = vadd.f32 %v6132, %v6134
        %6254 = vadd.xlane.f32.xlu0 %v6253
        %v6255 = vpop.xlane.xlu0 %6254
        %v6256 = vadd.f32 %v6136, %v6138
        %6257 = vadd.xlane.f32.xlu0 %v6256
        %v6258 = vpop.xlane.xlu0 %6257
        %v6259 = vadd.f32 %v6140, %v6142
        %6260 = vadd.xlane.f32.xlu0 %v6259
        %v6261 = vpop.xlane.xlu0 %6260
        %v6262 = vadd.f32 %v6144, %v6146
        %6263 = vadd.xlane.f32.xlu0 %v6262
        %v6264 = vpop.xlane.xlu0 %6263
        %v6265 = vadd.f32 %v6148, %v6150
        %6266 = vadd.xlane.f32.xlu0 %v6265
        %v6267 = vpop.xlane.xlu0 %6266
        %v6268 = vadd.f32 %v6152, %v6154
        %6269 = vadd.xlane.f32.xlu0 %v6268
        %v6270 = vpop.xlane.xlu0 %6269
        %v6271 = vadd.f32 %v6156, %v6158
        %6272 = vadd.xlane.f32.xlu0 %v6271
        %v6273 = vpop.xlane.xlu0 %6272
        %v6274 = vadd.f32 %v6160, %v6162
        %6275 = vadd.xlane.f32.xlu0 %v6274
        %v6276 = vpop.xlane.xlu0 %6275
        %v6277 = vadd.f32 %v6164, %v6166
        %6278 = vadd.xlane.f32.xlu0 %v6277
        %v6279 = vpop.xlane.xlu0 %6278
        %v6280 = vadd.f32 %v6168, %v6170
        %6281 = vadd.xlane.f32.xlu0 %v6280
        %v6282 = vpop.xlane.xlu0 %6281
        %v6283 = vadd.f32 %v6172, %v6174
        %6284 = vadd.xlane.f32.xlu0 %v6283
        %v6285 = vpop.xlane.xlu0 %6284
        %v6286 = vadd.f32 %v6176, %v6178
        %6287 = vadd.xlane.f32.xlu0 %v6286
        %v6288 = vpop.xlane.xlu0 %6287
        %v6289 = vadd.f32 %v6180, %v6182
        %6290 = vadd.xlane.f32.xlu0 %v6289
        %v6291 = vpop.xlane.xlu0 %6290
        %v6292 = vadd.f32 %v6184, %v6186
        %6293 = vadd.xlane.f32.xlu0 %v6292
        %v6294 = vpop.xlane.xlu0 %6293
        %v6295 = vadd.f32 %v6188, %v6190
        %6296 = vadd.xlane.f32.xlu0 %v6295
        %v6297 = vpop.xlane.xlu0 %6296
        %v6298 = vadd.f32 %v6192, %v6194
        %6299 = vadd.xlane.f32.xlu0 %v6298
        %v6300 = vpop.xlane.xlu0 %6299
        %v6301 = vadd.f32 %v6196, %v6198
        %6302 = vadd.xlane.f32.xlu0 %v6301
        %v6303 = vpop.xlane.xlu0 %6302
        %v6304 = vadd.f32 %v6200, %v6202
        %6305 = vadd.xlane.f32.xlu0 %v6304
        %v6306 = vpop.xlane.xlu0 %6305
        %v6307 = vadd.f32 %v6204, %v6206
        %6308 = vadd.xlane.f32.xlu0 %v6307
        %v6309 = vpop.xlane.xlu0 %6308
        %v6310 = vadd.f32 %v6208, %v6210
        %6311 = vadd.xlane.f32.xlu0 %v6310
        %v6312 = vpop.xlane.xlu0 %6311
        %v6313 = vadd.f32 %v6212, %v6214
        %6314 = vadd.xlane.f32.xlu0 %v6313
        %v6315 = vpop.xlane.xlu0 %6314
        %v6316 = vadd.f32 %v6216, %v6218
        %6317 = vadd.xlane.f32.xlu0 %v6316
        %v6318 = vpop.xlane.xlu0 %6317
        %v6319 = vadd.f32 %v6220, %v6222
        %6320 = vadd.xlane.f32.xlu0 %v6319
        %v6321 = vpop.xlane.xlu0 %6320
        %v6322 = vadd.f32 %v6224, %v6226
        %6323 = vadd.xlane.f32.xlu0 %v6322
        %v6324 = vpop.xlane.xlu0 %6323
        %v6325 = vadd.f32 %v6228, %v6230
        %6326 = vadd.xlane.f32.xlu0 %v6325
        %v6327 = vpop.xlane.xlu0 %6326
        %v6328 = vadd.f32 %v6232, %v6234
        %6329 = vadd.xlane.f32.xlu0 %v6328
        %v6330 = vpop.xlane.xlu0 %6329
        %v6331 = vrcp.pop %v6237
        %v6332 = vmul.f32 %v6237, %v6331
        %v6333 = vsub.f32 1.0, %v6332
        %v6334 = vmul.f32 %v6331, %v6333
        %v6335 = vadd.f32 %v6331, %v6334
        %vm6336 = vweird.f32 %v6237
        %vm6337 = vweird.f32 %v6331
        %vm6338 = vmor %vm6336, %vm6337
        %v6339 = vsel %vm6338, %v6331, %v6335
        %v6340 = vand.u32 2147483647, %v6237
        %vm6341 = vcmp.eq.f32.partialorder %v6340, 8.507059e+37
        %v6342 = vand.u32 %v6237, 2147483648
        %v6343 = vor.u32 1.1754944e-38, %v6342
        %v6344 = vsel %vm6341, %v6343, %v6339
        %v6345 = vmul.f32 1.0, %v6344
        %v6346 = vrcp.pop %v6240
        %v6347 = vmul.f32 %v6240, %v6346
        %v6348 = vsub.f32 1.0, %v6347
        %v6349 = vmul.f32 %v6346, %v6348
        %v6350 = vadd.f32 %v6346, %v6349
        %vm6351 = vweird.f32 %v6240
        %vm6352 = vweird.f32 %v6346
        %vm6353 = vmor %vm6351, %vm6352
        %v6354 = vsel %vm6353, %v6346, %v6350
        %v6355 = vand.u32 2147483647, %v6240
        %vm6356 = vcmp.eq.f32.partialorder %v6355, 8.507059e+37
        %v6357 = vand.u32 %v6240, 2147483648
        %v6358 = vor.u32 1.1754944e-38, %v6357
        %v6359 = vsel %vm6356, %v6358, %v6354
        %v6360 = vmul.f32 1.0, %v6359
        %v6361 = vrcp.pop %v6243
        %v6362 = vmul.f32 %v6243, %v6361
        %v6363 = vsub.f32 1.0, %v6362
        %v6364 = vmul.f32 %v6361, %v6363
        %v6365 = vadd.f32 %v6361, %v6364
        %vm6366 = vweird.f32 %v6243
        %vm6367 = vweird.f32 %v6361
        %vm6368 = vmor %vm6366, %vm6367
        %v6369 = vsel %vm6368, %v6361, %v6365
        %v6370 = vand.u32 2147483647, %v6243
        %vm6371 = vcmp.eq.f32.partialorder %v6370, 8.507059e+37
        %v6372 = vand.u32 %v6243, 2147483648
        %v6373 = vor.u32 1.1754944e-38, %v6372
        %v6374 = vsel %vm6371, %v6373, %v6369
        %v6375 = vmul.f32 1.0, %v6374
        %v6376 = vrcp.pop %v6246
        %v6377 = vmul.f32 %v6246, %v6376
        %v6378 = vsub.f32 1.0, %v6377
        %v6379 = vmul.f32 %v6376, %v6378
        %v6380 = vadd.f32 %v6376, %v6379
        %vm6381 = vweird.f32 %v6246
        %vm6382 = vweird.f32 %v6376
        %vm6383 = vmor %vm6381, %vm6382
        %v6384 = vsel %vm6383, %v6376, %v6380
        %v6385 = vand.u32 2147483647, %v6246
        %vm6386 = vcmp.eq.f32.partialorder %v6385, 8.507059e+37
        %v6387 = vand.u32 %v6246, 2147483648
        %v6388 = vor.u32 1.1754944e-38, %v6387
        %v6389 = vsel %vm6386, %v6388, %v6384
        %v6390 = vmul.f32 1.0, %v6389
        %v6391 = vrcp.pop %v6249
        %v6392 = vmul.f32 %v6249, %v6391
        %v6393 = vsub.f32 1.0, %v6392
        %v6394 = vmul.f32 %v6391, %v6393
        %v6395 = vadd.f32 %v6391, %v6394
        %vm6396 = vweird.f32 %v6249
        %vm6397 = vweird.f32 %v6391
        %vm6398 = vmor %vm6396, %vm6397
        %v6399 = vsel %vm6398, %v6391, %v6395
        %v6400 = vand.u32 2147483647, %v6249
        %vm6401 = vcmp.eq.f32.partialorder %v6400, 8.507059e+37
        %v6402 = vand.u32 %v6249, 2147483648
        %v6403 = vor.u32 1.1754944e-38, %v6402
        %v6404 = vsel %vm6401, %v6403, %v6399
        %v6405 = vmul.f32 1.0, %v6404
        %v6406 = vrcp.pop %v6252
        %v6407 = vmul.f32 %v6252, %v6406
        %v6408 = vsub.f32 1.0, %v6407
        %v6409 = vmul.f32 %v6406, %v6408
        %v6410 = vadd.f32 %v6406, %v6409
        %vm6411 = vweird.f32 %v6252
        %vm6412 = vweird.f32 %v6406
        %vm6413 = vmor %vm6411, %vm6412
        %v6414 = vsel %vm6413, %v6406, %v6410
        %v6415 = vand.u32 2147483647, %v6252
        %vm6416 = vcmp.eq.f32.partialorder %v6415, 8.507059e+37
        %v6417 = vand.u32 %v6252, 2147483648
        %v6418 = vor.u32 1.1754944e-38, %v6417
        %v6419 = vsel %vm6416, %v6418, %v6414
        %v6420 = vmul.f32 1.0, %v6419
        %v6421 = vrcp.pop %v6255
        %v6422 = vmul.f32 %v6255, %v6421
        %v6423 = vsub.f32 1.0, %v6422
        %v6424 = vmul.f32 %v6421, %v6423
        %v6425 = vadd.f32 %v6421, %v6424
        %vm6426 = vweird.f32 %v6255
        %vm6427 = vweird.f32 %v6421
        %vm6428 = vmor %vm6426, %vm6427
        %v6429 = vsel %vm6428, %v6421, %v6425
        %v6430 = vand.u32 2147483647, %v6255
        %vm6431 = vcmp.eq.f32.partialorder %v6430, 8.507059e+37
        %v6432 = vand.u32 %v6255, 2147483648
        %v6433 = vor.u32 1.1754944e-38, %v6432
        %v6434 = vsel %vm6431, %v6433, %v6429
        %v6435 = vmul.f32 1.0, %v6434
        %v6436 = vrcp.pop %v6258
        %v6437 = vmul.f32 %v6258, %v6436
        %v6438 = vsub.f32 1.0, %v6437
        %v6439 = vmul.f32 %v6436, %v6438
        %v6440 = vadd.f32 %v6436, %v6439
        %vm6441 = vweird.f32 %v6258
        %vm6442 = vweird.f32 %v6436
        %vm6443 = vmor %vm6441, %vm6442
        %v6444 = vsel %vm6443, %v6436, %v6440
        %v6445 = vand.u32 2147483647, %v6258
        %vm6446 = vcmp.eq.f32.partialorder %v6445, 8.507059e+37
        %v6447 = vand.u32 %v6258, 2147483648
        %v6448 = vor.u32 1.1754944e-38, %v6447
        %v6449 = vsel %vm6446, %v6448, %v6444
        %v6450 = vmul.f32 1.0, %v6449
        %v6451 = vrcp.pop %v6261
        %v6452 = vmul.f32 %v6261, %v6451
        %v6453 = vsub.f32 1.0, %v6452
        %v6454 = vmul.f32 %v6451, %v6453
        %v6455 = vadd.f32 %v6451, %v6454
        %vm6456 = vweird.f32 %v6261
        %vm6457 = vweird.f32 %v6451
        %vm6458 = vmor %vm6456, %vm6457
        %v6459 = vsel %vm6458, %v6451, %v6455
        %v6460 = vand.u32 2147483647, %v6261
        %vm6461 = vcmp.eq.f32.partialorder %v6460, 8.507059e+37
        %v6462 = vand.u32 %v6261, 2147483648
        %v6463 = vor.u32 1.1754944e-38, %v6462
        %v6464 = vsel %vm6461, %v6463, %v6459
        %v6465 = vmul.f32 1.0, %v6464
        %v6466 = vrcp.pop %v6264
        %v6467 = vmul.f32 %v6264, %v6466
        %v6468 = vsub.f32 1.0, %v6467
        %v6469 = vmul.f32 %v6466, %v6468
        %v6470 = vadd.f32 %v6466, %v6469
        %vm6471 = vweird.f32 %v6264
        %vm6472 = vweird.f32 %v6466
        %vm6473 = vmor %vm6471, %vm6472
        %v6474 = vsel %vm6473, %v6466, %v6470
        %v6475 = vand.u32 2147483647, %v6264
        %vm6476 = vcmp.eq.f32.partialorder %v6475, 8.507059e+37
        %v6477 = vand.u32 %v6264, 2147483648
        %v6478 = vor.u32 1.1754944e-38, %v6477
        %v6479 = vsel %vm6476, %v6478, %v6474
        %v6480 = vmul.f32 1.0, %v6479
        %v6481 = vrcp.pop %v6267
        %v6482 = vmul.f32 %v6267, %v6481
        %v6483 = vsub.f32 1.0, %v6482
        %v6484 = vmul.f32 %v6481, %v6483
        %v6485 = vadd.f32 %v6481, %v6484
        %vm6486 = vweird.f32 %v6267
        %vm6487 = vweird.f32 %v6481
        %vm6488 = vmor %vm6486, %vm6487
        %v6489 = vsel %vm6488, %v6481, %v6485
        %v6490 = vand.u32 2147483647, %v6267
        %vm6491 = vcmp.eq.f32.partialorder %v6490, 8.507059e+37
        %v6492 = vand.u32 %v6267, 2147483648
        %v6493 = vor.u32 1.1754944e-38, %v6492
        %v6494 = vsel %vm6491, %v6493, %v6489
        %v6495 = vmul.f32 1.0, %v6494
        %v6496 = vrcp.pop %v6270
        %v6497 = vmul.f32 %v6270, %v6496
        %v6498 = vsub.f32 1.0, %v6497
        %v6499 = vmul.f32 %v6496, %v6498
        %v6500 = vadd.f32 %v6496, %v6499
        %vm6501 = vweird.f32 %v6270
        %vm6502 = vweird.f32 %v6496
        %vm6503 = vmor %vm6501, %vm6502
        %v6504 = vsel %vm6503, %v6496, %v6500
        %v6505 = vand.u32 2147483647, %v6270
        %vm6506 = vcmp.eq.f32.partialorder %v6505, 8.507059e+37
        %v6507 = vand.u32 %v6270, 2147483648
        %v6508 = vor.u32 1.1754944e-38, %v6507
        %v6509 = vsel %vm6506, %v6508, %v6504
        %v6510 = vmul.f32 1.0, %v6509
        %v6511 = vrcp.pop %v6273
        %v6512 = vmul.f32 %v6273, %v6511
        %v6513 = vsub.f32 1.0, %v6512
        %v6514 = vmul.f32 %v6511, %v6513
        %v6515 = vadd.f32 %v6511, %v6514
        %vm6516 = vweird.f32 %v6273
        %vm6517 = vweird.f32 %v6511
        %vm6518 = vmor %vm6516, %vm6517
        %v6519 = vsel %vm6518, %v6511, %v6515
        %v6520 = vand.u32 2147483647, %v6273
        %vm6521 = vcmp.eq.f32.partialorder %v6520, 8.507059e+37
        %v6522 = vand.u32 %v6273, 2147483648
        %v6523 = vor.u32 1.1754944e-38, %v6522
        %v6524 = vsel %vm6521, %v6523, %v6519
        %v6525 = vmul.f32 1.0, %v6524
        %v6526 = vrcp.pop %v6276
        %v6527 = vmul.f32 %v6276, %v6526
        %v6528 = vsub.f32 1.0, %v6527
        %v6529 = vmul.f32 %v6526, %v6528
        %v6530 = vadd.f32 %v6526, %v6529
        %vm6531 = vweird.f32 %v6276
        %vm6532 = vweird.f32 %v6526
        %vm6533 = vmor %vm6531, %vm6532
        %v6534 = vsel %vm6533, %v6526, %v6530
        %v6535 = vand.u32 2147483647, %v6276
        %vm6536 = vcmp.eq.f32.partialorder %v6535, 8.507059e+37
        %v6537 = vand.u32 %v6276, 2147483648
        %v6538 = vor.u32 1.1754944e-38, %v6537
        %v6539 = vsel %vm6536, %v6538, %v6534
        %v6540 = vmul.f32 1.0, %v6539
        %v6541 = vrcp.pop %v6279
        %v6542 = vmul.f32 %v6279, %v6541
        %v6543 = vsub.f32 1.0, %v6542
        %v6544 = vmul.f32 %v6541, %v6543
        %v6545 = vadd.f32 %v6541, %v6544
        %vm6546 = vweird.f32 %v6279
        %vm6547 = vweird.f32 %v6541
        %vm6548 = vmor %vm6546, %vm6547
        %v6549 = vsel %vm6548, %v6541, %v6545
        %v6550 = vand.u32 2147483647, %v6279
        %vm6551 = vcmp.eq.f32.partialorder %v6550, 8.507059e+37
        %v6552 = vand.u32 %v6279, 2147483648
        %v6553 = vor.u32 1.1754944e-38, %v6552
        %v6554 = vsel %vm6551, %v6553, %v6549
        %v6555 = vmul.f32 1.0, %v6554
        %v6556 = vrcp.pop %v6282
        %v6557 = vmul.f32 %v6282, %v6556
        %v6558 = vsub.f32 1.0, %v6557
        %v6559 = vmul.f32 %v6556, %v6558
        %v6560 = vadd.f32 %v6556, %v6559
        %vm6561 = vweird.f32 %v6282
        %vm6562 = vweird.f32 %v6556
        %vm6563 = vmor %vm6561, %vm6562
        %v6564 = vsel %vm6563, %v6556, %v6560
        %v6565 = vand.u32 2147483647, %v6282
        %vm6566 = vcmp.eq.f32.partialorder %v6565, 8.507059e+37
        %v6567 = vand.u32 %v6282, 2147483648
        %v6568 = vor.u32 1.1754944e-38, %v6567
        %v6569 = vsel %vm6566, %v6568, %v6564
        %v6570 = vmul.f32 1.0, %v6569
        %v6571 = vrcp.pop %v6285
        %v6572 = vmul.f32 %v6285, %v6571
        %v6573 = vsub.f32 1.0, %v6572
        %v6574 = vmul.f32 %v6571, %v6573
        %v6575 = vadd.f32 %v6571, %v6574
        %vm6576 = vweird.f32 %v6285
        %vm6577 = vweird.f32 %v6571
        %vm6578 = vmor %vm6576, %vm6577
        %v6579 = vsel %vm6578, %v6571, %v6575
        %v6580 = vand.u32 2147483647, %v6285
        %vm6581 = vcmp.eq.f32.partialorder %v6580, 8.507059e+37
        %v6582 = vand.u32 %v6285, 2147483648
        %v6583 = vor.u32 1.1754944e-38, %v6582
        %v6584 = vsel %vm6581, %v6583, %v6579
        %v6585 = vmul.f32 1.0, %v6584
        %v6586 = vrcp.pop %v6288
        %v6587 = vmul.f32 %v6288, %v6586
        %v6588 = vsub.f32 1.0, %v6587
        %v6589 = vmul.f32 %v6586, %v6588
        %v6590 = vadd.f32 %v6586, %v6589
        %vm6591 = vweird.f32 %v6288
        %vm6592 = vweird.f32 %v6586
        %vm6593 = vmor %vm6591, %vm6592
        %v6594 = vsel %vm6593, %v6586, %v6590
        %v6595 = vand.u32 2147483647, %v6288
        %vm6596 = vcmp.eq.f32.partialorder %v6595, 8.507059e+37
        %v6597 = vand.u32 %v6288, 2147483648
        %v6598 = vor.u32 1.1754944e-38, %v6597
        %v6599 = vsel %vm6596, %v6598, %v6594
        %v6600 = vmul.f32 1.0, %v6599
        %v6601 = vrcp.pop %v6291
        %v6602 = vmul.f32 %v6291, %v6601
        %v6603 = vsub.f32 1.0, %v6602
        %v6604 = vmul.f32 %v6601, %v6603
        %v6605 = vadd.f32 %v6601, %v6604
        %vm6606 = vweird.f32 %v6291
        %vm6607 = vweird.f32 %v6601
        %vm6608 = vmor %vm6606, %vm6607
        %v6609 = vsel %vm6608, %v6601, %v6605
        %v6610 = vand.u32 2147483647, %v6291
        %vm6611 = vcmp.eq.f32.partialorder %v6610, 8.507059e+37
        %v6612 = vand.u32 %v6291, 2147483648
        %v6613 = vor.u32 1.1754944e-38, %v6612
        %v6614 = vsel %vm6611, %v6613, %v6609
        %v6615 = vmul.f32 1.0, %v6614
        %v6616 = vrcp.pop %v6294
        %v6617 = vmul.f32 %v6294, %v6616
        %v6618 = vsub.f32 1.0, %v6617
        %v6619 = vmul.f32 %v6616, %v6618
        %v6620 = vadd.f32 %v6616, %v6619
        %vm6621 = vweird.f32 %v6294
        %vm6622 = vweird.f32 %v6616
        %vm6623 = vmor %vm6621, %vm6622
        %v6624 = vsel %vm6623, %v6616, %v6620
        %v6625 = vand.u32 2147483647, %v6294
        %vm6626 = vcmp.eq.f32.partialorder %v6625, 8.507059e+37
        %v6627 = vand.u32 %v6294, 2147483648
        %v6628 = vor.u32 1.1754944e-38, %v6627
        %v6629 = vsel %vm6626, %v6628, %v6624
        %v6630 = vmul.f32 1.0, %v6629
        %v6631 = vrcp.pop %v6297
        %v6632 = vmul.f32 %v6297, %v6631
        %v6633 = vsub.f32 1.0, %v6632
        %v6634 = vmul.f32 %v6631, %v6633
        %v6635 = vadd.f32 %v6631, %v6634
        %vm6636 = vweird.f32 %v6297
        %vm6637 = vweird.f32 %v6631
        %vm6638 = vmor %vm6636, %vm6637
        %v6639 = vsel %vm6638, %v6631, %v6635
        %v6640 = vand.u32 2147483647, %v6297
        %vm6641 = vcmp.eq.f32.partialorder %v6640, 8.507059e+37
        %v6642 = vand.u32 %v6297, 2147483648
        %v6643 = vor.u32 1.1754944e-38, %v6642
        %v6644 = vsel %vm6641, %v6643, %v6639
        %v6645 = vmul.f32 1.0, %v6644
        %v6646 = vrcp.pop %v6300
        %v6647 = vmul.f32 %v6300, %v6646
        %v6648 = vsub.f32 1.0, %v6647
        %v6649 = vmul.f32 %v6646, %v6648
        %v6650 = vadd.f32 %v6646, %v6649
        %vm6651 = vweird.f32 %v6300
        %vm6652 = vweird.f32 %v6646
        %vm6653 = vmor %vm6651, %vm6652
        %v6654 = vsel %vm6653, %v6646, %v6650
        %v6655 = vand.u32 2147483647, %v6300
        %vm6656 = vcmp.eq.f32.partialorder %v6655, 8.507059e+37
        %v6657 = vand.u32 %v6300, 2147483648
        %v6658 = vor.u32 1.1754944e-38, %v6657
        %v6659 = vsel %vm6656, %v6658, %v6654
        %v6660 = vmul.f32 1.0, %v6659
        %v6661 = vrcp.pop %v6303
        %v6662 = vmul.f32 %v6303, %v6661
        %v6663 = vsub.f32 1.0, %v6662
        %v6664 = vmul.f32 %v6661, %v6663
        %v6665 = vadd.f32 %v6661, %v6664
        %vm6666 = vweird.f32 %v6303
        %vm6667 = vweird.f32 %v6661
        %vm6668 = vmor %vm6666, %vm6667
        %v6669 = vsel %vm6668, %v6661, %v6665
        %v6670 = vand.u32 2147483647, %v6303
        %vm6671 = vcmp.eq.f32.partialorder %v6670, 8.507059e+37
        %v6672 = vand.u32 %v6303, 2147483648
        %v6673 = vor.u32 1.1754944e-38, %v6672
        %v6674 = vsel %vm6671, %v6673, %v6669
        %v6675 = vmul.f32 1.0, %v6674
        %v6676 = vrcp.pop %v6306
        %v6677 = vmul.f32 %v6306, %v6676
        %v6678 = vsub.f32 1.0, %v6677
        %v6679 = vmul.f32 %v6676, %v6678
        %v6680 = vadd.f32 %v6676, %v6679
        %vm6681 = vweird.f32 %v6306
        %vm6682 = vweird.f32 %v6676
        %vm6683 = vmor %vm6681, %vm6682
        %v6684 = vsel %vm6683, %v6676, %v6680
        %v6685 = vand.u32 2147483647, %v6306
        %vm6686 = vcmp.eq.f32.partialorder %v6685, 8.507059e+37
        %v6687 = vand.u32 %v6306, 2147483648
        %v6688 = vor.u32 1.1754944e-38, %v6687
        %v6689 = vsel %vm6686, %v6688, %v6684
        %v6690 = vmul.f32 1.0, %v6689
        %v6691 = vrcp.pop %v6309
        %v6692 = vmul.f32 %v6309, %v6691
        %v6693 = vsub.f32 1.0, %v6692
        %v6694 = vmul.f32 %v6691, %v6693
        %v6695 = vadd.f32 %v6691, %v6694
        %vm6696 = vweird.f32 %v6309
        %vm6697 = vweird.f32 %v6691
        %vm6698 = vmor %vm6696, %vm6697
        %v6699 = vsel %vm6698, %v6691, %v6695
        %v6700 = vand.u32 2147483647, %v6309
        %vm6701 = vcmp.eq.f32.partialorder %v6700, 8.507059e+37
        %v6702 = vand.u32 %v6309, 2147483648
        %v6703 = vor.u32 1.1754944e-38, %v6702
        %v6704 = vsel %vm6701, %v6703, %v6699
        %v6705 = vmul.f32 1.0, %v6704
        %v6706 = vrcp.pop %v6312
        %v6707 = vmul.f32 %v6312, %v6706
        %v6708 = vsub.f32 1.0, %v6707
        %v6709 = vmul.f32 %v6706, %v6708
        %v6710 = vadd.f32 %v6706, %v6709
        %vm6711 = vweird.f32 %v6312
        %vm6712 = vweird.f32 %v6706
        %vm6713 = vmor %vm6711, %vm6712
        %v6714 = vsel %vm6713, %v6706, %v6710
        %v6715 = vand.u32 2147483647, %v6312
        %vm6716 = vcmp.eq.f32.partialorder %v6715, 8.507059e+37
        %v6717 = vand.u32 %v6312, 2147483648
        %v6718 = vor.u32 1.1754944e-38, %v6717
        %v6719 = vsel %vm6716, %v6718, %v6714
        %v6720 = vmul.f32 1.0, %v6719
        %v6721 = vrcp.pop %v6315
        %v6722 = vmul.f32 %v6315, %v6721
        %v6723 = vsub.f32 1.0, %v6722
        %v6724 = vmul.f32 %v6721, %v6723
        %v6725 = vadd.f32 %v6721, %v6724
        %vm6726 = vweird.f32 %v6315
        %vm6727 = vweird.f32 %v6721
        %vm6728 = vmor %vm6726, %vm6727
        %v6729 = vsel %vm6728, %v6721, %v6725
        %v6730 = vand.u32 2147483647, %v6315
        %vm6731 = vcmp.eq.f32.partialorder %v6730, 8.507059e+37
        %v6732 = vand.u32 %v6315, 2147483648
        %v6733 = vor.u32 1.1754944e-38, %v6732
        %v6734 = vsel %vm6731, %v6733, %v6729
        %v6735 = vmul.f32 1.0, %v6734
        %v6736 = vrcp.pop %v6318
        %v6737 = vmul.f32 %v6318, %v6736
        %v6738 = vsub.f32 1.0, %v6737
        %v6739 = vmul.f32 %v6736, %v6738
        %v6740 = vadd.f32 %v6736, %v6739
        %vm6741 = vweird.f32 %v6318
        %vm6742 = vweird.f32 %v6736
        %vm6743 = vmor %vm6741, %vm6742
        %v6744 = vsel %vm6743, %v6736, %v6740
        %v6745 = vand.u32 2147483647, %v6318
        %vm6746 = vcmp.eq.f32.partialorder %v6745, 8.507059e+37
        %v6747 = vand.u32 %v6318, 2147483648
        %v6748 = vor.u32 1.1754944e-38, %v6747
        %v6749 = vsel %vm6746, %v6748, %v6744
        %v6750 = vmul.f32 1.0, %v6749
        %v6751 = vrcp.pop %v6321
        %v6752 = vmul.f32 %v6321, %v6751
        %v6753 = vsub.f32 1.0, %v6752
        %v6754 = vmul.f32 %v6751, %v6753
        %v6755 = vadd.f32 %v6751, %v6754
        %vm6756 = vweird.f32 %v6321
        %vm6757 = vweird.f32 %v6751
        %vm6758 = vmor %vm6756, %vm6757
        %v6759 = vsel %vm6758, %v6751, %v6755
        %v6760 = vand.u32 2147483647, %v6321
        %vm6761 = vcmp.eq.f32.partialorder %v6760, 8.507059e+37
        %v6762 = vand.u32 %v6321, 2147483648
        %v6763 = vor.u32 1.1754944e-38, %v6762
        %v6764 = vsel %vm6761, %v6763, %v6759
        %v6765 = vmul.f32 1.0, %v6764
        %v6766 = vrcp.pop %v6324
        %v6767 = vmul.f32 %v6324, %v6766
        %v6768 = vsub.f32 1.0, %v6767
        %v6769 = vmul.f32 %v6766, %v6768
        %v6770 = vadd.f32 %v6766, %v6769
        %vm6771 = vweird.f32 %v6324
        %vm6772 = vweird.f32 %v6766
        %vm6773 = vmor %vm6771, %vm6772
        %v6774 = vsel %vm6773, %v6766, %v6770
        %v6775 = vand.u32 2147483647, %v6324
        %vm6776 = vcmp.eq.f32.partialorder %v6775, 8.507059e+37
        %v6777 = vand.u32 %v6324, 2147483648
        %v6778 = vor.u32 1.1754944e-38, %v6777
        %v6779 = vsel %vm6776, %v6778, %v6774
        %v6780 = vmul.f32 1.0, %v6779
        %v6781 = vrcp.pop %v6327
        %v6782 = vmul.f32 %v6327, %v6781
        %v6783 = vsub.f32 1.0, %v6782
        %v6784 = vmul.f32 %v6781, %v6783
        %v6785 = vadd.f32 %v6781, %v6784
        %vm6786 = vweird.f32 %v6327
        %vm6787 = vweird.f32 %v6781
        %vm6788 = vmor %vm6786, %vm6787
        %v6789 = vsel %vm6788, %v6781, %v6785
        %v6790 = vand.u32 2147483647, %v6327
        %vm6791 = vcmp.eq.f32.partialorder %v6790, 8.507059e+37
        %v6792 = vand.u32 %v6327, 2147483648
        %v6793 = vor.u32 1.1754944e-38, %v6792
        %v6794 = vsel %vm6791, %v6793, %v6789
        %v6795 = vmul.f32 1.0, %v6794
        %v6796 = vrcp.pop %v6330
        %v6797 = vmul.f32 %v6330, %v6796
        %v6798 = vsub.f32 1.0, %v6797
        %v6799 = vmul.f32 %v6796, %v6798
        %v6800 = vadd.f32 %v6796, %v6799
        %vm6801 = vweird.f32 %v6330
        %vm6802 = vweird.f32 %v6796
        %vm6803 = vmor %vm6801, %vm6802
        %v6804 = vsel %vm6803, %v6796, %v6800
        %v6805 = vand.u32 2147483647, %v6330
        %vm6806 = vcmp.eq.f32.partialorder %v6805, 8.507059e+37
        %v6807 = vand.u32 %v6330, 2147483648
        %v6808 = vor.u32 1.1754944e-38, %v6807
        %v6809 = vsel %vm6806, %v6808, %v6804
        %v6810 = vmul.f32 1.0, %v6809
        %v6811 = vmul.f32 %v6108, %v6345
        %v6812 = vmul.f32 %v6110, %v6345
        %v6813 = vmul.f32 %v6112, %v6360
        %v6814 = vmul.f32 %v6114, %v6360
        %v6815 = vmul.f32 %v6116, %v6375
        %v6816 = vmul.f32 %v6118, %v6375
        %v6817 = vmul.f32 %v6120, %v6390
        %v6818 = vmul.f32 %v6122, %v6390
        %v6819 = vmul.f32 %v6124, %v6405
        %v6820 = vmul.f32 %v6126, %v6405
        %v6821 = vmul.f32 %v6128, %v6420
        %v6822 = vmul.f32 %v6130, %v6420
        %v6823 = vmul.f32 %v6132, %v6435
        %v6824 = vmul.f32 %v6134, %v6435
        %v6825 = vmul.f32 %v6136, %v6450
        %v6826 = vmul.f32 %v6138, %v6450
        %v6827 = vmul.f32 %v6140, %v6465
        %v6828 = vmul.f32 %v6142, %v6465
        %v6829 = vmul.f32 %v6144, %v6480
        %v6830 = vmul.f32 %v6146, %v6480
        %v6831 = vmul.f32 %v6148, %v6495
        %v6832 = vmul.f32 %v6150, %v6495
        %v6833 = vmul.f32 %v6152, %v6510
        %v6834 = vmul.f32 %v6154, %v6510
        %v6835 = vmul.f32 %v6156, %v6525
        %v6836 = vmul.f32 %v6158, %v6525
        %v6837 = vmul.f32 %v6160, %v6540
        %v6838 = vmul.f32 %v6162, %v6540
        %v6839 = vmul.f32 %v6164, %v6555
        %v6840 = vmul.f32 %v6166, %v6555
        %v6841 = vmul.f32 %v6168, %v6570
        %v6842 = vmul.f32 %v6170, %v6570
        %v6843 = vmul.f32 %v6172, %v6585
        %v6844 = vmul.f32 %v6174, %v6585
        %v6845 = vmul.f32 %v6176, %v6600
        %v6846 = vmul.f32 %v6178, %v6600
        %v6847 = vmul.f32 %v6180, %v6615
        %v6848 = vmul.f32 %v6182, %v6615
        %v6849 = vmul.f32 %v6184, %v6630
        %v6850 = vmul.f32 %v6186, %v6630
        %v6851 = vmul.f32 %v6188, %v6645
        %v6852 = vmul.f32 %v6190, %v6645
        %v6853 = vmul.f32 %v6192, %v6660
        %v6854 = vmul.f32 %v6194, %v6660
        %v6855 = vmul.f32 %v6196, %v6675
        %v6856 = vmul.f32 %v6198, %v6675
        %v6857 = vmul.f32 %v6200, %v6690
        %v6858 = vmul.f32 %v6202, %v6690
        %v6859 = vmul.f32 %v6204, %v6705
        %v6860 = vmul.f32 %v6206, %v6705
        %v6861 = vmul.f32 %v6208, %v6720
        %v6862 = vmul.f32 %v6210, %v6720
        %v6863 = vmul.f32 %v6212, %v6735
        %v6864 = vmul.f32 %v6214, %v6735
        %v6865 = vmul.f32 %v6216, %v6750
        %v6866 = vmul.f32 %v6218, %v6750
        %v6867 = vmul.f32 %v6220, %v6765
        %v6868 = vmul.f32 %v6222, %v6765
        %v6869 = vmul.f32 %v6224, %v6780
        %v6870 = vmul.f32 %v6226, %v6780
        %v6871 = vmul.f32 %v6228, %v6795
        %v6872 = vmul.f32 %v6230, %v6795
        %v6873 = vmul.f32 %v6232, %v6810
        %v6874 = vmul.f32 %v6234, %v6810
        %v6875 = vpack.c.bf16 %v6812, %v6811
        %v6876 = vpack.c.bf16 %v6814, %v6813
        %v6877 = vpack.c.bf16 %v6816, %v6815
        %v6878 = vpack.c.bf16 %v6818, %v6817
        %v6879 = vpack.c.bf16 %v6820, %v6819
        %v6880 = vpack.c.bf16 %v6822, %v6821
        %v6881 = vpack.c.bf16 %v6824, %v6823
        %v6882 = vpack.c.bf16 %v6826, %v6825
        %v6883 = vpack.c.bf16 %v6828, %v6827
        %v6884 = vpack.c.bf16 %v6830, %v6829
        %v6885 = vpack.c.bf16 %v6832, %v6831
        %v6886 = vpack.c.bf16 %v6834, %v6833
        %v6887 = vpack.c.bf16 %v6836, %v6835
        %v6888 = vpack.c.bf16 %v6838, %v6837
        %v6889 = vpack.c.bf16 %v6840, %v6839
        %v6890 = vpack.c.bf16 %v6842, %v6841
        %v6891 = vpack.c.bf16 %v6844, %v6843
        %v6892 = vpack.c.bf16 %v6846, %v6845
        %v6893 = vpack.c.bf16 %v6848, %v6847
        %v6894 = vpack.c.bf16 %v6850, %v6849
        %v6895 = vpack.c.bf16 %v6852, %v6851
        %v6896 = vpack.c.bf16 %v6854, %v6853
        %v6897 = vpack.c.bf16 %v6856, %v6855
        %v6898 = vpack.c.bf16 %v6858, %v6857
        %v6899 = vpack.c.bf16 %v6860, %v6859
        %v6900 = vpack.c.bf16 %v6862, %v6861
        %v6901 = vpack.c.bf16 %v6864, %v6863
        %v6902 = vpack.c.bf16 %v6866, %v6865
        %v6903 = vpack.c.bf16 %v6868, %v6867
        %v6904 = vpack.c.bf16 %v6870, %v6869
        %v6905 = vpack.c.bf16 %v6872, %v6871
        %v6906 = vpack.c.bf16 %v6874, %v6873
        %s6907 = scalar_lea.vmem %s255, 512 [#allocation5]
        %6908 = vst [vmem:[%s6907] sm:$0xff] %v6875
        %6909 = vst [vmem:[%s6907 + $0x8] sm:$0xff] %v6876
        %6910 = vst [vmem:[%s6907 + $0x10] sm:$0xff] %v6877
        %6911 = vst [vmem:[%s6907 + $0x18] sm:$0xff] %v6878
        %6912 = vst [vmem:[%s6907 + $0x20] sm:$0xff] %v6879
        %6913 = vst [vmem:[%s6907 + $0x28] sm:$0xff] %v6880
        %6914 = vst [vmem:[%s6907 + $0x30] sm:$0xff] %v6881
        %6915 = vst [vmem:[%s6907 + $0x38] sm:$0xff] %v6882
        %6916 = vst [vmem:[%s6907 + $0x40] sm:$0xff] %v6883
        %6917 = vst [vmem:[%s6907 + $0x48] sm:$0xff] %v6884
        %6918 = vst [vmem:[%s6907 + $0x50] sm:$0xff] %v6885
        %6919 = vst [vmem:[%s6907 + $0x58] sm:$0xff] %v6886
        %6920 = vst [vmem:[%s6907 + $0x60] sm:$0xff] %v6887
        %6921 = vst [vmem:[%s6907 + $0x68] sm:$0xff] %v6888
        %6922 = vst [vmem:[%s6907 + $0x70] sm:$0xff] %v6889
        %6923 = vst [vmem:[%s6907 + $0x78] sm:$0xff] %v6890
        %6924 = vst [vmem:[%s6907 + $0x80] sm:$0xff] %v6891
        %6925 = vst [vmem:[%s6907 + $0x88] sm:$0xff] %v6892
        %6926 = vst [vmem:[%s6907 + $0x90] sm:$0xff] %v6893
        %6927 = vst [vmem:[%s6907 + $0x98] sm:$0xff] %v6894
        %6928 = vst [vmem:[%s6907 + $0xa0] sm:$0xff] %v6895
        %6929 = vst [vmem:[%s6907 + $0xa8] sm:$0xff] %v6896
        %6930 = vst [vmem:[%s6907 + $0xb0] sm:$0xff] %v6897
        %6931 = vst [vmem:[%s6907 + $0xb8] sm:$0xff] %v6898
        %6932 = vst [vmem:[%s6907 + $0xc0] sm:$0xff] %v6899
        %6933 = vst [vmem:[%s6907 + $0xc8] sm:$0xff] %v6900
        %6934 = vst [vmem:[%s6907 + $0xd0] sm:$0xff] %v6901
        %6935 = vst [vmem:[%s6907 + $0xd8] sm:$0xff] %v6902
        %6936 = vst [vmem:[%s6907 + $0xe0] sm:$0xff] %v6903
        %6937 = vst [vmem:[%s6907 + $0xe8] sm:$0xff] %v6904
        %6938 = vst [vmem:[%s6907 + $0xf0] sm:$0xff] %v6905
        %6939 = vst [vmem:[%s6907 + $0xf8] sm:$0xff] %v6906
        %v6972 = vunpack.c.l.b16 %v6875
        %v6973 = vunpack.c.h.b16 %v6875
        %v6974 = vunpack.c.l.b16 %v6876
        %v6975 = vunpack.c.h.b16 %v6876
        %v6976 = vunpack.c.l.b16 %v6877
        %v6977 = vunpack.c.h.b16 %v6877
        %v6978 = vunpack.c.l.b16 %v6878
        %v6979 = vunpack.c.h.b16 %v6878
        %v6980 = vunpack.c.l.b16 %v6879
        %v6981 = vunpack.c.h.b16 %v6879
        %v6982 = vunpack.c.l.b16 %v6880
        %v6983 = vunpack.c.h.b16 %v6880
        %v6984 = vunpack.c.l.b16 %v6881
        %v6985 = vunpack.c.h.b16 %v6881
        %v6986 = vunpack.c.l.b16 %v6882
        %v6987 = vunpack.c.h.b16 %v6882
        %v6988 = vunpack.c.l.b16 %v6883
        %v6989 = vunpack.c.h.b16 %v6883
        %v6990 = vunpack.c.l.b16 %v6884
        %v6991 = vunpack.c.h.b16 %v6884
        %v6992 = vunpack.c.l.b16 %v6885
        %v6993 = vunpack.c.h.b16 %v6885
        %v6994 = vunpack.c.l.b16 %v6886
        %v6995 = vunpack.c.h.b16 %v6886
        %v6996 = vunpack.c.l.b16 %v6887
        %v6997 = vunpack.c.h.b16 %v6887
        %v6998 = vunpack.c.l.b16 %v6888
        %v6999 = vunpack.c.h.b16 %v6888
        %v7000 = vunpack.c.l.b16 %v6889
        %v7001 = vunpack.c.h.b16 %v6889
        %v7002 = vunpack.c.l.b16 %v6890
        %v7003 = vunpack.c.h.b16 %v6890
        %v7004 = vunpack.c.l.b16 %v6891
        %v7005 = vunpack.c.h.b16 %v6891
        %v7006 = vunpack.c.l.b16 %v6892
        %v7007 = vunpack.c.h.b16 %v6892
        %v7008 = vunpack.c.l.b16 %v6893
        %v7009 = vunpack.c.h.b16 %v6893
        %v7010 = vunpack.c.l.b16 %v6894
        %v7011 = vunpack.c.h.b16 %v6894
        %v7012 = vunpack.c.l.b16 %v6895
        %v7013 = vunpack.c.h.b16 %v6895
        %v7014 = vunpack.c.l.b16 %v6896
        %v7015 = vunpack.c.h.b16 %v6896
        %v7016 = vunpack.c.l.b16 %v6897
        %v7017 = vunpack.c.h.b16 %v6897
        %v7018 = vunpack.c.l.b16 %v6898
        %v7019 = vunpack.c.h.b16 %v6898
        %v7020 = vunpack.c.l.b16 %v6899
        %v7021 = vunpack.c.h.b16 %v6899
        %v7022 = vunpack.c.l.b16 %v6900
        %v7023 = vunpack.c.h.b16 %v6900
        %v7024 = vunpack.c.l.b16 %v6901
        %v7025 = vunpack.c.h.b16 %v6901
        %v7026 = vunpack.c.l.b16 %v6902
        %v7027 = vunpack.c.h.b16 %v6902
        %v7028 = vunpack.c.l.b16 %v6903
        %v7029 = vunpack.c.h.b16 %v6903
        %v7030 = vunpack.c.l.b16 %v6904
        %v7031 = vunpack.c.h.b16 %v6904
        %v7032 = vunpack.c.l.b16 %v6905
        %v7033 = vunpack.c.h.b16 %v6905
        %v7034 = vunpack.c.l.b16 %v6906
        %v7035 = vunpack.c.h.b16 %v6906
        %v7036 = vpack.c.b16 %v6974, %v6972
        %v7037 = vpack.c.b16 %v6975, %v6973
        %v7038 = vpack.c.b16 %v6978, %v6976
        %v7039 = vpack.c.b16 %v6979, %v6977
        %v7040 = vpack.c.b16 %v6982, %v6980
        %v7041 = vpack.c.b16 %v6983, %v6981
        %v7042 = vpack.c.b16 %v6986, %v6984
        %v7043 = vpack.c.b16 %v6987, %v6985
        %v7044 = vpack.c.b16 %v6990, %v6988
        %v7045 = vpack.c.b16 %v6991, %v6989
        %v7046 = vpack.c.b16 %v6994, %v6992
        %v7047 = vpack.c.b16 %v6995, %v6993
        %v7048 = vpack.c.b16 %v6998, %v6996
        %v7049 = vpack.c.b16 %v6999, %v6997
        %v7050 = vpack.c.b16 %v7002, %v7000
        %v7051 = vpack.c.b16 %v7003, %v7001
        %v7052 = vpack.c.b16 %v7006, %v7004
        %v7053 = vpack.c.b16 %v7007, %v7005
        %v7054 = vpack.c.b16 %v7010, %v7008
        %v7055 = vpack.c.b16 %v7011, %v7009
        %v7056 = vpack.c.b16 %v7014, %v7012
        %v7057 = vpack.c.b16 %v7015, %v7013
        %v7058 = vpack.c.b16 %v7018, %v7016
        %v7059 = vpack.c.b16 %v7019, %v7017
        %v7060 = vpack.c.b16 %v7022, %v7020
        %v7061 = vpack.c.b16 %v7023, %v7021
        %v7062 = vpack.c.b16 %v7026, %v7024
        %v7063 = vpack.c.b16 %v7027, %v7025
        %v7064 = vpack.c.b16 %v7030, %v7028
        %v7065 = vpack.c.b16 %v7031, %v7029
        %v7066 = vpack.c.b16 %v7034, %v7032
        %v7067 = vpack.c.b16 %v7035, %v7033
        %v7132 = vunpack.c.l.b16 %v5417
        %v7133 = vunpack.c.l.b16 %v5418
        %v7134 = vunpack.c.l.b16 %v5419
        %v7135 = vunpack.c.l.b16 %v5420
        %v7136 = vunpack.c.l.b16 %v5421
        %v7137 = vunpack.c.l.b16 %v5422
        %v7138 = vunpack.c.l.b16 %v5423
        %v7139 = vunpack.c.l.b16 %v5424
        %v7140 = vunpack.c.l.b16 %v5425
        %v7141 = vunpack.c.l.b16 %v5426
        %v7142 = vunpack.c.l.b16 %v5427
        %v7143 = vunpack.c.l.b16 %v5428
        %v7144 = vunpack.c.l.b16 %v5429
        %v7145 = vunpack.c.l.b16 %v5430
        %v7146 = vunpack.c.l.b16 %v5431
        %v7147 = vunpack.c.l.b16 %v5432
        %v7148 = vunpack.c.l.b16 %v5433
        %v7149 = vunpack.c.l.b16 %v5434
        %v7150 = vunpack.c.l.b16 %v5435
        %v7151 = vunpack.c.l.b16 %v5436
        %v7152 = vunpack.c.l.b16 %v5437
        %v7153 = vunpack.c.l.b16 %v5438
        %v7154 = vunpack.c.l.b16 %v5439
        %v7155 = vunpack.c.l.b16 %v5440
        %v7156 = vunpack.c.l.b16 %v5441
        %v7157 = vunpack.c.l.b16 %v5442
        %v7158 = vunpack.c.l.b16 %v5443
        %v7159 = vunpack.c.l.b16 %v5444
        %v7160 = vunpack.c.l.b16 %v5445
        %v7161 = vunpack.c.l.b16 %v5446
        %v7162 = vunpack.c.l.b16 %v5447
        %v7163 = vunpack.c.l.b16 %v5448
        %v7164 = vpack.c.b16 %v7133, %v7132
        %v7165 = vpack.c.b16 %v7135, %v7134
        %v7166 = vpack.c.b16 %v7137, %v7136
        %v7167 = vpack.c.b16 %v7139, %v7138
        %v7168 = vpack.c.b16 %v7141, %v7140
        %v7169 = vpack.c.b16 %v7143, %v7142
        %v7170 = vpack.c.b16 %v7145, %v7144
        %v7171 = vpack.c.b16 %v7147, %v7146
        %v7172 = vpack.c.b16 %v7149, %v7148
        %v7173 = vpack.c.b16 %v7151, %v7150
        %v7174 = vpack.c.b16 %v7153, %v7152
        %v7175 = vpack.c.b16 %v7155, %v7154
        %v7176 = vpack.c.b16 %v7157, %v7156
        %v7177 = vpack.c.b16 %v7159, %v7158
        %v7178 = vpack.c.b16 %v7161, %v7160
        %v7179 = vpack.c.b16 %v7163, %v7162
        %7180 = vrot.lane.b32.xlu0 %v7164, 64
        %v7181 = vpop.permute.xlu0 %7180
        %7182 = vrot.lane.b32.xlu0 %v7165, 64
        %v7183 = vpop.permute.xlu0 %7182
        %7184 = vrot.lane.b32.xlu0 %v7166, 64
        %v7185 = vpop.permute.xlu0 %7184
        %7186 = vrot.lane.b32.xlu0 %v7167, 64
        %v7187 = vpop.permute.xlu0 %7186
        %7188 = vrot.lane.b32.xlu0 %v7168, 64
        %v7189 = vpop.permute.xlu0 %7188
        %7190 = vrot.lane.b32.xlu0 %v7169, 64
        %v7191 = vpop.permute.xlu0 %7190
        %7192 = vrot.lane.b32.xlu0 %v7170, 64
        %v7193 = vpop.permute.xlu0 %7192
        %7194 = vrot.lane.b32.xlu0 %v7171, 64
        %v7195 = vpop.permute.xlu0 %7194
        %7196 = vrot.lane.b32.xlu0 %v7172, 64
        %v7197 = vpop.permute.xlu0 %7196
        %7198 = vrot.lane.b32.xlu0 %v7173, 64
        %v7199 = vpop.permute.xlu0 %7198
        %7200 = vrot.lane.b32.xlu0 %v7174, 64
        %v7201 = vpop.permute.xlu0 %7200
        %7202 = vrot.lane.b32.xlu0 %v7175, 64
        %v7203 = vpop.permute.xlu0 %7202
        %7204 = vrot.lane.b32.xlu0 %v7176, 64
        %v7205 = vpop.permute.xlu0 %7204
        %7206 = vrot.lane.b32.xlu0 %v7177, 64
        %v7207 = vpop.permute.xlu0 %7206
        %7208 = vrot.lane.b32.xlu0 %v7178, 64
        %v7209 = vpop.permute.xlu0 %7208
        %7210 = vrot.lane.b32.xlu0 %v7179, 64
        %v7211 = vpop.permute.xlu0 %7210
        %7228 = vmatpush.bf16.msra.mxu0 %v7195
        %7229 = vmatpush.bf16.msra.mxu0 %v7193
        %7230 = vmatpush.bf16.msra.mxu0 %v7191
        %7231 = vmatpush.bf16.msra.mxu0 %v7189
        %7232 = vmatpush.bf16.msra.mxu0 %v7187
        %7233 = vmatpush.bf16.msra.mxu0 %v7185
        %7234 = vmatpush.bf16.msra.mxu0 %v7183
        %7235 = vmatpush.bf16.msra.mxu0 %v7181
        %7236 = vmatmul.bf16.gmra.mxu0 %v7036
        %v7237 = vpop.f32.mrf.mxu0
        %v7238 = vadd.f32 0.0, %v7237
        %v7239 = vpop.f32.mrf.mxu0
        %v7240 = vadd.f32 0.0, %v7239
        %7241 = vmatmul.bf16.gmra.mxu0 %v7038
        %v7242 = vpop.f32.mrf.mxu0
        %v7243 = vadd.f32 0.0, %v7242
        %v7244 = vpop.f32.mrf.mxu0
        %v7245 = vadd.f32 0.0, %v7244
        %7246 = vmatmul.bf16.gmra.mxu0 %v7040
        %v7247 = vpop.f32.mrf.mxu0
        %v7248 = vadd.f32 0.0, %v7247
        %v7249 = vpop.f32.mrf.mxu0
        %v7250 = vadd.f32 0.0, %v7249
        %7251 = vmatmul.bf16.gmra.mxu0 %v7042
        %v7252 = vpop.f32.mrf.mxu0
        %v7253 = vadd.f32 0.0, %v7252
        %v7254 = vpop.f32.mrf.mxu0
        %v7255 = vadd.f32 0.0, %v7254
        %7256 = vmatmul.bf16.gmra.mxu0 %v7044
        %v7257 = vpop.f32.mrf.mxu0
        %v7258 = vadd.f32 0.0, %v7257
        %v7259 = vpop.f32.mrf.mxu0
        %v7260 = vadd.f32 0.0, %v7259
        %7261 = vmatmul.bf16.gmra.mxu0 %v7046
        %v7262 = vpop.f32.mrf.mxu0
        %v7263 = vadd.f32 0.0, %v7262
        %v7264 = vpop.f32.mrf.mxu0
        %v7265 = vadd.f32 0.0, %v7264
        %7266 = vmatmul.bf16.gmra.mxu0 %v7048
        %v7267 = vpop.f32.mrf.mxu0
        %v7268 = vadd.f32 0.0, %v7267
        %v7269 = vpop.f32.mrf.mxu0
        %v7270 = vadd.f32 0.0, %v7269
        %7271 = vmatmul.bf16.gmra.mxu0 %v7050
        %v7272 = vpop.f32.mrf.mxu0
        %v7273 = vadd.f32 0.0, %v7272
        %v7274 = vpop.f32.mrf.mxu0
        %v7275 = vadd.f32 0.0, %v7274
        %7276 = vmatmul.bf16.gmra.mxu0 %v7052
        %v7277 = vpop.f32.mrf.mxu0
        %v7278 = vadd.f32 0.0, %v7277
        %v7279 = vpop.f32.mrf.mxu0
        %v7280 = vadd.f32 0.0, %v7279
        %7281 = vmatmul.bf16.gmra.mxu0 %v7054
        %v7282 = vpop.f32.mrf.mxu0
        %v7283 = vadd.f32 0.0, %v7282
        %v7284 = vpop.f32.mrf.mxu0
        %v7285 = vadd.f32 0.0, %v7284
        %7286 = vmatmul.bf16.gmra.mxu0 %v7056
        %v7287 = vpop.f32.mrf.mxu0
        %v7288 = vadd.f32 0.0, %v7287
        %v7289 = vpop.f32.mrf.mxu0
        %v7290 = vadd.f32 0.0, %v7289
        %7291 = vmatmul.bf16.gmra.mxu0 %v7058
        %v7292 = vpop.f32.mrf.mxu0
        %v7293 = vadd.f32 0.0, %v7292
        %v7294 = vpop.f32.mrf.mxu0
        %v7295 = vadd.f32 0.0, %v7294
        %7296 = vmatmul.bf16.gmra.mxu0 %v7060
        %v7297 = vpop.f32.mrf.mxu0
        %v7298 = vadd.f32 0.0, %v7297
        %v7299 = vpop.f32.mrf.mxu0
        %v7300 = vadd.f32 0.0, %v7299
        %7301 = vmatmul.bf16.gmra.mxu0 %v7062
        %v7302 = vpop.f32.mrf.mxu0
        %v7303 = vadd.f32 0.0, %v7302
        %v7304 = vpop.f32.mrf.mxu0
        %v7305 = vadd.f32 0.0, %v7304
        %7306 = vmatmul.bf16.gmra.mxu0 %v7064
        %v7307 = vpop.f32.mrf.mxu0
        %v7308 = vadd.f32 0.0, %v7307
        %v7309 = vpop.f32.mrf.mxu0
        %v7310 = vadd.f32 0.0, %v7309
        %7311 = vmatmul.bf16.gmra.mxu0 %v7066
        %v7312 = vpop.f32.mrf.mxu0
        %v7313 = vadd.f32 0.0, %v7312
        %v7314 = vpop.f32.mrf.mxu0
        %v7315 = vadd.f32 0.0, %v7314
        %7316 = vdwg.mxu0
        %7317 = vmatpush.bf16.msra.mxu0 %v7211
        %7318 = vmatpush.bf16.msra.mxu0 %v7209
        %7319 = vmatpush.bf16.msra.mxu0 %v7207
        %7320 = vmatpush.bf16.msra.mxu0 %v7205
        %7321 = vmatpush.bf16.msra.mxu0 %v7203
        %7322 = vmatpush.bf16.msra.mxu0 %v7201
        %7323 = vmatpush.bf16.msra.mxu0 %v7199
        %7324 = vmatpush.bf16.msra.mxu0 %v7197
        %7325 = vmatmul.bf16.gmra.mxu0 %v7037
        %v7326 = vpop.f32.mrf.mxu0
        %v7327 = vadd.f32 %v7238, %v7326
        %v7328 = vpop.f32.mrf.mxu0
        %v7329 = vadd.f32 %v7240, %v7328
        %7330 = vmatmul.bf16.gmra.mxu0 %v7039
        %v7331 = vpop.f32.mrf.mxu0
        %v7332 = vadd.f32 %v7243, %v7331
        %v7333 = vpop.f32.mrf.mxu0
        %v7334 = vadd.f32 %v7245, %v7333
        %7335 = vmatmul.bf16.gmra.mxu0 %v7041
        %v7336 = vpop.f32.mrf.mxu0
        %v7337 = vadd.f32 %v7248, %v7336
        %v7338 = vpop.f32.mrf.mxu0
        %v7339 = vadd.f32 %v7250, %v7338
        %7340 = vmatmul.bf16.gmra.mxu0 %v7043
        %v7341 = vpop.f32.mrf.mxu0
        %v7342 = vadd.f32 %v7253, %v7341
        %v7343 = vpop.f32.mrf.mxu0
        %v7344 = vadd.f32 %v7255, %v7343
        %7345 = vmatmul.bf16.gmra.mxu0 %v7045
        %v7346 = vpop.f32.mrf.mxu0
        %v7347 = vadd.f32 %v7258, %v7346
        %v7348 = vpop.f32.mrf.mxu0
        %v7349 = vadd.f32 %v7260, %v7348
        %7350 = vmatmul.bf16.gmra.mxu0 %v7047
        %v7351 = vpop.f32.mrf.mxu0
        %v7352 = vadd.f32 %v7263, %v7351
        %v7353 = vpop.f32.mrf.mxu0
        %v7354 = vadd.f32 %v7265, %v7353
        %7355 = vmatmul.bf16.gmra.mxu0 %v7049
        %v7356 = vpop.f32.mrf.mxu0
        %v7357 = vadd.f32 %v7268, %v7356
        %v7358 = vpop.f32.mrf.mxu0
        %v7359 = vadd.f32 %v7270, %v7358
        %7360 = vmatmul.bf16.gmra.mxu0 %v7051
        %v7361 = vpop.f32.mrf.mxu0
        %v7362 = vadd.f32 %v7273, %v7361
        %v7363 = vpop.f32.mrf.mxu0
        %v7364 = vadd.f32 %v7275, %v7363
        %7365 = vmatmul.bf16.gmra.mxu0 %v7053
        %v7366 = vpop.f32.mrf.mxu0
        %v7367 = vadd.f32 %v7278, %v7366
        %v7368 = vpop.f32.mrf.mxu0
        %v7369 = vadd.f32 %v7280, %v7368
        %7370 = vmatmul.bf16.gmra.mxu0 %v7055
        %v7371 = vpop.f32.mrf.mxu0
        %v7372 = vadd.f32 %v7283, %v7371
        %v7373 = vpop.f32.mrf.mxu0
        %v7374 = vadd.f32 %v7285, %v7373
        %7375 = vmatmul.bf16.gmra.mxu0 %v7057
        %v7376 = vpop.f32.mrf.mxu0
        %v7377 = vadd.f32 %v7288, %v7376
        %v7378 = vpop.f32.mrf.mxu0
        %v7379 = vadd.f32 %v7290, %v7378
        %7380 = vmatmul.bf16.gmra.mxu0 %v7059
        %v7381 = vpop.f32.mrf.mxu0
        %v7382 = vadd.f32 %v7293, %v7381
        %v7383 = vpop.f32.mrf.mxu0
        %v7384 = vadd.f32 %v7295, %v7383
        %7385 = vmatmul.bf16.gmra.mxu0 %v7061
        %v7386 = vpop.f32.mrf.mxu0
        %v7387 = vadd.f32 %v7298, %v7386
        %v7388 = vpop.f32.mrf.mxu0
        %v7389 = vadd.f32 %v7300, %v7388
        %7390 = vmatmul.bf16.gmra.mxu0 %v7063
        %v7391 = vpop.f32.mrf.mxu0
        %v7392 = vadd.f32 %v7303, %v7391
        %v7393 = vpop.f32.mrf.mxu0
        %v7394 = vadd.f32 %v7305, %v7393
        %7395 = vmatmul.bf16.gmra.mxu0 %v7065
        %v7396 = vpop.f32.mrf.mxu0
        %v7397 = vadd.f32 %v7308, %v7396
        %v7398 = vpop.f32.mrf.mxu0
        %v7399 = vadd.f32 %v7310, %v7398
        %7400 = vmatmul.bf16.gmra.mxu0 %v7067
        %v7401 = vpop.f32.mrf.mxu0
        %v7402 = vadd.f32 %v7313, %v7401
        %v7403 = vpop.f32.mrf.mxu0
        %v7404 = vadd.f32 %v7315, %v7403
        %7405 = vdwg.mxu0
        %v7406 = vpack.c.bf16 %v7329, %v7327
        %v7407 = vpack.c.bf16 %v7334, %v7332
        %v7408 = vpack.c.bf16 %v7339, %v7337
        %v7409 = vpack.c.bf16 %v7344, %v7342
        %v7410 = vpack.c.bf16 %v7349, %v7347
        %v7411 = vpack.c.bf16 %v7354, %v7352
        %v7412 = vpack.c.bf16 %v7359, %v7357
        %v7413 = vpack.c.bf16 %v7364, %v7362
        %v7414 = vpack.c.bf16 %v7369, %v7367
        %v7415 = vpack.c.bf16 %v7374, %v7372
        %v7416 = vpack.c.bf16 %v7379, %v7377
        %v7417 = vpack.c.bf16 %v7384, %v7382
        %v7418 = vpack.c.bf16 %v7389, %v7387
        %v7419 = vpack.c.bf16 %v7394, %v7392
        %v7420 = vpack.c.bf16 %v7399, %v7397
        %v7421 = vpack.c.bf16 %v7404, %v7402
        %v7422 = vld [vmem:[%s3 + $0x20] sm:$0xf]
        %v7423 = vld [vmem:[%s3 + $0x24] sm:$0xf]
        %v7424 = vld [vmem:[%s3 + $0x28] sm:$0xf]
        %v7425 = vld [vmem:[%s3 + $0x2c] sm:$0xf]
        %v7430 = vunpack.c.l.b16 %v7422
        %v7431 = vunpack.c.l.b16 %v7423
        %v7432 = vunpack.c.l.b16 %v7424
        %v7433 = vunpack.c.l.b16 %v7425
        %v7434 = vpack.c.b16 %v7431, %v7430
        %v7435 = vpack.c.b16 %v7433, %v7432
        %v7439 = vsel %vm1129, %v7406, 0
        %v7442 = vsel %vm1129, %v7407, 0
        %v7445 = vsel %vm1129, %v7408, 0
        %v7448 = vsel %vm1129, %v7409, 0
        %v7451 = vsel %vm1129, %v7410, 0
        %v7454 = vsel %vm1129, %v7411, 0
        %v7457 = vsel %vm1129, %v7412, 0
        %v7460 = vsel %vm1129, %v7413, 0
        %v7463 = vsel %vm1129, %v7414, 0
        %v7466 = vsel %vm1129, %v7415, 0
        %v7469 = vsel %vm1129, %v7416, 0
        %v7472 = vsel %vm1129, %v7417, 0
        %v7475 = vsel %vm1129, %v7418, 0
        %v7478 = vsel %vm1129, %v7419, 0
        %v7481 = vsel %vm1129, %v7420, 0
        %v7484 = vsel %vm1129, %v7421, 0
        %7486 = vmatpush.bf16.msra.mxu0 0
        %7487 = vmatpush.bf16.msra.mxu0 0
        %7488 = vmatpush.bf16.msra.mxu0 0
        %7489 = vmatpush.bf16.msra.mxu0 0
        %7490 = vmatpush.bf16.msra.mxu0 0
        %7491 = vmatpush.bf16.msra.mxu0 0
        %7492 = vmatpush.bf16.msra.mxu0 %v7435
        %7493 = vmatpush.bf16.msra.mxu0 %v7434
        %7494 = vmatmul.bf16.gmra.mxu0 %v7439
        %v7495 = vpop.f32.mrf.mxu0
        %v7496 = vadd.f32 0.0, %v7495
        %v7497 = vpop.f32.mrf.mxu0
        %v7498 = vadd.f32 0.0, %v7497
        %7499 = vmatmul.bf16.gmra.mxu0 %v7442
        %v7500 = vpop.f32.mrf.mxu0
        %v7501 = vadd.f32 0.0, %v7500
        %v7502 = vpop.f32.mrf.mxu0
        %v7503 = vadd.f32 0.0, %v7502
        %7504 = vmatmul.bf16.gmra.mxu0 %v7445
        %v7505 = vpop.f32.mrf.mxu0
        %v7506 = vadd.f32 0.0, %v7505
        %v7507 = vpop.f32.mrf.mxu0
        %v7508 = vadd.f32 0.0, %v7507
        %7509 = vmatmul.bf16.gmra.mxu0 %v7448
        %v7510 = vpop.f32.mrf.mxu0
        %v7511 = vadd.f32 0.0, %v7510
        %v7512 = vpop.f32.mrf.mxu0
        %v7513 = vadd.f32 0.0, %v7512
        %7514 = vmatmul.bf16.gmra.mxu0 %v7451
        %v7515 = vpop.f32.mrf.mxu0
        %v7516 = vadd.f32 0.0, %v7515
        %v7517 = vpop.f32.mrf.mxu0
        %v7518 = vadd.f32 0.0, %v7517
        %7519 = vmatmul.bf16.gmra.mxu0 %v7454
        %v7520 = vpop.f32.mrf.mxu0
        %v7521 = vadd.f32 0.0, %v7520
        %v7522 = vpop.f32.mrf.mxu0
        %v7523 = vadd.f32 0.0, %v7522
        %7524 = vmatmul.bf16.gmra.mxu0 %v7457
        %v7525 = vpop.f32.mrf.mxu0
        %v7526 = vadd.f32 0.0, %v7525
        %v7527 = vpop.f32.mrf.mxu0
        %v7528 = vadd.f32 0.0, %v7527
        %7529 = vmatmul.bf16.gmra.mxu0 %v7460
        %v7530 = vpop.f32.mrf.mxu0
        %v7531 = vadd.f32 0.0, %v7530
        %v7532 = vpop.f32.mrf.mxu0
        %v7533 = vadd.f32 0.0, %v7532
        %7534 = vmatmul.bf16.gmra.mxu0 %v7463
        %v7535 = vpop.f32.mrf.mxu0
        %v7536 = vadd.f32 0.0, %v7535
        %v7537 = vpop.f32.mrf.mxu0
        %v7538 = vadd.f32 0.0, %v7537
        %7539 = vmatmul.bf16.gmra.mxu0 %v7466
        %v7540 = vpop.f32.mrf.mxu0
        %v7541 = vadd.f32 0.0, %v7540
        %v7542 = vpop.f32.mrf.mxu0
        %v7543 = vadd.f32 0.0, %v7542
        %7544 = vmatmul.bf16.gmra.mxu0 %v7469
        %v7545 = vpop.f32.mrf.mxu0
        %v7546 = vadd.f32 0.0, %v7545
        %v7547 = vpop.f32.mrf.mxu0
        %v7548 = vadd.f32 0.0, %v7547
        %7549 = vmatmul.bf16.gmra.mxu0 %v7472
        %v7550 = vpop.f32.mrf.mxu0
        %v7551 = vadd.f32 0.0, %v7550
        %v7552 = vpop.f32.mrf.mxu0
        %v7553 = vadd.f32 0.0, %v7552
        %7554 = vmatmul.bf16.gmra.mxu0 %v7475
        %v7555 = vpop.f32.mrf.mxu0
        %v7556 = vadd.f32 0.0, %v7555
        %v7557 = vpop.f32.mrf.mxu0
        %v7558 = vadd.f32 0.0, %v7557
        %7559 = vmatmul.bf16.gmra.mxu0 %v7478
        %v7560 = vpop.f32.mrf.mxu0
        %v7561 = vadd.f32 0.0, %v7560
        %v7562 = vpop.f32.mrf.mxu0
        %v7563 = vadd.f32 0.0, %v7562
        %7564 = vmatmul.bf16.gmra.mxu0 %v7481
        %v7565 = vpop.f32.mrf.mxu0
        %v7566 = vadd.f32 0.0, %v7565
        %v7567 = vpop.f32.mrf.mxu0
        %v7568 = vadd.f32 0.0, %v7567
        %7569 = vmatmul.bf16.gmra.mxu0 %v7484
        %v7570 = vpop.f32.mrf.mxu0
        %v7571 = vadd.f32 0.0, %v7570
        %v7572 = vpop.f32.mrf.mxu0
        %v7573 = vadd.f32 0.0, %v7572
        %7574 = vdwg.mxu0
        %v7575 = vld [vmem:[%s248] sm:$0xff]
        %v7576 = vld [vmem:[%s248 + $0x8] sm:$0xff]
        %v7577 = vld [vmem:[%s248 + $0x10] sm:$0xff]
        %v7578 = vld [vmem:[%s248 + $0x18] sm:$0xff]
        %v7579 = vld [vmem:[%s248 + $0x20] sm:$0xff]
        %v7580 = vld [vmem:[%s248 + $0x28] sm:$0xff]
        %v7581 = vld [vmem:[%s248 + $0x30] sm:$0xff]
        %v7582 = vld [vmem:[%s248 + $0x38] sm:$0xff]
        %v7583 = vld [vmem:[%s248 + $0x40] sm:$0xff]
        %v7584 = vld [vmem:[%s248 + $0x48] sm:$0xff]
        %v7585 = vld [vmem:[%s248 + $0x50] sm:$0xff]
        %v7586 = vld [vmem:[%s248 + $0x58] sm:$0xff]
        %v7587 = vld [vmem:[%s248 + $0x60] sm:$0xff]
        %v7588 = vld [vmem:[%s248 + $0x68] sm:$0xff]
        %v7589 = vld [vmem:[%s248 + $0x70] sm:$0xff]
        %v7590 = vld [vmem:[%s248 + $0x78] sm:$0xff]
        %v7591 = vld [vmem:[%s248 + $0x80] sm:$0xff]
        %v7592 = vld [vmem:[%s248 + $0x88] sm:$0xff]
        %v7593 = vld [vmem:[%s248 + $0x90] sm:$0xff]
        %v7594 = vld [vmem:[%s248 + $0x98] sm:$0xff]
        %v7595 = vld [vmem:[%s248 + $0xa0] sm:$0xff]
        %v7596 = vld [vmem:[%s248 + $0xa8] sm:$0xff]
        %v7597 = vld [vmem:[%s248 + $0xb0] sm:$0xff]
        %v7598 = vld [vmem:[%s248 + $0xb8] sm:$0xff]
        %v7599 = vld [vmem:[%s248 + $0xc0] sm:$0xff]
        %v7600 = vld [vmem:[%s248 + $0xc8] sm:$0xff]
        %v7601 = vld [vmem:[%s248 + $0xd0] sm:$0xff]
        %v7602 = vld [vmem:[%s248 + $0xd8] sm:$0xff]
        %v7603 = vld [vmem:[%s248 + $0xe0] sm:$0xff]
        %v7604 = vld [vmem:[%s248 + $0xe8] sm:$0xff]
        %v7605 = vld [vmem:[%s248 + $0xf0] sm:$0xff]
        %v7606 = vld [vmem:[%s248 + $0xf8] sm:$0xff]
        %v7607 = vadd.f32 %v7575, %v7496
        %v7608 = vadd.f32 %v7576, %v7498
        %v7609 = vadd.f32 %v7577, %v7501
        %v7610 = vadd.f32 %v7578, %v7503
        %v7611 = vadd.f32 %v7579, %v7506
        %v7612 = vadd.f32 %v7580, %v7508
        %v7613 = vadd.f32 %v7581, %v7511
        %v7614 = vadd.f32 %v7582, %v7513
        %v7615 = vadd.f32 %v7583, %v7516
        %v7616 = vadd.f32 %v7584, %v7518
        %v7617 = vadd.f32 %v7585, %v7521
        %v7618 = vadd.f32 %v7586, %v7523
        %v7619 = vadd.f32 %v7587, %v7526
        %v7620 = vadd.f32 %v7588, %v7528
        %v7621 = vadd.f32 %v7589, %v7531
        %v7622 = vadd.f32 %v7590, %v7533
        %v7623 = vadd.f32 %v7591, %v7536
        %v7624 = vadd.f32 %v7592, %v7538
        %v7625 = vadd.f32 %v7593, %v7541
        %v7626 = vadd.f32 %v7594, %v7543
        %v7627 = vadd.f32 %v7595, %v7546
        %v7628 = vadd.f32 %v7596, %v7548
        %v7629 = vadd.f32 %v7597, %v7551
        %v7630 = vadd.f32 %v7598, %v7553
        %v7631 = vadd.f32 %v7599, %v7556
        %v7632 = vadd.f32 %v7600, %v7558
        %v7633 = vadd.f32 %v7601, %v7561
        %v7634 = vadd.f32 %v7602, %v7563
        %v7635 = vadd.f32 %v7603, %v7566
        %v7636 = vadd.f32 %v7604, %v7568
        %v7637 = vadd.f32 %v7605, %v7571
        %v7638 = vadd.f32 %v7606, %v7573
        %7639 = vst [vmem:[%s248] sm:$0xff] %v7607
        %7640 = vst [vmem:[%s248 + $0x8] sm:$0xff] %v7608
        %7641 = vst [vmem:[%s248 + $0x10] sm:$0xff] %v7609
        %7642 = vst [vmem:[%s248 + $0x18] sm:$0xff] %v7610
        %7643 = vst [vmem:[%s248 + $0x20] sm:$0xff] %v7611
        %7644 = vst [vmem:[%s248 + $0x28] sm:$0xff] %v7612
        %7645 = vst [vmem:[%s248 + $0x30] sm:$0xff] %v7613
        %7646 = vst [vmem:[%s248 + $0x38] sm:$0xff] %v7614
        %7647 = vst [vmem:[%s248 + $0x40] sm:$0xff] %v7615
        %7648 = vst [vmem:[%s248 + $0x48] sm:$0xff] %v7616
        %7649 = vst [vmem:[%s248 + $0x50] sm:$0xff] %v7617
        %7650 = vst [vmem:[%s248 + $0x58] sm:$0xff] %v7618
        %7651 = vst [vmem:[%s248 + $0x60] sm:$0xff] %v7619
        %7652 = vst [vmem:[%s248 + $0x68] sm:$0xff] %v7620
        %7653 = vst [vmem:[%s248 + $0x70] sm:$0xff] %v7621
        %7654 = vst [vmem:[%s248 + $0x78] sm:$0xff] %v7622
        %7655 = vst [vmem:[%s248 + $0x80] sm:$0xff] %v7623
        %7656 = vst [vmem:[%s248 + $0x88] sm:$0xff] %v7624
        %7657 = vst [vmem:[%s248 + $0x90] sm:$0xff] %v7625
        %7658 = vst [vmem:[%s248 + $0x98] sm:$0xff] %v7626
        %7659 = vst [vmem:[%s248 + $0xa0] sm:$0xff] %v7627
        %7660 = vst [vmem:[%s248 + $0xa8] sm:$0xff] %v7628
        %7661 = vst [vmem:[%s248 + $0xb0] sm:$0xff] %v7629
        %7662 = vst [vmem:[%s248 + $0xb8] sm:$0xff] %v7630
        %7663 = vst [vmem:[%s248 + $0xc0] sm:$0xff] %v7631
        %7664 = vst [vmem:[%s248 + $0xc8] sm:$0xff] %v7632
        %7665 = vst [vmem:[%s248 + $0xd0] sm:$0xff] %v7633
        %7666 = vst [vmem:[%s248 + $0xd8] sm:$0xff] %v7634
        %7667 = vst [vmem:[%s248 + $0xe0] sm:$0xff] %v7635
        %7668 = vst [vmem:[%s248 + $0xe8] sm:$0xff] %v7636
        %7669 = vst [vmem:[%s248 + $0xf0] sm:$0xff] %v7637
        %7670 = vst [vmem:[%s248 + $0xf8] sm:$0xff] %v7638
        %v7671 = vld [vmem:[#allocation2] sm:$0xf]
        %v7672 = vld [vmem:[#allocation2 + $0xc] sm:$0xf]
        %v7673 = vld [vmem:[#allocation2 + $0x18] sm:$0xf]
        %v7674 = vld [vmem:[#allocation2 + $0x24] sm:$0xf]
        %v7675 = vld [vmem:[#allocation2 + $0x30] sm:$0xf]
        %v7676 = vld [vmem:[#allocation2 + $0x3c] sm:$0xf]
        %v7677 = vld [vmem:[#allocation2 + $0x48] sm:$0xf]
        %v7678 = vld [vmem:[#allocation2 + $0x54] sm:$0xf]
        %v7679 = vld [vmem:[#allocation2 + $0x60] sm:$0xf]
        %v7680 = vld [vmem:[#allocation2 + $0x6c] sm:$0xf]
        %v7681 = vld [vmem:[#allocation2 + $0x78] sm:$0xf]
        %v7682 = vld [vmem:[#allocation2 + $0x84] sm:$0xf]
        %v7683 = vld [vmem:[#allocation2 + $0x90] sm:$0xf]
        %v7684 = vld [vmem:[#allocation2 + $0x9c] sm:$0xf]
        %v7685 = vld [vmem:[#allocation2 + $0xa8] sm:$0xf]
        %v7686 = vld [vmem:[#allocation2 + $0xb4] sm:$0xf]
        %v7687 = vld [vmem:[#allocation2 + $0xc0] sm:$0xf]
        %v7688 = vld [vmem:[#allocation2 + $0xcc] sm:$0xf]
        %v7689 = vld [vmem:[#allocation2 + $0xd8] sm:$0xf]
        %v7690 = vld [vmem:[#allocation2 + $0xe4] sm:$0xf]
        %v7691 = vld [vmem:[#allocation2 + $0xf0] sm:$0xf]
        %v7692 = vld [vmem:[#allocation2 + $0xfc] sm:$0xf]
        %v7693 = vld [vmem:[#allocation2 + $0x108] sm:$0xf]
        %v7694 = vld [vmem:[#allocation2 + $0x114] sm:$0xf]
        %v7695 = vld [vmem:[#allocation2 + $0x120] sm:$0xf]
        %v7696 = vld [vmem:[#allocation2 + $0x12c] sm:$0xf]
        %v7697 = vld [vmem:[#allocation2 + $0x138] sm:$0xf]
        %v7698 = vld [vmem:[#allocation2 + $0x144] sm:$0xf]
        %v7699 = vld [vmem:[#allocation2 + $0x150] sm:$0xf]
        %v7700 = vld [vmem:[#allocation2 + $0x15c] sm:$0xf]
        %v7701 = vld [vmem:[#allocation2 + $0x168] sm:$0xf]
        %v7702 = vld [vmem:[#allocation2 + $0x174] sm:$0xf]
        %v7703 = vld [vmem:[#allocation2 + $0x4] sm:$0xf]
        %v7704 = vld [vmem:[#allocation2 + $0x10] sm:$0xf]
        %v7705 = vld [vmem:[#allocation2 + $0x1c] sm:$0xf]
        %v7706 = vld [vmem:[#allocation2 + $0x28] sm:$0xf]
        %v7707 = vld [vmem:[#allocation2 + $0x34] sm:$0xf]
        %v7708 = vld [vmem:[#allocation2 + $0x40] sm:$0xf]
        %v7709 = vld [vmem:[#allocation2 + $0x4c] sm:$0xf]
        %v7710 = vld [vmem:[#allocation2 + $0x58] sm:$0xf]
        %v7711 = vld [vmem:[#allocation2 + $0x64] sm:$0xf]
        %v7712 = vld [vmem:[#allocation2 + $0x70] sm:$0xf]
        %v7713 = vld [vmem:[#allocation2 + $0x7c] sm:$0xf]
        %v7714 = vld [vmem:[#allocation2 + $0x88] sm:$0xf]
        %v7715 = vld [vmem:[#allocation2 + $0x94] sm:$0xf]
        %v7716 = vld [vmem:[#allocation2 + $0xa0] sm:$0xf]
        %v7717 = vld [vmem:[#allocation2 + $0xac] sm:$0xf]
        %v7718 = vld [vmem:[#allocation2 + $0xb8] sm:$0xf]
        %v7719 = vld [vmem:[#allocation2 + $0xc4] sm:$0xf]
        %v7720 = vld [vmem:[#allocation2 + $0xd0] sm:$0xf]
        %v7721 = vld [vmem:[#allocation2 + $0xdc] sm:$0xf]
        %v7722 = vld [vmem:[#allocation2 + $0xe8] sm:$0xf]
        %v7723 = vld [vmem:[#allocation2 + $0xf4] sm:$0xf]
        %v7724 = vld [vmem:[#allocation2 + $0x100] sm:$0xf]
        %v7725 = vld [vmem:[#allocation2 + $0x10c] sm:$0xf]
        %v7726 = vld [vmem:[#allocation2 + $0x118] sm:$0xf]
        %v7727 = vld [vmem:[#allocation2 + $0x124] sm:$0xf]
        %v7728 = vld [vmem:[#allocation2 + $0x130] sm:$0xf]
        %v7729 = vld [vmem:[#allocation2 + $0x13c] sm:$0xf]
        %v7730 = vld [vmem:[#allocation2 + $0x148] sm:$0xf]
        %v7731 = vld [vmem:[#allocation2 + $0x154] sm:$0xf]
        %v7732 = vld [vmem:[#allocation2 + $0x160] sm:$0xf]
        %v7733 = vld [vmem:[#allocation2 + $0x16c] sm:$0xf]
        %v7734 = vld [vmem:[#allocation2 + $0x178] sm:$0xf]
        %v7735 = vld [vmem:[#allocation2 + $0x8] sm:$0xf]
        %v7736 = vld [vmem:[#allocation2 + $0x14] sm:$0xf]
        %v7737 = vld [vmem:[#allocation2 + $0x20] sm:$0xf]
        %v7738 = vld [vmem:[#allocation2 + $0x2c] sm:$0xf]
        %v7739 = vld [vmem:[#allocation2 + $0x38] sm:$0xf]
        %v7740 = vld [vmem:[#allocation2 + $0x44] sm:$0xf]
        %v7741 = vld [vmem:[#allocation2 + $0x50] sm:$0xf]
        %v7742 = vld [vmem:[#allocation2 + $0x5c] sm:$0xf]
        %v7743 = vld [vmem:[#allocation2 + $0x68] sm:$0xf]
        %v7744 = vld [vmem:[#allocation2 + $0x74] sm:$0xf]
        %v7745 = vld [vmem:[#allocation2 + $0x80] sm:$0xf]
        %v7746 = vld [vmem:[#allocation2 + $0x8c] sm:$0xf]
        %v7747 = vld [vmem:[#allocation2 + $0x98] sm:$0xf]
        %v7748 = vld [vmem:[#allocation2 + $0xa4] sm:$0xf]
        %v7749 = vld [vmem:[#allocation2 + $0xb0] sm:$0xf]
        %v7750 = vld [vmem:[#allocation2 + $0xbc] sm:$0xf]
        %v7751 = vld [vmem:[#allocation2 + $0xc8] sm:$0xf]
        %v7752 = vld [vmem:[#allocation2 + $0xd4] sm:$0xf]
        %v7753 = vld [vmem:[#allocation2 + $0xe0] sm:$0xf]
        %v7754 = vld [vmem:[#allocation2 + $0xec] sm:$0xf]
        %v7755 = vld [vmem:[#allocation2 + $0xf8] sm:$0xf]
        %v7756 = vld [vmem:[#allocation2 + $0x104] sm:$0xf]
        %v7757 = vld [vmem:[#allocation2 + $0x110] sm:$0xf]
        %v7758 = vld [vmem:[#allocation2 + $0x11c] sm:$0xf]
        %v7759 = vld [vmem:[#allocation2 + $0x128] sm:$0xf]
        %v7760 = vld [vmem:[#allocation2 + $0x134] sm:$0xf]
        %v7761 = vld [vmem:[#allocation2 + $0x140] sm:$0xf]
        %v7762 = vld [vmem:[#allocation2 + $0x14c] sm:$0xf]
        %v7763 = vld [vmem:[#allocation2 + $0x158] sm:$0xf]
        %v7764 = vld [vmem:[#allocation2 + $0x164] sm:$0xf]
        %v7765 = vld [vmem:[#allocation2 + $0x170] sm:$0xf]
        %v7766 = vld [vmem:[#allocation2 + $0x17c] sm:$0xf]
        %v7799 = vunpack.c.l.b16 %v7671
        %v7800 = vunpack.c.l.b16 %v7672
        %v7801 = vunpack.c.l.b16 %v7673
        %v7802 = vunpack.c.l.b16 %v7674
        %v7803 = vunpack.c.l.b16 %v7675
        %v7804 = vunpack.c.l.b16 %v7676
        %v7805 = vunpack.c.l.b16 %v7677
        %v7806 = vunpack.c.l.b16 %v7678
        %v7807 = vunpack.c.l.b16 %v7679
        %v7808 = vunpack.c.l.b16 %v7680
        %v7809 = vunpack.c.l.b16 %v7681
        %v7810 = vunpack.c.l.b16 %v7682
        %v7811 = vunpack.c.l.b16 %v7683
        %v7812 = vunpack.c.l.b16 %v7684
        %v7813 = vunpack.c.l.b16 %v7685
        %v7814 = vunpack.c.l.b16 %v7686
        %v7815 = vunpack.c.l.b16 %v7687
        %v7816 = vunpack.c.l.b16 %v7688
        %v7817 = vunpack.c.l.b16 %v7689
        %v7818 = vunpack.c.l.b16 %v7690
        %v7819 = vunpack.c.l.b16 %v7691
        %v7820 = vunpack.c.l.b16 %v7692
        %v7821 = vunpack.c.l.b16 %v7693
        %v7822 = vunpack.c.l.b16 %v7694
        %v7823 = vunpack.c.l.b16 %v7695
        %v7824 = vunpack.c.l.b16 %v7696
        %v7825 = vunpack.c.l.b16 %v7697
        %v7826 = vunpack.c.l.b16 %v7698
        %v7827 = vunpack.c.l.b16 %v7699
        %v7828 = vunpack.c.l.b16 %v7700
        %v7829 = vunpack.c.l.b16 %v7701
        %v7830 = vunpack.c.l.b16 %v7702
        %v7831 = vpack.c.b16 %v7800, %v7799
        %v7832 = vpack.c.b16 %v7802, %v7801
        %v7833 = vpack.c.b16 %v7804, %v7803
        %v7834 = vpack.c.b16 %v7806, %v7805
        %v7835 = vpack.c.b16 %v7808, %v7807
        %v7836 = vpack.c.b16 %v7810, %v7809
        %v7837 = vpack.c.b16 %v7812, %v7811
        %v7838 = vpack.c.b16 %v7814, %v7813
        %v7839 = vpack.c.b16 %v7816, %v7815
        %v7840 = vpack.c.b16 %v7818, %v7817
        %v7841 = vpack.c.b16 %v7820, %v7819
        %v7842 = vpack.c.b16 %v7822, %v7821
        %v7843 = vpack.c.b16 %v7824, %v7823
        %v7844 = vpack.c.b16 %v7826, %v7825
        %v7845 = vpack.c.b16 %v7828, %v7827
        %v7846 = vpack.c.b16 %v7830, %v7829
        %7847 = vrot.lane.b32.xlu0 %v7831, 32
        %v7848 = vpop.permute.xlu0 %7847
        %7849 = vrot.lane.b32.xlu0 %v7832, 32
        %v7850 = vpop.permute.xlu0 %7849
        %7851 = vrot.lane.b32.xlu0 %v7833, 32
        %v7852 = vpop.permute.xlu0 %7851
        %7853 = vrot.lane.b32.xlu0 %v7834, 32
        %v7854 = vpop.permute.xlu0 %7853
        %7855 = vrot.lane.b32.xlu0 %v7835, 32
        %v7856 = vpop.permute.xlu0 %7855
        %7857 = vrot.lane.b32.xlu0 %v7836, 32
        %v7858 = vpop.permute.xlu0 %7857
        %7859 = vrot.lane.b32.xlu0 %v7837, 32
        %v7860 = vpop.permute.xlu0 %7859
        %7861 = vrot.lane.b32.xlu0 %v7838, 32
        %v7862 = vpop.permute.xlu0 %7861
        %7863 = vrot.lane.b32.xlu0 %v7839, 32
        %v7864 = vpop.permute.xlu0 %7863
        %7865 = vrot.lane.b32.xlu0 %v7840, 32
        %v7866 = vpop.permute.xlu0 %7865
        %7867 = vrot.lane.b32.xlu0 %v7841, 32
        %v7868 = vpop.permute.xlu0 %7867
        %7869 = vrot.lane.b32.xlu0 %v7842, 32
        %v7870 = vpop.permute.xlu0 %7869
        %7871 = vrot.lane.b32.xlu0 %v7843, 32
        %v7872 = vpop.permute.xlu0 %7871
        %7873 = vrot.lane.b32.xlu0 %v7844, 32
        %v7874 = vpop.permute.xlu0 %7873
        %7875 = vrot.lane.b32.xlu0 %v7845, 32
        %v7876 = vpop.permute.xlu0 %7875
        %7877 = vrot.lane.b32.xlu0 %v7846, 32
        %v7878 = vpop.permute.xlu0 %7877
        %v7911 = vunpack.c.l.b16 %v7703
        %v7912 = vunpack.c.l.b16 %v7704
        %v7913 = vunpack.c.l.b16 %v7705
        %v7914 = vunpack.c.l.b16 %v7706
        %v7915 = vunpack.c.l.b16 %v7707
        %v7916 = vunpack.c.l.b16 %v7708
        %v7917 = vunpack.c.l.b16 %v7709
        %v7918 = vunpack.c.l.b16 %v7710
        %v7919 = vunpack.c.l.b16 %v7711
        %v7920 = vunpack.c.l.b16 %v7712
        %v7921 = vunpack.c.l.b16 %v7713
        %v7922 = vunpack.c.l.b16 %v7714
        %v7923 = vunpack.c.l.b16 %v7715
        %v7924 = vunpack.c.l.b16 %v7716
        %v7925 = vunpack.c.l.b16 %v7717
        %v7926 = vunpack.c.l.b16 %v7718
        %v7927 = vunpack.c.l.b16 %v7719
        %v7928 = vunpack.c.l.b16 %v7720
        %v7929 = vunpack.c.l.b16 %v7721
        %v7930 = vunpack.c.l.b16 %v7722
        %v7931 = vunpack.c.l.b16 %v7723
        %v7932 = vunpack.c.l.b16 %v7724
        %v7933 = vunpack.c.l.b16 %v7725
        %v7934 = vunpack.c.l.b16 %v7726
        %v7935 = vunpack.c.l.b16 %v7727
        %v7936 = vunpack.c.l.b16 %v7728
        %v7937 = vunpack.c.l.b16 %v7729
        %v7938 = vunpack.c.l.b16 %v7730
        %v7939 = vunpack.c.l.b16 %v7731
        %v7940 = vunpack.c.l.b16 %v7732
        %v7941 = vunpack.c.l.b16 %v7733
        %v7942 = vunpack.c.l.b16 %v7734
        %v7943 = vpack.c.b16 %v7912, %v7911
        %v7944 = vpack.c.b16 %v7914, %v7913
        %v7945 = vpack.c.b16 %v7916, %v7915
        %v7946 = vpack.c.b16 %v7918, %v7917
        %v7947 = vpack.c.b16 %v7920, %v7919
        %v7948 = vpack.c.b16 %v7922, %v7921
        %v7949 = vpack.c.b16 %v7924, %v7923
        %v7950 = vpack.c.b16 %v7926, %v7925
        %v7951 = vpack.c.b16 %v7928, %v7927
        %v7952 = vpack.c.b16 %v7930, %v7929
        %v7953 = vpack.c.b16 %v7932, %v7931
        %v7954 = vpack.c.b16 %v7934, %v7933
        %v7955 = vpack.c.b16 %v7936, %v7935
        %v7956 = vpack.c.b16 %v7938, %v7937
        %v7957 = vpack.c.b16 %v7940, %v7939
        %v7958 = vpack.c.b16 %v7942, %v7941
        %7959 = vrot.lane.b32.xlu0 %v7943, 32
        %v7960 = vpop.permute.xlu0 %7959
        %7961 = vrot.lane.b32.xlu0 %v7944, 32
        %v7962 = vpop.permute.xlu0 %7961
        %7963 = vrot.lane.b32.xlu0 %v7945, 32
        %v7964 = vpop.permute.xlu0 %7963
        %7965 = vrot.lane.b32.xlu0 %v7946, 32
        %v7966 = vpop.permute.xlu0 %7965
        %7967 = vrot.lane.b32.xlu0 %v7947, 32
        %v7968 = vpop.permute.xlu0 %7967
        %7969 = vrot.lane.b32.xlu0 %v7948, 32
        %v7970 = vpop.permute.xlu0 %7969
        %7971 = vrot.lane.b32.xlu0 %v7949, 32
        %v7972 = vpop.permute.xlu0 %7971
        %7973 = vrot.lane.b32.xlu0 %v7950, 32
        %v7974 = vpop.permute.xlu0 %7973
        %7975 = vrot.lane.b32.xlu0 %v7951, 32
        %v7976 = vpop.permute.xlu0 %7975
        %7977 = vrot.lane.b32.xlu0 %v7952, 32
        %v7978 = vpop.permute.xlu0 %7977
        %7979 = vrot.lane.b32.xlu0 %v7953, 32
        %v7980 = vpop.permute.xlu0 %7979
        %7981 = vrot.lane.b32.xlu0 %v7954, 32
        %v7982 = vpop.permute.xlu0 %7981
        %7983 = vrot.lane.b32.xlu0 %v7955, 32
        %v7984 = vpop.permute.xlu0 %7983
        %7985 = vrot.lane.b32.xlu0 %v7956, 32
        %v7986 = vpop.permute.xlu0 %7985
        %7987 = vrot.lane.b32.xlu0 %v7957, 32
        %v7988 = vpop.permute.xlu0 %7987
        %7989 = vrot.lane.b32.xlu0 %v7958, 32
        %v7990 = vpop.permute.xlu0 %7989
        %v7992 = vsel %vm1129, %v7848, 0
        %v7995 = vsel %vm1129, %v7850, 0
        %v7998 = vsel %vm1129, %v7852, 0
        %v8001 = vsel %vm1129, %v7854, 0
        %v8004 = vsel %vm1129, %v7856, 0
        %v8007 = vsel %vm1129, %v7858, 0
        %v8010 = vsel %vm1129, %v7860, 0
        %v8013 = vsel %vm1129, %v7862, 0
        %v8016 = vsel %vm1129, %v7864, 0
        %v8019 = vsel %vm1129, %v7866, 0
        %v8022 = vsel %vm1129, %v7868, 0
        %v8025 = vsel %vm1129, %v7870, 0
        %v8028 = vsel %vm1129, %v7872, 0
        %v8031 = vsel %vm1129, %v7874, 0
        %v8034 = vsel %vm1129, %v7876, 0
        %v8037 = vsel %vm1129, %v7878, 0
        %v8040 = vsel %vm1129, %v7960, 0
        %v8043 = vsel %vm1129, %v7962, 0
        %v8046 = vsel %vm1129, %v7964, 0
        %v8049 = vsel %vm1129, %v7966, 0
        %v8052 = vsel %vm1129, %v7968, 0
        %v8055 = vsel %vm1129, %v7970, 0
        %v8058 = vsel %vm1129, %v7972, 0
        %v8061 = vsel %vm1129, %v7974, 0
        %v8064 = vsel %vm1129, %v7976, 0
        %v8067 = vsel %vm1129, %v7978, 0
        %v8070 = vsel %vm1129, %v7980, 0
        %v8073 = vsel %vm1129, %v7982, 0
        %v8076 = vsel %vm1129, %v7984, 0
        %v8079 = vsel %vm1129, %v7986, 0
        %v8082 = vsel %vm1129, %v7988, 0
        %v8085 = vsel %vm1129, %v7990, 0
        %8087 = vmatpush.bf16.xpose.msra.mxu0 %v8061
        %8088 = vmatpush.bf16.xpose.msra.mxu0 %v8058
        %8089 = vmatpush.bf16.xpose.msra.mxu0 %v8055
        %8090 = vmatpush.bf16.xpose.msra.mxu0 %v8052
        %8091 = vmatpush.bf16.xpose.msra.mxu0 %v8049
        %8092 = vmatpush.bf16.xpose.msra.mxu0 %v8046
        %8093 = vmatpush.bf16.xpose.msra.mxu0 %v8043
        %8094 = vmatpush.bf16.xpose.msra.mxu0 %v8040
        %8095 = vmatmul.bf16.gmra.mxu0 %v7992
        %v8096 = vpop.f32.mrf.mxu0
        %v8097 = vadd.f32 0.0, %v8096
        %v8098 = vpop.f32.mrf.mxu0
        %v8099 = vadd.f32 0.0, %v8098
        %8100 = vmatmul.bf16.gmra.mxu0 %v7995
        %v8101 = vpop.f32.mrf.mxu0
        %v8102 = vadd.f32 0.0, %v8101
        %v8103 = vpop.f32.mrf.mxu0
        %v8104 = vadd.f32 0.0, %v8103
        %8105 = vmatmul.bf16.gmra.mxu0 %v7998
        %v8106 = vpop.f32.mrf.mxu0
        %v8107 = vadd.f32 0.0, %v8106
        %v8108 = vpop.f32.mrf.mxu0
        %v8109 = vadd.f32 0.0, %v8108
        %8110 = vmatmul.bf16.gmra.mxu0 %v8001
        %v8111 = vpop.f32.mrf.mxu0
        %v8112 = vadd.f32 0.0, %v8111
        %v8113 = vpop.f32.mrf.mxu0
        %v8114 = vadd.f32 0.0, %v8113
        %8115 = vmatmul.bf16.gmra.mxu0 %v8004
        %v8116 = vpop.f32.mrf.mxu0
        %v8117 = vadd.f32 0.0, %v8116
        %v8118 = vpop.f32.mrf.mxu0
        %v8119 = vadd.f32 0.0, %v8118
        %8120 = vmatmul.bf16.gmra.mxu0 %v8007
        %v8121 = vpop.f32.mrf.mxu0
        %v8122 = vadd.f32 0.0, %v8121
        %v8123 = vpop.f32.mrf.mxu0
        %v8124 = vadd.f32 0.0, %v8123
        %8125 = vmatmul.bf16.gmra.mxu0 %v8010
        %v8126 = vpop.f32.mrf.mxu0
        %v8127 = vadd.f32 0.0, %v8126
        %v8128 = vpop.f32.mrf.mxu0
        %v8129 = vadd.f32 0.0, %v8128
        %8130 = vmatmul.bf16.gmra.mxu0 %v8013
        %v8131 = vpop.f32.mrf.mxu0
        %v8132 = vadd.f32 0.0, %v8131
        %v8133 = vpop.f32.mrf.mxu0
        %v8134 = vadd.f32 0.0, %v8133
        %8135 = vmatmul.bf16.gmra.mxu0 %v8016
        %v8136 = vpop.f32.mrf.mxu0
        %v8137 = vadd.f32 0.0, %v8136
        %v8138 = vpop.f32.mrf.mxu0
        %v8139 = vadd.f32 0.0, %v8138
        %8140 = vmatmul.bf16.gmra.mxu0 %v8019
        %v8141 = vpop.f32.mrf.mxu0
        %v8142 = vadd.f32 0.0, %v8141
        %v8143 = vpop.f32.mrf.mxu0
        %v8144 = vadd.f32 0.0, %v8143
        %8145 = vmatmul.bf16.gmra.mxu0 %v8022
        %v8146 = vpop.f32.mrf.mxu0
        %v8147 = vadd.f32 0.0, %v8146
        %v8148 = vpop.f32.mrf.mxu0
        %v8149 = vadd.f32 0.0, %v8148
        %8150 = vmatmul.bf16.gmra.mxu0 %v8025
        %v8151 = vpop.f32.mrf.mxu0
        %v8152 = vadd.f32 0.0, %v8151
        %v8153 = vpop.f32.mrf.mxu0
        %v8154 = vadd.f32 0.0, %v8153
        %8155 = vmatmul.bf16.gmra.mxu0 %v8028
        %v8156 = vpop.f32.mrf.mxu0
        %v8157 = vadd.f32 0.0, %v8156
        %v8158 = vpop.f32.mrf.mxu0
        %v8159 = vadd.f32 0.0, %v8158
        %8160 = vmatmul.bf16.gmra.mxu0 %v8031
        %v8161 = vpop.f32.mrf.mxu0
        %v8162 = vadd.f32 0.0, %v8161
        %v8163 = vpop.f32.mrf.mxu0
        %v8164 = vadd.f32 0.0, %v8163
        %8165 = vmatmul.bf16.gmra.mxu0 %v8034
        %v8166 = vpop.f32.mrf.mxu0
        %v8167 = vadd.f32 0.0, %v8166
        %v8168 = vpop.f32.mrf.mxu0
        %v8169 = vadd.f32 0.0, %v8168
        %8170 = vmatmul.bf16.gmra.mxu0 %v8037
        %v8171 = vpop.f32.mrf.mxu0
        %v8172 = vadd.f32 0.0, %v8171
        %v8173 = vpop.f32.mrf.mxu0
        %v8174 = vadd.f32 0.0, %v8173
        %8175 = vdwg.mxu0
        %8176 = vmatpush.bf16.xpose.msra.mxu0 %v8085
        %8177 = vmatpush.bf16.xpose.msra.mxu0 %v8082
        %8178 = vmatpush.bf16.xpose.msra.mxu0 %v8079
        %8179 = vmatpush.bf16.xpose.msra.mxu0 %v8076
        %8180 = vmatpush.bf16.xpose.msra.mxu0 %v8073
        %8181 = vmatpush.bf16.xpose.msra.mxu0 %v8070
        %8182 = vmatpush.bf16.xpose.msra.mxu0 %v8067
        %8183 = vmatpush.bf16.xpose.msra.mxu0 %v8064
        %8184 = vmatmul.bf16.gmra.mxu0 %v7992
        %v8185 = vpop.f32.mrf.mxu0
        %v8186 = vadd.f32 0.0, %v8185
        %v8187 = vpop.f32.mrf.mxu0
        %v8188 = vadd.f32 0.0, %v8187
        %8189 = vmatmul.bf16.gmra.mxu0 %v7995
        %v8190 = vpop.f32.mrf.mxu0
        %v8191 = vadd.f32 0.0, %v8190
        %v8192 = vpop.f32.mrf.mxu0
        %v8193 = vadd.f32 0.0, %v8192
        %8194 = vmatmul.bf16.gmra.mxu0 %v7998
        %v8195 = vpop.f32.mrf.mxu0
        %v8196 = vadd.f32 0.0, %v8195
        %v8197 = vpop.f32.mrf.mxu0
        %v8198 = vadd.f32 0.0, %v8197
        %8199 = vmatmul.bf16.gmra.mxu0 %v8001
        %v8200 = vpop.f32.mrf.mxu0
        %v8201 = vadd.f32 0.0, %v8200
        %v8202 = vpop.f32.mrf.mxu0
        %v8203 = vadd.f32 0.0, %v8202
        %8204 = vmatmul.bf16.gmra.mxu0 %v8004
        %v8205 = vpop.f32.mrf.mxu0
        %v8206 = vadd.f32 0.0, %v8205
        %v8207 = vpop.f32.mrf.mxu0
        %v8208 = vadd.f32 0.0, %v8207
        %8209 = vmatmul.bf16.gmra.mxu0 %v8007
        %v8210 = vpop.f32.mrf.mxu0
        %v8211 = vadd.f32 0.0, %v8210
        %v8212 = vpop.f32.mrf.mxu0
        %v8213 = vadd.f32 0.0, %v8212
        %8214 = vmatmul.bf16.gmra.mxu0 %v8010
        %v8215 = vpop.f32.mrf.mxu0
        %v8216 = vadd.f32 0.0, %v8215
        %v8217 = vpop.f32.mrf.mxu0
        %v8218 = vadd.f32 0.0, %v8217
        %8219 = vmatmul.bf16.gmra.mxu0 %v8013
        %v8220 = vpop.f32.mrf.mxu0
        %v8221 = vadd.f32 0.0, %v8220
        %v8222 = vpop.f32.mrf.mxu0
        %v8223 = vadd.f32 0.0, %v8222
        %8224 = vmatmul.bf16.gmra.mxu0 %v8016
        %v8225 = vpop.f32.mrf.mxu0
        %v8226 = vadd.f32 0.0, %v8225
        %v8227 = vpop.f32.mrf.mxu0
        %v8228 = vadd.f32 0.0, %v8227
        %8229 = vmatmul.bf16.gmra.mxu0 %v8019
        %v8230 = vpop.f32.mrf.mxu0
        %v8231 = vadd.f32 0.0, %v8230
        %v8232 = vpop.f32.mrf.mxu0
        %v8233 = vadd.f32 0.0, %v8232
        %8234 = vmatmul.bf16.gmra.mxu0 %v8022
        %v8235 = vpop.f32.mrf.mxu0
        %v8236 = vadd.f32 0.0, %v8235
        %v8237 = vpop.f32.mrf.mxu0
        %v8238 = vadd.f32 0.0, %v8237
        %8239 = vmatmul.bf16.gmra.mxu0 %v8025
        %v8240 = vpop.f32.mrf.mxu0
        %v8241 = vadd.f32 0.0, %v8240
        %v8242 = vpop.f32.mrf.mxu0
        %v8243 = vadd.f32 0.0, %v8242
        %8244 = vmatmul.bf16.gmra.mxu0 %v8028
        %v8245 = vpop.f32.mrf.mxu0
        %v8246 = vadd.f32 0.0, %v8245
        %v8247 = vpop.f32.mrf.mxu0
        %v8248 = vadd.f32 0.0, %v8247
        %8249 = vmatmul.bf16.gmra.mxu0 %v8031
        %v8250 = vpop.f32.mrf.mxu0
        %v8251 = vadd.f32 0.0, %v8250
        %v8252 = vpop.f32.mrf.mxu0
        %v8253 = vadd.f32 0.0, %v8252
        %8254 = vmatmul.bf16.gmra.mxu0 %v8034
        %v8255 = vpop.f32.mrf.mxu0
        %v8256 = vadd.f32 0.0, %v8255
        %v8257 = vpop.f32.mrf.mxu0
        %v8258 = vadd.f32 0.0, %v8257
        %8259 = vmatmul.bf16.gmra.mxu0 %v8037
        %v8260 = vpop.f32.mrf.mxu0
        %v8261 = vadd.f32 0.0, %v8260
        %v8262 = vpop.f32.mrf.mxu0
        %v8263 = vadd.f32 0.0, %v8262
        %8264 = vdwg.mxu0
        %v8265 = vmax.f32 %v8097, %v8186
        %8266 = vmax.xlane.f32.xlu0 %v8265
        %v8267 = vpop.xlane.xlu0 %8266
        %v8268 = vmax.f32 %v8099, %v8188
        %8269 = vmax.xlane.f32.xlu0 %v8268
        %v8270 = vpop.xlane.xlu0 %8269
        %v8271 = vmax.f32 %v8102, %v8191
        %8272 = vmax.xlane.f32.xlu0 %v8271
        %v8273 = vpop.xlane.xlu0 %8272
        %v8274 = vmax.f32 %v8104, %v8193
        %8275 = vmax.xlane.f32.xlu0 %v8274
        %v8276 = vpop.xlane.xlu0 %8275
        %v8277 = vmax.f32 %v8107, %v8196
        %8278 = vmax.xlane.f32.xlu0 %v8277
        %v8279 = vpop.xlane.xlu0 %8278
        %v8280 = vmax.f32 %v8109, %v8198
        %8281 = vmax.xlane.f32.xlu0 %v8280
        %v8282 = vpop.xlane.xlu0 %8281
        %v8283 = vmax.f32 %v8112, %v8201
        %8284 = vmax.xlane.f32.xlu0 %v8283
        %v8285 = vpop.xlane.xlu0 %8284
        %v8286 = vmax.f32 %v8114, %v8203
        %8287 = vmax.xlane.f32.xlu0 %v8286
        %v8288 = vpop.xlane.xlu0 %8287
        %v8289 = vmax.f32 %v8117, %v8206
        %8290 = vmax.xlane.f32.xlu0 %v8289
        %v8291 = vpop.xlane.xlu0 %8290
        %v8292 = vmax.f32 %v8119, %v8208
        %8293 = vmax.xlane.f32.xlu0 %v8292
        %v8294 = vpop.xlane.xlu0 %8293
        %v8295 = vmax.f32 %v8122, %v8211
        %8296 = vmax.xlane.f32.xlu0 %v8295
        %v8297 = vpop.xlane.xlu0 %8296
        %v8298 = vmax.f32 %v8124, %v8213
        %8299 = vmax.xlane.f32.xlu0 %v8298
        %v8300 = vpop.xlane.xlu0 %8299
        %v8301 = vmax.f32 %v8127, %v8216
        %8302 = vmax.xlane.f32.xlu0 %v8301
        %v8303 = vpop.xlane.xlu0 %8302
        %v8304 = vmax.f32 %v8129, %v8218
        %8305 = vmax.xlane.f32.xlu0 %v8304
        %v8306 = vpop.xlane.xlu0 %8305
        %v8307 = vmax.f32 %v8132, %v8221
        %8308 = vmax.xlane.f32.xlu0 %v8307
        %v8309 = vpop.xlane.xlu0 %8308
        %v8310 = vmax.f32 %v8134, %v8223
        %8311 = vmax.xlane.f32.xlu0 %v8310
        %v8312 = vpop.xlane.xlu0 %8311
        %v8313 = vmax.f32 %v8137, %v8226
        %8314 = vmax.xlane.f32.xlu0 %v8313
        %v8315 = vpop.xlane.xlu0 %8314
        %v8316 = vmax.f32 %v8139, %v8228
        %8317 = vmax.xlane.f32.xlu0 %v8316
        %v8318 = vpop.xlane.xlu0 %8317
        %v8319 = vmax.f32 %v8142, %v8231
        %8320 = vmax.xlane.f32.xlu0 %v8319
        %v8321 = vpop.xlane.xlu0 %8320
        %v8322 = vmax.f32 %v8144, %v8233
        %8323 = vmax.xlane.f32.xlu0 %v8322
        %v8324 = vpop.xlane.xlu0 %8323
        %v8325 = vmax.f32 %v8147, %v8236
        %8326 = vmax.xlane.f32.xlu0 %v8325
        %v8327 = vpop.xlane.xlu0 %8326
        %v8328 = vmax.f32 %v8149, %v8238
        %8329 = vmax.xlane.f32.xlu0 %v8328
        %v8330 = vpop.xlane.xlu0 %8329
        %v8331 = vmax.f32 %v8152, %v8241
        %8332 = vmax.xlane.f32.xlu0 %v8331
        %v8333 = vpop.xlane.xlu0 %8332
        %v8334 = vmax.f32 %v8154, %v8243
        %8335 = vmax.xlane.f32.xlu0 %v8334
        %v8336 = vpop.xlane.xlu0 %8335
        %v8337 = vmax.f32 %v8157, %v8246
        %8338 = vmax.xlane.f32.xlu0 %v8337
        %v8339 = vpop.xlane.xlu0 %8338
        %v8340 = vmax.f32 %v8159, %v8248
        %8341 = vmax.xlane.f32.xlu0 %v8340
        %v8342 = vpop.xlane.xlu0 %8341
        %v8343 = vmax.f32 %v8162, %v8251
        %8344 = vmax.xlane.f32.xlu0 %v8343
        %v8345 = vpop.xlane.xlu0 %8344
        %v8346 = vmax.f32 %v8164, %v8253
        %8347 = vmax.xlane.f32.xlu0 %v8346
        %v8348 = vpop.xlane.xlu0 %8347
        %v8349 = vmax.f32 %v8167, %v8256
        %8350 = vmax.xlane.f32.xlu0 %v8349
        %v8351 = vpop.xlane.xlu0 %8350
        %v8352 = vmax.f32 %v8169, %v8258
        %8353 = vmax.xlane.f32.xlu0 %v8352
        %v8354 = vpop.xlane.xlu0 %8353
        %v8355 = vmax.f32 %v8172, %v8261
        %8356 = vmax.xlane.f32.xlu0 %v8355
        %v8357 = vpop.xlane.xlu0 %8356
        %v8358 = vmax.f32 %v8174, %v8263
        %8359 = vmax.xlane.f32.xlu0 %v8358
        %v8360 = vpop.xlane.xlu0 %8359
        %v8361 = vsub.f32 %v8097, %v8267
        %v8362 = vsub.f32 %v8186, %v8267
        %v8363 = vsub.f32 %v8099, %v8270
        %v8364 = vsub.f32 %v8188, %v8270
        %v8365 = vsub.f32 %v8102, %v8273
        %v8366 = vsub.f32 %v8191, %v8273
        %v8367 = vsub.f32 %v8104, %v8276
        %v8368 = vsub.f32 %v8193, %v8276
        %v8369 = vsub.f32 %v8107, %v8279
        %v8370 = vsub.f32 %v8196, %v8279
        %v8371 = vsub.f32 %v8109, %v8282
        %v8372 = vsub.f32 %v8198, %v8282
        %v8373 = vsub.f32 %v8112, %v8285
        %v8374 = vsub.f32 %v8201, %v8285
        %v8375 = vsub.f32 %v8114, %v8288
        %v8376 = vsub.f32 %v8203, %v8288
        %v8377 = vsub.f32 %v8117, %v8291
        %v8378 = vsub.f32 %v8206, %v8291
        %v8379 = vsub.f32 %v8119, %v8294
        %v8380 = vsub.f32 %v8208, %v8294
        %v8381 = vsub.f32 %v8122, %v8297
        %v8382 = vsub.f32 %v8211, %v8297
        %v8383 = vsub.f32 %v8124, %v8300
        %v8384 = vsub.f32 %v8213, %v8300
        %v8385 = vsub.f32 %v8127, %v8303
        %v8386 = vsub.f32 %v8216, %v8303
        %v8387 = vsub.f32 %v8129, %v8306
        %v8388 = vsub.f32 %v8218, %v8306
        %v8389 = vsub.f32 %v8132, %v8309
        %v8390 = vsub.f32 %v8221, %v8309
        %v8391 = vsub.f32 %v8134, %v8312
        %v8392 = vsub.f32 %v8223, %v8312
        %v8393 = vsub.f32 %v8137, %v8315
        %v8394 = vsub.f32 %v8226, %v8315
        %v8395 = vsub.f32 %v8139, %v8318
        %v8396 = vsub.f32 %v8228, %v8318
        %v8397 = vsub.f32 %v8142, %v8321
        %v8398 = vsub.f32 %v8231, %v8321
        %v8399 = vsub.f32 %v8144, %v8324
        %v8400 = vsub.f32 %v8233, %v8324
        %v8401 = vsub.f32 %v8147, %v8327
        %v8402 = vsub.f32 %v8236, %v8327
        %v8403 = vsub.f32 %v8149, %v8330
        %v8404 = vsub.f32 %v8238, %v8330
        %v8405 = vsub.f32 %v8152, %v8333
        %v8406 = vsub.f32 %v8241, %v8333
        %v8407 = vsub.f32 %v8154, %v8336
        %v8408 = vsub.f32 %v8243, %v8336
        %v8409 = vsub.f32 %v8157, %v8339
        %v8410 = vsub.f32 %v8246, %v8339
        %v8411 = vsub.f32 %v8159, %v8342
        %v8412 = vsub.f32 %v8248, %v8342
        %v8413 = vsub.f32 %v8162, %v8345
        %v8414 = vsub.f32 %v8251, %v8345
        %v8415 = vsub.f32 %v8164, %v8348
        %v8416 = vsub.f32 %v8253, %v8348
        %v8417 = vsub.f32 %v8167, %v8351
        %v8418 = vsub.f32 %v8256, %v8351
        %v8419 = vsub.f32 %v8169, %v8354
        %v8420 = vsub.f32 %v8258, %v8354
        %v8421 = vsub.f32 %v8172, %v8357
        %v8422 = vsub.f32 %v8261, %v8357
        %v8423 = vsub.f32 %v8174, %v8360
        %v8424 = vsub.f32 %v8263, %v8360
        %v8425 = vmul.f32 %v8361, 1.442695
        %v8426 = vpow.pop %v8425
        %v8427 = vmul.f32 %v8362, 1.442695
        %v8428 = vpow.pop %v8427
        %v8429 = vmul.f32 %v8363, 1.442695
        %v8430 = vpow.pop %v8429
        %v8431 = vmul.f32 %v8364, 1.442695
        %v8432 = vpow.pop %v8431
        %v8433 = vmul.f32 %v8365, 1.442695
        %v8434 = vpow.pop %v8433
        %v8435 = vmul.f32 %v8366, 1.442695
        %v8436 = vpow.pop %v8435
        %v8437 = vmul.f32 %v8367, 1.442695
        %v8438 = vpow.pop %v8437
        %v8439 = vmul.f32 %v8368, 1.442695
        %v8440 = vpow.pop %v8439
        %v8441 = vmul.f32 %v8369, 1.442695
        %v8442 = vpow.pop %v8441
        %v8443 = vmul.f32 %v8370, 1.442695
        %v8444 = vpow.pop %v8443
        %v8445 = vmul.f32 %v8371, 1.442695
        %v8446 = vpow.pop %v8445
        %v8447 = vmul.f32 %v8372, 1.442695
        %v8448 = vpow.pop %v8447
        %v8449 = vmul.f32 %v8373, 1.442695
        %v8450 = vpow.pop %v8449
        %v8451 = vmul.f32 %v8374, 1.442695
        %v8452 = vpow.pop %v8451
        %v8453 = vmul.f32 %v8375, 1.442695
        %v8454 = vpow.pop %v8453
        %v8455 = vmul.f32 %v8376, 1.442695
        %v8456 = vpow.pop %v8455
        %v8457 = vmul.f32 %v8377, 1.442695
        %v8458 = vpow.pop %v8457
        %v8459 = vmul.f32 %v8378, 1.442695
        %v8460 = vpow.pop %v8459
        %v8461 = vmul.f32 %v8379, 1.442695
        %v8462 = vpow.pop %v8461
        %v8463 = vmul.f32 %v8380, 1.442695
        %v8464 = vpow.pop %v8463
        %v8465 = vmul.f32 %v8381, 1.442695
        %v8466 = vpow.pop %v8465
        %v8467 = vmul.f32 %v8382, 1.442695
        %v8468 = vpow.pop %v8467
        %v8469 = vmul.f32 %v8383, 1.442695
        %v8470 = vpow.pop %v8469
        %v8471 = vmul.f32 %v8384, 1.442695
        %v8472 = vpow.pop %v8471
        %v8473 = vmul.f32 %v8385, 1.442695
        %v8474 = vpow.pop %v8473
        %v8475 = vmul.f32 %v8386, 1.442695
        %v8476 = vpow.pop %v8475
        %v8477 = vmul.f32 %v8387, 1.442695
        %v8478 = vpow.pop %v8477
        %v8479 = vmul.f32 %v8388, 1.442695
        %v8480 = vpow.pop %v8479
        %v8481 = vmul.f32 %v8389, 1.442695
        %v8482 = vpow.pop %v8481
        %v8483 = vmul.f32 %v8390, 1.442695
        %v8484 = vpow.pop %v8483
        %v8485 = vmul.f32 %v8391, 1.442695
        %v8486 = vpow.pop %v8485
        %v8487 = vmul.f32 %v8392, 1.442695
        %v8488 = vpow.pop %v8487
        %v8489 = vmul.f32 %v8393, 1.442695
        %v8490 = vpow.pop %v8489
        %v8491 = vmul.f32 %v8394, 1.442695
        %v8492 = vpow.pop %v8491
        %v8493 = vmul.f32 %v8395, 1.442695
        %v8494 = vpow.pop %v8493
        %v8495 = vmul.f32 %v8396, 1.442695
        %v8496 = vpow.pop %v8495
        %v8497 = vmul.f32 %v8397, 1.442695
        %v8498 = vpow.pop %v8497
        %v8499 = vmul.f32 %v8398, 1.442695
        %v8500 = vpow.pop %v8499
        %v8501 = vmul.f32 %v8399, 1.442695
        %v8502 = vpow.pop %v8501
        %v8503 = vmul.f32 %v8400, 1.442695
        %v8504 = vpow.pop %v8503
        %v8505 = vmul.f32 %v8401, 1.442695
        %v8506 = vpow.pop %v8505
        %v8507 = vmul.f32 %v8402, 1.442695
        %v8508 = vpow.pop %v8507
        %v8509 = vmul.f32 %v8403, 1.442695
        %v8510 = vpow.pop %v8509
        %v8511 = vmul.f32 %v8404, 1.442695
        %v8512 = vpow.pop %v8511
        %v8513 = vmul.f32 %v8405, 1.442695
        %v8514 = vpow.pop %v8513
        %v8515 = vmul.f32 %v8406, 1.442695
        %v8516 = vpow.pop %v8515
        %v8517 = vmul.f32 %v8407, 1.442695
        %v8518 = vpow.pop %v8517
        %v8519 = vmul.f32 %v8408, 1.442695
        %v8520 = vpow.pop %v8519
        %v8521 = vmul.f32 %v8409, 1.442695
        %v8522 = vpow.pop %v8521
        %v8523 = vmul.f32 %v8410, 1.442695
        %v8524 = vpow.pop %v8523
        %v8525 = vmul.f32 %v8411, 1.442695
        %v8526 = vpow.pop %v8525
        %v8527 = vmul.f32 %v8412, 1.442695
        %v8528 = vpow.pop %v8527
        %v8529 = vmul.f32 %v8413, 1.442695
        %v8530 = vpow.pop %v8529
        %v8531 = vmul.f32 %v8414, 1.442695
        %v8532 = vpow.pop %v8531
        %v8533 = vmul.f32 %v8415, 1.442695
        %v8534 = vpow.pop %v8533
        %v8535 = vmul.f32 %v8416, 1.442695
        %v8536 = vpow.pop %v8535
        %v8537 = vmul.f32 %v8417, 1.442695
        %v8538 = vpow.pop %v8537
        %v8539 = vmul.f32 %v8418, 1.442695
        %v8540 = vpow.pop %v8539
        %v8541 = vmul.f32 %v8419, 1.442695
        %v8542 = vpow.pop %v8541
        %v8543 = vmul.f32 %v8420, 1.442695
        %v8544 = vpow.pop %v8543
        %v8545 = vmul.f32 %v8421, 1.442695
        %v8546 = vpow.pop %v8545
        %v8547 = vmul.f32 %v8422, 1.442695
        %v8548 = vpow.pop %v8547
        %v8549 = vmul.f32 %v8423, 1.442695
        %v8550 = vpow.pop %v8549
        %v8551 = vmul.f32 %v8424, 1.442695
        %v8552 = vpow.pop %v8551
        %v8553 = vadd.f32 %v8426, %v8428
        %8554 = vadd.xlane.f32.xlu0 %v8553
        %v8555 = vpop.xlane.xlu0 %8554
        %v8556 = vadd.f32 %v8430, %v8432
        %8557 = vadd.xlane.f32.xlu0 %v8556
        %v8558 = vpop.xlane.xlu0 %8557
        %v8559 = vadd.f32 %v8434, %v8436
        %8560 = vadd.xlane.f32.xlu0 %v8559
        %v8561 = vpop.xlane.xlu0 %8560
        %v8562 = vadd.f32 %v8438, %v8440
        %8563 = vadd.xlane.f32.xlu0 %v8562
        %v8564 = vpop.xlane.xlu0 %8563
        %v8565 = vadd.f32 %v8442, %v8444
        %8566 = vadd.xlane.f32.xlu0 %v8565
        %v8567 = vpop.xlane.xlu0 %8566
        %v8568 = vadd.f32 %v8446, %v8448
        %8569 = vadd.xlane.f32.xlu0 %v8568
        %v8570 = vpop.xlane.xlu0 %8569
        %v8571 = vadd.f32 %v8450, %v8452
        %8572 = vadd.xlane.f32.xlu0 %v8571
        %v8573 = vpop.xlane.xlu0 %8572
        %v8574 = vadd.f32 %v8454, %v8456
        %8575 = vadd.xlane.f32.xlu0 %v8574
        %v8576 = vpop.xlane.xlu0 %8575
        %v8577 = vadd.f32 %v8458, %v8460
        %8578 = vadd.xlane.f32.xlu0 %v8577
        %v8579 = vpop.xlane.xlu0 %8578
        %v8580 = vadd.f32 %v8462, %v8464
        %8581 = vadd.xlane.f32.xlu0 %v8580
        %v8582 = vpop.xlane.xlu0 %8581
        %v8583 = vadd.f32 %v8466, %v8468
        %8584 = vadd.xlane.f32.xlu0 %v8583
        %v8585 = vpop.xlane.xlu0 %8584
        %v8586 = vadd.f32 %v8470, %v8472
        %8587 = vadd.xlane.f32.xlu0 %v8586
        %v8588 = vpop.xlane.xlu0 %8587
        %v8589 = vadd.f32 %v8474, %v8476
        %8590 = vadd.xlane.f32.xlu0 %v8589
        %v8591 = vpop.xlane.xlu0 %8590
        %v8592 = vadd.f32 %v8478, %v8480
        %8593 = vadd.xlane.f32.xlu0 %v8592
        %v8594 = vpop.xlane.xlu0 %8593
        %v8595 = vadd.f32 %v8482, %v8484
        %8596 = vadd.xlane.f32.xlu0 %v8595
        %v8597 = vpop.xlane.xlu0 %8596
        %v8598 = vadd.f32 %v8486, %v8488
        %8599 = vadd.xlane.f32.xlu0 %v8598
        %v8600 = vpop.xlane.xlu0 %8599
        %v8601 = vadd.f32 %v8490, %v8492
        %8602 = vadd.xlane.f32.xlu0 %v8601
        %v8603 = vpop.xlane.xlu0 %8602
        %v8604 = vadd.f32 %v8494, %v8496
        %8605 = vadd.xlane.f32.xlu0 %v8604
        %v8606 = vpop.xlane.xlu0 %8605
        %v8607 = vadd.f32 %v8498, %v8500
        %8608 = vadd.xlane.f32.xlu0 %v8607
        %v8609 = vpop.xlane.xlu0 %8608
        %v8610 = vadd.f32 %v8502, %v8504
        %8611 = vadd.xlane.f32.xlu0 %v8610
        %v8612 = vpop.xlane.xlu0 %8611
        %v8613 = vadd.f32 %v8506, %v8508
        %8614 = vadd.xlane.f32.xlu0 %v8613
        %v8615 = vpop.xlane.xlu0 %8614
        %v8616 = vadd.f32 %v8510, %v8512
        %8617 = vadd.xlane.f32.xlu0 %v8616
        %v8618 = vpop.xlane.xlu0 %8617
        %v8619 = vadd.f32 %v8514, %v8516
        %8620 = vadd.xlane.f32.xlu0 %v8619
        %v8621 = vpop.xlane.xlu0 %8620
        %v8622 = vadd.f32 %v8518, %v8520
        %8623 = vadd.xlane.f32.xlu0 %v8622
        %v8624 = vpop.xlane.xlu0 %8623
        %v8625 = vadd.f32 %v8522, %v8524
        %8626 = vadd.xlane.f32.xlu0 %v8625
        %v8627 = vpop.xlane.xlu0 %8626
        %v8628 = vadd.f32 %v8526, %v8528
        %8629 = vadd.xlane.f32.xlu0 %v8628
        %v8630 = vpop.xlane.xlu0 %8629
        %v8631 = vadd.f32 %v8530, %v8532
        %8632 = vadd.xlane.f32.xlu0 %v8631
        %v8633 = vpop.xlane.xlu0 %8632
        %v8634 = vadd.f32 %v8534, %v8536
        %8635 = vadd.xlane.f32.xlu0 %v8634
        %v8636 = vpop.xlane.xlu0 %8635
        %v8637 = vadd.f32 %v8538, %v8540
        %8638 = vadd.xlane.f32.xlu0 %v8637
        %v8639 = vpop.xlane.xlu0 %8638
        %v8640 = vadd.f32 %v8542, %v8544
        %8641 = vadd.xlane.f32.xlu0 %v8640
        %v8642 = vpop.xlane.xlu0 %8641
        %v8643 = vadd.f32 %v8546, %v8548
        %8644 = vadd.xlane.f32.xlu0 %v8643
        %v8645 = vpop.xlane.xlu0 %8644
        %v8646 = vadd.f32 %v8550, %v8552
        %8647 = vadd.xlane.f32.xlu0 %v8646
        %v8648 = vpop.xlane.xlu0 %8647
        %v8649 = vrcp.pop %v8555
        %v8650 = vmul.f32 %v8555, %v8649
        %v8651 = vsub.f32 1.0, %v8650
        %v8652 = vmul.f32 %v8649, %v8651
        %v8653 = vadd.f32 %v8649, %v8652
        %vm8654 = vweird.f32 %v8555
        %vm8655 = vweird.f32 %v8649
        %vm8656 = vmor %vm8654, %vm8655
        %v8657 = vsel %vm8656, %v8649, %v8653
        %v8658 = vand.u32 2147483647, %v8555
        %vm8659 = vcmp.eq.f32.partialorder %v8658, 8.507059e+37
        %v8660 = vand.u32 %v8555, 2147483648
        %v8661 = vor.u32 1.1754944e-38, %v8660
        %v8662 = vsel %vm8659, %v8661, %v8657
        %v8663 = vmul.f32 1.0, %v8662
        %v8664 = vrcp.pop %v8558
        %v8665 = vmul.f32 %v8558, %v8664
        %v8666 = vsub.f32 1.0, %v8665
        %v8667 = vmul.f32 %v8664, %v8666
        %v8668 = vadd.f32 %v8664, %v8667
        %vm8669 = vweird.f32 %v8558
        %vm8670 = vweird.f32 %v8664
        %vm8671 = vmor %vm8669, %vm8670
        %v8672 = vsel %vm8671, %v8664, %v8668
        %v8673 = vand.u32 2147483647, %v8558
        %vm8674 = vcmp.eq.f32.partialorder %v8673, 8.507059e+37
        %v8675 = vand.u32 %v8558, 2147483648
        %v8676 = vor.u32 1.1754944e-38, %v8675
        %v8677 = vsel %vm8674, %v8676, %v8672
        %v8678 = vmul.f32 1.0, %v8677
        %v8679 = vrcp.pop %v8561
        %v8680 = vmul.f32 %v8561, %v8679
        %v8681 = vsub.f32 1.0, %v8680
        %v8682 = vmul.f32 %v8679, %v8681
        %v8683 = vadd.f32 %v8679, %v8682
        %vm8684 = vweird.f32 %v8561
        %vm8685 = vweird.f32 %v8679
        %vm8686 = vmor %vm8684, %vm8685
        %v8687 = vsel %vm8686, %v8679, %v8683
        %v8688 = vand.u32 2147483647, %v8561
        %vm8689 = vcmp.eq.f32.partialorder %v8688, 8.507059e+37
        %v8690 = vand.u32 %v8561, 2147483648
        %v8691 = vor.u32 1.1754944e-38, %v8690
        %v8692 = vsel %vm8689, %v8691, %v8687
        %v8693 = vmul.f32 1.0, %v8692
        %v8694 = vrcp.pop %v8564
        %v8695 = vmul.f32 %v8564, %v8694
        %v8696 = vsub.f32 1.0, %v8695
        %v8697 = vmul.f32 %v8694, %v8696
        %v8698 = vadd.f32 %v8694, %v8697
        %vm8699 = vweird.f32 %v8564
        %vm8700 = vweird.f32 %v8694
        %vm8701 = vmor %vm8699, %vm8700
        %v8702 = vsel %vm8701, %v8694, %v8698
        %v8703 = vand.u32 2147483647, %v8564
        %vm8704 = vcmp.eq.f32.partialorder %v8703, 8.507059e+37
        %v8705 = vand.u32 %v8564, 2147483648
        %v8706 = vor.u32 1.1754944e-38, %v8705
        %v8707 = vsel %vm8704, %v8706, %v8702
        %v8708 = vmul.f32 1.0, %v8707
        %v8709 = vrcp.pop %v8567
        %v8710 = vmul.f32 %v8567, %v8709
        %v8711 = vsub.f32 1.0, %v8710
        %v8712 = vmul.f32 %v8709, %v8711
        %v8713 = vadd.f32 %v8709, %v8712
        %vm8714 = vweird.f32 %v8567
        %vm8715 = vweird.f32 %v8709
        %vm8716 = vmor %vm8714, %vm8715
        %v8717 = vsel %vm8716, %v8709, %v8713
        %v8718 = vand.u32 2147483647, %v8567
        %vm8719 = vcmp.eq.f32.partialorder %v8718, 8.507059e+37
        %v8720 = vand.u32 %v8567, 2147483648
        %v8721 = vor.u32 1.1754944e-38, %v8720
        %v8722 = vsel %vm8719, %v8721, %v8717
        %v8723 = vmul.f32 1.0, %v8722
        %v8724 = vrcp.pop %v8570
        %v8725 = vmul.f32 %v8570, %v8724
        %v8726 = vsub.f32 1.0, %v8725
        %v8727 = vmul.f32 %v8724, %v8726
        %v8728 = vadd.f32 %v8724, %v8727
        %vm8729 = vweird.f32 %v8570
        %vm8730 = vweird.f32 %v8724
        %vm8731 = vmor %vm8729, %vm8730
        %v8732 = vsel %vm8731, %v8724, %v8728
        %v8733 = vand.u32 2147483647, %v8570
        %vm8734 = vcmp.eq.f32.partialorder %v8733, 8.507059e+37
        %v8735 = vand.u32 %v8570, 2147483648
        %v8736 = vor.u32 1.1754944e-38, %v8735
        %v8737 = vsel %vm8734, %v8736, %v8732
        %v8738 = vmul.f32 1.0, %v8737
        %v8739 = vrcp.pop %v8573
        %v8740 = vmul.f32 %v8573, %v8739
        %v8741 = vsub.f32 1.0, %v8740
        %v8742 = vmul.f32 %v8739, %v8741
        %v8743 = vadd.f32 %v8739, %v8742
        %vm8744 = vweird.f32 %v8573
        %vm8745 = vweird.f32 %v8739
        %vm8746 = vmor %vm8744, %vm8745
        %v8747 = vsel %vm8746, %v8739, %v8743
        %v8748 = vand.u32 2147483647, %v8573
        %vm8749 = vcmp.eq.f32.partialorder %v8748, 8.507059e+37
        %v8750 = vand.u32 %v8573, 2147483648
        %v8751 = vor.u32 1.1754944e-38, %v8750
        %v8752 = vsel %vm8749, %v8751, %v8747
        %v8753 = vmul.f32 1.0, %v8752
        %v8754 = vrcp.pop %v8576
        %v8755 = vmul.f32 %v8576, %v8754
        %v8756 = vsub.f32 1.0, %v8755
        %v8757 = vmul.f32 %v8754, %v8756
        %v8758 = vadd.f32 %v8754, %v8757
        %vm8759 = vweird.f32 %v8576
        %vm8760 = vweird.f32 %v8754
        %vm8761 = vmor %vm8759, %vm8760
        %v8762 = vsel %vm8761, %v8754, %v8758
        %v8763 = vand.u32 2147483647, %v8576
        %vm8764 = vcmp.eq.f32.partialorder %v8763, 8.507059e+37
        %v8765 = vand.u32 %v8576, 2147483648
        %v8766 = vor.u32 1.1754944e-38, %v8765
        %v8767 = vsel %vm8764, %v8766, %v8762
        %v8768 = vmul.f32 1.0, %v8767
        %v8769 = vrcp.pop %v8579
        %v8770 = vmul.f32 %v8579, %v8769
        %v8771 = vsub.f32 1.0, %v8770
        %v8772 = vmul.f32 %v8769, %v8771
        %v8773 = vadd.f32 %v8769, %v8772
        %vm8774 = vweird.f32 %v8579
        %vm8775 = vweird.f32 %v8769
        %vm8776 = vmor %vm8774, %vm8775
        %v8777 = vsel %vm8776, %v8769, %v8773
        %v8778 = vand.u32 2147483647, %v8579
        %vm8779 = vcmp.eq.f32.partialorder %v8778, 8.507059e+37
        %v8780 = vand.u32 %v8579, 2147483648
        %v8781 = vor.u32 1.1754944e-38, %v8780
        %v8782 = vsel %vm8779, %v8781, %v8777
        %v8783 = vmul.f32 1.0, %v8782
        %v8784 = vrcp.pop %v8582
        %v8785 = vmul.f32 %v8582, %v8784
        %v8786 = vsub.f32 1.0, %v8785
        %v8787 = vmul.f32 %v8784, %v8786
        %v8788 = vadd.f32 %v8784, %v8787
        %vm8789 = vweird.f32 %v8582
        %vm8790 = vweird.f32 %v8784
        %vm8791 = vmor %vm8789, %vm8790
        %v8792 = vsel %vm8791, %v8784, %v8788
        %v8793 = vand.u32 2147483647, %v8582
        %vm8794 = vcmp.eq.f32.partialorder %v8793, 8.507059e+37
        %v8795 = vand.u32 %v8582, 2147483648
        %v8796 = vor.u32 1.1754944e-38, %v8795
        %v8797 = vsel %vm8794, %v8796, %v8792
        %v8798 = vmul.f32 1.0, %v8797
        %v8799 = vrcp.pop %v8585
        %v8800 = vmul.f32 %v8585, %v8799
        %v8801 = vsub.f32 1.0, %v8800
        %v8802 = vmul.f32 %v8799, %v8801
        %v8803 = vadd.f32 %v8799, %v8802
        %vm8804 = vweird.f32 %v8585
        %vm8805 = vweird.f32 %v8799
        %vm8806 = vmor %vm8804, %vm8805
        %v8807 = vsel %vm8806, %v8799, %v8803
        %v8808 = vand.u32 2147483647, %v8585
        %vm8809 = vcmp.eq.f32.partialorder %v8808, 8.507059e+37
        %v8810 = vand.u32 %v8585, 2147483648
        %v8811 = vor.u32 1.1754944e-38, %v8810
        %v8812 = vsel %vm8809, %v8811, %v8807
        %v8813 = vmul.f32 1.0, %v8812
        %v8814 = vrcp.pop %v8588
        %v8815 = vmul.f32 %v8588, %v8814
        %v8816 = vsub.f32 1.0, %v8815
        %v8817 = vmul.f32 %v8814, %v8816
        %v8818 = vadd.f32 %v8814, %v8817
        %vm8819 = vweird.f32 %v8588
        %vm8820 = vweird.f32 %v8814
        %vm8821 = vmor %vm8819, %vm8820
        %v8822 = vsel %vm8821, %v8814, %v8818
        %v8823 = vand.u32 2147483647, %v8588
        %vm8824 = vcmp.eq.f32.partialorder %v8823, 8.507059e+37
        %v8825 = vand.u32 %v8588, 2147483648
        %v8826 = vor.u32 1.1754944e-38, %v8825
        %v8827 = vsel %vm8824, %v8826, %v8822
        %v8828 = vmul.f32 1.0, %v8827
        %v8829 = vrcp.pop %v8591
        %v8830 = vmul.f32 %v8591, %v8829
        %v8831 = vsub.f32 1.0, %v8830
        %v8832 = vmul.f32 %v8829, %v8831
        %v8833 = vadd.f32 %v8829, %v8832
        %vm8834 = vweird.f32 %v8591
        %vm8835 = vweird.f32 %v8829
        %vm8836 = vmor %vm8834, %vm8835
        %v8837 = vsel %vm8836, %v8829, %v8833
        %v8838 = vand.u32 2147483647, %v8591
        %vm8839 = vcmp.eq.f32.partialorder %v8838, 8.507059e+37
        %v8840 = vand.u32 %v8591, 2147483648
        %v8841 = vor.u32 1.1754944e-38, %v8840
        %v8842 = vsel %vm8839, %v8841, %v8837
        %v8843 = vmul.f32 1.0, %v8842
        %v8844 = vrcp.pop %v8594
        %v8845 = vmul.f32 %v8594, %v8844
        %v8846 = vsub.f32 1.0, %v8845
        %v8847 = vmul.f32 %v8844, %v8846
        %v8848 = vadd.f32 %v8844, %v8847
        %vm8849 = vweird.f32 %v8594
        %vm8850 = vweird.f32 %v8844
        %vm8851 = vmor %vm8849, %vm8850
        %v8852 = vsel %vm8851, %v8844, %v8848
        %v8853 = vand.u32 2147483647, %v8594
        %vm8854 = vcmp.eq.f32.partialorder %v8853, 8.507059e+37
        %v8855 = vand.u32 %v8594, 2147483648
        %v8856 = vor.u32 1.1754944e-38, %v8855
        %v8857 = vsel %vm8854, %v8856, %v8852
        %v8858 = vmul.f32 1.0, %v8857
        %v8859 = vrcp.pop %v8597
        %v8860 = vmul.f32 %v8597, %v8859
        %v8861 = vsub.f32 1.0, %v8860
        %v8862 = vmul.f32 %v8859, %v8861
        %v8863 = vadd.f32 %v8859, %v8862
        %vm8864 = vweird.f32 %v8597
        %vm8865 = vweird.f32 %v8859
        %vm8866 = vmor %vm8864, %vm8865
        %v8867 = vsel %vm8866, %v8859, %v8863
        %v8868 = vand.u32 2147483647, %v8597
        %vm8869 = vcmp.eq.f32.partialorder %v8868, 8.507059e+37
        %v8870 = vand.u32 %v8597, 2147483648
        %v8871 = vor.u32 1.1754944e-38, %v8870
        %v8872 = vsel %vm8869, %v8871, %v8867
        %v8873 = vmul.f32 1.0, %v8872
        %v8874 = vrcp.pop %v8600
        %v8875 = vmul.f32 %v8600, %v8874
        %v8876 = vsub.f32 1.0, %v8875
        %v8877 = vmul.f32 %v8874, %v8876
        %v8878 = vadd.f32 %v8874, %v8877
        %vm8879 = vweird.f32 %v8600
        %vm8880 = vweird.f32 %v8874
        %vm8881 = vmor %vm8879, %vm8880
        %v8882 = vsel %vm8881, %v8874, %v8878
        %v8883 = vand.u32 2147483647, %v8600
        %vm8884 = vcmp.eq.f32.partialorder %v8883, 8.507059e+37
        %v8885 = vand.u32 %v8600, 2147483648
        %v8886 = vor.u32 1.1754944e-38, %v8885
        %v8887 = vsel %vm8884, %v8886, %v8882
        %v8888 = vmul.f32 1.0, %v8887
        %v8889 = vrcp.pop %v8603
        %v8890 = vmul.f32 %v8603, %v8889
        %v8891 = vsub.f32 1.0, %v8890
        %v8892 = vmul.f32 %v8889, %v8891
        %v8893 = vadd.f32 %v8889, %v8892
        %vm8894 = vweird.f32 %v8603
        %vm8895 = vweird.f32 %v8889
        %vm8896 = vmor %vm8894, %vm8895
        %v8897 = vsel %vm8896, %v8889, %v8893
        %v8898 = vand.u32 2147483647, %v8603
        %vm8899 = vcmp.eq.f32.partialorder %v8898, 8.507059e+37
        %v8900 = vand.u32 %v8603, 2147483648
        %v8901 = vor.u32 1.1754944e-38, %v8900
        %v8902 = vsel %vm8899, %v8901, %v8897
        %v8903 = vmul.f32 1.0, %v8902
        %v8904 = vrcp.pop %v8606
        %v8905 = vmul.f32 %v8606, %v8904
        %v8906 = vsub.f32 1.0, %v8905
        %v8907 = vmul.f32 %v8904, %v8906
        %v8908 = vadd.f32 %v8904, %v8907
        %vm8909 = vweird.f32 %v8606
        %vm8910 = vweird.f32 %v8904
        %vm8911 = vmor %vm8909, %vm8910
        %v8912 = vsel %vm8911, %v8904, %v8908
        %v8913 = vand.u32 2147483647, %v8606
        %vm8914 = vcmp.eq.f32.partialorder %v8913, 8.507059e+37
        %v8915 = vand.u32 %v8606, 2147483648
        %v8916 = vor.u32 1.1754944e-38, %v8915
        %v8917 = vsel %vm8914, %v8916, %v8912
        %v8918 = vmul.f32 1.0, %v8917
        %v8919 = vrcp.pop %v8609
        %v8920 = vmul.f32 %v8609, %v8919
        %v8921 = vsub.f32 1.0, %v8920
        %v8922 = vmul.f32 %v8919, %v8921
        %v8923 = vadd.f32 %v8919, %v8922
        %vm8924 = vweird.f32 %v8609
        %vm8925 = vweird.f32 %v8919
        %vm8926 = vmor %vm8924, %vm8925
        %v8927 = vsel %vm8926, %v8919, %v8923
        %v8928 = vand.u32 2147483647, %v8609
        %vm8929 = vcmp.eq.f32.partialorder %v8928, 8.507059e+37
        %v8930 = vand.u32 %v8609, 2147483648
        %v8931 = vor.u32 1.1754944e-38, %v8930
        %v8932 = vsel %vm8929, %v8931, %v8927
        %v8933 = vmul.f32 1.0, %v8932
        %v8934 = vrcp.pop %v8612
        %v8935 = vmul.f32 %v8612, %v8934
        %v8936 = vsub.f32 1.0, %v8935
        %v8937 = vmul.f32 %v8934, %v8936
        %v8938 = vadd.f32 %v8934, %v8937
        %vm8939 = vweird.f32 %v8612
        %vm8940 = vweird.f32 %v8934
        %vm8941 = vmor %vm8939, %vm8940
        %v8942 = vsel %vm8941, %v8934, %v8938
        %v8943 = vand.u32 2147483647, %v8612
        %vm8944 = vcmp.eq.f32.partialorder %v8943, 8.507059e+37
        %v8945 = vand.u32 %v8612, 2147483648
        %v8946 = vor.u32 1.1754944e-38, %v8945
        %v8947 = vsel %vm8944, %v8946, %v8942
        %v8948 = vmul.f32 1.0, %v8947
        %v8949 = vrcp.pop %v8615
        %v8950 = vmul.f32 %v8615, %v8949
        %v8951 = vsub.f32 1.0, %v8950
        %v8952 = vmul.f32 %v8949, %v8951
        %v8953 = vadd.f32 %v8949, %v8952
        %vm8954 = vweird.f32 %v8615
        %vm8955 = vweird.f32 %v8949
        %vm8956 = vmor %vm8954, %vm8955
        %v8957 = vsel %vm8956, %v8949, %v8953
        %v8958 = vand.u32 2147483647, %v8615
        %vm8959 = vcmp.eq.f32.partialorder %v8958, 8.507059e+37
        %v8960 = vand.u32 %v8615, 2147483648
        %v8961 = vor.u32 1.1754944e-38, %v8960
        %v8962 = vsel %vm8959, %v8961, %v8957
        %v8963 = vmul.f32 1.0, %v8962
        %v8964 = vrcp.pop %v8618
        %v8965 = vmul.f32 %v8618, %v8964
        %v8966 = vsub.f32 1.0, %v8965
        %v8967 = vmul.f32 %v8964, %v8966
        %v8968 = vadd.f32 %v8964, %v8967
        %vm8969 = vweird.f32 %v8618
        %vm8970 = vweird.f32 %v8964
        %vm8971 = vmor %vm8969, %vm8970
        %v8972 = vsel %vm8971, %v8964, %v8968
        %v8973 = vand.u32 2147483647, %v8618
        %vm8974 = vcmp.eq.f32.partialorder %v8973, 8.507059e+37
        %v8975 = vand.u32 %v8618, 2147483648
        %v8976 = vor.u32 1.1754944e-38, %v8975
        %v8977 = vsel %vm8974, %v8976, %v8972
        %v8978 = vmul.f32 1.0, %v8977
        %v8979 = vrcp.pop %v8621
        %v8980 = vmul.f32 %v8621, %v8979
        %v8981 = vsub.f32 1.0, %v8980
        %v8982 = vmul.f32 %v8979, %v8981
        %v8983 = vadd.f32 %v8979, %v8982
        %vm8984 = vweird.f32 %v8621
        %vm8985 = vweird.f32 %v8979
        %vm8986 = vmor %vm8984, %vm8985
        %v8987 = vsel %vm8986, %v8979, %v8983
        %v8988 = vand.u32 2147483647, %v8621
        %vm8989 = vcmp.eq.f32.partialorder %v8988, 8.507059e+37
        %v8990 = vand.u32 %v8621, 2147483648
        %v8991 = vor.u32 1.1754944e-38, %v8990
        %v8992 = vsel %vm8989, %v8991, %v8987
        %v8993 = vmul.f32 1.0, %v8992
        %v8994 = vrcp.pop %v8624
        %v8995 = vmul.f32 %v8624, %v8994
        %v8996 = vsub.f32 1.0, %v8995
        %v8997 = vmul.f32 %v8994, %v8996
        %v8998 = vadd.f32 %v8994, %v8997
        %vm8999 = vweird.f32 %v8624
        %vm9000 = vweird.f32 %v8994
        %vm9001 = vmor %vm8999, %vm9000
        %v9002 = vsel %vm9001, %v8994, %v8998
        %v9003 = vand.u32 2147483647, %v8624
        %vm9004 = vcmp.eq.f32.partialorder %v9003, 8.507059e+37
        %v9005 = vand.u32 %v8624, 2147483648
        %v9006 = vor.u32 1.1754944e-38, %v9005
        %v9007 = vsel %vm9004, %v9006, %v9002
        %v9008 = vmul.f32 1.0, %v9007
        %v9009 = vrcp.pop %v8627
        %v9010 = vmul.f32 %v8627, %v9009
        %v9011 = vsub.f32 1.0, %v9010
        %v9012 = vmul.f32 %v9009, %v9011
        %v9013 = vadd.f32 %v9009, %v9012
        %vm9014 = vweird.f32 %v8627
        %vm9015 = vweird.f32 %v9009
        %vm9016 = vmor %vm9014, %vm9015
        %v9017 = vsel %vm9016, %v9009, %v9013
        %v9018 = vand.u32 2147483647, %v8627
        %vm9019 = vcmp.eq.f32.partialorder %v9018, 8.507059e+37
        %v9020 = vand.u32 %v8627, 2147483648
        %v9021 = vor.u32 1.1754944e-38, %v9020
        %v9022 = vsel %vm9019, %v9021, %v9017
        %v9023 = vmul.f32 1.0, %v9022
        %v9024 = vrcp.pop %v8630
        %v9025 = vmul.f32 %v8630, %v9024
        %v9026 = vsub.f32 1.0, %v9025
        %v9027 = vmul.f32 %v9024, %v9026
        %v9028 = vadd.f32 %v9024, %v9027
        %vm9029 = vweird.f32 %v8630
        %vm9030 = vweird.f32 %v9024
        %vm9031 = vmor %vm9029, %vm9030
        %v9032 = vsel %vm9031, %v9024, %v9028
        %v9033 = vand.u32 2147483647, %v8630
        %vm9034 = vcmp.eq.f32.partialorder %v9033, 8.507059e+37
        %v9035 = vand.u32 %v8630, 2147483648
        %v9036 = vor.u32 1.1754944e-38, %v9035
        %v9037 = vsel %vm9034, %v9036, %v9032
        %v9038 = vmul.f32 1.0, %v9037
        %v9039 = vrcp.pop %v8633
        %v9040 = vmul.f32 %v8633, %v9039
        %v9041 = vsub.f32 1.0, %v9040
        %v9042 = vmul.f32 %v9039, %v9041
        %v9043 = vadd.f32 %v9039, %v9042
        %vm9044 = vweird.f32 %v8633
        %vm9045 = vweird.f32 %v9039
        %vm9046 = vmor %vm9044, %vm9045
        %v9047 = vsel %vm9046, %v9039, %v9043
        %v9048 = vand.u32 2147483647, %v8633
        %vm9049 = vcmp.eq.f32.partialorder %v9048, 8.507059e+37
        %v9050 = vand.u32 %v8633, 2147483648
        %v9051 = vor.u32 1.1754944e-38, %v9050
        %v9052 = vsel %vm9049, %v9051, %v9047
        %v9053 = vmul.f32 1.0, %v9052
        %v9054 = vrcp.pop %v8636
        %v9055 = vmul.f32 %v8636, %v9054
        %v9056 = vsub.f32 1.0, %v9055
        %v9057 = vmul.f32 %v9054, %v9056
        %v9058 = vadd.f32 %v9054, %v9057
        %vm9059 = vweird.f32 %v8636
        %vm9060 = vweird.f32 %v9054
        %vm9061 = vmor %vm9059, %vm9060
        %v9062 = vsel %vm9061, %v9054, %v9058
        %v9063 = vand.u32 2147483647, %v8636
        %vm9064 = vcmp.eq.f32.partialorder %v9063, 8.507059e+37
        %v9065 = vand.u32 %v8636, 2147483648
        %v9066 = vor.u32 1.1754944e-38, %v9065
        %v9067 = vsel %vm9064, %v9066, %v9062
        %v9068 = vmul.f32 1.0, %v9067
        %v9069 = vrcp.pop %v8639
        %v9070 = vmul.f32 %v8639, %v9069
        %v9071 = vsub.f32 1.0, %v9070
        %v9072 = vmul.f32 %v9069, %v9071
        %v9073 = vadd.f32 %v9069, %v9072
        %vm9074 = vweird.f32 %v8639
        %vm9075 = vweird.f32 %v9069
        %vm9076 = vmor %vm9074, %vm9075
        %v9077 = vsel %vm9076, %v9069, %v9073
        %v9078 = vand.u32 2147483647, %v8639
        %vm9079 = vcmp.eq.f32.partialorder %v9078, 8.507059e+37
        %v9080 = vand.u32 %v8639, 2147483648
        %v9081 = vor.u32 1.1754944e-38, %v9080
        %v9082 = vsel %vm9079, %v9081, %v9077
        %v9083 = vmul.f32 1.0, %v9082
        %v9084 = vrcp.pop %v8642
        %v9085 = vmul.f32 %v8642, %v9084
        %v9086 = vsub.f32 1.0, %v9085
        %v9087 = vmul.f32 %v9084, %v9086
        %v9088 = vadd.f32 %v9084, %v9087
        %vm9089 = vweird.f32 %v8642
        %vm9090 = vweird.f32 %v9084
        %vm9091 = vmor %vm9089, %vm9090
        %v9092 = vsel %vm9091, %v9084, %v9088
        %v9093 = vand.u32 2147483647, %v8642
        %vm9094 = vcmp.eq.f32.partialorder %v9093, 8.507059e+37
        %v9095 = vand.u32 %v8642, 2147483648
        %v9096 = vor.u32 1.1754944e-38, %v9095
        %v9097 = vsel %vm9094, %v9096, %v9092
        %v9098 = vmul.f32 1.0, %v9097
        %v9099 = vrcp.pop %v8645
        %v9100 = vmul.f32 %v8645, %v9099
        %v9101 = vsub.f32 1.0, %v9100
        %v9102 = vmul.f32 %v9099, %v9101
        %v9103 = vadd.f32 %v9099, %v9102
        %vm9104 = vweird.f32 %v8645
        %vm9105 = vweird.f32 %v9099
        %vm9106 = vmor %vm9104, %vm9105
        %v9107 = vsel %vm9106, %v9099, %v9103
        %v9108 = vand.u32 2147483647, %v8645
        %vm9109 = vcmp.eq.f32.partialorder %v9108, 8.507059e+37
        %v9110 = vand.u32 %v8645, 2147483648
        %v9111 = vor.u32 1.1754944e-38, %v9110
        %v9112 = vsel %vm9109, %v9111, %v9107
        %v9113 = vmul.f32 1.0, %v9112
        %v9114 = vrcp.pop %v8648
        %v9115 = vmul.f32 %v8648, %v9114
        %v9116 = vsub.f32 1.0, %v9115
        %v9117 = vmul.f32 %v9114, %v9116
        %v9118 = vadd.f32 %v9114, %v9117
        %vm9119 = vweird.f32 %v8648
        %vm9120 = vweird.f32 %v9114
        %vm9121 = vmor %vm9119, %vm9120
        %v9122 = vsel %vm9121, %v9114, %v9118
        %v9123 = vand.u32 2147483647, %v8648
        %vm9124 = vcmp.eq.f32.partialorder %v9123, 8.507059e+37
        %v9125 = vand.u32 %v8648, 2147483648
        %v9126 = vor.u32 1.1754944e-38, %v9125
        %v9127 = vsel %vm9124, %v9126, %v9122
        %v9128 = vmul.f32 1.0, %v9127
        %v9129 = vmul.f32 %v8426, %v8663
        %v9130 = vmul.f32 %v8428, %v8663
        %v9131 = vmul.f32 %v8430, %v8678
        %v9132 = vmul.f32 %v8432, %v8678
        %v9133 = vmul.f32 %v8434, %v8693
        %v9134 = vmul.f32 %v8436, %v8693
        %v9135 = vmul.f32 %v8438, %v8708
        %v9136 = vmul.f32 %v8440, %v8708
        %v9137 = vmul.f32 %v8442, %v8723
        %v9138 = vmul.f32 %v8444, %v8723
        %v9139 = vmul.f32 %v8446, %v8738
        %v9140 = vmul.f32 %v8448, %v8738
        %v9141 = vmul.f32 %v8450, %v8753
        %v9142 = vmul.f32 %v8452, %v8753
        %v9143 = vmul.f32 %v8454, %v8768
        %v9144 = vmul.f32 %v8456, %v8768
        %v9145 = vmul.f32 %v8458, %v8783
        %v9146 = vmul.f32 %v8460, %v8783
        %v9147 = vmul.f32 %v8462, %v8798
        %v9148 = vmul.f32 %v8464, %v8798
        %v9149 = vmul.f32 %v8466, %v8813
        %v9150 = vmul.f32 %v8468, %v8813
        %v9151 = vmul.f32 %v8470, %v8828
        %v9152 = vmul.f32 %v8472, %v8828
        %v9153 = vmul.f32 %v8474, %v8843
        %v9154 = vmul.f32 %v8476, %v8843
        %v9155 = vmul.f32 %v8478, %v8858
        %v9156 = vmul.f32 %v8480, %v8858
        %v9157 = vmul.f32 %v8482, %v8873
        %v9158 = vmul.f32 %v8484, %v8873
        %v9159 = vmul.f32 %v8486, %v8888
        %v9160 = vmul.f32 %v8488, %v8888
        %v9161 = vmul.f32 %v8490, %v8903
        %v9162 = vmul.f32 %v8492, %v8903
        %v9163 = vmul.f32 %v8494, %v8918
        %v9164 = vmul.f32 %v8496, %v8918
        %v9165 = vmul.f32 %v8498, %v8933
        %v9166 = vmul.f32 %v8500, %v8933
        %v9167 = vmul.f32 %v8502, %v8948
        %v9168 = vmul.f32 %v8504, %v8948
        %v9169 = vmul.f32 %v8506, %v8963
        %v9170 = vmul.f32 %v8508, %v8963
        %v9171 = vmul.f32 %v8510, %v8978
        %v9172 = vmul.f32 %v8512, %v8978
        %v9173 = vmul.f32 %v8514, %v8993
        %v9174 = vmul.f32 %v8516, %v8993
        %v9175 = vmul.f32 %v8518, %v9008
        %v9176 = vmul.f32 %v8520, %v9008
        %v9177 = vmul.f32 %v8522, %v9023
        %v9178 = vmul.f32 %v8524, %v9023
        %v9179 = vmul.f32 %v8526, %v9038
        %v9180 = vmul.f32 %v8528, %v9038
        %v9181 = vmul.f32 %v8530, %v9053
        %v9182 = vmul.f32 %v8532, %v9053
        %v9183 = vmul.f32 %v8534, %v9068
        %v9184 = vmul.f32 %v8536, %v9068
        %v9185 = vmul.f32 %v8538, %v9083
        %v9186 = vmul.f32 %v8540, %v9083
        %v9187 = vmul.f32 %v8542, %v9098
        %v9188 = vmul.f32 %v8544, %v9098
        %v9189 = vmul.f32 %v8546, %v9113
        %v9190 = vmul.f32 %v8548, %v9113
        %v9191 = vmul.f32 %v8550, %v9128
        %v9192 = vmul.f32 %v8552, %v9128
        %v9193 = vpack.c.bf16 %v9130, %v9129
        %v9194 = vpack.c.bf16 %v9132, %v9131
        %v9195 = vpack.c.bf16 %v9134, %v9133
        %v9196 = vpack.c.bf16 %v9136, %v9135
        %v9197 = vpack.c.bf16 %v9138, %v9137
        %v9198 = vpack.c.bf16 %v9140, %v9139
        %v9199 = vpack.c.bf16 %v9142, %v9141
        %v9200 = vpack.c.bf16 %v9144, %v9143
        %v9201 = vpack.c.bf16 %v9146, %v9145
        %v9202 = vpack.c.bf16 %v9148, %v9147
        %v9203 = vpack.c.bf16 %v9150, %v9149
        %v9204 = vpack.c.bf16 %v9152, %v9151
        %v9205 = vpack.c.bf16 %v9154, %v9153
        %v9206 = vpack.c.bf16 %v9156, %v9155
        %v9207 = vpack.c.bf16 %v9158, %v9157
        %v9208 = vpack.c.bf16 %v9160, %v9159
        %v9209 = vpack.c.bf16 %v9162, %v9161
        %v9210 = vpack.c.bf16 %v9164, %v9163
        %v9211 = vpack.c.bf16 %v9166, %v9165
        %v9212 = vpack.c.bf16 %v9168, %v9167
        %v9213 = vpack.c.bf16 %v9170, %v9169
        %v9214 = vpack.c.bf16 %v9172, %v9171
        %v9215 = vpack.c.bf16 %v9174, %v9173
        %v9216 = vpack.c.bf16 %v9176, %v9175
        %v9217 = vpack.c.bf16 %v9178, %v9177
        %v9218 = vpack.c.bf16 %v9180, %v9179
        %v9219 = vpack.c.bf16 %v9182, %v9181
        %v9220 = vpack.c.bf16 %v9184, %v9183
        %v9221 = vpack.c.bf16 %v9186, %v9185
        %v9222 = vpack.c.bf16 %v9188, %v9187
        %v9223 = vpack.c.bf16 %v9190, %v9189
        %v9224 = vpack.c.bf16 %v9192, %v9191
        %s9225 = scalar_lea.vmem %s255, 768 [#allocation5]
        %9226 = vst [vmem:[%s9225] sm:$0xff] %v9193
        %9227 = vst [vmem:[%s9225 + $0x8] sm:$0xff] %v9194
        %9228 = vst [vmem:[%s9225 + $0x10] sm:$0xff] %v9195
        %9229 = vst [vmem:[%s9225 + $0x18] sm:$0xff] %v9196
        %9230 = vst [vmem:[%s9225 + $0x20] sm:$0xff] %v9197
        %9231 = vst [vmem:[%s9225 + $0x28] sm:$0xff] %v9198
        %9232 = vst [vmem:[%s9225 + $0x30] sm:$0xff] %v9199
        %9233 = vst [vmem:[%s9225 + $0x38] sm:$0xff] %v9200
        %9234 = vst [vmem:[%s9225 + $0x40] sm:$0xff] %v9201
        %9235 = vst [vmem:[%s9225 + $0x48] sm:$0xff] %v9202
        %9236 = vst [vmem:[%s9225 + $0x50] sm:$0xff] %v9203
        %9237 = vst [vmem:[%s9225 + $0x58] sm:$0xff] %v9204
        %9238 = vst [vmem:[%s9225 + $0x60] sm:$0xff] %v9205
        %9239 = vst [vmem:[%s9225 + $0x68] sm:$0xff] %v9206
        %9240 = vst [vmem:[%s9225 + $0x70] sm:$0xff] %v9207
        %9241 = vst [vmem:[%s9225 + $0x78] sm:$0xff] %v9208
        %9242 = vst [vmem:[%s9225 + $0x80] sm:$0xff] %v9209
        %9243 = vst [vmem:[%s9225 + $0x88] sm:$0xff] %v9210
        %9244 = vst [vmem:[%s9225 + $0x90] sm:$0xff] %v9211
        %9245 = vst [vmem:[%s9225 + $0x98] sm:$0xff] %v9212
        %9246 = vst [vmem:[%s9225 + $0xa0] sm:$0xff] %v9213
        %9247 = vst [vmem:[%s9225 + $0xa8] sm:$0xff] %v9214
        %9248 = vst [vmem:[%s9225 + $0xb0] sm:$0xff] %v9215
        %9249 = vst [vmem:[%s9225 + $0xb8] sm:$0xff] %v9216
        %9250 = vst [vmem:[%s9225 + $0xc0] sm:$0xff] %v9217
        %9251 = vst [vmem:[%s9225 + $0xc8] sm:$0xff] %v9218
        %9252 = vst [vmem:[%s9225 + $0xd0] sm:$0xff] %v9219
        %9253 = vst [vmem:[%s9225 + $0xd8] sm:$0xff] %v9220
        %9254 = vst [vmem:[%s9225 + $0xe0] sm:$0xff] %v9221
        %9255 = vst [vmem:[%s9225 + $0xe8] sm:$0xff] %v9222
        %9256 = vst [vmem:[%s9225 + $0xf0] sm:$0xff] %v9223
        %9257 = vst [vmem:[%s9225 + $0xf8] sm:$0xff] %v9224
        %v9290 = vunpack.c.l.b16 %v9193
        %v9291 = vunpack.c.h.b16 %v9193
        %v9292 = vunpack.c.l.b16 %v9194
        %v9293 = vunpack.c.h.b16 %v9194
        %v9294 = vunpack.c.l.b16 %v9195
        %v9295 = vunpack.c.h.b16 %v9195
        %v9296 = vunpack.c.l.b16 %v9196
        %v9297 = vunpack.c.h.b16 %v9196
        %v9298 = vunpack.c.l.b16 %v9197
        %v9299 = vunpack.c.h.b16 %v9197
        %v9300 = vunpack.c.l.b16 %v9198
        %v9301 = vunpack.c.h.b16 %v9198
        %v9302 = vunpack.c.l.b16 %v9199
        %v9303 = vunpack.c.h.b16 %v9199
        %v9304 = vunpack.c.l.b16 %v9200
        %v9305 = vunpack.c.h.b16 %v9200
        %v9306 = vunpack.c.l.b16 %v9201
        %v9307 = vunpack.c.h.b16 %v9201
        %v9308 = vunpack.c.l.b16 %v9202
        %v9309 = vunpack.c.h.b16 %v9202
        %v9310 = vunpack.c.l.b16 %v9203
        %v9311 = vunpack.c.h.b16 %v9203
        %v9312 = vunpack.c.l.b16 %v9204
        %v9313 = vunpack.c.h.b16 %v9204
        %v9314 = vunpack.c.l.b16 %v9205
        %v9315 = vunpack.c.h.b16 %v9205
        %v9316 = vunpack.c.l.b16 %v9206
        %v9317 = vunpack.c.h.b16 %v9206
        %v9318 = vunpack.c.l.b16 %v9207
        %v9319 = vunpack.c.h.b16 %v9207
        %v9320 = vunpack.c.l.b16 %v9208
        %v9321 = vunpack.c.h.b16 %v9208
        %v9322 = vunpack.c.l.b16 %v9209
        %v9323 = vunpack.c.h.b16 %v9209
        %v9324 = vunpack.c.l.b16 %v9210
        %v9325 = vunpack.c.h.b16 %v9210
        %v9326 = vunpack.c.l.b16 %v9211
        %v9327 = vunpack.c.h.b16 %v9211
        %v9328 = vunpack.c.l.b16 %v9212
        %v9329 = vunpack.c.h.b16 %v9212
        %v9330 = vunpack.c.l.b16 %v9213
        %v9331 = vunpack.c.h.b16 %v9213
        %v9332 = vunpack.c.l.b16 %v9214
        %v9333 = vunpack.c.h.b16 %v9214
        %v9334 = vunpack.c.l.b16 %v9215
        %v9335 = vunpack.c.h.b16 %v9215
        %v9336 = vunpack.c.l.b16 %v9216
        %v9337 = vunpack.c.h.b16 %v9216
        %v9338 = vunpack.c.l.b16 %v9217
        %v9339 = vunpack.c.h.b16 %v9217
        %v9340 = vunpack.c.l.b16 %v9218
        %v9341 = vunpack.c.h.b16 %v9218
        %v9342 = vunpack.c.l.b16 %v9219
        %v9343 = vunpack.c.h.b16 %v9219
        %v9344 = vunpack.c.l.b16 %v9220
        %v9345 = vunpack.c.h.b16 %v9220
        %v9346 = vunpack.c.l.b16 %v9221
        %v9347 = vunpack.c.h.b16 %v9221
        %v9348 = vunpack.c.l.b16 %v9222
        %v9349 = vunpack.c.h.b16 %v9222
        %v9350 = vunpack.c.l.b16 %v9223
        %v9351 = vunpack.c.h.b16 %v9223
        %v9352 = vunpack.c.l.b16 %v9224
        %v9353 = vunpack.c.h.b16 %v9224
        %v9354 = vpack.c.b16 %v9292, %v9290
        %v9355 = vpack.c.b16 %v9293, %v9291
        %v9356 = vpack.c.b16 %v9296, %v9294
        %v9357 = vpack.c.b16 %v9297, %v9295
        %v9358 = vpack.c.b16 %v9300, %v9298
        %v9359 = vpack.c.b16 %v9301, %v9299
        %v9360 = vpack.c.b16 %v9304, %v9302
        %v9361 = vpack.c.b16 %v9305, %v9303
        %v9362 = vpack.c.b16 %v9308, %v9306
        %v9363 = vpack.c.b16 %v9309, %v9307
        %v9364 = vpack.c.b16 %v9312, %v9310
        %v9365 = vpack.c.b16 %v9313, %v9311
        %v9366 = vpack.c.b16 %v9316, %v9314
        %v9367 = vpack.c.b16 %v9317, %v9315
        %v9368 = vpack.c.b16 %v9320, %v9318
        %v9369 = vpack.c.b16 %v9321, %v9319
        %v9370 = vpack.c.b16 %v9324, %v9322
        %v9371 = vpack.c.b16 %v9325, %v9323
        %v9372 = vpack.c.b16 %v9328, %v9326
        %v9373 = vpack.c.b16 %v9329, %v9327
        %v9374 = vpack.c.b16 %v9332, %v9330
        %v9375 = vpack.c.b16 %v9333, %v9331
        %v9376 = vpack.c.b16 %v9336, %v9334
        %v9377 = vpack.c.b16 %v9337, %v9335
        %v9378 = vpack.c.b16 %v9340, %v9338
        %v9379 = vpack.c.b16 %v9341, %v9339
        %v9380 = vpack.c.b16 %v9344, %v9342
        %v9381 = vpack.c.b16 %v9345, %v9343
        %v9382 = vpack.c.b16 %v9348, %v9346
        %v9383 = vpack.c.b16 %v9349, %v9347
        %v9384 = vpack.c.b16 %v9352, %v9350
        %v9385 = vpack.c.b16 %v9353, %v9351
        %v9450 = vunpack.c.l.b16 %v7735
        %v9451 = vunpack.c.l.b16 %v7736
        %v9452 = vunpack.c.l.b16 %v7737
        %v9453 = vunpack.c.l.b16 %v7738
        %v9454 = vunpack.c.l.b16 %v7739
        %v9455 = vunpack.c.l.b16 %v7740
        %v9456 = vunpack.c.l.b16 %v7741
        %v9457 = vunpack.c.l.b16 %v7742
        %v9458 = vunpack.c.l.b16 %v7743
        %v9459 = vunpack.c.l.b16 %v7744
        %v9460 = vunpack.c.l.b16 %v7745
        %v9461 = vunpack.c.l.b16 %v7746
        %v9462 = vunpack.c.l.b16 %v7747
        %v9463 = vunpack.c.l.b16 %v7748
        %v9464 = vunpack.c.l.b16 %v7749
        %v9465 = vunpack.c.l.b16 %v7750
        %v9466 = vunpack.c.l.b16 %v7751
        %v9467 = vunpack.c.l.b16 %v7752
        %v9468 = vunpack.c.l.b16 %v7753
        %v9469 = vunpack.c.l.b16 %v7754
        %v9470 = vunpack.c.l.b16 %v7755
        %v9471 = vunpack.c.l.b16 %v7756
        %v9472 = vunpack.c.l.b16 %v7757
        %v9473 = vunpack.c.l.b16 %v7758
        %v9474 = vunpack.c.l.b16 %v7759
        %v9475 = vunpack.c.l.b16 %v7760
        %v9476 = vunpack.c.l.b16 %v7761
        %v9477 = vunpack.c.l.b16 %v7762
        %v9478 = vunpack.c.l.b16 %v7763
        %v9479 = vunpack.c.l.b16 %v7764
        %v9480 = vunpack.c.l.b16 %v7765
        %v9481 = vunpack.c.l.b16 %v7766
        %v9482 = vpack.c.b16 %v9451, %v9450
        %v9483 = vpack.c.b16 %v9453, %v9452
        %v9484 = vpack.c.b16 %v9455, %v9454
        %v9485 = vpack.c.b16 %v9457, %v9456
        %v9486 = vpack.c.b16 %v9459, %v9458
        %v9487 = vpack.c.b16 %v9461, %v9460
        %v9488 = vpack.c.b16 %v9463, %v9462
        %v9489 = vpack.c.b16 %v9465, %v9464
        %v9490 = vpack.c.b16 %v9467, %v9466
        %v9491 = vpack.c.b16 %v9469, %v9468
        %v9492 = vpack.c.b16 %v9471, %v9470
        %v9493 = vpack.c.b16 %v9473, %v9472
        %v9494 = vpack.c.b16 %v9475, %v9474
        %v9495 = vpack.c.b16 %v9477, %v9476
        %v9496 = vpack.c.b16 %v9479, %v9478
        %v9497 = vpack.c.b16 %v9481, %v9480
        %9498 = vrot.lane.b32.xlu0 %v9482, 32
        %v9499 = vpop.permute.xlu0 %9498
        %9500 = vrot.lane.b32.xlu0 %v9483, 32
        %v9501 = vpop.permute.xlu0 %9500
        %9502 = vrot.lane.b32.xlu0 %v9484, 32
        %v9503 = vpop.permute.xlu0 %9502
        %9504 = vrot.lane.b32.xlu0 %v9485, 32
        %v9505 = vpop.permute.xlu0 %9504
        %9506 = vrot.lane.b32.xlu0 %v9486, 32
        %v9507 = vpop.permute.xlu0 %9506
        %9508 = vrot.lane.b32.xlu0 %v9487, 32
        %v9509 = vpop.permute.xlu0 %9508
        %9510 = vrot.lane.b32.xlu0 %v9488, 32
        %v9511 = vpop.permute.xlu0 %9510
        %9512 = vrot.lane.b32.xlu0 %v9489, 32
        %v9513 = vpop.permute.xlu0 %9512
        %9514 = vrot.lane.b32.xlu0 %v9490, 32
        %v9515 = vpop.permute.xlu0 %9514
        %9516 = vrot.lane.b32.xlu0 %v9491, 32
        %v9517 = vpop.permute.xlu0 %9516
        %9518 = vrot.lane.b32.xlu0 %v9492, 32
        %v9519 = vpop.permute.xlu0 %9518
        %9520 = vrot.lane.b32.xlu0 %v9493, 32
        %v9521 = vpop.permute.xlu0 %9520
        %9522 = vrot.lane.b32.xlu0 %v9494, 32
        %v9523 = vpop.permute.xlu0 %9522
        %9524 = vrot.lane.b32.xlu0 %v9495, 32
        %v9525 = vpop.permute.xlu0 %9524
        %9526 = vrot.lane.b32.xlu0 %v9496, 32
        %v9527 = vpop.permute.xlu0 %9526
        %9528 = vrot.lane.b32.xlu0 %v9497, 32
        %v9529 = vpop.permute.xlu0 %9528
        %9546 = vmatpush.bf16.msra.mxu0 %v9513
        %9547 = vmatpush.bf16.msra.mxu0 %v9511
        %9548 = vmatpush.bf16.msra.mxu0 %v9509
        %9549 = vmatpush.bf16.msra.mxu0 %v9507
        %9550 = vmatpush.bf16.msra.mxu0 %v9505
        %9551 = vmatpush.bf16.msra.mxu0 %v9503
        %9552 = vmatpush.bf16.msra.mxu0 %v9501
        %9553 = vmatpush.bf16.msra.mxu0 %v9499
        %9554 = vmatmul.bf16.gmra.mxu0 %v9354
        %v9555 = vpop.f32.mrf.mxu0
        %v9556 = vadd.f32 0.0, %v9555
        %v9557 = vpop.f32.mrf.mxu0
        %v9558 = vadd.f32 0.0, %v9557
        %9559 = vmatmul.bf16.gmra.mxu0 %v9356
        %v9560 = vpop.f32.mrf.mxu0
        %v9561 = vadd.f32 0.0, %v9560
        %v9562 = vpop.f32.mrf.mxu0
        %v9563 = vadd.f32 0.0, %v9562
        %9564 = vmatmul.bf16.gmra.mxu0 %v9358
        %v9565 = vpop.f32.mrf.mxu0
        %v9566 = vadd.f32 0.0, %v9565
        %v9567 = vpop.f32.mrf.mxu0
        %v9568 = vadd.f32 0.0, %v9567
        %9569 = vmatmul.bf16.gmra.mxu0 %v9360
        %v9570 = vpop.f32.mrf.mxu0
        %v9571 = vadd.f32 0.0, %v9570
        %v9572 = vpop.f32.mrf.mxu0
        %v9573 = vadd.f32 0.0, %v9572
        %9574 = vmatmul.bf16.gmra.mxu0 %v9362
        %v9575 = vpop.f32.mrf.mxu0
        %v9576 = vadd.f32 0.0, %v9575
        %v9577 = vpop.f32.mrf.mxu0
        %v9578 = vadd.f32 0.0, %v9577
        %9579 = vmatmul.bf16.gmra.mxu0 %v9364
        %v9580 = vpop.f32.mrf.mxu0
        %v9581 = vadd.f32 0.0, %v9580
        %v9582 = vpop.f32.mrf.mxu0
        %v9583 = vadd.f32 0.0, %v9582
        %9584 = vmatmul.bf16.gmra.mxu0 %v9366
        %v9585 = vpop.f32.mrf.mxu0
        %v9586 = vadd.f32 0.0, %v9585
        %v9587 = vpop.f32.mrf.mxu0
        %v9588 = vadd.f32 0.0, %v9587
        %9589 = vmatmul.bf16.gmra.mxu0 %v9368
        %v9590 = vpop.f32.mrf.mxu0
        %v9591 = vadd.f32 0.0, %v9590
        %v9592 = vpop.f32.mrf.mxu0
        %v9593 = vadd.f32 0.0, %v9592
        %9594 = vmatmul.bf16.gmra.mxu0 %v9370
        %v9595 = vpop.f32.mrf.mxu0
        %v9596 = vadd.f32 0.0, %v9595
        %v9597 = vpop.f32.mrf.mxu0
        %v9598 = vadd.f32 0.0, %v9597
        %9599 = vmatmul.bf16.gmra.mxu0 %v9372
        %v9600 = vpop.f32.mrf.mxu0
        %v9601 = vadd.f32 0.0, %v9600
        %v9602 = vpop.f32.mrf.mxu0
        %v9603 = vadd.f32 0.0, %v9602
        %9604 = vmatmul.bf16.gmra.mxu0 %v9374
        %v9605 = vpop.f32.mrf.mxu0
        %v9606 = vadd.f32 0.0, %v9605
        %v9607 = vpop.f32.mrf.mxu0
        %v9608 = vadd.f32 0.0, %v9607
        %9609 = vmatmul.bf16.gmra.mxu0 %v9376
        %v9610 = vpop.f32.mrf.mxu0
        %v9611 = vadd.f32 0.0, %v9610
        %v9612 = vpop.f32.mrf.mxu0
        %v9613 = vadd.f32 0.0, %v9612
        %9614 = vmatmul.bf16.gmra.mxu0 %v9378
        %v9615 = vpop.f32.mrf.mxu0
        %v9616 = vadd.f32 0.0, %v9615
        %v9617 = vpop.f32.mrf.mxu0
        %v9618 = vadd.f32 0.0, %v9617
        %9619 = vmatmul.bf16.gmra.mxu0 %v9380
        %v9620 = vpop.f32.mrf.mxu0
        %v9621 = vadd.f32 0.0, %v9620
        %v9622 = vpop.f32.mrf.mxu0
        %v9623 = vadd.f32 0.0, %v9622
        %9624 = vmatmul.bf16.gmra.mxu0 %v9382
        %v9625 = vpop.f32.mrf.mxu0
        %v9626 = vadd.f32 0.0, %v9625
        %v9627 = vpop.f32.mrf.mxu0
        %v9628 = vadd.f32 0.0, %v9627
        %9629 = vmatmul.bf16.gmra.mxu0 %v9384
        %v9630 = vpop.f32.mrf.mxu0
        %v9631 = vadd.f32 0.0, %v9630
        %v9632 = vpop.f32.mrf.mxu0
        %v9633 = vadd.f32 0.0, %v9632
        %9634 = vdwg.mxu0
        %9635 = vmatpush.bf16.msra.mxu0 %v9529
        %9636 = vmatpush.bf16.msra.mxu0 %v9527
        %9637 = vmatpush.bf16.msra.mxu0 %v9525
        %9638 = vmatpush.bf16.msra.mxu0 %v9523
        %9639 = vmatpush.bf16.msra.mxu0 %v9521
        %9640 = vmatpush.bf16.msra.mxu0 %v9519
        %9641 = vmatpush.bf16.msra.mxu0 %v9517
        %9642 = vmatpush.bf16.msra.mxu0 %v9515
        %9643 = vmatmul.bf16.gmra.mxu0 %v9355
        %v9644 = vpop.f32.mrf.mxu0
        %v9645 = vadd.f32 %v9556, %v9644
        %v9646 = vpop.f32.mrf.mxu0
        %v9647 = vadd.f32 %v9558, %v9646
        %9648 = vmatmul.bf16.gmra.mxu0 %v9357
        %v9649 = vpop.f32.mrf.mxu0
        %v9650 = vadd.f32 %v9561, %v9649
        %v9651 = vpop.f32.mrf.mxu0
        %v9652 = vadd.f32 %v9563, %v9651
        %9653 = vmatmul.bf16.gmra.mxu0 %v9359
        %v9654 = vpop.f32.mrf.mxu0
        %v9655 = vadd.f32 %v9566, %v9654
        %v9656 = vpop.f32.mrf.mxu0
        %v9657 = vadd.f32 %v9568, %v9656
        %9658 = vmatmul.bf16.gmra.mxu0 %v9361
        %v9659 = vpop.f32.mrf.mxu0
        %v9660 = vadd.f32 %v9571, %v9659
        %v9661 = vpop.f32.mrf.mxu0
        %v9662 = vadd.f32 %v9573, %v9661
        %9663 = vmatmul.bf16.gmra.mxu0 %v9363
        %v9664 = vpop.f32.mrf.mxu0
        %v9665 = vadd.f32 %v9576, %v9664
        %v9666 = vpop.f32.mrf.mxu0
        %v9667 = vadd.f32 %v9578, %v9666
        %9668 = vmatmul.bf16.gmra.mxu0 %v9365
        %v9669 = vpop.f32.mrf.mxu0
        %v9670 = vadd.f32 %v9581, %v9669
        %v9671 = vpop.f32.mrf.mxu0
        %v9672 = vadd.f32 %v9583, %v9671
        %9673 = vmatmul.bf16.gmra.mxu0 %v9367
        %v9674 = vpop.f32.mrf.mxu0
        %v9675 = vadd.f32 %v9586, %v9674
        %v9676 = vpop.f32.mrf.mxu0
        %v9677 = vadd.f32 %v9588, %v9676
        %9678 = vmatmul.bf16.gmra.mxu0 %v9369
        %v9679 = vpop.f32.mrf.mxu0
        %v9680 = vadd.f32 %v9591, %v9679
        %v9681 = vpop.f32.mrf.mxu0
        %v9682 = vadd.f32 %v9593, %v9681
        %9683 = vmatmul.bf16.gmra.mxu0 %v9371
        %v9684 = vpop.f32.mrf.mxu0
        %v9685 = vadd.f32 %v9596, %v9684
        %v9686 = vpop.f32.mrf.mxu0
        %v9687 = vadd.f32 %v9598, %v9686
        %9688 = vmatmul.bf16.gmra.mxu0 %v9373
        %v9689 = vpop.f32.mrf.mxu0
        %v9690 = vadd.f32 %v9601, %v9689
        %v9691 = vpop.f32.mrf.mxu0
        %v9692 = vadd.f32 %v9603, %v9691
        %9693 = vmatmul.bf16.gmra.mxu0 %v9375
        %v9694 = vpop.f32.mrf.mxu0
        %v9695 = vadd.f32 %v9606, %v9694
        %v9696 = vpop.f32.mrf.mxu0
        %v9697 = vadd.f32 %v9608, %v9696
        %9698 = vmatmul.bf16.gmra.mxu0 %v9377
        %v9699 = vpop.f32.mrf.mxu0
        %v9700 = vadd.f32 %v9611, %v9699
        %v9701 = vpop.f32.mrf.mxu0
        %v9702 = vadd.f32 %v9613, %v9701
        %9703 = vmatmul.bf16.gmra.mxu0 %v9379
        %v9704 = vpop.f32.mrf.mxu0
        %v9705 = vadd.f32 %v9616, %v9704
        %v9706 = vpop.f32.mrf.mxu0
        %v9707 = vadd.f32 %v9618, %v9706
        %9708 = vmatmul.bf16.gmra.mxu0 %v9381
        %v9709 = vpop.f32.mrf.mxu0
        %v9710 = vadd.f32 %v9621, %v9709
        %v9711 = vpop.f32.mrf.mxu0
        %v9712 = vadd.f32 %v9623, %v9711
        %9713 = vmatmul.bf16.gmra.mxu0 %v9383
        %v9714 = vpop.f32.mrf.mxu0
        %v9715 = vadd.f32 %v9626, %v9714
        %v9716 = vpop.f32.mrf.mxu0
        %v9717 = vadd.f32 %v9628, %v9716
        %9718 = vmatmul.bf16.gmra.mxu0 %v9385
        %v9719 = vpop.f32.mrf.mxu0
        %v9720 = vadd.f32 %v9631, %v9719
        %v9721 = vpop.f32.mrf.mxu0
        %v9722 = vadd.f32 %v9633, %v9721
        %9723 = vdwg.mxu0
        %v9724 = vpack.c.bf16 %v9647, %v9645
        %v9725 = vpack.c.bf16 %v9652, %v9650
        %v9726 = vpack.c.bf16 %v9657, %v9655
        %v9727 = vpack.c.bf16 %v9662, %v9660
        %v9728 = vpack.c.bf16 %v9667, %v9665
        %v9729 = vpack.c.bf16 %v9672, %v9670
        %v9730 = vpack.c.bf16 %v9677, %v9675
        %v9731 = vpack.c.bf16 %v9682, %v9680
        %v9732 = vpack.c.bf16 %v9687, %v9685
        %v9733 = vpack.c.bf16 %v9692, %v9690
        %v9734 = vpack.c.bf16 %v9697, %v9695
        %v9735 = vpack.c.bf16 %v9702, %v9700
        %v9736 = vpack.c.bf16 %v9707, %v9705
        %v9737 = vpack.c.bf16 %v9712, %v9710
        %v9738 = vpack.c.bf16 %v9717, %v9715
        %v9739 = vpack.c.bf16 %v9722, %v9720
        %v9740 = vld [vmem:[%s3 + $0x30] sm:$0xf]
        %v9741 = vld [vmem:[%s3 + $0x34] sm:$0xf]
        %v9742 = vld [vmem:[%s3 + $0x38] sm:$0xf]
        %v9743 = vld [vmem:[%s3 + $0x3c] sm:$0xf]
        %v9748 = vunpack.c.l.b16 %v9740
        %v9749 = vunpack.c.l.b16 %v9741
        %v9750 = vunpack.c.l.b16 %v9742
        %v9751 = vunpack.c.l.b16 %v9743
        %v9752 = vpack.c.b16 %v9749, %v9748
        %v9753 = vpack.c.b16 %v9751, %v9750
        %v9757 = vsel %vm1129, %v9724, 0
        %v9760 = vsel %vm1129, %v9725, 0
        %v9763 = vsel %vm1129, %v9726, 0
        %v9766 = vsel %vm1129, %v9727, 0
        %v9769 = vsel %vm1129, %v9728, 0
        %v9772 = vsel %vm1129, %v9729, 0
        %v9775 = vsel %vm1129, %v9730, 0
        %v9778 = vsel %vm1129, %v9731, 0
        %v9781 = vsel %vm1129, %v9732, 0
        %v9784 = vsel %vm1129, %v9733, 0
        %v9787 = vsel %vm1129, %v9734, 0
        %v9790 = vsel %vm1129, %v9735, 0
        %v9793 = vsel %vm1129, %v9736, 0
        %v9796 = vsel %vm1129, %v9737, 0
        %v9799 = vsel %vm1129, %v9738, 0
        %v9802 = vsel %vm1129, %v9739, 0
        %9804 = vmatpush.bf16.msra.mxu0 0
        %9805 = vmatpush.bf16.msra.mxu0 0
        %9806 = vmatpush.bf16.msra.mxu0 0
        %9807 = vmatpush.bf16.msra.mxu0 0
        %9808 = vmatpush.bf16.msra.mxu0 0
        %9809 = vmatpush.bf16.msra.mxu0 0
        %9810 = vmatpush.bf16.msra.mxu0 %v9753
        %9811 = vmatpush.bf16.msra.mxu0 %v9752
        %9812 = vmatmul.bf16.gmra.mxu0 %v9757
        %v9813 = vpop.f32.mrf.mxu0
        %v9814 = vadd.f32 0.0, %v9813
        %v9815 = vpop.f32.mrf.mxu0
        %v9816 = vadd.f32 0.0, %v9815
        %9817 = vmatmul.bf16.gmra.mxu0 %v9760
        %v9818 = vpop.f32.mrf.mxu0
        %v9819 = vadd.f32 0.0, %v9818
        %v9820 = vpop.f32.mrf.mxu0
        %v9821 = vadd.f32 0.0, %v9820
        %9822 = vmatmul.bf16.gmra.mxu0 %v9763
        %v9823 = vpop.f32.mrf.mxu0
        %v9824 = vadd.f32 0.0, %v9823
        %v9825 = vpop.f32.mrf.mxu0
        %v9826 = vadd.f32 0.0, %v9825
        %9827 = vmatmul.bf16.gmra.mxu0 %v9766
        %v9828 = vpop.f32.mrf.mxu0
        %v9829 = vadd.f32 0.0, %v9828
        %v9830 = vpop.f32.mrf.mxu0
        %v9831 = vadd.f32 0.0, %v9830
        %9832 = vmatmul.bf16.gmra.mxu0 %v9769
        %v9833 = vpop.f32.mrf.mxu0
        %v9834 = vadd.f32 0.0, %v9833
        %v9835 = vpop.f32.mrf.mxu0
        %v9836 = vadd.f32 0.0, %v9835
        %9837 = vmatmul.bf16.gmra.mxu0 %v9772
        %v9838 = vpop.f32.mrf.mxu0
        %v9839 = vadd.f32 0.0, %v9838
        %v9840 = vpop.f32.mrf.mxu0
        %v9841 = vadd.f32 0.0, %v9840
        %9842 = vmatmul.bf16.gmra.mxu0 %v9775
        %v9843 = vpop.f32.mrf.mxu0
        %v9844 = vadd.f32 0.0, %v9843
        %v9845 = vpop.f32.mrf.mxu0
        %v9846 = vadd.f32 0.0, %v9845
        %9847 = vmatmul.bf16.gmra.mxu0 %v9778
        %v9848 = vpop.f32.mrf.mxu0
        %v9849 = vadd.f32 0.0, %v9848
        %v9850 = vpop.f32.mrf.mxu0
        %v9851 = vadd.f32 0.0, %v9850
        %9852 = vmatmul.bf16.gmra.mxu0 %v9781
        %v9853 = vpop.f32.mrf.mxu0
        %v9854 = vadd.f32 0.0, %v9853
        %v9855 = vpop.f32.mrf.mxu0
        %v9856 = vadd.f32 0.0, %v9855
        %9857 = vmatmul.bf16.gmra.mxu0 %v9784
        %v9858 = vpop.f32.mrf.mxu0
        %v9859 = vadd.f32 0.0, %v9858
        %v9860 = vpop.f32.mrf.mxu0
        %v9861 = vadd.f32 0.0, %v9860
        %9862 = vmatmul.bf16.gmra.mxu0 %v9787
        %v9863 = vpop.f32.mrf.mxu0
        %v9864 = vadd.f32 0.0, %v9863
        %v9865 = vpop.f32.mrf.mxu0
        %v9866 = vadd.f32 0.0, %v9865
        %9867 = vmatmul.bf16.gmra.mxu0 %v9790
        %v9868 = vpop.f32.mrf.mxu0
        %v9869 = vadd.f32 0.0, %v9868
        %v9870 = vpop.f32.mrf.mxu0
        %v9871 = vadd.f32 0.0, %v9870
        %9872 = vmatmul.bf16.gmra.mxu0 %v9793
        %v9873 = vpop.f32.mrf.mxu0
        %v9874 = vadd.f32 0.0, %v9873
        %v9875 = vpop.f32.mrf.mxu0
        %v9876 = vadd.f32 0.0, %v9875
        %9877 = vmatmul.bf16.gmra.mxu0 %v9796
        %v9878 = vpop.f32.mrf.mxu0
        %v9879 = vadd.f32 0.0, %v9878
        %v9880 = vpop.f32.mrf.mxu0
        %v9881 = vadd.f32 0.0, %v9880
        %9882 = vmatmul.bf16.gmra.mxu0 %v9799
        %v9883 = vpop.f32.mrf.mxu0
        %v9884 = vadd.f32 0.0, %v9883
        %v9885 = vpop.f32.mrf.mxu0
        %v9886 = vadd.f32 0.0, %v9885
        %9887 = vmatmul.bf16.gmra.mxu0 %v9802
        %v9888 = vpop.f32.mrf.mxu0
        %v9889 = vadd.f32 0.0, %v9888
        %v9890 = vpop.f32.mrf.mxu0
        %v9891 = vadd.f32 0.0, %v9890
        %9892 = vdwg.mxu0
        %v9893 = vld [vmem:[%s248] sm:$0xff]
        %v9894 = vld [vmem:[%s248 + $0x8] sm:$0xff]
        %v9895 = vld [vmem:[%s248 + $0x10] sm:$0xff]
        %v9896 = vld [vmem:[%s248 + $0x18] sm:$0xff]
        %v9897 = vld [vmem:[%s248 + $0x20] sm:$0xff]
        %v9898 = vld [vmem:[%s248 + $0x28] sm:$0xff]
        %v9899 = vld [vmem:[%s248 + $0x30] sm:$0xff]
        %v9900 = vld [vmem:[%s248 + $0x38] sm:$0xff]
        %v9901 = vld [vmem:[%s248 + $0x40] sm:$0xff]
        %v9902 = vld [vmem:[%s248 + $0x48] sm:$0xff]
        %v9903 = vld [vmem:[%s248 + $0x50] sm:$0xff]
        %v9904 = vld [vmem:[%s248 + $0x58] sm:$0xff]
        %v9905 = vld [vmem:[%s248 + $0x60] sm:$0xff]
        %v9906 = vld [vmem:[%s248 + $0x68] sm:$0xff]
        %v9907 = vld [vmem:[%s248 + $0x70] sm:$0xff]
        %v9908 = vld [vmem:[%s248 + $0x78] sm:$0xff]
        %v9909 = vld [vmem:[%s248 + $0x80] sm:$0xff]
        %v9910 = vld [vmem:[%s248 + $0x88] sm:$0xff]
        %v9911 = vld [vmem:[%s248 + $0x90] sm:$0xff]
        %v9912 = vld [vmem:[%s248 + $0x98] sm:$0xff]
        %v9913 = vld [vmem:[%s248 + $0xa0] sm:$0xff]
        %v9914 = vld [vmem:[%s248 + $0xa8] sm:$0xff]
        %v9915 = vld [vmem:[%s248 + $0xb0] sm:$0xff]
        %v9916 = vld [vmem:[%s248 + $0xb8] sm:$0xff]
        %v9917 = vld [vmem:[%s248 + $0xc0] sm:$0xff]
        %v9918 = vld [vmem:[%s248 + $0xc8] sm:$0xff]
        %v9919 = vld [vmem:[%s248 + $0xd0] sm:$0xff]
        %v9920 = vld [vmem:[%s248 + $0xd8] sm:$0xff]
        %v9921 = vld [vmem:[%s248 + $0xe0] sm:$0xff]
        %v9922 = vld [vmem:[%s248 + $0xe8] sm:$0xff]
        %v9923 = vld [vmem:[%s248 + $0xf0] sm:$0xff]
        %v9924 = vld [vmem:[%s248 + $0xf8] sm:$0xff]
        %v9925 = vadd.f32 %v9893, %v9814
        %v9926 = vadd.f32 %v9894, %v9816
        %v9927 = vadd.f32 %v9895, %v9819
        %v9928 = vadd.f32 %v9896, %v9821
        %v9929 = vadd.f32 %v9897, %v9824
        %v9930 = vadd.f32 %v9898, %v9826
        %v9931 = vadd.f32 %v9899, %v9829
        %v9932 = vadd.f32 %v9900, %v9831
        %v9933 = vadd.f32 %v9901, %v9834
        %v9934 = vadd.f32 %v9902, %v9836
        %v9935 = vadd.f32 %v9903, %v9839
        %v9936 = vadd.f32 %v9904, %v9841
        %v9937 = vadd.f32 %v9905, %v9844
        %v9938 = vadd.f32 %v9906, %v9846
        %v9939 = vadd.f32 %v9907, %v9849
        %v9940 = vadd.f32 %v9908, %v9851
        %v9941 = vadd.f32 %v9909, %v9854
        %v9942 = vadd.f32 %v9910, %v9856
        %v9943 = vadd.f32 %v9911, %v9859
        %v9944 = vadd.f32 %v9912, %v9861
        %v9945 = vadd.f32 %v9913, %v9864
        %v9946 = vadd.f32 %v9914, %v9866
        %v9947 = vadd.f32 %v9915, %v9869
        %v9948 = vadd.f32 %v9916, %v9871
        %v9949 = vadd.f32 %v9917, %v9874
        %v9950 = vadd.f32 %v9918, %v9876
        %v9951 = vadd.f32 %v9919, %v9879
        %v9952 = vadd.f32 %v9920, %v9881
        %v9953 = vadd.f32 %v9921, %v9884
        %v9954 = vadd.f32 %v9922, %v9886
        %v9955 = vadd.f32 %v9923, %v9889
        %v9956 = vadd.f32 %v9924, %v9891
        %9957 = vst [vmem:[%s248] sm:$0xff] %v9925
        %9958 = vst [vmem:[%s248 + $0x8] sm:$0xff] %v9926
        %9959 = vst [vmem:[%s248 + $0x10] sm:$0xff] %v9927
        %9960 = vst [vmem:[%s248 + $0x18] sm:$0xff] %v9928
        %9961 = vst [vmem:[%s248 + $0x20] sm:$0xff] %v9929
        %9962 = vst [vmem:[%s248 + $0x28] sm:$0xff] %v9930
        %9963 = vst [vmem:[%s248 + $0x30] sm:$0xff] %v9931
        %9964 = vst [vmem:[%s248 + $0x38] sm:$0xff] %v9932
        %9965 = vst [vmem:[%s248 + $0x40] sm:$0xff] %v9933
        %9966 = vst [vmem:[%s248 + $0x48] sm:$0xff] %v9934
        %9967 = vst [vmem:[%s248 + $0x50] sm:$0xff] %v9935
        %9968 = vst [vmem:[%s248 + $0x58] sm:$0xff] %v9936
        %9969 = vst [vmem:[%s248 + $0x60] sm:$0xff] %v9937
        %9970 = vst [vmem:[%s248 + $0x68] sm:$0xff] %v9938
        %9971 = vst [vmem:[%s248 + $0x70] sm:$0xff] %v9939
        %9972 = vst [vmem:[%s248 + $0x78] sm:$0xff] %v9940
        %9973 = vst [vmem:[%s248 + $0x80] sm:$0xff] %v9941
        %9974 = vst [vmem:[%s248 + $0x88] sm:$0xff] %v9942
        %9975 = vst [vmem:[%s248 + $0x90] sm:$0xff] %v9943
        %9976 = vst [vmem:[%s248 + $0x98] sm:$0xff] %v9944
        %9977 = vst [vmem:[%s248 + $0xa0] sm:$0xff] %v9945
        %9978 = vst [vmem:[%s248 + $0xa8] sm:$0xff] %v9946
        %9979 = vst [vmem:[%s248 + $0xb0] sm:$0xff] %v9947
        %9980 = vst [vmem:[%s248 + $0xb8] sm:$0xff] %v9948
        %9981 = vst [vmem:[%s248 + $0xc0] sm:$0xff] %v9949
        %9982 = vst [vmem:[%s248 + $0xc8] sm:$0xff] %v9950
        %9983 = vst [vmem:[%s248 + $0xd0] sm:$0xff] %v9951
        %9984 = vst [vmem:[%s248 + $0xd8] sm:$0xff] %v9952
        %9985 = vst [vmem:[%s248 + $0xe0] sm:$0xff] %v9953
        %9986 = vst [vmem:[%s248 + $0xe8] sm:$0xff] %v9954
        %9987 = vst [vmem:[%s248 + $0xf0] sm:$0xff] %v9955
        %9988 = vst [vmem:[%s248 + $0xf8] sm:$0xff] %v9956
        %s9989 = sand.u32 %s142, 1
        %s9990 = scalar_lea.sflag [#allocation4], %s9989
        %s9991 = sand.u32 %s142, 1
        %s9992 = smul.addr %s9991, 256
        %s9993 = scalar_lea.vmem [#allocation3], %s9992
        %s9994 = sand.u32 %s168, 1
        %s9995 = scalar_lea.sflag [#allocation6], %s9994
        %s9996 = sand.u32 %s168, 1
        %s9997 = smul.addr %s9996, 1024
        %s9998 = scalar_lea.vmem [#allocation5], %s9997
        // Predicated region
        $region41: #{_lambda_.1} parent=39 // pred_check
          %p9999 = pneg %p152
        $region42: #{_lambda_.1} parent=39 // pred_check_branch
          %10001 = sbr.rel (%p9999) target = $region44
        $region43: #{_lambda_.1} parent=39 // pred_region
          %10003 = vsyncadd %s9990, 0
          %s10004 = smul.addr %s24, 32
          %s10005 = smul.addr %s10004, 8
          %s10006 = scalar_lea.hbm %s5, %s10005
          %s10007 = sshll.u32 %s9993, 4
          %s10008 = int_to_ptr.vmem [resolvable:$true] %s10007
          %s10009 = sshll.u32 %s10006, 4
          %s10010 = int_to_ptr.hbm [resolvable:$true] %s10009
          %10015 = dma.vmem_to_hbm [thread:$0]  %s10008, 4096, %s10010, %s9990, 128, 128, 8
        $region44: #{_lambda_.1} parent=39 // pred_fallthru
          _
        // Predicated region
        $region45: #{_lambda_.1} parent=39 // pred_check
          %p10016 = pneg %p178
        $region46: #{_lambda_.1} parent=39 // pred_check_branch
          %10018 = sbr.rel (%p10016) target = $region48
        $region47: #{_lambda_.1} parent=39 // pred_region
          %10020 = vsyncadd %s9995, 0
          %s10021 = smul.addr %s24, 256
          %s10022 = smul.addr %s10021, 4
          %s10023 = scalar_lea.hbm %s6, %s10022
          %s10024 = sshll.u32 %s9998, 4
          %s10025 = int_to_ptr.vmem [resolvable:$true] %s10024
          %s10026 = sshll.u32 %s10023, 4
          %s10027 = int_to_ptr.hbm [resolvable:$true] %s10026
          %10032 = dma.vmem_to_hbm [thread:$0]  %s10025, 16384, %s10027, %s9995, 128, 128, 8
        $region48: #{_lambda_.1} parent=39 // pred_fallthru
          _
      $region40: #{_lambda_.1} parent=5 // pred_fallthru
        _
      %p10033 = scmp.le.s32.totalorder 2, %s19
      // Predicated region
      $region49: #{_lambda_.1} parent=5 // pred_check
        %p10034 = pneg %p10033
      $region50: #{_lambda_.1} parent=5 // pred_check_branch
        %10036 = sbr.rel (%p10034) target = $region52
      $region51: #{_lambda_.1} parent=5 // pred_region
        %s10037 = ssub.s32 %s19, 2
        // Predicated region
        $region53: #{_lambda_.1} parent=51 // pred_check
          %p10038 = pneg %p158
        $region54: #{_lambda_.1} parent=51 // pred_check_branch
          %10040 = sbr.rel (%p10038) target = $region56
        $region55: #{_lambda_.1} parent=51 // pred_region
          %s10041 = sand.u32 %s143, 1
          %s10042 = scalar_lea.sflag [#allocation4], %s10041
          %s10043 = sand.u32 %s143, 1
          %s10044 = smul.addr %s10043, 256
          %s10045 = scalar_lea.vmem [#allocation3], %s10044
          %10047 = dma.done %s10042, 4096
        $region56: #{_lambda_.1} parent=51 // pred_fallthru
          _
        // Predicated region
        $region57: #{_lambda_.1} parent=51 // pred_check
          %p10048 = pneg %p184
        $region58: #{_lambda_.1} parent=51 // pred_check_branch
          %10050 = sbr.rel (%p10048) target = $region60
        $region59: #{_lambda_.1} parent=51 // pred_region
          %s10051 = sand.u32 %s169, 1
          %s10052 = scalar_lea.sflag [#allocation6], %s10051
          %s10053 = sand.u32 %s169, 1
          %s10054 = smul.addr %s10053, 1024
          %s10055 = scalar_lea.vmem [#allocation5], %s10054
          %10057 = dma.done %s10052, 16384
        $region60: #{_lambda_.1} parent=51 // pred_fallthru
          _
      $region52: #{_lambda_.1} parent=5 // pred_fallthru
        _
    $region6: #{_lambda_.1} parent=1 // loop_footer
      %s23 = sadd.s32 1, %s19
    $region7: #{_lambda_.1} parent=1 // loop_footer_branch
      %18 = sbr.rel target = $region3
    $region8: #{_lambda_.1} parent=1 // loop_exit
      _
    %10058 = vsyncpa [#allocation4], 1
    %s10059 = scalar_lea.sflag [#allocation4], 1
    %10060 = vsyncpa %s10059, 1
    %10061 = vsyncpa [#allocation6], 1
    %s10062 = scalar_lea.sflag [#allocation6], 1
    %10063 = vsyncpa %s10062, 1

</llo_original>
